<compile_context>
chip_gen: v7x
topology: tpu7x:2x2x1
jax: 0.10.0
libtpu: 0.0.40
codegen_flags: <defaults>
</compile_context>

<pallas_src>
import functools

import jax
import jax.numpy as jnp
from jax.experimental import pallas as pl
from jax.experimental.pallas import tpu as pltpu


def _window_attn_kernel(*refs, num_heads, head_dim, bw, n_tok, compute_dtype,
                        masked):
    if masked:
        (x_ref, wq_ref, wk_ref, wv_ref, bq_ref, bk_ref, bv_ref,
         wp_ref, bp_ref, mask_ref, o_ref, acc_ref) = refs
    else:
        (x_ref, wq_ref, wk_ref, wv_ref, bq_ref, bk_ref, bv_ref,
         wp_ref, bp_ref, o_ref, acc_ref) = refs
        mask_ref = None

    c = num_heads * head_dim
    rows = bw * n_tok

    # Flatten the Bw windows into one (Bw*N, C) slab for the projections (MXU).
    xf = x_ref[...].reshape(rows, c).astype(compute_dtype)

    q = jnp.dot(xf, wq_ref[...], preferred_element_type=jnp.float32) + bq_ref[...]
    k = jnp.dot(xf, wk_ref[...], preferred_element_type=jnp.float32) + bk_ref[...]
    v = jnp.dot(xf, wv_ref[...], preferred_element_type=jnp.float32) + bv_ref[...]

    q = q.reshape(bw, n_tok, c)
    k = k.reshape(bw, n_tok, c)
    v = v.reshape(bw, n_tok, c)

    for h in range(num_heads):
        lo = h * head_dim
        hi = lo + head_dim
        qh = q[:, :, lo:hi].astype(compute_dtype)     # (Bw, N, hd)
        kh = k[:, :, lo:hi].astype(compute_dtype)
        vh = v[:, :, lo:hi].astype(compute_dtype)

        # Scale already folded into Wq / bq in the wrapper.
        s = jnp.einsum('bqd,bkd->bqk', qh, kh,
                       preferred_element_type=jnp.float32)        # (Bw, N, N)
        if masked:
            s = s + mask_ref[...][None, :, :]                     # mask padded keys
        s = s - jnp.max(s, axis=-1, keepdims=True)
        p = jnp.exp(s)
        denom = jnp.sum(p, axis=-1, keepdims=True)
        p = p * pl.reciprocal(denom, approx=True)

        oh = jnp.einsum('bqk,bkd->bqd', p.astype(compute_dtype), vh,
                        preferred_element_type=jnp.float32)       # (Bw, N, hd)
        acc_ref[:, :, lo:hi] = oh                                  # no concat

    out = acc_ref[...].reshape(rows, c).astype(compute_dtype)
    y = jnp.dot(out, wp_ref[...], preferred_element_type=jnp.float32) + bp_ref[...]
    o_ref[...] = y.reshape(bw, n_tok, c).astype(o_ref.dtype)


def _pick_block_windows(bn, n_pad, c, in_itemsize, budget_bytes):
    """Largest divisor of Bn whose VMEM footprint fits the budget."""
    cap = bn if bn < 2 else bn // 2      # keep >= 2 grid steps (v7x: 2 TCs)
    best = 1
    for cand in range(1, bn + 1):
        if bn % cand or cand > cap:
            continue
        est = (2 * 2 * cand * n_pad * c * in_itemsize   # double-buffered x + out
               + cand * n_pad * c * 4                   # f32 head-output scratch
               + 6 * cand * n_pad * c * 4               # q/k/v + temporaries (f32)
               + 3 * cand * n_pad * n_pad * 4)          # per-head scores/probs (f32)
        if est <= budget_bytes:
            best = cand
    return best


def window_attention_3d(x, w_qkv, b_qkv, w_proj, b_proj, *, num_heads,
                        compute_dtype=jnp.float32, block_windows=None,
                        vmem_budget_bytes=24 * 1024 * 1024):
    """x: (Bn, N, C); w_qkv: (3C, C); b_qkv: (3C,); w_proj: (C, C); b_proj: (C,)."""
    x = jnp.asarray(x)
    bn, n, c = x.shape
    head_dim = c // num_heads
    scale = head_dim ** (-0.5)

    # Pad the token dim to a multiple of 8 (full sublanes); mask padded keys.
    n_pad = max(8, ((n + 7) // 8) * 8)
    masked = n_pad != n
    key_mask = None
    if masked:
        x = jnp.pad(x, ((0, 0), (0, n_pad - n), (0, 0)))
        key_mask = jnp.concatenate(
            [jnp.zeros((1, n), jnp.float32),
             jnp.full((1, n_pad - n), -1e30, jnp.float32)], axis=1)

    w_qkv = jnp.asarray(w_qkv, jnp.float32)
    b_qkv = jnp.asarray(b_qkv, jnp.float32)
    w_proj = jnp.asarray(w_proj, jnp.float32)
    b_proj = jnp.asarray(b_proj, jnp.float32)

    # nn.Linear stores W as (out, in): split into q/k/v, pre-transpose so the
    # kernel does x @ W, and fold the softmax scale into the Q weights/bias.
    wq = (w_qkv[0 * c:1 * c].T * scale).astype(compute_dtype)   # (C, C)
    wk = w_qkv[1 * c:2 * c].T.astype(compute_dtype)
    wv = w_qkv[2 * c:3 * c].T.astype(compute_dtype)
    bq = (b_qkv[0 * c:1 * c] * scale).reshape(1, c)
    bk = b_qkv[1 * c:2 * c].reshape(1, c)
    bv = b_qkv[2 * c:3 * c].reshape(1, c)
    wp = w_proj.T.astype(compute_dtype)                          # (C, C)
    bp = b_proj.reshape(1, c)

    if block_windows is None:
        block_windows = _pick_block_windows(bn, n_pad, c, x.dtype.itemsize,
                                            vmem_budget_bytes)
    bw = block_windows
    assert bn % bw == 0, "block_windows must divide the number of windows"

    kernel = functools.partial(_window_attn_kernel,
                               num_heads=num_heads, head_dim=head_dim,
                               bw=bw, n_tok=n_pad,
                               compute_dtype=compute_dtype, masked=masked)

    def const2d(shape):
        return pl.BlockSpec(shape, lambda b: (0, 0))

    in_specs = [
        pl.BlockSpec((bw, n_pad, c), lambda b: (b, 0, 0)),   # x: Bw windows
        const2d((c, c)),                                     # Wq^T * scale
        const2d((c, c)),                                     # Wk^T
        const2d((c, c)),                                     # Wv^T
        const2d((1, c)),                                     # bq * scale
        const2d((1, c)),                                     # bk
        const2d((1, c)),                                     # bv
        const2d((c, c)),                                     # Wproj^T
        const2d((1, c)),                                     # bproj
    ]
    inputs = [x, wq, wk, wv, bq, bk, bv, wp, bp]
    if masked:
        in_specs.append(const2d((1, n_pad)))                 # additive key mask
        inputs.append(key_mask)

    out = pl.pallas_call(
        kernel,
        out_shape=jax.ShapeDtypeStruct((bn, n_pad, c), x.dtype),
        grid_spec=pltpu.PrefetchScalarGridSpec(
            num_scalar_prefetch=0,
            grid=(bn // bw,),
            in_specs=in_specs,
            out_specs=pl.BlockSpec((bw, n_pad, c), lambda b: (b, 0, 0)),
            scratch_shapes=[pltpu.VMEM((bw, n_pad, c), jnp.float32)],
        ),
        compiler_params=pltpu.CompilerParams(
            dimension_semantics=("parallel",)),
    )(*inputs)

    if masked:
        out = out[:, :n, :]
    return out


def _reference(x, w_qkv, b_qkv, w_proj, b_proj, num_heads):
    """Pure-JAX reference mirroring the PyTorch forward (eval mode)."""
    bn, n, c = x.shape
    hd = c // num_heads
    scale = hd ** (-0.5)
    qkv = x @ w_qkv.T + b_qkv                       # (Bn, N, 3C)
    qkv = qkv.reshape(bn, n, 3, num_heads, hd)
    q, k, v = qkv[:, :, 0], qkv[:, :, 1], qkv[:, :, 2]
    q = jnp.transpose(q, (0, 2, 1, 3))
    k = jnp.transpose(k, (0, 2, 1, 3))
    v = jnp.transpose(v, (0, 2, 1, 3))
    attn = jnp.einsum("bhqd,bhkd->bhqk", q, k) * scale
    attn = jax.nn.softmax(attn, axis=-1)
    out = jnp.einsum("bhqk,bhkd->bhqd", attn, v)
    out = jnp.transpose(out, (0, 2, 1, 3)).reshape(bn, n, c)
    return out @ w_proj.T + b_proj


if __name__ == "__main__":
    # Small shapes consistent with the module: Bn windows, N tokens, C channels.
    Bn, N, C = 8, 64, 32
    num_heads = 4

    key = jax.random.PRNGKey(0)
    kx, kw1, kb1, kw2, kb2, kx2 = jax.random.split(key, 6)

    x = jax.random.normal(kx, (Bn, N, C), dtype=jnp.float32)
    w_qkv = jax.random.normal(kw1, (3 * C, C), dtype=jnp.float32) * 0.02
    b_qkv = jax.random.normal(kb1, (3 * C,), dtype=jnp.float32) * 0.02
    w_proj = jax.random.normal(kw2, (C, C), dtype=jnp.float32) * 0.02
    b_proj = jax.random.normal(kb2, (C,), dtype=jnp.float32) * 0.02

    ref = _reference(x, w_qkv, b_qkv, w_proj, b_proj, num_heads)

    # f32 compute: tight parity with the module's math.
    out = window_attention_3d(x, w_qkv, b_qkv, w_proj, b_proj,
                              num_heads=num_heads,
                              compute_dtype=jnp.float32)
    out = jax.block_until_ready(out)
    assert out.shape == (Bn, N, C)
    assert jnp.allclose(out, ref, atol=1e-3, rtol=1e-3), "f32 mismatch vs reference"

    # bf16 MXU inputs (v6e/v7x path): looser tolerance, same structure.
    out_bf16 = window_attention_3d(x, w_qkv, b_qkv, w_proj, b_proj,
                                   num_heads=num_heads,
                                   compute_dtype=jnp.bfloat16)
    out_bf16 = jax.block_until_ready(out_bf16)
    assert jnp.allclose(out_bf16, ref, atol=3e-2, rtol=3e-2), "bf16 mismatch vs reference"

    # Ragged token count (exercises the N-padding + key-mask path).
    N2 = 52
    x2 = jax.random.normal(kx2, (Bn, N2, C), dtype=jnp.float32)
    ref2 = _reference(x2, w_qkv, b_qkv, w_proj, b_proj, num_heads)
    out2 = window_attention_3d(x2, w_qkv, b_qkv, w_proj, b_proj,
                               num_heads=num_heads,
                               compute_dtype=jnp.float32)
    out2 = jax.block_until_ready(out2)
    assert out2.shape == (Bn, N2, C)
    assert jnp.allclose(out2, ref2, atol=1e-3, rtol=1e-3), "padded-N mismatch vs reference"

    print("KERNEL_OK")
</pallas_src>

<mosaic_0001>
module attributes {stable_mosaic.version = 11 : i64} {
  func.func @_window_attn_kernel(%arg0: i32, %arg1: memref<4x64x32xf32, #tpu.memory_space<vmem>>, %arg2: memref<32x32xf32, #tpu.memory_space<vmem>>, %arg3: memref<32x32xf32, #tpu.memory_space<vmem>>, %arg4: memref<32x32xf32, #tpu.memory_space<vmem>>, %arg5: memref<1x32xf32, #tpu.memory_space<vmem>>, %arg6: memref<1x32xf32, #tpu.memory_space<vmem>>, %arg7: memref<1x32xf32, #tpu.memory_space<vmem>>, %arg8: memref<32x32xf32, #tpu.memory_space<vmem>>, %arg9: memref<1x32xf32, #tpu.memory_space<vmem>>, %arg10: memref<4x64x32xf32, #tpu.memory_space<vmem>>, %arg11: memref<4x64x32xf32, #tpu.memory_space<vmem>>) attributes {dimension_semantics = [#tpu.dimension_semantics<parallel>], iteration_bounds = array<i64: 2>, scalar_prefetch = 0 : i64, scratch_operands = 1 : i64, tpu.core_type = #tpu.core_type<tc>, window_params = [{transform_indices = @transform_0, window_bounds = array<i64: 4, 64, 32>}, {pipeline_mode = #tpu.pipeline_mode<synchronous>, transform_indices = @transform_1, window_bounds = array<i64: 32, 32>}, {pipeline_mode = #tpu.pipeline_mode<synchronous>, transform_indices = @transform_2, window_bounds = array<i64: 32, 32>}, {pipeline_mode = #tpu.pipeline_mode<synchronous>, transform_indices = @transform_3, window_bounds = array<i64: 32, 32>}, {pipeline_mode = #tpu.pipeline_mode<synchronous>, transform_indices = @transform_4, window_bounds = array<i64: 1, 32>}, {pipeline_mode = #tpu.pipeline_mode<synchronous>, transform_indices = @transform_5, window_bounds = array<i64: 1, 32>}, {pipeline_mode = #tpu.pipeline_mode<synchronous>, transform_indices = @transform_6, window_bounds = array<i64: 1, 32>}, {pipeline_mode = #tpu.pipeline_mode<synchronous>, transform_indices = @transform_7, window_bounds = array<i64: 32, 32>}, {pipeline_mode = #tpu.pipeline_mode<synchronous>, transform_indices = @transform_8, window_bounds = array<i64: 1, 32>}, {transform_indices = @transform_9, window_bounds = array<i64: 4, 64, 32>}]} {
    %c0 = arith.constant 0 : index
    %c0_0 = arith.constant 0 : index
    %c0_1 = arith.constant 0 : index
    %0 = vector.load %arg1[%c0, %c0_0, %c0_1] : memref<4x64x32xf32, #tpu.memory_space<vmem>>, vector<4x64x32xf32>
    %1 = vector.shape_cast %0 : vector<4x64x32xf32> to vector<256x32xf32>
    %c0_2 = arith.constant 0 : index
    %c0_3 = arith.constant 0 : index
    %2 = vector.load %arg2[%c0_2, %c0_3] : memref<32x32xf32, #tpu.memory_space<vmem>>, vector<32x32xf32>
    %cst = arith.constant dense<0.000000e+00> : vector<256x32xf32>
    %3 = tpu.matmul %1, %2, %cst {dimension_numbers = #tpu.dot_dimension_numbers<[1], [0], [0], [1], [0, 0, 1, 1], [], []>} : vector<256x32xf32>, vector<32x32xf32>, vector<256x32xf32> -> vector<256x32xf32>
    %c0_4 = arith.constant 0 : index
    %c0_5 = arith.constant 0 : index
    %4 = vector.load %arg5[%c0_4, %c0_5] : memref<1x32xf32, #tpu.memory_space<vmem>>, vector<1x32xf32>
    %5 = vector.broadcast %4 : vector<1x32xf32> to vector<256x32xf32>
    %6 = arith.addf %3, %5 : vector<256x32xf32>
    %c0_6 = arith.constant 0 : index
    %c0_7 = arith.constant 0 : index
    %7 = vector.load %arg3[%c0_6, %c0_7] : memref<32x32xf32, #tpu.memory_space<vmem>>, vector<32x32xf32>
    %cst_8 = arith.constant dense<0.000000e+00> : vector<256x32xf32>
    %8 = tpu.matmul %1, %7, %cst_8 {dimension_numbers = #tpu.dot_dimension_numbers<[1], [0], [0], [1], [0, 0, 1, 1], [], []>} : vector<256x32xf32>, vector<32x32xf32>, vector<256x32xf32> -> vector<256x32xf32>
    %c0_9 = arith.constant 0 : index
    %c0_10 = arith.constant 0 : index
    %9 = vector.load %arg6[%c0_9, %c0_10] : memref<1x32xf32, #tpu.memory_space<vmem>>, vector<1x32xf32>
    %10 = vector.broadcast %9 : vector<1x32xf32> to vector<256x32xf32>
    %11 = arith.addf %8, %10 : vector<256x32xf32>
    %c0_11 = arith.constant 0 : index
    %c0_12 = arith.constant 0 : index
    %12 = vector.load %arg4[%c0_11, %c0_12] : memref<32x32xf32, #tpu.memory_space<vmem>>, vector<32x32xf32>
    %cst_13 = arith.constant dense<0.000000e+00> : vector<256x32xf32>
    %13 = tpu.matmul %1, %12, %cst_13 {dimension_numbers = #tpu.dot_dimension_numbers<[1], [0], [0], [1], [0, 0, 1, 1], [], []>} : vector<256x32xf32>, vector<32x32xf32>, vector<256x32xf32> -> vector<256x32xf32>
    %c0_14 = arith.constant 0 : index
    %c0_15 = arith.constant 0 : index
    %14 = vector.load %arg7[%c0_14, %c0_15] : memref<1x32xf32, #tpu.memory_space<vmem>>, vector<1x32xf32>
    %15 = vector.broadcast %14 : vector<1x32xf32> to vector<256x32xf32>
    %16 = arith.addf %13, %15 : vector<256x32xf32>
    %17 = vector.shape_cast %6 : vector<256x32xf32> to vector<4x64x32xf32>
    %18 = vector.shape_cast %11 : vector<256x32xf32> to vector<4x64x32xf32>
    %19 = vector.shape_cast %16 : vector<256x32xf32> to vector<4x64x32xf32>
    %20 = vector.extract_strided_slice %17 {offsets = [0, 0, 0], sizes = [4, 64, 8], strides = [1, 1, 1]} : vector<4x64x32xf32> to vector<4x64x8xf32>
    %21 = vector.extract_strided_slice %18 {offsets = [0, 0, 0], sizes = [4, 64, 8], strides = [1, 1, 1]} : vector<4x64x32xf32> to vector<4x64x8xf32>
    %22 = vector.extract_strided_slice %19 {offsets = [0, 0, 0], sizes = [4, 64, 8], strides = [1, 1, 1]} : vector<4x64x32xf32> to vector<4x64x8xf32>
    "tpu.trace_start"() <{level = 10 : i32, message = "bqd,bkd->bqk"}> : () -> ()
    %cst_16 = arith.constant dense<0.000000e+00> : vector<4x64x64xf32>
    %23 = tpu.matmul %20, %21, %cst_16 {dimension_numbers = #tpu.dot_dimension_numbers<[2], [2], [1], [1], [0, 0, 0, 1, 1, 1], [0], [0]>} : vector<4x64x8xf32>, vector<4x64x8xf32>, vector<4x64x64xf32> -> vector<4x64x64xf32>
    "tpu.trace_stop"() : () -> ()
    %cst_17 = arith.constant dense<0xFF800000> : vector<4x64xf32>
    %24 = vector.multi_reduction <maximumf>, %23, %cst_17 [2] : vector<4x64x64xf32> to vector<4x64xf32>
    %25 = vector.shape_cast %24 : vector<4x64xf32> to vector<4x64x1xf32>
    %26 = vector.broadcast %25 : vector<4x64x1xf32> to vector<4x64x64xf32>
    %27 = arith.subf %23, %26 : vector<4x64x64xf32>
    %28 = math.exp %27 : vector<4x64x64xf32>
    %cst_18 = arith.constant dense<0.000000e+00> : vector<4x64xf32>
    %29 = vector.multi_reduction <add>, %28, %cst_18 [2] : vector<4x64x64xf32> to vector<4x64xf32>
    %30 = vector.shape_cast %29 : vector<4x64xf32> to vector<4x64x1xf32>
    %31 = tpu.reciprocal %30 {approx = true} : vector<4x64x1xf32> -> vector<4x64x1xf32>
    %32 = vector.broadcast %31 : vector<4x64x1xf32> to vector<4x64x64xf32>
    %33 = arith.mulf %28, %32 : vector<4x64x64xf32>
    "tpu.trace_start"() <{level = 10 : i32, message = "bqk,bkd->bqd"}> : () -> ()
    %cst_19 = arith.constant dense<0.000000e+00> : vector<4x64x8xf32>
    %34 = tpu.matmul %33, %22, %cst_19 {dimension_numbers = #tpu.dot_dimension_numbers<[2], [1], [1], [2], [0, 0, 0, 1, 1, 2], [0], [0]>} : vector<4x64x64xf32>, vector<4x64x8xf32>, vector<4x64x8xf32> -> vector<4x64x8xf32>
    "tpu.trace_stop"() : () -> ()
    %c0_20 = arith.constant 0 : index
    %c0_21 = arith.constant 0 : index
    %c0_22 = arith.constant 0 : index
    %35 = vector.load %arg11[%c0_20, %c0_21, %c0_22] : memref<4x64x32xf32, #tpu.memory_space<vmem>>, vector<4x64x8xf32>
    tpu.vector_store %arg11[%c0_20, %c0_21, %c0_22], %34 {strides = array<i32>} : memref<4x64x32xf32, #tpu.memory_space<vmem>>, vector<4x64x8xf32>,
    %36 = vector.extract_strided_slice %17 {offsets = [0, 0, 8], sizes = [4, 64, 8], strides = [1, 1, 1]} : vector<4x64x32xf32> to vector<4x64x8xf32>
    %37 = vector.extract_strided_slice %18 {offsets = [0, 0, 8], sizes = [4, 64, 8], strides = [1, 1, 1]} : vector<4x64x32xf32> to vector<4x64x8xf32>
    %38 = vector.extract_strided_slice %19 {offsets = [0, 0, 8], sizes = [4, 64, 8], strides = [1, 1, 1]} : vector<4x64x32xf32> to vector<4x64x8xf32>
    "tpu.trace_start"() <{level = 10 : i32, message = "bqd,bkd->bqk"}> : () -> ()
    %cst_23 = arith.constant dense<0.000000e+00> : vector<4x64x64xf32>
    %39 = tpu.matmul %36, %37, %cst_23 {dimension_numbers = #tpu.dot_dimension_numbers<[2], [2], [1], [1], [0, 0, 0, 1, 1, 1], [0], [0]>} : vector<4x64x8xf32>, vector<4x64x8xf32>, vector<4x64x64xf32> -> vector<4x64x64xf32>
    "tpu.trace_stop"() : () -> ()
    %cst_24 = arith.constant dense<0xFF800000> : vector<4x64xf32>
    %40 = vector.multi_reduction <maximumf>, %39, %cst_24 [2] : vector<4x64x64xf32> to vector<4x64xf32>
    %41 = vector.shape_cast %40 : vector<4x64xf32> to vector<4x64x1xf32>
    %42 = vector.broadcast %41 : vector<4x64x1xf32> to vector<4x64x64xf32>
    %43 = arith.subf %39, %42 : vector<4x64x64xf32>
    %44 = math.exp %43 : vector<4x64x64xf32>
    %cst_25 = arith.constant dense<0.000000e+00> : vector<4x64xf32>
    %45 = vector.multi_reduction <add>, %44, %cst_25 [2] : vector<4x64x64xf32> to vector<4x64xf32>
    %46 = vector.shape_cast %45 : vector<4x64xf32> to vector<4x64x1xf32>
    %47 = tpu.reciprocal %46 {approx = true} : vector<4x64x1xf32> -> vector<4x64x1xf32>
    %48 = vector.broadcast %47 : vector<4x64x1xf32> to vector<4x64x64xf32>
    %49 = arith.mulf %44, %48 : vector<4x64x64xf32>
    "tpu.trace_start"() <{level = 10 : i32, message = "bqk,bkd->bqd"}> : () -> ()
    %cst_26 = arith.constant dense<0.000000e+00> : vector<4x64x8xf32>
    %50 = tpu.matmul %49, %38, %cst_26 {dimension_numbers = #tpu.dot_dimension_numbers<[2], [1], [1], [2], [0, 0, 0, 1, 1, 2], [0], [0]>} : vector<4x64x64xf32>, vector<4x64x8xf32>, vector<4x64x8xf32> -> vector<4x64x8xf32>
    "tpu.trace_stop"() : () -> ()
    %c0_27 = arith.constant 0 : index
    %c0_28 = arith.constant 0 : index
    %c8 = arith.constant 8 : index
    %51 = vector.load %arg11[%c0_27, %c0_28, %c8] : memref<4x64x32xf32, #tpu.memory_space<vmem>>, vector<4x64x8xf32>
    tpu.vector_store %arg11[%c0_27, %c0_28, %c8], %50 {strides = array<i32>} : memref<4x64x32xf32, #tpu.memory_space<vmem>>, vector<4x64x8xf32>,
    %52 = vector.extract_strided_slice %17 {offsets = [0, 0, 16], sizes = [4, 64, 8], strides = [1, 1, 1]} : vector<4x64x32xf32> to vector<4x64x8xf32>
    %53 = vector.extract_strided_slice %18 {offsets = [0, 0, 16], sizes = [4, 64, 8], strides = [1, 1, 1]} : vector<4x64x32xf32> to vector<4x64x8xf32>
    %54 = vector.extract_strided_slice %19 {offsets = [0, 0, 16], sizes = [4, 64, 8], strides = [1, 1, 1]} : vector<4x64x32xf32> to vector<4x64x8xf32>
    "tpu.trace_start"() <{level = 10 : i32, message = "bqd,bkd->bqk"}> : () -> ()
    %cst_29 = arith.constant dense<0.000000e+00> : vector<4x64x64xf32>
    %55 = tpu.matmul %52, %53, %cst_29 {dimension_numbers = #tpu.dot_dimension_numbers<[2], [2], [1], [1], [0, 0, 0, 1, 1, 1], [0], [0]>} : vector<4x64x8xf32>, vector<4x64x8xf32>, vector<4x64x64xf32> -> vector<4x64x64xf32>
    "tpu.trace_stop"() : () -> ()
    %cst_30 = arith.constant dense<0xFF800000> : vector<4x64xf32>
    %56 = vector.multi_reduction <maximumf>, %55, %cst_30 [2] : vector<4x64x64xf32> to vector<4x64xf32>
    %57 = vector.shape_cast %56 : vector<4x64xf32> to vector<4x64x1xf32>
    %58 = vector.broadcast %57 : vector<4x64x1xf32> to vector<4x64x64xf32>
    %59 = arith.subf %55, %58 : vector<4x64x64xf32>
    %60 = math.exp %59 : vector<4x64x64xf32>
    %cst_31 = arith.constant dense<0.000000e+00> : vector<4x64xf32>
    %61 = vector.multi_reduction <add>, %60, %cst_31 [2] : vector<4x64x64xf32> to vector<4x64xf32>
    %62 = vector.shape_cast %61 : vector<4x64xf32> to vector<4x64x1xf32>
    %63 = tpu.reciprocal %62 {approx = true} : vector<4x64x1xf32> -> vector<4x64x1xf32>
    %64 = vector.broadcast %63 : vector<4x64x1xf32> to vector<4x64x64xf32>
    %65 = arith.mulf %60, %64 : vector<4x64x64xf32>
    "tpu.trace_start"() <{level = 10 : i32, message = "bqk,bkd->bqd"}> : () -> ()
    %cst_32 = arith.constant dense<0.000000e+00> : vector<4x64x8xf32>
    %66 = tpu.matmul %65, %54, %cst_32 {dimension_numbers = #tpu.dot_dimension_numbers<[2], [1], [1], [2], [0, 0, 0, 1, 1, 2], [0], [0]>} : vector<4x64x64xf32>, vector<4x64x8xf32>, vector<4x64x8xf32> -> vector<4x64x8xf32>
    "tpu.trace_stop"() : () -> ()
    %c0_33 = arith.constant 0 : index
    %c0_34 = arith.constant 0 : index
    %c16 = arith.constant 16 : index
    %67 = vector.load %arg11[%c0_33, %c0_34, %c16] : memref<4x64x32xf32, #tpu.memory_space<vmem>>, vector<4x64x8xf32>
    tpu.vector_store %arg11[%c0_33, %c0_34, %c16], %66 {strides = array<i32>} : memref<4x64x32xf32, #tpu.memory_space<vmem>>, vector<4x64x8xf32>,
    %68 = vector.extract_strided_slice %17 {offsets = [0, 0, 24], sizes = [4, 64, 8], strides = [1, 1, 1]} : vector<4x64x32xf32> to vector<4x64x8xf32>
    %69 = vector.extract_strided_slice %18 {offsets = [0, 0, 24], sizes = [4, 64, 8], strides = [1, 1, 1]} : vector<4x64x32xf32> to vector<4x64x8xf32>
    %70 = vector.extract_strided_slice %19 {offsets = [0, 0, 24], sizes = [4, 64, 8], strides = [1, 1, 1]} : vector<4x64x32xf32> to vector<4x64x8xf32>
    "tpu.trace_start"() <{level = 10 : i32, message = "bqd,bkd->bqk"}> : () -> ()
    %cst_35 = arith.constant dense<0.000000e+00> : vector<4x64x64xf32>
    %71 = tpu.matmul %68, %69, %cst_35 {dimension_numbers = #tpu.dot_dimension_numbers<[2], [2], [1], [1], [0, 0, 0, 1, 1, 1], [0], [0]>} : vector<4x64x8xf32>, vector<4x64x8xf32>, vector<4x64x64xf32> -> vector<4x64x64xf32>
    "tpu.trace_stop"() : () -> ()
    %cst_36 = arith.constant dense<0xFF800000> : vector<4x64xf32>
    %72 = vector.multi_reduction <maximumf>, %71, %cst_36 [2] : vector<4x64x64xf32> to vector<4x64xf32>
    %73 = vector.shape_cast %72 : vector<4x64xf32> to vector<4x64x1xf32>
    %74 = vector.broadcast %73 : vector<4x64x1xf32> to vector<4x64x64xf32>
    %75 = arith.subf %71, %74 : vector<4x64x64xf32>
    %76 = math.exp %75 : vector<4x64x64xf32>
    %cst_37 = arith.constant dense<0.000000e+00> : vector<4x64xf32>
    %77 = vector.multi_reduction <add>, %76, %cst_37 [2] : vector<4x64x64xf32> to vector<4x64xf32>
    %78 = vector.shape_cast %77 : vector<4x64xf32> to vector<4x64x1xf32>
    %79 = tpu.reciprocal %78 {approx = true} : vector<4x64x1xf32> -> vector<4x64x1xf32>
    %80 = vector.broadcast %79 : vector<4x64x1xf32> to vector<4x64x64xf32>
    %81 = arith.mulf %76, %80 : vector<4x64x64xf32>
    "tpu.trace_start"() <{level = 10 : i32, message = "bqk,bkd->bqd"}> : () -> ()
    %cst_38 = arith.constant dense<0.000000e+00> : vector<4x64x8xf32>
    %82 = tpu.matmul %81, %70, %cst_38 {dimension_numbers = #tpu.dot_dimension_numbers<[2], [1], [1], [2], [0, 0, 0, 1, 1, 2], [0], [0]>} : vector<4x64x64xf32>, vector<4x64x8xf32>, vector<4x64x8xf32> -> vector<4x64x8xf32>
    "tpu.trace_stop"() : () -> ()
    %c0_39 = arith.constant 0 : index
    %c0_40 = arith.constant 0 : index
    %c24 = arith.constant 24 : index
    %83 = vector.load %arg11[%c0_39, %c0_40, %c24] : memref<4x64x32xf32, #tpu.memory_space<vmem>>, vector<4x64x8xf32>
    tpu.vector_store %arg11[%c0_39, %c0_40, %c24], %82 {strides = array<i32>} : memref<4x64x32xf32, #tpu.memory_space<vmem>>, vector<4x64x8xf32>,
    %c0_41 = arith.constant 0 : index
    %c0_42 = arith.constant 0 : index
    %c0_43 = arith.constant 0 : index
    %84 = vector.load %arg11[%c0_41, %c0_42, %c0_43] : memref<4x64x32xf32, #tpu.memory_space<vmem>>, vector<4x64x32xf32>
    %85 = vector.shape_cast %84 : vector<4x64x32xf32> to vector<256x32xf32>
    %c0_44 = arith.constant 0 : index
    %c0_45 = arith.constant 0 : index
    %86 = vector.load %arg8[%c0_44, %c0_45] : memref<32x32xf32, #tpu.memory_space<vmem>>, vector<32x32xf32>
    %cst_46 = arith.constant dense<0.000000e+00> : vector<256x32xf32>
    %87 = tpu.matmul %85, %86, %cst_46 {dimension_numbers = #tpu.dot_dimension_numbers<[1], [0], [0], [1], [0, 0, 1, 1], [], []>} : vector<256x32xf32>, vector<32x32xf32>, vector<256x32xf32> -> vector<256x32xf32>
    %c0_47 = arith.constant 0 : index
    %c0_48 = arith.constant 0 : index
    %88 = vector.load %arg9[%c0_47, %c0_48] : memref<1x32xf32, #tpu.memory_space<vmem>>, vector<1x32xf32>
    %89 = vector.broadcast %88 : vector<1x32xf32> to vector<256x32xf32>
    %90 = arith.addf %87, %89 : vector<256x32xf32>
    %91 = vector.shape_cast %90 : vector<256x32xf32> to vector<4x64x32xf32>
    %c0_49 = arith.constant 0 : index
    %c0_50 = arith.constant 0 : index
    %c0_51 = arith.constant 0 : index
    %92 = vector.load %arg10[%c0_49, %c0_50, %c0_51] : memref<4x64x32xf32, #tpu.memory_space<vmem>>, vector<4x64x32xf32>
    tpu.vector_store %arg10[%c0_49, %c0_50, %c0_51], %91 {strides = array<i32>} : memref<4x64x32xf32, #tpu.memory_space<vmem>>, vector<4x64x32xf32>,
    return
  }
  func.func @transform_0(%arg0: i32) -> (i32, i32, i32) {
    %c0_i32 = arith.constant 0 : i32
    %c0_i32_0 = arith.constant 0 : i32
    %c0_i32_1 = arith.constant 0 : i32
    return %arg0, %c0_i32, %c0_i32_0 : i32, i32, i32
  }
  func.func @transform_1(%arg0: i32) -> (i32, i32) {
    %c0_i32 = arith.constant 0 : i32
    %c0_i32_0 = arith.constant 0 : i32
    %c0_i32_1 = arith.constant 0 : i32
    return %c0_i32, %c0_i32_0 : i32, i32
  }
  func.func @transform_2(%arg0: i32) -> (i32, i32) {
    %c0_i32 = arith.constant 0 : i32
    %c0_i32_0 = arith.constant 0 : i32
    %c0_i32_1 = arith.constant 0 : i32
    return %c0_i32, %c0_i32_0 : i32, i32
  }
  func.func @transform_3(%arg0: i32) -> (i32, i32) {
    %c0_i32 = arith.constant 0 : i32
    %c0_i32_0 = arith.constant 0 : i32
    %c0_i32_1 = arith.constant 0 : i32
    return %c0_i32, %c0_i32_0 : i32, i32
  }
  func.func @transform_4(%arg0: i32) -> (i32, i32) {
    %c0_i32 = arith.constant 0 : i32
    %c0_i32_0 = arith.constant 0 : i32
    %c0_i32_1 = arith.constant 0 : i32
    return %c0_i32, %c0_i32_0 : i32, i32
  }
  func.func @transform_5(%arg0: i32) -> (i32, i32) {
    %c0_i32 = arith.constant 0 : i32
    %c0_i32_0 = arith.constant 0 : i32
    %c0_i32_1 = arith.constant 0 : i32
    return %c0_i32, %c0_i32_0 : i32, i32
  }
  func.func @transform_6(%arg0: i32) -> (i32, i32) {
    %c0_i32 = arith.constant 0 : i32
    %c0_i32_0 = arith.constant 0 : i32
    %c0_i32_1 = arith.constant 0 : i32
    return %c0_i32, %c0_i32_0 : i32, i32
  }
  func.func @transform_7(%arg0: i32) -> (i32, i32) {
    %c0_i32 = arith.constant 0 : i32
    %c0_i32_0 = arith.constant 0 : i32
    %c0_i32_1 = arith.constant 0 : i32
    return %c0_i32, %c0_i32_0 : i32, i32
  }
  func.func @transform_8(%arg0: i32) -> (i32, i32) {
    %c0_i32 = arith.constant 0 : i32
    %c0_i32_0 = arith.constant 0 : i32
    %c0_i32_1 = arith.constant 0 : i32
    return %c0_i32, %c0_i32_0 : i32, i32
  }
  func.func @transform_9(%arg0: i32) -> (i32, i32, i32) {
    %c0_i32 = arith.constant 0 : i32
    %c0_i32_0 = arith.constant 0 : i32
    %c0_i32_1 = arith.constant 0 : i32
    return %arg0, %c0_i32, %c0_i32_0 : i32, i32, i32
  }
}

</mosaic_0001>

<llo_original>
// kernel: tpu_custom_call.1
$region0: #{tpu_custom_call.1}
  #allocation0 [shape = 'u32[]', space=smem, size = 0x4, offset = 0x4, fixed_abs, tag = 'smem constant byte address 0x4 - core index']
  #allocation1 [shape = 'u32[144,128]{1,0:T(1,128)}', space=vmem, size = 0x12000, scoped, tag = 'internal scratch']
  #allocation2 [shape = 'f32[4,64,32]{2,1,0:T(8,128)}', space=vmem, size = 0x20000, scoped, tag = 'scratch operand']
  %s0 = inlined_call_operand.vmem [shape: f32[8,64,32], index: 0, kind: input, shape index: {}]
  %s1 = inlined_call_operand.vmem [shape: f32[32,32], index: 1, kind: input, shape index: {}]
  %s2 = inlined_call_operand.vmem [shape: f32[32,32], index: 2, kind: input, shape index: {}]
  %s3 = inlined_call_operand.vmem [shape: f32[32,32], index: 3, kind: input, shape index: {}]
  %s4 = inlined_call_operand.vmem [shape: f32[1,32], index: 4, kind: input, shape index: {}]
  %s5 = inlined_call_operand.vmem [shape: f32[1,32], index: 5, kind: input, shape index: {}]
  %s6 = inlined_call_operand.vmem [shape: f32[1,32], index: 6, kind: input, shape index: {}]
  %s7 = inlined_call_operand.vmem [shape: f32[32,32], index: 7, kind: input, shape index: {}]
  %s8 = inlined_call_operand.vmem [shape: f32[1,32], index: 8, kind: input, shape index: {}]
  %s9 = inlined_call_operand.vmem [shape: f32[8,64,32], index: 9, kind: output, shape index: {}]
  %s10 = sld [smem:[#allocation0]]
  $region69: #{tpu_custom_call.1} parent=0
    _
  %s12 = ssub.s32 1, %s10
  %s13 = scalar_select 0, %s12, %s10
  loop: start=0, step=1, limit=4
  $region2: #{tpu_custom_call.1} parent=0 // loop_pre_header
    _
  $region3: #{tpu_custom_call.1} parent=0 // loop_header
    %s15 = sphi 0, %s19
    %p16 = scmp.ge.s32.totalorder %s15, 4
    %s25 = sphi 0, %s27
    %s28 = sphi 0, %s25
    %s29 = sphi 0, %s28
    %s45 = sphi 0, %s29
    %s49 = sphi 0, %s49
    %s51 = sphi 0, %s49
    %s52 = sphi 0, %s51
    %s66 = sphi 0, %s52
    %s70 = sphi 0, %s70
    %s72 = sphi 0, %s70
    %s73 = sphi 0, %s72
    %s87 = sphi 0, %s73
    %s91 = sphi 0, %s91
    %s93 = sphi 0, %s91
    %s94 = sphi 0, %s93
    %s108 = sphi 0, %s94
    %s112 = sphi 0, %s112
    %s114 = sphi 0, %s112
    %s115 = sphi 0, %s114
    %s129 = sphi 0, %s115
    %s133 = sphi 0, %s133
    %s135 = sphi 0, %s133
    %s136 = sphi 0, %s135
    %s150 = sphi 0, %s136
    %s154 = sphi 0, %s154
    %s156 = sphi 0, %s154
    %s157 = sphi 0, %s156
    %s171 = sphi 0, %s157
    %s175 = sphi 0, %s175
    %s177 = sphi 0, %s175
    %s178 = sphi 0, %s177
    %s192 = sphi 0, %s178
    %s196 = sphi 0, %s196
    %s198 = sphi 0, %s196
    %s199 = sphi 0, %s198
    %s213 = sphi 0, %s199
    %s219 = sphi 0, %s221
    %s222 = sphi 0, %s219
    %s223 = sphi 0, %s222
    %s239 = sphi 0, %s223
  $region4: #{tpu_custom_call.1} parent=0 // loop_header_branch
    %18 = sbr.rel (%p16) target = $region8
  $region5: #{tpu_custom_call.1} parent=0 // loop_body
    %s20 = ssub.s32 %s15, 1
    %s21 = ssub.s32 %s15, 2
    %s22 = sadd.s32 %s15, 1
    %s23 = ssub.s32 %s15, %s22
    %p24 = scmp.eq.s32.totalorder %s23, 0
    %s26 = sadd.s32 %s25, 1
    %s27 = scalar_select %p24, %s25, %s26
    %p30 = pneg %p24
    %p31 = scmp.eq.s32.totalorder %s15, 1
    %p32 = por %p30, %p31
    %p33 = scmp.ne.s32.totalorder %s25, %s28
    %p34 = scmp.eq.s32.totalorder %s15, 0
    %p35 = por %p33, %p34
    %p36 = scmp.ne.s32.totalorder %s25, %s28
    %p37 = scmp.eq.s32.totalorder %s20, 1
    %p38 = por %p36, %p37
    %p39 = scmp.ne.s32.totalorder %s28, %s29
    %p40 = scmp.eq.s32.totalorder %s20, 0
    %p41 = por %p39, %p40
    %p42 = scmp.ne.s32.totalorder %s28, %s29
    %p43 = scmp.eq.s32.totalorder %s21, 1
    %p44 = por %p42, %p43
    %p46 = scmp.ne.s32.totalorder %s29, %s45
    %p47 = scmp.eq.s32.totalorder %s21, 0
    %p48 = por %p46, %p47
    %s50 = sadd.s32 %s49, 1
    %p53 = scmp.eq.s32.totalorder %s15, 1
    %p54 = scmp.ne.s32.totalorder %s49, %s51
    %p55 = scmp.eq.s32.totalorder %s15, 0
    %p56 = por %p54, %p55
    %p57 = scmp.ne.s32.totalorder %s49, %s51
    %p58 = scmp.eq.s32.totalorder %s20, 1
    %p59 = por %p57, %p58
    %p60 = scmp.ne.s32.totalorder %s51, %s52
    %p61 = scmp.eq.s32.totalorder %s20, 0
    %p62 = por %p60, %p61
    %p63 = scmp.ne.s32.totalorder %s51, %s52
    %p64 = scmp.eq.s32.totalorder %s21, 1
    %p65 = por %p63, %p64
    %p67 = scmp.ne.s32.totalorder %s52, %s66
    %p68 = scmp.eq.s32.totalorder %s21, 0
    %p69 = por %p67, %p68
    %s71 = sadd.s32 %s70, 1
    %p74 = scmp.eq.s32.totalorder %s15, 1
    %p75 = scmp.ne.s32.totalorder %s70, %s72
    %p76 = scmp.eq.s32.totalorder %s15, 0
    %p77 = por %p75, %p76
    %p78 = scmp.ne.s32.totalorder %s70, %s72
    %p79 = scmp.eq.s32.totalorder %s20, 1
    %p80 = por %p78, %p79
    %p81 = scmp.ne.s32.totalorder %s72, %s73
    %p82 = scmp.eq.s32.totalorder %s20, 0
    %p83 = por %p81, %p82
    %p84 = scmp.ne.s32.totalorder %s72, %s73
    %p85 = scmp.eq.s32.totalorder %s21, 1
    %p86 = por %p84, %p85
    %p88 = scmp.ne.s32.totalorder %s73, %s87
    %p89 = scmp.eq.s32.totalorder %s21, 0
    %p90 = por %p88, %p89
    %s92 = sadd.s32 %s91, 1
    %p95 = scmp.eq.s32.totalorder %s15, 1
    %p96 = scmp.ne.s32.totalorder %s91, %s93
    %p97 = scmp.eq.s32.totalorder %s15, 0
    %p98 = por %p96, %p97
    %p99 = scmp.ne.s32.totalorder %s91, %s93
    %p100 = scmp.eq.s32.totalorder %s20, 1
    %p101 = por %p99, %p100
    %p102 = scmp.ne.s32.totalorder %s93, %s94
    %p103 = scmp.eq.s32.totalorder %s20, 0
    %p104 = por %p102, %p103
    %p105 = scmp.ne.s32.totalorder %s93, %s94
    %p106 = scmp.eq.s32.totalorder %s21, 1
    %p107 = por %p105, %p106
    %p109 = scmp.ne.s32.totalorder %s94, %s108
    %p110 = scmp.eq.s32.totalorder %s21, 0
    %p111 = por %p109, %p110
    %s113 = sadd.s32 %s112, 1
    %p116 = scmp.eq.s32.totalorder %s15, 1
    %p117 = scmp.ne.s32.totalorder %s112, %s114
    %p118 = scmp.eq.s32.totalorder %s15, 0
    %p119 = por %p117, %p118
    %p120 = scmp.ne.s32.totalorder %s112, %s114
    %p121 = scmp.eq.s32.totalorder %s20, 1
    %p122 = por %p120, %p121
    %p123 = scmp.ne.s32.totalorder %s114, %s115
    %p124 = scmp.eq.s32.totalorder %s20, 0
    %p125 = por %p123, %p124
    %p126 = scmp.ne.s32.totalorder %s114, %s115
    %p127 = scmp.eq.s32.totalorder %s21, 1
    %p128 = por %p126, %p127
    %p130 = scmp.ne.s32.totalorder %s115, %s129
    %p131 = scmp.eq.s32.totalorder %s21, 0
    %p132 = por %p130, %p131
    %s134 = sadd.s32 %s133, 1
    %p137 = scmp.eq.s32.totalorder %s15, 1
    %p138 = scmp.ne.s32.totalorder %s133, %s135
    %p139 = scmp.eq.s32.totalorder %s15, 0
    %p140 = por %p138, %p139
    %p141 = scmp.ne.s32.totalorder %s133, %s135
    %p142 = scmp.eq.s32.totalorder %s20, 1
    %p143 = por %p141, %p142
    %p144 = scmp.ne.s32.totalorder %s135, %s136
    %p145 = scmp.eq.s32.totalorder %s20, 0
    %p146 = por %p144, %p145
    %p147 = scmp.ne.s32.totalorder %s135, %s136
    %p148 = scmp.eq.s32.totalorder %s21, 1
    %p149 = por %p147, %p148
    %p151 = scmp.ne.s32.totalorder %s136, %s150
    %p152 = scmp.eq.s32.totalorder %s21, 0
    %p153 = por %p151, %p152
    %s155 = sadd.s32 %s154, 1
    %p158 = scmp.eq.s32.totalorder %s15, 1
    %p159 = scmp.ne.s32.totalorder %s154, %s156
    %p160 = scmp.eq.s32.totalorder %s15, 0
    %p161 = por %p159, %p160
    %p162 = scmp.ne.s32.totalorder %s154, %s156
    %p163 = scmp.eq.s32.totalorder %s20, 1
    %p164 = por %p162, %p163
    %p165 = scmp.ne.s32.totalorder %s156, %s157
    %p166 = scmp.eq.s32.totalorder %s20, 0
    %p167 = por %p165, %p166
    %p168 = scmp.ne.s32.totalorder %s156, %s157
    %p169 = scmp.eq.s32.totalorder %s21, 1
    %p170 = por %p168, %p169
    %p172 = scmp.ne.s32.totalorder %s157, %s171
    %p173 = scmp.eq.s32.totalorder %s21, 0
    %p174 = por %p172, %p173
    %s176 = sadd.s32 %s175, 1
    %p179 = scmp.eq.s32.totalorder %s15, 1
    %p180 = scmp.ne.s32.totalorder %s175, %s177
    %p181 = scmp.eq.s32.totalorder %s15, 0
    %p182 = por %p180, %p181
    %p183 = scmp.ne.s32.totalorder %s175, %s177
    %p184 = scmp.eq.s32.totalorder %s20, 1
    %p185 = por %p183, %p184
    %p186 = scmp.ne.s32.totalorder %s177, %s178
    %p187 = scmp.eq.s32.totalorder %s20, 0
    %p188 = por %p186, %p187
    %p189 = scmp.ne.s32.totalorder %s177, %s178
    %p190 = scmp.eq.s32.totalorder %s21, 1
    %p191 = por %p189, %p190
    %p193 = scmp.ne.s32.totalorder %s178, %s192
    %p194 = scmp.eq.s32.totalorder %s21, 0
    %p195 = por %p193, %p194
    %s197 = sadd.s32 %s196, 1
    %p200 = scmp.eq.s32.totalorder %s15, 1
    %p201 = scmp.ne.s32.totalorder %s196, %s198
    %p202 = scmp.eq.s32.totalorder %s15, 0
    %p203 = por %p201, %p202
    %p204 = scmp.ne.s32.totalorder %s196, %s198
    %p205 = scmp.eq.s32.totalorder %s20, 1
    %p206 = por %p204, %p205
    %p207 = scmp.ne.s32.totalorder %s198, %s199
    %p208 = scmp.eq.s32.totalorder %s20, 0
    %p209 = por %p207, %p208
    %p210 = scmp.ne.s32.totalorder %s198, %s199
    %p211 = scmp.eq.s32.totalorder %s21, 1
    %p212 = por %p210, %p211
    %p214 = scmp.ne.s32.totalorder %s199, %s213
    %p215 = scmp.eq.s32.totalorder %s21, 0
    %p216 = por %p214, %p215
    %s217 = ssub.s32 %s15, %s22
    %p218 = scmp.eq.s32.totalorder %s217, 0
    %s220 = sadd.s32 %s219, 1
    %s221 = scalar_select %p218, %s219, %s220
    %p224 = pneg %p218
    %p225 = scmp.eq.s32.totalorder %s15, 1
    %p226 = por %p224, %p225
    %p227 = scmp.ne.s32.totalorder %s219, %s222
    %p228 = scmp.eq.s32.totalorder %s15, 0
    %p229 = por %p227, %p228
    %p230 = scmp.ne.s32.totalorder %s219, %s222
    %p231 = scmp.eq.s32.totalorder %s20, 1
    %p232 = por %p230, %p231
    %p233 = scmp.ne.s32.totalorder %s222, %s223
    %p234 = scmp.eq.s32.totalorder %s20, 0
    %p235 = por %p233, %p234
    %p236 = scmp.ne.s32.totalorder %s222, %s223
    %p237 = scmp.eq.s32.totalorder %s21, 1
    %p238 = por %p236, %p237
    %p240 = scmp.ne.s32.totalorder %s223, %s239
    %p241 = scmp.eq.s32.totalorder %s21, 0
    %p242 = por %p240, %p241
    %p243 = scmp.le.s32.totalorder 1, %s15
    %p244 = scmp.lt.s32.totalorder %s15, 3
    %p245 = pnand %p243, %p244
    %p246 = pneg %p245
    // Predicated region
    $region9: #{tpu_custom_call.1} parent=5 // pred_check
      _
    $region10: #{tpu_custom_call.1} parent=5 // pred_check_branch
      %248 = sbr.rel (%p245) target = $region12
    $region11: #{tpu_custom_call.1} parent=5 // pred_region
      %s249 = ssub.s32 %s15, 1
      // Predicated region
      $region13: #{tpu_custom_call.1} parent=11 // pred_check
        %p250 = pneg %p62
      $region14: #{tpu_custom_call.1} parent=11 // pred_check_branch
        %252 = sbr.rel (%p250) target = $region16
      $region15: #{tpu_custom_call.1} parent=11 // pred_region
        _
      $region16: #{tpu_custom_call.1} parent=11 // pred_fallthru
        _
      // Predicated region
      $region17: #{tpu_custom_call.1} parent=11 // pred_check
        %p253 = pneg %p83
      $region18: #{tpu_custom_call.1} parent=11 // pred_check_branch
        %255 = sbr.rel (%p253) target = $region20
      $region19: #{tpu_custom_call.1} parent=11 // pred_region
        _
      $region20: #{tpu_custom_call.1} parent=11 // pred_fallthru
        _
      // Predicated region
      $region21: #{tpu_custom_call.1} parent=11 // pred_check
        %p256 = pneg %p104
      $region22: #{tpu_custom_call.1} parent=11 // pred_check_branch
        %258 = sbr.rel (%p256) target = $region24
      $region23: #{tpu_custom_call.1} parent=11 // pred_region
        _
      $region24: #{tpu_custom_call.1} parent=11 // pred_fallthru
        _
      // Predicated region
      $region25: #{tpu_custom_call.1} parent=11 // pred_check
        %p259 = pneg %p125
      $region26: #{tpu_custom_call.1} parent=11 // pred_check_branch
        %261 = sbr.rel (%p259) target = $region28
      $region27: #{tpu_custom_call.1} parent=11 // pred_region
        _
      $region28: #{tpu_custom_call.1} parent=11 // pred_fallthru
        _
      // Predicated region
      $region29: #{tpu_custom_call.1} parent=11 // pred_check
        %p262 = pneg %p146
      $region30: #{tpu_custom_call.1} parent=11 // pred_check_branch
        %264 = sbr.rel (%p262) target = $region32
      $region31: #{tpu_custom_call.1} parent=11 // pred_region
        _
      $region32: #{tpu_custom_call.1} parent=11 // pred_fallthru
        _
      // Predicated region
      $region33: #{tpu_custom_call.1} parent=11 // pred_check
        %p265 = pneg %p167
      $region34: #{tpu_custom_call.1} parent=11 // pred_check_branch
        %267 = sbr.rel (%p265) target = $region36
      $region35: #{tpu_custom_call.1} parent=11 // pred_region
        _
      $region36: #{tpu_custom_call.1} parent=11 // pred_fallthru
        _
      // Predicated region
      $region37: #{tpu_custom_call.1} parent=11 // pred_check
        %p268 = pneg %p188
      $region38: #{tpu_custom_call.1} parent=11 // pred_check_branch
        %270 = sbr.rel (%p268) target = $region40
      $region39: #{tpu_custom_call.1} parent=11 // pred_region
        _
      $region40: #{tpu_custom_call.1} parent=11 // pred_fallthru
        _
      // Predicated region
      $region41: #{tpu_custom_call.1} parent=11 // pred_check
        %p271 = pneg %p209
      $region42: #{tpu_custom_call.1} parent=11 // pred_check_branch
        %273 = sbr.rel (%p271) target = $region44
      $region43: #{tpu_custom_call.1} parent=11 // pred_region
        _
      $region44: #{tpu_custom_call.1} parent=11 // pred_fallthru
        _
    $region12: #{tpu_custom_call.1} parent=5 // pred_fallthru
      _
    %p274 = scmp.lt.s32.totalorder %s15, 2
    // Predicated region
    $region45: #{tpu_custom_call.1} parent=5 // pred_check
      %p275 = pneg %p274
    $region46: #{tpu_custom_call.1} parent=5 // pred_check_branch
      %277 = sbr.rel (%p275) target = $region48
    $region47: #{tpu_custom_call.1} parent=5 // pred_region
      // Predicated region
      $region49: #{tpu_custom_call.1} parent=47 // pred_check
        %p278 = pneg %p35
      $region50: #{tpu_custom_call.1} parent=47 // pred_check_branch
        %280 = sbr.rel (%p278) target = $region52
      $region51: #{tpu_custom_call.1} parent=47 // pred_region
        %s281 = smul.u32 4, %s15
        %p282 = scmp.lt.s32.totalorder %s281, 7
        %s283 = scalar_select %p282, %s281, 7
        %s284 = smul.addr %s283, 8
        %s285 = smul.addr %s284, 8
        %s286 = scalar_lea.vmem %s0, %s285
        %s287 = smul.u32 4, %s15
      $region52: #{tpu_custom_call.1} parent=47 // pred_fallthru
        _
    $region48: #{tpu_custom_call.1} parent=5 // pred_fallthru
      _
    %p288 = scmp.le.s32.totalorder 1, %s15
    %p289 = scmp.lt.s32.totalorder %s15, 3
    %p290 = pnand %p288, %p289
    %p291 = pneg %p290
    // Predicated region
    $region53: #{tpu_custom_call.1} parent=5 // pred_check
      _
    $region54: #{tpu_custom_call.1} parent=5 // pred_check_branch
      %293 = sbr.rel (%p290) target = $region56
    $region55: #{tpu_custom_call.1} parent=5 // pred_region
      %s294 = ssub.s32 %s15, 1
      %s295 = smul.u32 4, %s20
      %p296 = scmp.lt.s32.totalorder %s295, 7
      %s297 = scalar_select %p296, %s295, 7
      %s298 = smul.addr %s297, 8
      %s299 = smul.addr %s298, 8
      %s300 = scalar_lea.vmem %s0, %s299
      %p301 = pneg %p41
      %p302 = pneg %p38
      %p303 = pneg %p62
      %p304 = pneg %p59
      %p305 = pneg %p83
      %p306 = pneg %p80
      %p307 = pneg %p104
      %p308 = pneg %p101
      %p309 = pneg %p125
      %p310 = pneg %p122
      %p311 = pneg %p146
      %p312 = pneg %p143
      %p313 = pneg %p167
      %p314 = pneg %p164
      %p315 = pneg %p188
      %p316 = pneg %p185
      %p317 = pneg %p209
      %p318 = pneg %p206
      %p319 = pneg %p235
      %p320 = pneg %p232
      %s321 = smul.u32 4, %s20
      %p322 = scmp.lt.s32.totalorder %s321, 7
      %s323 = scalar_select %p322, %s321, 7
      %s324 = smul.addr %s323, 8
      %s325 = smul.addr %s324, 8
      %s326 = scalar_lea.vmem %s9, %s325
      %s327 = smul.u32 4, %s20
      %p328 = scmp.lt.s32.totalorder %s327, 7
      %s329 = scalar_select %p328, %s327, 7
      %s330 = smul.addr %s329, 8
      %s331 = smul.addr %s330, 8
      %s332 = scalar_lea.vmem %s0, %s331
      %s333 = smul.u32 4, %s20
      %s334 = smul.u32 4, %s20
      %p335 = scmp.lt.s32.totalorder %s334, 7
      %s336 = scalar_select %p335, %s334, 7
      %s337 = smul.addr %s336, 8
      %s338 = smul.addr %s337, 8
      %s339 = scalar_lea.vmem %s9, %s338
      %s340 = smul.u32 4, %s20
      %v341 = vld [vmem:[%s332] sm:$0xff]
      %v342 = vld [vmem:[%s332 + $0x8] sm:$0xff]
      %v343 = vld [vmem:[%s332 + $0x10] sm:$0xff]
      %v344 = vld [vmem:[%s332 + $0x18] sm:$0xff]
      %v345 = vld [vmem:[%s332 + $0x20] sm:$0xff]
      %v346 = vld [vmem:[%s332 + $0x28] sm:$0xff]
      %v347 = vld [vmem:[%s332 + $0x30] sm:$0xff]
      %v348 = vld [vmem:[%s332 + $0x38] sm:$0xff]
      %v349 = vld [vmem:[%s332 + $0x40] sm:$0xff]
      %v350 = vld [vmem:[%s332 + $0x48] sm:$0xff]
      %v351 = vld [vmem:[%s332 + $0x50] sm:$0xff]
      %v352 = vld [vmem:[%s332 + $0x58] sm:$0xff]
      %v353 = vld [vmem:[%s332 + $0x60] sm:$0xff]
      %v354 = vld [vmem:[%s332 + $0x68] sm:$0xff]
      %v355 = vld [vmem:[%s332 + $0x70] sm:$0xff]
      %v356 = vld [vmem:[%s332 + $0x78] sm:$0xff]
      %v357 = vld [vmem:[%s332 + $0x80] sm:$0xff]
      %v358 = vld [vmem:[%s332 + $0x88] sm:$0xff]
      %v359 = vld [vmem:[%s332 + $0x90] sm:$0xff]
      %v360 = vld [vmem:[%s332 + $0x98] sm:$0xff]
      %v361 = vld [vmem:[%s332 + $0xa0] sm:$0xff]
      %v362 = vld [vmem:[%s332 + $0xa8] sm:$0xff]
      %v363 = vld [vmem:[%s332 + $0xb0] sm:$0xff]
      %v364 = vld [vmem:[%s332 + $0xb8] sm:$0xff]
      %v365 = vld [vmem:[%s332 + $0xc0] sm:$0xff]
      %v366 = vld [vmem:[%s332 + $0xc8] sm:$0xff]
      %v367 = vld [vmem:[%s332 + $0xd0] sm:$0xff]
      %v368 = vld [vmem:[%s332 + $0xd8] sm:$0xff]
      %v369 = vld [vmem:[%s332 + $0xe0] sm:$0xff]
      %v370 = vld [vmem:[%s332 + $0xe8] sm:$0xff]
      %v371 = vld [vmem:[%s332 + $0xf0] sm:$0xff]
      %v372 = vld [vmem:[%s332 + $0xf8] sm:$0xff]
      %v373 = vld [vmem:[%s1] sm:$0xff]
      %v374 = vld [vmem:[%s1 + $0x8] sm:$0xff]
      %v375 = vld [vmem:[%s1 + $0x10] sm:$0xff]
      %v376 = vld [vmem:[%s1 + $0x18] sm:$0xff]
      %v377 = vld [vmem:[%s4] sm:$0x1]
      %v379 = vlaneseq
      %v380 = vshrl.u32 %v379, 7
      %v381 = vsub.s32 0, %v380
      %v382 = vrot.slane %v377, %v381
      %vm384 = vcmask 261120
      %v386 = vsel %vm384, %v341, 0
      %v389 = vsel %vm384, %v342, 0
      %v392 = vsel %vm384, %v343, 0
      %v395 = vsel %vm384, %v344, 0
      %v398 = vsel %vm384, %v345, 0
      %v401 = vsel %vm384, %v346, 0
      %v404 = vsel %vm384, %v347, 0
      %v407 = vsel %vm384, %v348, 0
      %v410 = vsel %vm384, %v349, 0
      %v413 = vsel %vm384, %v350, 0
      %v416 = vsel %vm384, %v351, 0
      %v419 = vsel %vm384, %v352, 0
      %v422 = vsel %vm384, %v353, 0
      %v425 = vsel %vm384, %v354, 0
      %v428 = vsel %vm384, %v355, 0
      %v431 = vsel %vm384, %v356, 0
      %v434 = vsel %vm384, %v357, 0
      %v437 = vsel %vm384, %v358, 0
      %v440 = vsel %vm384, %v359, 0
      %v443 = vsel %vm384, %v360, 0
      %v446 = vsel %vm384, %v361, 0
      %v449 = vsel %vm384, %v362, 0
      %v452 = vsel %vm384, %v363, 0
      %v455 = vsel %vm384, %v364, 0
      %v458 = vsel %vm384, %v365, 0
      %v461 = vsel %vm384, %v366, 0
      %v464 = vsel %vm384, %v367, 0
      %v467 = vsel %vm384, %v368, 0
      %v470 = vsel %vm384, %v369, 0
      %v473 = vsel %vm384, %v370, 0
      %v476 = vsel %vm384, %v371, 0
      %v479 = vsel %vm384, %v372, 0
      %481 = vmatprep.subr.mxu0 0.0
      %482 = vmatpush1.msra.mxu0 %v373
      %483 = vmatprep.subr.mxu0 0.0
      %484 = vmatpush1.msra.mxu0 %v374
      %485 = vmatprep.subr.mxu0 0.0
      %486 = vmatpush1.msra.mxu0 %v375
      %487 = vmatprep.subr.mxu0 0.0
      %488 = vmatpush1.msra.mxu0 %v376
      %489 = vmatprep.subr.mxu0 0.0
      %490 = vmatpush1.msra.mxu0 0.0
      %491 = vmatprep.subr.mxu0 0.0
      %492 = vmatpush1.msra.mxu0 0.0
      %493 = vmatprep.subr.mxu0 0.0
      %494 = vmatpush1.msra.mxu0 0.0
      %495 = vmatprep.subr.mxu0 0.0
      %496 = vmatpush1.msra.mxu0 0.0
      %497 = vmatprep.subr.mxu0 0.0
      %498 = vmatpush1.msra.mxu0 0.0
      %499 = vmatprep.subr.mxu0 0.0
      %500 = vmatpush1.msra.mxu0 0.0
      %501 = vmatprep.subr.mxu0 0.0
      %502 = vmatpush1.msra.mxu0 0.0
      %503 = vmatprep.subr.mxu0 0.0
      %504 = vmatpush1.msra.mxu0 0.0
      %505 = vmatprep.subr.mxu0 0.0
      %506 = vmatpush1.msra.mxu0 0.0
      %507 = vmatprep.subr.mxu0 0.0
      %508 = vmatpush1.msra.mxu0 0.0
      %509 = vmatprep.subr.mxu0 0.0
      %510 = vmatpush1.msra.mxu0 0.0
      %511 = vmatprep.subr.mxu0 0.0
      %512 = vmatpush1.msra.mxu0 0.0
      %513 = vmatprep.subr.mxu0 0.0
      %514 = vmatpush1.msra.mxu0 0.0
      %515 = vmatprep.subr.mxu0 0.0
      %516 = vmatpush1.msra.mxu0 0.0
      %517 = vmatprep.subr.mxu0 0.0
      %518 = vmatpush1.msra.mxu0 0.0
      %519 = vmatprep.subr.mxu0 0.0
      %520 = vmatpush1.msra.mxu0 0.0
      %521 = vmatprep.subr.mxu0 0.0
      %522 = vmatpush1.msra.mxu0 0.0
      %523 = vmatprep.subr.mxu0 0.0
      %524 = vmatpush1.msra.mxu0 0.0
      %525 = vmatprep.subr.mxu0 0.0
      %526 = vmatpush1.msra.mxu0 0.0
      %527 = vmatprep.subr.mxu0 0.0
      %528 = vmatpush1.msra.mxu0 0.0
      %529 = vmatprep.subr.mxu0 0.0
      %530 = vmatpush1.msra.mxu0 0.0
      %531 = vmatprep.subr.mxu0 0.0
      %532 = vmatpush1.msra.mxu0 0.0
      %533 = vmatprep.subr.mxu0 0.0
      %534 = vmatpush1.msra.mxu0 0.0
      %535 = vmatprep.subr.mxu0 0.0
      %536 = vmatpush1.msra.mxu0 0.0
      %537 = vmatprep.subr.mxu0 0.0
      %538 = vmatpush1.msra.mxu0 0.0
      %539 = vmatprep.subr.mxu0 0.0
      %540 = vmatpush1.msra.mxu0 0.0
      %541 = vmatprep.subr.mxu0 0.0
      %542 = vmatpush1.msra.mxu0 0.0
      %543 = vmatprep.subr.mxu0 0.0
      %544 = vmatpush1.msra.mxu0 0.0
      %545 = vmatprep.mubr.f32.mxu0 0.0
      %546 = vmatmul.mubr.f32.gmra.mrb[0].mxu0 %v386
      %v547 = vpop.f32.mrb[0].mxu0
      %v548 = vadd.f32 %v382, %v547
      %v549 = vpop.f32.mrb[0].mxu0
      %550 = vmatprep.mubr.f32.mxu0 0.0
      %551 = vmatmul.mubr.f32.gmra.mrb[0].mxu0 %v389
      %v552 = vpop.f32.mrb[0].mxu0
      %v553 = vadd.f32 %v382, %v552
      %v554 = vpop.f32.mrb[0].mxu0
      %555 = vmatprep.mubr.f32.mxu0 0.0
      %556 = vmatmul.mubr.f32.gmra.mrb[0].mxu0 %v392
      %v557 = vpop.f32.mrb[0].mxu0
      %v558 = vadd.f32 %v382, %v557
      %v559 = vpop.f32.mrb[0].mxu0
      %560 = vmatprep.mubr.f32.mxu0 0.0
      %561 = vmatmul.mubr.f32.gmra.mrb[0].mxu0 %v395
      %v562 = vpop.f32.mrb[0].mxu0
      %v563 = vadd.f32 %v382, %v562
      %v564 = vpop.f32.mrb[0].mxu0
      %565 = vmatprep.mubr.f32.mxu0 0.0
      %566 = vmatmul.mubr.f32.gmra.mrb[0].mxu0 %v398
      %v567 = vpop.f32.mrb[0].mxu0
      %v568 = vadd.f32 %v382, %v567
      %v569 = vpop.f32.mrb[0].mxu0
      %570 = vmatprep.mubr.f32.mxu0 0.0
      %571 = vmatmul.mubr.f32.gmra.mrb[0].mxu0 %v401
      %v572 = vpop.f32.mrb[0].mxu0
      %v573 = vadd.f32 %v382, %v572
      %v574 = vpop.f32.mrb[0].mxu0
      %575 = vmatprep.mubr.f32.mxu0 0.0
      %576 = vmatmul.mubr.f32.gmra.mrb[0].mxu0 %v404
      %v577 = vpop.f32.mrb[0].mxu0
      %v578 = vadd.f32 %v382, %v577
      %v579 = vpop.f32.mrb[0].mxu0
      %580 = vmatprep.mubr.f32.mxu0 0.0
      %581 = vmatmul.mubr.f32.gmra.mrb[0].mxu0 %v407
      %v582 = vpop.f32.mrb[0].mxu0
      %v583 = vadd.f32 %v382, %v582
      %v584 = vpop.f32.mrb[0].mxu0
      %585 = vmatprep.mubr.f32.mxu0 0.0
      %586 = vmatmul.mubr.f32.gmra.mrb[0].mxu0 %v410
      %v587 = vpop.f32.mrb[0].mxu0
      %v588 = vadd.f32 %v382, %v587
      %v589 = vpop.f32.mrb[0].mxu0
      %590 = vmatprep.mubr.f32.mxu0 0.0
      %591 = vmatmul.mubr.f32.gmra.mrb[0].mxu0 %v413
      %v592 = vpop.f32.mrb[0].mxu0
      %v593 = vadd.f32 %v382, %v592
      %v594 = vpop.f32.mrb[0].mxu0
      %595 = vmatprep.mubr.f32.mxu0 0.0
      %596 = vmatmul.mubr.f32.gmra.mrb[0].mxu0 %v416
      %v597 = vpop.f32.mrb[0].mxu0
      %v598 = vadd.f32 %v382, %v597
      %v599 = vpop.f32.mrb[0].mxu0
      %600 = vmatprep.mubr.f32.mxu0 0.0
      %601 = vmatmul.mubr.f32.gmra.mrb[0].mxu0 %v419
      %v602 = vpop.f32.mrb[0].mxu0
      %v603 = vadd.f32 %v382, %v602
      %v604 = vpop.f32.mrb[0].mxu0
      %605 = vmatprep.mubr.f32.mxu0 0.0
      %606 = vmatmul.mubr.f32.gmra.mrb[0].mxu0 %v422
      %v607 = vpop.f32.mrb[0].mxu0
      %v608 = vadd.f32 %v382, %v607
      %v609 = vpop.f32.mrb[0].mxu0
      %610 = vmatprep.mubr.f32.mxu0 0.0
      %611 = vmatmul.mubr.f32.gmra.mrb[0].mxu0 %v425
      %v612 = vpop.f32.mrb[0].mxu0
      %v613 = vadd.f32 %v382, %v612
      %v614 = vpop.f32.mrb[0].mxu0
      %615 = vmatprep.mubr.f32.mxu0 0.0
      %616 = vmatmul.mubr.f32.gmra.mrb[0].mxu0 %v428
      %v617 = vpop.f32.mrb[0].mxu0
      %v618 = vadd.f32 %v382, %v617
      %v619 = vpop.f32.mrb[0].mxu0
      %620 = vmatprep.mubr.f32.mxu0 0.0
      %621 = vmatmul.mubr.f32.gmra.mrb[0].mxu0 %v431
      %v622 = vpop.f32.mrb[0].mxu0
      %v623 = vadd.f32 %v382, %v622
      %v624 = vpop.f32.mrb[0].mxu0
      %625 = vmatprep.mubr.f32.mxu0 0.0
      %626 = vmatmul.mubr.f32.gmra.mrb[0].mxu0 %v434
      %v627 = vpop.f32.mrb[0].mxu0
      %v628 = vadd.f32 %v382, %v627
      %v629 = vpop.f32.mrb[0].mxu0
      %630 = vmatprep.mubr.f32.mxu0 0.0
      %631 = vmatmul.mubr.f32.gmra.mrb[0].mxu0 %v437
      %v632 = vpop.f32.mrb[0].mxu0
      %v633 = vadd.f32 %v382, %v632
      %v634 = vpop.f32.mrb[0].mxu0
      %635 = vmatprep.mubr.f32.mxu0 0.0
      %636 = vmatmul.mubr.f32.gmra.mrb[0].mxu0 %v440
      %v637 = vpop.f32.mrb[0].mxu0
      %v638 = vadd.f32 %v382, %v637
      %v639 = vpop.f32.mrb[0].mxu0
      %640 = vmatprep.mubr.f32.mxu0 0.0
      %641 = vmatmul.mubr.f32.gmra.mrb[0].mxu0 %v443
      %v642 = vpop.f32.mrb[0].mxu0
      %v643 = vadd.f32 %v382, %v642
      %v644 = vpop.f32.mrb[0].mxu0
      %645 = vmatprep.mubr.f32.mxu0 0.0
      %646 = vmatmul.mubr.f32.gmra.mrb[0].mxu0 %v446
      %v647 = vpop.f32.mrb[0].mxu0
      %v648 = vadd.f32 %v382, %v647
      %v649 = vpop.f32.mrb[0].mxu0
      %650 = vmatprep.mubr.f32.mxu0 0.0
      %651 = vmatmul.mubr.f32.gmra.mrb[0].mxu0 %v449
      %v652 = vpop.f32.mrb[0].mxu0
      %v653 = vadd.f32 %v382, %v652
      %v654 = vpop.f32.mrb[0].mxu0
      %655 = vmatprep.mubr.f32.mxu0 0.0
      %656 = vmatmul.mubr.f32.gmra.mrb[0].mxu0 %v452
      %v657 = vpop.f32.mrb[0].mxu0
      %v658 = vadd.f32 %v382, %v657
      %v659 = vpop.f32.mrb[0].mxu0
      %660 = vmatprep.mubr.f32.mxu0 0.0
      %661 = vmatmul.mubr.f32.gmra.mrb[0].mxu0 %v455
      %v662 = vpop.f32.mrb[0].mxu0
      %v663 = vadd.f32 %v382, %v662
      %v664 = vpop.f32.mrb[0].mxu0
      %665 = vmatprep.mubr.f32.mxu0 0.0
      %666 = vmatmul.mubr.f32.gmra.mrb[0].mxu0 %v458
      %v667 = vpop.f32.mrb[0].mxu0
      %v668 = vadd.f32 %v382, %v667
      %v669 = vpop.f32.mrb[0].mxu0
      %670 = vmatprep.mubr.f32.mxu0 0.0
      %671 = vmatmul.mubr.f32.gmra.mrb[0].mxu0 %v461
      %v672 = vpop.f32.mrb[0].mxu0
      %v673 = vadd.f32 %v382, %v672
      %v674 = vpop.f32.mrb[0].mxu0
      %675 = vmatprep.mubr.f32.mxu0 0.0
      %676 = vmatmul.mubr.f32.gmra.mrb[0].mxu0 %v464
      %v677 = vpop.f32.mrb[0].mxu0
      %v678 = vadd.f32 %v382, %v677
      %v679 = vpop.f32.mrb[0].mxu0
      %680 = vmatprep.mubr.f32.mxu0 0.0
      %681 = vmatmul.mubr.f32.gmra.mrb[0].mxu0 %v467
      %v682 = vpop.f32.mrb[0].mxu0
      %v683 = vadd.f32 %v382, %v682
      %v684 = vpop.f32.mrb[0].mxu0
      %685 = vmatprep.mubr.f32.mxu0 0.0
      %686 = vmatmul.mubr.f32.gmra.mrb[0].mxu0 %v470
      %v687 = vpop.f32.mrb[0].mxu0
      %v688 = vadd.f32 %v382, %v687
      %v689 = vpop.f32.mrb[0].mxu0
      %690 = vmatprep.mubr.f32.mxu0 0.0
      %691 = vmatmul.mubr.f32.gmra.mrb[0].mxu0 %v473
      %v692 = vpop.f32.mrb[0].mxu0
      %v693 = vadd.f32 %v382, %v692
      %v694 = vpop.f32.mrb[0].mxu0
      %695 = vmatprep.mubr.f32.mxu0 0.0
      %696 = vmatmul.mubr.f32.gmra.mrb[0].mxu0 %v476
      %v697 = vpop.f32.mrb[0].mxu0
      %v698 = vadd.f32 %v382, %v697
      %v699 = vpop.f32.mrb[0].mxu0
      %700 = vmatprep.mubr.f32.mxu0 0.0
      %701 = vmatmul.mubr.f32.gmra.mrb[0].mxu0 %v479
      %v702 = vpop.f32.mrb[0].mxu0
      %v703 = vadd.f32 %v382, %v702
      %v704 = vpop.f32.mrb[0].mxu0
      %705 = vdwg.mxu0
      %v706 = vld [vmem:[%s2] sm:$0xff]
      %v707 = vld [vmem:[%s2 + $0x8] sm:$0xff]
      %v708 = vld [vmem:[%s2 + $0x10] sm:$0xff]
      %v709 = vld [vmem:[%s2 + $0x18] sm:$0xff]
      %v710 = vld [vmem:[%s5] sm:$0x1]
      %v712 = vlaneseq
      %v713 = vshrl.u32 %v712, 7
      %v714 = vsub.s32 0, %v713
      %v715 = vrot.slane %v710, %v714
      %717 = vmatprep.subr.mxu0 0.0
      %718 = vmatpush1.msra.mxu0 %v706
      %719 = vmatprep.subr.mxu0 0.0
      %720 = vmatpush1.msra.mxu0 %v707
      %721 = vmatprep.subr.mxu0 0.0
      %722 = vmatpush1.msra.mxu0 %v708
      %723 = vmatprep.subr.mxu0 0.0
      %724 = vmatpush1.msra.mxu0 %v709
      %725 = vmatprep.subr.mxu0 0.0
      %726 = vmatpush1.msra.mxu0 0.0
      %727 = vmatprep.subr.mxu0 0.0
      %728 = vmatpush1.msra.mxu0 0.0
      %729 = vmatprep.subr.mxu0 0.0
      %730 = vmatpush1.msra.mxu0 0.0
      %731 = vmatprep.subr.mxu0 0.0
      %732 = vmatpush1.msra.mxu0 0.0
      %733 = vmatprep.subr.mxu0 0.0
      %734 = vmatpush1.msra.mxu0 0.0
      %735 = vmatprep.subr.mxu0 0.0
      %736 = vmatpush1.msra.mxu0 0.0
      %737 = vmatprep.subr.mxu0 0.0
      %738 = vmatpush1.msra.mxu0 0.0
      %739 = vmatprep.subr.mxu0 0.0
      %740 = vmatpush1.msra.mxu0 0.0
      %741 = vmatprep.subr.mxu0 0.0
      %742 = vmatpush1.msra.mxu0 0.0
      %743 = vmatprep.subr.mxu0 0.0
      %744 = vmatpush1.msra.mxu0 0.0
      %745 = vmatprep.subr.mxu0 0.0
      %746 = vmatpush1.msra.mxu0 0.0
      %747 = vmatprep.subr.mxu0 0.0
      %748 = vmatpush1.msra.mxu0 0.0
      %749 = vmatprep.subr.mxu0 0.0
      %750 = vmatpush1.msra.mxu0 0.0
      %751 = vmatprep.subr.mxu0 0.0
      %752 = vmatpush1.msra.mxu0 0.0
      %753 = vmatprep.subr.mxu0 0.0
      %754 = vmatpush1.msra.mxu0 0.0
      %755 = vmatprep.subr.mxu0 0.0
      %756 = vmatpush1.msra.mxu0 0.0
      %757 = vmatprep.subr.mxu0 0.0
      %758 = vmatpush1.msra.mxu0 0.0
      %759 = vmatprep.subr.mxu0 0.0
      %760 = vmatpush1.msra.mxu0 0.0
      %761 = vmatprep.subr.mxu0 0.0
      %762 = vmatpush1.msra.mxu0 0.0
      %763 = vmatprep.subr.mxu0 0.0
      %764 = vmatpush1.msra.mxu0 0.0
      %765 = vmatprep.subr.mxu0 0.0
      %766 = vmatpush1.msra.mxu0 0.0
      %767 = vmatprep.subr.mxu0 0.0
      %768 = vmatpush1.msra.mxu0 0.0
      %769 = vmatprep.subr.mxu0 0.0
      %770 = vmatpush1.msra.mxu0 0.0
      %771 = vmatprep.subr.mxu0 0.0
      %772 = vmatpush1.msra.mxu0 0.0
      %773 = vmatprep.subr.mxu0 0.0
      %774 = vmatpush1.msra.mxu0 0.0
      %775 = vmatprep.subr.mxu0 0.0
      %776 = vmatpush1.msra.mxu0 0.0
      %777 = vmatprep.subr.mxu0 0.0
      %778 = vmatpush1.msra.mxu0 0.0
      %779 = vmatprep.subr.mxu0 0.0
      %780 = vmatpush1.msra.mxu0 0.0
      %781 = vmatprep.mubr.f32.mxu0 0.0
      %782 = vmatmul.mubr.f32.gmra.mrb[0].mxu0 %v386
      %v783 = vpop.f32.mrb[0].mxu0
      %v784 = vadd.f32 %v715, %v783
      %v785 = vpop.f32.mrb[0].mxu0
      %786 = vmatprep.mubr.f32.mxu0 0.0
      %787 = vmatmul.mubr.f32.gmra.mrb[0].mxu0 %v389
      %v788 = vpop.f32.mrb[0].mxu0
      %v789 = vadd.f32 %v715, %v788
      %v790 = vpop.f32.mrb[0].mxu0
      %791 = vmatprep.mubr.f32.mxu0 0.0
      %792 = vmatmul.mubr.f32.gmra.mrb[0].mxu0 %v392
      %v793 = vpop.f32.mrb[0].mxu0
      %v794 = vadd.f32 %v715, %v793
      %v795 = vpop.f32.mrb[0].mxu0
      %796 = vmatprep.mubr.f32.mxu0 0.0
      %797 = vmatmul.mubr.f32.gmra.mrb[0].mxu0 %v395
      %v798 = vpop.f32.mrb[0].mxu0
      %v799 = vadd.f32 %v715, %v798
      %v800 = vpop.f32.mrb[0].mxu0
      %801 = vmatprep.mubr.f32.mxu0 0.0
      %802 = vmatmul.mubr.f32.gmra.mrb[0].mxu0 %v398
      %v803 = vpop.f32.mrb[0].mxu0
      %v804 = vadd.f32 %v715, %v803
      %v805 = vpop.f32.mrb[0].mxu0
      %806 = vmatprep.mubr.f32.mxu0 0.0
      %807 = vmatmul.mubr.f32.gmra.mrb[0].mxu0 %v401
      %v808 = vpop.f32.mrb[0].mxu0
      %v809 = vadd.f32 %v715, %v808
      %v810 = vpop.f32.mrb[0].mxu0
      %811 = vmatprep.mubr.f32.mxu0 0.0
      %812 = vmatmul.mubr.f32.gmra.mrb[0].mxu0 %v404
      %v813 = vpop.f32.mrb[0].mxu0
      %v814 = vadd.f32 %v715, %v813
      %v815 = vpop.f32.mrb[0].mxu0
      %816 = vmatprep.mubr.f32.mxu0 0.0
      %817 = vmatmul.mubr.f32.gmra.mrb[0].mxu0 %v407
      %v818 = vpop.f32.mrb[0].mxu0
      %v819 = vadd.f32 %v715, %v818
      %v820 = vpop.f32.mrb[0].mxu0
      %821 = vmatprep.mubr.f32.mxu0 0.0
      %822 = vmatmul.mubr.f32.gmra.mrb[0].mxu0 %v410
      %v823 = vpop.f32.mrb[0].mxu0
      %v824 = vadd.f32 %v715, %v823
      %v825 = vpop.f32.mrb[0].mxu0
      %826 = vmatprep.mubr.f32.mxu0 0.0
      %827 = vmatmul.mubr.f32.gmra.mrb[0].mxu0 %v413
      %v828 = vpop.f32.mrb[0].mxu0
      %v829 = vadd.f32 %v715, %v828
      %v830 = vpop.f32.mrb[0].mxu0
      %831 = vmatprep.mubr.f32.mxu0 0.0
      %832 = vmatmul.mubr.f32.gmra.mrb[0].mxu0 %v416
      %v833 = vpop.f32.mrb[0].mxu0
      %v834 = vadd.f32 %v715, %v833
      %v835 = vpop.f32.mrb[0].mxu0
      %836 = vmatprep.mubr.f32.mxu0 0.0
      %837 = vmatmul.mubr.f32.gmra.mrb[0].mxu0 %v419
      %v838 = vpop.f32.mrb[0].mxu0
      %v839 = vadd.f32 %v715, %v838
      %v840 = vpop.f32.mrb[0].mxu0
      %841 = vmatprep.mubr.f32.mxu0 0.0
      %842 = vmatmul.mubr.f32.gmra.mrb[0].mxu0 %v422
      %v843 = vpop.f32.mrb[0].mxu0
      %v844 = vadd.f32 %v715, %v843
      %v845 = vpop.f32.mrb[0].mxu0
      %846 = vmatprep.mubr.f32.mxu0 0.0
      %847 = vmatmul.mubr.f32.gmra.mrb[0].mxu0 %v425
      %v848 = vpop.f32.mrb[0].mxu0
      %v849 = vadd.f32 %v715, %v848
      %v850 = vpop.f32.mrb[0].mxu0
      %851 = vmatprep.mubr.f32.mxu0 0.0
      %852 = vmatmul.mubr.f32.gmra.mrb[0].mxu0 %v428
      %v853 = vpop.f32.mrb[0].mxu0
      %v854 = vadd.f32 %v715, %v853
      %v855 = vpop.f32.mrb[0].mxu0
      %856 = vmatprep.mubr.f32.mxu0 0.0
      %857 = vmatmul.mubr.f32.gmra.mrb[0].mxu0 %v431
      %v858 = vpop.f32.mrb[0].mxu0
      %v859 = vadd.f32 %v715, %v858
      %v860 = vpop.f32.mrb[0].mxu0
      %861 = vmatprep.mubr.f32.mxu0 0.0
      %862 = vmatmul.mubr.f32.gmra.mrb[0].mxu0 %v434
      %v863 = vpop.f32.mrb[0].mxu0
      %v864 = vadd.f32 %v715, %v863
      %v865 = vpop.f32.mrb[0].mxu0
      %866 = vmatprep.mubr.f32.mxu0 0.0
      %867 = vmatmul.mubr.f32.gmra.mrb[0].mxu0 %v437
      %v868 = vpop.f32.mrb[0].mxu0
      %v869 = vadd.f32 %v715, %v868
      %v870 = vpop.f32.mrb[0].mxu0
      %871 = vmatprep.mubr.f32.mxu0 0.0
      %872 = vmatmul.mubr.f32.gmra.mrb[0].mxu0 %v440
      %v873 = vpop.f32.mrb[0].mxu0
      %v874 = vadd.f32 %v715, %v873
      %v875 = vpop.f32.mrb[0].mxu0
      %876 = vmatprep.mubr.f32.mxu0 0.0
      %877 = vmatmul.mubr.f32.gmra.mrb[0].mxu0 %v443
      %v878 = vpop.f32.mrb[0].mxu0
      %v879 = vadd.f32 %v715, %v878
      %v880 = vpop.f32.mrb[0].mxu0
      %881 = vmatprep.mubr.f32.mxu0 0.0
      %882 = vmatmul.mubr.f32.gmra.mrb[0].mxu0 %v446
      %v883 = vpop.f32.mrb[0].mxu0
      %v884 = vadd.f32 %v715, %v883
      %v885 = vpop.f32.mrb[0].mxu0
      %886 = vmatprep.mubr.f32.mxu0 0.0
      %887 = vmatmul.mubr.f32.gmra.mrb[0].mxu0 %v449
      %v888 = vpop.f32.mrb[0].mxu0
      %v889 = vadd.f32 %v715, %v888
      %v890 = vpop.f32.mrb[0].mxu0
      %891 = vmatprep.mubr.f32.mxu0 0.0
      %892 = vmatmul.mubr.f32.gmra.mrb[0].mxu0 %v452
      %v893 = vpop.f32.mrb[0].mxu0
      %v894 = vadd.f32 %v715, %v893
      %v895 = vpop.f32.mrb[0].mxu0
      %896 = vmatprep.mubr.f32.mxu0 0.0
      %897 = vmatmul.mubr.f32.gmra.mrb[0].mxu0 %v455
      %v898 = vpop.f32.mrb[0].mxu0
      %v899 = vadd.f32 %v715, %v898
      %v900 = vpop.f32.mrb[0].mxu0
      %901 = vmatprep.mubr.f32.mxu0 0.0
      %902 = vmatmul.mubr.f32.gmra.mrb[0].mxu0 %v458
      %v903 = vpop.f32.mrb[0].mxu0
      %v904 = vadd.f32 %v715, %v903
      %v905 = vpop.f32.mrb[0].mxu0
      %906 = vmatprep.mubr.f32.mxu0 0.0
      %907 = vmatmul.mubr.f32.gmra.mrb[0].mxu0 %v461
      %v908 = vpop.f32.mrb[0].mxu0
      %v909 = vadd.f32 %v715, %v908
      %v910 = vpop.f32.mrb[0].mxu0
      %911 = vmatprep.mubr.f32.mxu0 0.0
      %912 = vmatmul.mubr.f32.gmra.mrb[0].mxu0 %v464
      %v913 = vpop.f32.mrb[0].mxu0
      %v914 = vadd.f32 %v715, %v913
      %v915 = vpop.f32.mrb[0].mxu0
      %916 = vmatprep.mubr.f32.mxu0 0.0
      %917 = vmatmul.mubr.f32.gmra.mrb[0].mxu0 %v467
      %v918 = vpop.f32.mrb[0].mxu0
      %v919 = vadd.f32 %v715, %v918
      %v920 = vpop.f32.mrb[0].mxu0
      %921 = vmatprep.mubr.f32.mxu0 0.0
      %922 = vmatmul.mubr.f32.gmra.mrb[0].mxu0 %v470
      %v923 = vpop.f32.mrb[0].mxu0
      %v924 = vadd.f32 %v715, %v923
      %v925 = vpop.f32.mrb[0].mxu0
      %926 = vmatprep.mubr.f32.mxu0 0.0
      %927 = vmatmul.mubr.f32.gmra.mrb[0].mxu0 %v473
      %v928 = vpop.f32.mrb[0].mxu0
      %v929 = vadd.f32 %v715, %v928
      %v930 = vpop.f32.mrb[0].mxu0
      %931 = vmatprep.mubr.f32.mxu0 0.0
      %932 = vmatmul.mubr.f32.gmra.mrb[0].mxu0 %v476
      %v933 = vpop.f32.mrb[0].mxu0
      %v934 = vadd.f32 %v715, %v933
      %v935 = vpop.f32.mrb[0].mxu0
      %936 = vmatprep.mubr.f32.mxu0 0.0
      %937 = vmatmul.mubr.f32.gmra.mrb[0].mxu0 %v479
      %v938 = vpop.f32.mrb[0].mxu0
      %v939 = vadd.f32 %v715, %v938
      %v940 = vpop.f32.mrb[0].mxu0
      %941 = vdwg.mxu0
      %v942 = vld [vmem:[%s3] sm:$0xff]
      %v943 = vld [vmem:[%s3 + $0x8] sm:$0xff]
      %v944 = vld [vmem:[%s3 + $0x10] sm:$0xff]
      %v945 = vld [vmem:[%s3 + $0x18] sm:$0xff]
      %v946 = vld [vmem:[%s6] sm:$0x1]
      %v948 = vlaneseq
      %v949 = vshrl.u32 %v948, 7
      %v950 = vsub.s32 0, %v949
      %v951 = vrot.slane %v946, %v950
      %953 = vmatprep.subr.mxu0 0.0
      %954 = vmatpush1.msra.mxu0 %v942
      %955 = vmatprep.subr.mxu0 0.0
      %956 = vmatpush1.msra.mxu0 %v943
      %957 = vmatprep.subr.mxu0 0.0
      %958 = vmatpush1.msra.mxu0 %v944
      %959 = vmatprep.subr.mxu0 0.0
      %960 = vmatpush1.msra.mxu0 %v945
      %961 = vmatprep.subr.mxu0 0.0
      %962 = vmatpush1.msra.mxu0 0.0
      %963 = vmatprep.subr.mxu0 0.0
      %964 = vmatpush1.msra.mxu0 0.0
      %965 = vmatprep.subr.mxu0 0.0
      %966 = vmatpush1.msra.mxu0 0.0
      %967 = vmatprep.subr.mxu0 0.0
      %968 = vmatpush1.msra.mxu0 0.0
      %969 = vmatprep.subr.mxu0 0.0
      %970 = vmatpush1.msra.mxu0 0.0
      %971 = vmatprep.subr.mxu0 0.0
      %972 = vmatpush1.msra.mxu0 0.0
      %973 = vmatprep.subr.mxu0 0.0
      %974 = vmatpush1.msra.mxu0 0.0
      %975 = vmatprep.subr.mxu0 0.0
      %976 = vmatpush1.msra.mxu0 0.0
      %977 = vmatprep.subr.mxu0 0.0
      %978 = vmatpush1.msra.mxu0 0.0
      %979 = vmatprep.subr.mxu0 0.0
      %980 = vmatpush1.msra.mxu0 0.0
      %981 = vmatprep.subr.mxu0 0.0
      %982 = vmatpush1.msra.mxu0 0.0
      %983 = vmatprep.subr.mxu0 0.0
      %984 = vmatpush1.msra.mxu0 0.0
      %985 = vmatprep.subr.mxu0 0.0
      %986 = vmatpush1.msra.mxu0 0.0
      %987 = vmatprep.subr.mxu0 0.0
      %988 = vmatpush1.msra.mxu0 0.0
      %989 = vmatprep.subr.mxu0 0.0
      %990 = vmatpush1.msra.mxu0 0.0
      %991 = vmatprep.subr.mxu0 0.0
      %992 = vmatpush1.msra.mxu0 0.0
      %993 = vmatprep.subr.mxu0 0.0
      %994 = vmatpush1.msra.mxu0 0.0
      %995 = vmatprep.subr.mxu0 0.0
      %996 = vmatpush1.msra.mxu0 0.0
      %997 = vmatprep.subr.mxu0 0.0
      %998 = vmatpush1.msra.mxu0 0.0
      %999 = vmatprep.subr.mxu0 0.0
      %1000 = vmatpush1.msra.mxu0 0.0
      %1001 = vmatprep.subr.mxu0 0.0
      %1002 = vmatpush1.msra.mxu0 0.0
      %1003 = vmatprep.subr.mxu0 0.0
      %1004 = vmatpush1.msra.mxu0 0.0
      %1005 = vmatprep.subr.mxu0 0.0
      %1006 = vmatpush1.msra.mxu0 0.0
      %1007 = vmatprep.subr.mxu0 0.0
      %1008 = vmatpush1.msra.mxu0 0.0
      %1009 = vmatprep.subr.mxu0 0.0
      %1010 = vmatpush1.msra.mxu0 0.0
      %1011 = vmatprep.subr.mxu0 0.0
      %1012 = vmatpush1.msra.mxu0 0.0
      %1013 = vmatprep.subr.mxu0 0.0
      %1014 = vmatpush1.msra.mxu0 0.0
      %1015 = vmatprep.subr.mxu0 0.0
      %1016 = vmatpush1.msra.mxu0 0.0
      %1017 = vmatprep.mubr.f32.mxu0 0.0
      %1018 = vmatmul.mubr.f32.gmra.mrb[0].mxu0 %v386
      %v1019 = vpop.f32.mrb[0].mxu0
      %v1020 = vadd.f32 %v951, %v1019
      %v1021 = vpop.f32.mrb[0].mxu0
      %1022 = vmatprep.mubr.f32.mxu0 0.0
      %1023 = vmatmul.mubr.f32.gmra.mrb[0].mxu0 %v389
      %v1024 = vpop.f32.mrb[0].mxu0
      %v1025 = vadd.f32 %v951, %v1024
      %v1026 = vpop.f32.mrb[0].mxu0
      %1027 = vmatprep.mubr.f32.mxu0 0.0
      %1028 = vmatmul.mubr.f32.gmra.mrb[0].mxu0 %v392
      %v1029 = vpop.f32.mrb[0].mxu0
      %v1030 = vadd.f32 %v951, %v1029
      %v1031 = vpop.f32.mrb[0].mxu0
      %1032 = vmatprep.mubr.f32.mxu0 0.0
      %1033 = vmatmul.mubr.f32.gmra.mrb[0].mxu0 %v395
      %v1034 = vpop.f32.mrb[0].mxu0
      %v1035 = vadd.f32 %v951, %v1034
      %v1036 = vpop.f32.mrb[0].mxu0
      %1037 = vmatprep.mubr.f32.mxu0 0.0
      %1038 = vmatmul.mubr.f32.gmra.mrb[0].mxu0 %v398
      %v1039 = vpop.f32.mrb[0].mxu0
      %v1040 = vadd.f32 %v951, %v1039
      %v1041 = vpop.f32.mrb[0].mxu0
      %1042 = vmatprep.mubr.f32.mxu0 0.0
      %1043 = vmatmul.mubr.f32.gmra.mrb[0].mxu0 %v401
      %v1044 = vpop.f32.mrb[0].mxu0
      %v1045 = vadd.f32 %v951, %v1044
      %v1046 = vpop.f32.mrb[0].mxu0
      %1047 = vmatprep.mubr.f32.mxu0 0.0
      %1048 = vmatmul.mubr.f32.gmra.mrb[0].mxu0 %v404
      %v1049 = vpop.f32.mrb[0].mxu0
      %v1050 = vadd.f32 %v951, %v1049
      %v1051 = vpop.f32.mrb[0].mxu0
      %1052 = vmatprep.mubr.f32.mxu0 0.0
      %1053 = vmatmul.mubr.f32.gmra.mrb[0].mxu0 %v407
      %v1054 = vpop.f32.mrb[0].mxu0
      %v1055 = vadd.f32 %v951, %v1054
      %v1056 = vpop.f32.mrb[0].mxu0
      %1057 = vmatprep.mubr.f32.mxu0 0.0
      %1058 = vmatmul.mubr.f32.gmra.mrb[0].mxu0 %v410
      %v1059 = vpop.f32.mrb[0].mxu0
      %v1060 = vadd.f32 %v951, %v1059
      %v1061 = vpop.f32.mrb[0].mxu0
      %1062 = vmatprep.mubr.f32.mxu0 0.0
      %1063 = vmatmul.mubr.f32.gmra.mrb[0].mxu0 %v413
      %v1064 = vpop.f32.mrb[0].mxu0
      %v1065 = vadd.f32 %v951, %v1064
      %v1066 = vpop.f32.mrb[0].mxu0
      %1067 = vmatprep.mubr.f32.mxu0 0.0
      %1068 = vmatmul.mubr.f32.gmra.mrb[0].mxu0 %v416
      %v1069 = vpop.f32.mrb[0].mxu0
      %v1070 = vadd.f32 %v951, %v1069
      %v1071 = vpop.f32.mrb[0].mxu0
      %1072 = vmatprep.mubr.f32.mxu0 0.0
      %1073 = vmatmul.mubr.f32.gmra.mrb[0].mxu0 %v419
      %v1074 = vpop.f32.mrb[0].mxu0
      %v1075 = vadd.f32 %v951, %v1074
      %v1076 = vpop.f32.mrb[0].mxu0
      %1077 = vmatprep.mubr.f32.mxu0 0.0
      %1078 = vmatmul.mubr.f32.gmra.mrb[0].mxu0 %v422
      %v1079 = vpop.f32.mrb[0].mxu0
      %v1080 = vadd.f32 %v951, %v1079
      %v1081 = vpop.f32.mrb[0].mxu0
      %1082 = vmatprep.mubr.f32.mxu0 0.0
      %1083 = vmatmul.mubr.f32.gmra.mrb[0].mxu0 %v425
      %v1084 = vpop.f32.mrb[0].mxu0
      %v1085 = vadd.f32 %v951, %v1084
      %v1086 = vpop.f32.mrb[0].mxu0
      %1087 = vmatprep.mubr.f32.mxu0 0.0
      %1088 = vmatmul.mubr.f32.gmra.mrb[0].mxu0 %v428
      %v1089 = vpop.f32.mrb[0].mxu0
      %v1090 = vadd.f32 %v951, %v1089
      %v1091 = vpop.f32.mrb[0].mxu0
      %1092 = vmatprep.mubr.f32.mxu0 0.0
      %1093 = vmatmul.mubr.f32.gmra.mrb[0].mxu0 %v431
      %v1094 = vpop.f32.mrb[0].mxu0
      %v1095 = vadd.f32 %v951, %v1094
      %v1096 = vpop.f32.mrb[0].mxu0
      %1097 = vmatprep.mubr.f32.mxu0 0.0
      %1098 = vmatmul.mubr.f32.gmra.mrb[0].mxu0 %v434
      %v1099 = vpop.f32.mrb[0].mxu0
      %v1100 = vadd.f32 %v951, %v1099
      %v1101 = vpop.f32.mrb[0].mxu0
      %1102 = vmatprep.mubr.f32.mxu0 0.0
      %1103 = vmatmul.mubr.f32.gmra.mrb[0].mxu0 %v437
      %v1104 = vpop.f32.mrb[0].mxu0
      %v1105 = vadd.f32 %v951, %v1104
      %v1106 = vpop.f32.mrb[0].mxu0
      %1107 = vmatprep.mubr.f32.mxu0 0.0
      %1108 = vmatmul.mubr.f32.gmra.mrb[0].mxu0 %v440
      %v1109 = vpop.f32.mrb[0].mxu0
      %v1110 = vadd.f32 %v951, %v1109
      %v1111 = vpop.f32.mrb[0].mxu0
      %1112 = vmatprep.mubr.f32.mxu0 0.0
      %1113 = vmatmul.mubr.f32.gmra.mrb[0].mxu0 %v443
      %v1114 = vpop.f32.mrb[0].mxu0
      %v1115 = vadd.f32 %v951, %v1114
      %v1116 = vpop.f32.mrb[0].mxu0
      %1117 = vmatprep.mubr.f32.mxu0 0.0
      %1118 = vmatmul.mubr.f32.gmra.mrb[0].mxu0 %v446
      %v1119 = vpop.f32.mrb[0].mxu0
      %v1120 = vadd.f32 %v951, %v1119
      %v1121 = vpop.f32.mrb[0].mxu0
      %1122 = vmatprep.mubr.f32.mxu0 0.0
      %1123 = vmatmul.mubr.f32.gmra.mrb[0].mxu0 %v449
      %v1124 = vpop.f32.mrb[0].mxu0
      %v1125 = vadd.f32 %v951, %v1124
      %v1126 = vpop.f32.mrb[0].mxu0
      %1127 = vmatprep.mubr.f32.mxu0 0.0
      %1128 = vmatmul.mubr.f32.gmra.mrb[0].mxu0 %v452
      %v1129 = vpop.f32.mrb[0].mxu0
      %v1130 = vadd.f32 %v951, %v1129
      %v1131 = vpop.f32.mrb[0].mxu0
      %1132 = vmatprep.mubr.f32.mxu0 0.0
      %1133 = vmatmul.mubr.f32.gmra.mrb[0].mxu0 %v455
      %v1134 = vpop.f32.mrb[0].mxu0
      %v1135 = vadd.f32 %v951, %v1134
      %v1136 = vpop.f32.mrb[0].mxu0
      %1137 = vmatprep.mubr.f32.mxu0 0.0
      %1138 = vmatmul.mubr.f32.gmra.mrb[0].mxu0 %v458
      %v1139 = vpop.f32.mrb[0].mxu0
      %v1140 = vadd.f32 %v951, %v1139
      %v1141 = vpop.f32.mrb[0].mxu0
      %1142 = vmatprep.mubr.f32.mxu0 0.0
      %1143 = vmatmul.mubr.f32.gmra.mrb[0].mxu0 %v461
      %v1144 = vpop.f32.mrb[0].mxu0
      %v1145 = vadd.f32 %v951, %v1144
      %v1146 = vpop.f32.mrb[0].mxu0
      %1147 = vmatprep.mubr.f32.mxu0 0.0
      %1148 = vmatmul.mubr.f32.gmra.mrb[0].mxu0 %v464
      %v1149 = vpop.f32.mrb[0].mxu0
      %v1150 = vadd.f32 %v951, %v1149
      %v1151 = vpop.f32.mrb[0].mxu0
      %1152 = vmatprep.mubr.f32.mxu0 0.0
      %1153 = vmatmul.mubr.f32.gmra.mrb[0].mxu0 %v467
      %v1154 = vpop.f32.mrb[0].mxu0
      %v1155 = vadd.f32 %v951, %v1154
      %v1156 = vpop.f32.mrb[0].mxu0
      %1157 = vmatprep.mubr.f32.mxu0 0.0
      %1158 = vmatmul.mubr.f32.gmra.mrb[0].mxu0 %v470
      %v1159 = vpop.f32.mrb[0].mxu0
      %v1160 = vadd.f32 %v951, %v1159
      %v1161 = vpop.f32.mrb[0].mxu0
      %1162 = vmatprep.mubr.f32.mxu0 0.0
      %1163 = vmatmul.mubr.f32.gmra.mrb[0].mxu0 %v473
      %v1164 = vpop.f32.mrb[0].mxu0
      %v1165 = vadd.f32 %v951, %v1164
      %v1166 = vpop.f32.mrb[0].mxu0
      %1167 = vmatprep.mubr.f32.mxu0 0.0
      %1168 = vmatmul.mubr.f32.gmra.mrb[0].mxu0 %v476
      %v1169 = vpop.f32.mrb[0].mxu0
      %v1170 = vadd.f32 %v951, %v1169
      %v1171 = vpop.f32.mrb[0].mxu0
      %1172 = vmatprep.mubr.f32.mxu0 0.0
      %1173 = vmatmul.mubr.f32.gmra.mrb[0].mxu0 %v479
      %v1174 = vpop.f32.mrb[0].mxu0
      %v1175 = vadd.f32 %v951, %v1174
      %v1176 = vpop.f32.mrb[0].mxu0
      %1177 = vdwg.mxu0
      %vm1178 = vcmask 64512
      %v1180 = vsel %vm1178, %v548, 0
      %v1183 = vsel %vm1178, %v553, 0
      %v1186 = vsel %vm1178, %v558, 0
      %v1189 = vsel %vm1178, %v563, 0
      %v1192 = vsel %vm1178, %v568, 0
      %v1195 = vsel %vm1178, %v573, 0
      %v1198 = vsel %vm1178, %v578, 0
      %v1201 = vsel %vm1178, %v583, 0
      %v1204 = vsel %vm1178, %v784, 0
      %v1207 = vsel %vm1178, %v789, 0
      %v1210 = vsel %vm1178, %v794, 0
      %v1213 = vsel %vm1178, %v799, 0
      %v1216 = vsel %vm1178, %v804, 0
      %v1219 = vsel %vm1178, %v809, 0
      %v1222 = vsel %vm1178, %v814, 0
      %v1225 = vsel %vm1178, %v819, 0
      %1227 = vmatprep.subr.mxu0 0.0
      %1228 = vmatpush1.xpose.msra.mxu0 %v1204
      %1229 = vmatprep.subr.mxu0 0.0
      %1230 = vmatpush1.xpose.msra.mxu0 %v1207
      %1231 = vmatprep.subr.mxu0 0.0
      %1232 = vmatpush1.xpose.msra.mxu0 %v1210
      %1233 = vmatprep.subr.mxu0 0.0
      %1234 = vmatpush1.xpose.msra.mxu0 %v1213
      %1235 = vmatprep.subr.mxu0 0.0
      %1236 = vmatpush1.xpose.msra.mxu0 %v1216
      %1237 = vmatprep.subr.mxu0 0.0
      %1238 = vmatpush1.xpose.msra.mxu0 %v1219
      %1239 = vmatprep.subr.mxu0 0.0
      %1240 = vmatpush1.xpose.msra.mxu0 %v1222
      %1241 = vmatprep.subr.mxu0 0.0
      %1242 = vmatpush1.xpose.msra.mxu0 %v1225
      %1243 = vmatprep.subr.mxu0 0.0
      %1244 = vmatpush1.xpose.msra.mxu0 0.0
      %1245 = vmatprep.subr.mxu0 0.0
      %1246 = vmatpush1.xpose.msra.mxu0 0.0
      %1247 = vmatprep.subr.mxu0 0.0
      %1248 = vmatpush1.xpose.msra.mxu0 0.0
      %1249 = vmatprep.subr.mxu0 0.0
      %1250 = vmatpush1.xpose.msra.mxu0 0.0
      %1251 = vmatprep.subr.mxu0 0.0
      %1252 = vmatpush1.xpose.msra.mxu0 0.0
      %1253 = vmatprep.subr.mxu0 0.0
      %1254 = vmatpush1.xpose.msra.mxu0 0.0
      %1255 = vmatprep.subr.mxu0 0.0
      %1256 = vmatpush1.xpose.msra.mxu0 0.0
      %1257 = vmatprep.subr.mxu0 0.0
      %1258 = vmatpush1.xpose.msra.mxu0 0.0
      %1259 = vmatprep.subr.mxu0 0.0
      %1260 = vmatpush1.xpose.msra.mxu0 0.0
      %1261 = vmatprep.subr.mxu0 0.0
      %1262 = vmatpush1.xpose.msra.mxu0 0.0
      %1263 = vmatprep.subr.mxu0 0.0
      %1264 = vmatpush1.xpose.msra.mxu0 0.0
      %1265 = vmatprep.subr.mxu0 0.0
      %1266 = vmatpush1.xpose.msra.mxu0 0.0
      %1267 = vmatprep.subr.mxu0 0.0
      %1268 = vmatpush1.xpose.msra.mxu0 0.0
      %1269 = vmatprep.subr.mxu0 0.0
      %1270 = vmatpush1.xpose.msra.mxu0 0.0
      %1271 = vmatprep.subr.mxu0 0.0
      %1272 = vmatpush1.xpose.msra.mxu0 0.0
      %1273 = vmatprep.subr.mxu0 0.0
      %1274 = vmatpush1.xpose.msra.mxu0 0.0
      %1275 = vmatprep.subr.mxu0 0.0
      %1276 = vmatpush1.xpose.msra.mxu0 0.0
      %1277 = vmatprep.subr.mxu0 0.0
      %1278 = vmatpush1.xpose.msra.mxu0 0.0
      %1279 = vmatprep.subr.mxu0 0.0
      %1280 = vmatpush1.xpose.msra.mxu0 0.0
      %1281 = vmatprep.subr.mxu0 0.0
      %1282 = vmatpush1.xpose.msra.mxu0 0.0
      %1283 = vmatprep.subr.mxu0 0.0
      %1284 = vmatpush1.xpose.msra.mxu0 0.0
      %1285 = vmatprep.subr.mxu0 0.0
      %1286 = vmatpush1.xpose.msra.mxu0 0.0
      %1287 = vmatprep.subr.mxu0 0.0
      %1288 = vmatpush1.xpose.msra.mxu0 0.0
      %1289 = vmatprep.subr.mxu0 0.0
      %1290 = vmatpush1.xpose.msra.mxu0 0.0
      %1291 = vmatprep.mubr.f32.mxu0 0.0
      %1292 = vmatmul.mubr.f32.gmra.mrb[0].mxu0 %v1180
      %v1293 = vpop.f32.mrb[0].mxu0
      %v1294 = vadd.f32 0.0, %v1293
      %v1295 = vpop.f32.mrb[0].mxu0
      %1296 = vmatprep.mubr.f32.mxu0 0.0
      %1297 = vmatmul.mubr.f32.gmra.mrb[0].mxu0 %v1183
      %v1298 = vpop.f32.mrb[0].mxu0
      %v1299 = vadd.f32 0.0, %v1298
      %v1300 = vpop.f32.mrb[0].mxu0
      %1301 = vmatprep.mubr.f32.mxu0 0.0
      %1302 = vmatmul.mubr.f32.gmra.mrb[0].mxu0 %v1186
      %v1303 = vpop.f32.mrb[0].mxu0
      %v1304 = vadd.f32 0.0, %v1303
      %v1305 = vpop.f32.mrb[0].mxu0
      %1306 = vmatprep.mubr.f32.mxu0 0.0
      %1307 = vmatmul.mubr.f32.gmra.mrb[0].mxu0 %v1189
      %v1308 = vpop.f32.mrb[0].mxu0
      %v1309 = vadd.f32 0.0, %v1308
      %v1310 = vpop.f32.mrb[0].mxu0
      %1311 = vmatprep.mubr.f32.mxu0 0.0
      %1312 = vmatmul.mubr.f32.gmra.mrb[0].mxu0 %v1192
      %v1313 = vpop.f32.mrb[0].mxu0
      %v1314 = vadd.f32 0.0, %v1313
      %v1315 = vpop.f32.mrb[0].mxu0
      %1316 = vmatprep.mubr.f32.mxu0 0.0
      %1317 = vmatmul.mubr.f32.gmra.mrb[0].mxu0 %v1195
      %v1318 = vpop.f32.mrb[0].mxu0
      %v1319 = vadd.f32 0.0, %v1318
      %v1320 = vpop.f32.mrb[0].mxu0
      %1321 = vmatprep.mubr.f32.mxu0 0.0
      %1322 = vmatmul.mubr.f32.gmra.mrb[0].mxu0 %v1198
      %v1323 = vpop.f32.mrb[0].mxu0
      %v1324 = vadd.f32 0.0, %v1323
      %v1325 = vpop.f32.mrb[0].mxu0
      %1326 = vmatprep.mubr.f32.mxu0 0.0
      %1327 = vmatmul.mubr.f32.gmra.mrb[0].mxu0 %v1201
      %v1328 = vpop.f32.mrb[0].mxu0
      %v1329 = vadd.f32 0.0, %v1328
      %v1330 = vpop.f32.mrb[0].mxu0
      %1331 = vdwg.mxu0
      %v1333 = vsel %vm1178, %v588, 0
      %v1336 = vsel %vm1178, %v593, 0
      %v1339 = vsel %vm1178, %v598, 0
      %v1342 = vsel %vm1178, %v603, 0
      %v1345 = vsel %vm1178, %v608, 0
      %v1348 = vsel %vm1178, %v613, 0
      %v1351 = vsel %vm1178, %v618, 0
      %v1354 = vsel %vm1178, %v623, 0
      %v1357 = vsel %vm1178, %v824, 0
      %v1360 = vsel %vm1178, %v829, 0
      %v1363 = vsel %vm1178, %v834, 0
      %v1366 = vsel %vm1178, %v839, 0
      %v1369 = vsel %vm1178, %v844, 0
      %v1372 = vsel %vm1178, %v849, 0
      %v1375 = vsel %vm1178, %v854, 0
      %v1378 = vsel %vm1178, %v859, 0
      %1380 = vmatprep.subr.mxu0 0.0
      %1381 = vmatpush1.xpose.msra.mxu0 %v1357
      %1382 = vmatprep.subr.mxu0 0.0
      %1383 = vmatpush1.xpose.msra.mxu0 %v1360
      %1384 = vmatprep.subr.mxu0 0.0
      %1385 = vmatpush1.xpose.msra.mxu0 %v1363
      %1386 = vmatprep.subr.mxu0 0.0
      %1387 = vmatpush1.xpose.msra.mxu0 %v1366
      %1388 = vmatprep.subr.mxu0 0.0
      %1389 = vmatpush1.xpose.msra.mxu0 %v1369
      %1390 = vmatprep.subr.mxu0 0.0
      %1391 = vmatpush1.xpose.msra.mxu0 %v1372
      %1392 = vmatprep.subr.mxu0 0.0
      %1393 = vmatpush1.xpose.msra.mxu0 %v1375
      %1394 = vmatprep.subr.mxu0 0.0
      %1395 = vmatpush1.xpose.msra.mxu0 %v1378
      %1396 = vmatprep.subr.mxu0 0.0
      %1397 = vmatpush1.xpose.msra.mxu0 0.0
      %1398 = vmatprep.subr.mxu0 0.0
      %1399 = vmatpush1.xpose.msra.mxu0 0.0
      %1400 = vmatprep.subr.mxu0 0.0
      %1401 = vmatpush1.xpose.msra.mxu0 0.0
      %1402 = vmatprep.subr.mxu0 0.0
      %1403 = vmatpush1.xpose.msra.mxu0 0.0
      %1404 = vmatprep.subr.mxu0 0.0
      %1405 = vmatpush1.xpose.msra.mxu0 0.0
      %1406 = vmatprep.subr.mxu0 0.0
      %1407 = vmatpush1.xpose.msra.mxu0 0.0
      %1408 = vmatprep.subr.mxu0 0.0
      %1409 = vmatpush1.xpose.msra.mxu0 0.0
      %1410 = vmatprep.subr.mxu0 0.0
      %1411 = vmatpush1.xpose.msra.mxu0 0.0
      %1412 = vmatprep.subr.mxu0 0.0
      %1413 = vmatpush1.xpose.msra.mxu0 0.0
      %1414 = vmatprep.subr.mxu0 0.0
      %1415 = vmatpush1.xpose.msra.mxu0 0.0
      %1416 = vmatprep.subr.mxu0 0.0
      %1417 = vmatpush1.xpose.msra.mxu0 0.0
      %1418 = vmatprep.subr.mxu0 0.0
      %1419 = vmatpush1.xpose.msra.mxu0 0.0
      %1420 = vmatprep.subr.mxu0 0.0
      %1421 = vmatpush1.xpose.msra.mxu0 0.0
      %1422 = vmatprep.subr.mxu0 0.0
      %1423 = vmatpush1.xpose.msra.mxu0 0.0
      %1424 = vmatprep.subr.mxu0 0.0
      %1425 = vmatpush1.xpose.msra.mxu0 0.0
      %1426 = vmatprep.subr.mxu0 0.0
      %1427 = vmatpush1.xpose.msra.mxu0 0.0
      %1428 = vmatprep.subr.mxu0 0.0
      %1429 = vmatpush1.xpose.msra.mxu0 0.0
      %1430 = vmatprep.subr.mxu0 0.0
      %1431 = vmatpush1.xpose.msra.mxu0 0.0
      %1432 = vmatprep.subr.mxu0 0.0
      %1433 = vmatpush1.xpose.msra.mxu0 0.0
      %1434 = vmatprep.subr.mxu0 0.0
      %1435 = vmatpush1.xpose.msra.mxu0 0.0
      %1436 = vmatprep.subr.mxu0 0.0
      %1437 = vmatpush1.xpose.msra.mxu0 0.0
      %1438 = vmatprep.subr.mxu0 0.0
      %1439 = vmatpush1.xpose.msra.mxu0 0.0
      %1440 = vmatprep.subr.mxu0 0.0
      %1441 = vmatpush1.xpose.msra.mxu0 0.0
      %1442 = vmatprep.subr.mxu0 0.0
      %1443 = vmatpush1.xpose.msra.mxu0 0.0
      %1444 = vmatprep.mubr.f32.mxu0 0.0
      %1445 = vmatmul.mubr.f32.gmra.mrb[0].mxu0 %v1333
      %v1446 = vpop.f32.mrb[0].mxu0
      %v1447 = vadd.f32 0.0, %v1446
      %v1448 = vpop.f32.mrb[0].mxu0
      %1449 = vmatprep.mubr.f32.mxu0 0.0
      %1450 = vmatmul.mubr.f32.gmra.mrb[0].mxu0 %v1336
      %v1451 = vpop.f32.mrb[0].mxu0
      %v1452 = vadd.f32 0.0, %v1451
      %v1453 = vpop.f32.mrb[0].mxu0
      %1454 = vmatprep.mubr.f32.mxu0 0.0
      %1455 = vmatmul.mubr.f32.gmra.mrb[0].mxu0 %v1339
      %v1456 = vpop.f32.mrb[0].mxu0
      %v1457 = vadd.f32 0.0, %v1456
      %v1458 = vpop.f32.mrb[0].mxu0
      %1459 = vmatprep.mubr.f32.mxu0 0.0
      %1460 = vmatmul.mubr.f32.gmra.mrb[0].mxu0 %v1342
      %v1461 = vpop.f32.mrb[0].mxu0
      %v1462 = vadd.f32 0.0, %v1461
      %v1463 = vpop.f32.mrb[0].mxu0
      %1464 = vmatprep.mubr.f32.mxu0 0.0
      %1465 = vmatmul.mubr.f32.gmra.mrb[0].mxu0 %v1345
      %v1466 = vpop.f32.mrb[0].mxu0
      %v1467 = vadd.f32 0.0, %v1466
      %v1468 = vpop.f32.mrb[0].mxu0
      %1469 = vmatprep.mubr.f32.mxu0 0.0
      %1470 = vmatmul.mubr.f32.gmra.mrb[0].mxu0 %v1348
      %v1471 = vpop.f32.mrb[0].mxu0
      %v1472 = vadd.f32 0.0, %v1471
      %v1473 = vpop.f32.mrb[0].mxu0
      %1474 = vmatprep.mubr.f32.mxu0 0.0
      %1475 = vmatmul.mubr.f32.gmra.mrb[0].mxu0 %v1351
      %v1476 = vpop.f32.mrb[0].mxu0
      %v1477 = vadd.f32 0.0, %v1476
      %v1478 = vpop.f32.mrb[0].mxu0
      %1479 = vmatprep.mubr.f32.mxu0 0.0
      %1480 = vmatmul.mubr.f32.gmra.mrb[0].mxu0 %v1354
      %v1481 = vpop.f32.mrb[0].mxu0
      %v1482 = vadd.f32 0.0, %v1481
      %v1483 = vpop.f32.mrb[0].mxu0
      %1484 = vdwg.mxu0
      %v1486 = vsel %vm1178, %v628, 0
      %v1489 = vsel %vm1178, %v633, 0
      %v1492 = vsel %vm1178, %v638, 0
      %v1495 = vsel %vm1178, %v643, 0
      %v1498 = vsel %vm1178, %v648, 0
      %v1501 = vsel %vm1178, %v653, 0
      %v1504 = vsel %vm1178, %v658, 0
      %v1507 = vsel %vm1178, %v663, 0
      %v1510 = vsel %vm1178, %v864, 0
      %v1513 = vsel %vm1178, %v869, 0
      %v1516 = vsel %vm1178, %v874, 0
      %v1519 = vsel %vm1178, %v879, 0
      %v1522 = vsel %vm1178, %v884, 0
      %v1525 = vsel %vm1178, %v889, 0
      %v1528 = vsel %vm1178, %v894, 0
      %v1531 = vsel %vm1178, %v899, 0
      %1533 = vmatprep.subr.mxu0 0.0
      %1534 = vmatpush1.xpose.msra.mxu0 %v1510
      %1535 = vmatprep.subr.mxu0 0.0
      %1536 = vmatpush1.xpose.msra.mxu0 %v1513
      %1537 = vmatprep.subr.mxu0 0.0
      %1538 = vmatpush1.xpose.msra.mxu0 %v1516
      %1539 = vmatprep.subr.mxu0 0.0
      %1540 = vmatpush1.xpose.msra.mxu0 %v1519
      %1541 = vmatprep.subr.mxu0 0.0
      %1542 = vmatpush1.xpose.msra.mxu0 %v1522
      %1543 = vmatprep.subr.mxu0 0.0
      %1544 = vmatpush1.xpose.msra.mxu0 %v1525
      %1545 = vmatprep.subr.mxu0 0.0
      %1546 = vmatpush1.xpose.msra.mxu0 %v1528
      %1547 = vmatprep.subr.mxu0 0.0
      %1548 = vmatpush1.xpose.msra.mxu0 %v1531
      %1549 = vmatprep.subr.mxu0 0.0
      %1550 = vmatpush1.xpose.msra.mxu0 0.0
      %1551 = vmatprep.subr.mxu0 0.0
      %1552 = vmatpush1.xpose.msra.mxu0 0.0
      %1553 = vmatprep.subr.mxu0 0.0
      %1554 = vmatpush1.xpose.msra.mxu0 0.0
      %1555 = vmatprep.subr.mxu0 0.0
      %1556 = vmatpush1.xpose.msra.mxu0 0.0
      %1557 = vmatprep.subr.mxu0 0.0
      %1558 = vmatpush1.xpose.msra.mxu0 0.0
      %1559 = vmatprep.subr.mxu0 0.0
      %1560 = vmatpush1.xpose.msra.mxu0 0.0
      %1561 = vmatprep.subr.mxu0 0.0
      %1562 = vmatpush1.xpose.msra.mxu0 0.0
      %1563 = vmatprep.subr.mxu0 0.0
      %1564 = vmatpush1.xpose.msra.mxu0 0.0
      %1565 = vmatprep.subr.mxu0 0.0
      %1566 = vmatpush1.xpose.msra.mxu0 0.0
      %1567 = vmatprep.subr.mxu0 0.0
      %1568 = vmatpush1.xpose.msra.mxu0 0.0
      %1569 = vmatprep.subr.mxu0 0.0
      %1570 = vmatpush1.xpose.msra.mxu0 0.0
      %1571 = vmatprep.subr.mxu0 0.0
      %1572 = vmatpush1.xpose.msra.mxu0 0.0
      %1573 = vmatprep.subr.mxu0 0.0
      %1574 = vmatpush1.xpose.msra.mxu0 0.0
      %1575 = vmatprep.subr.mxu0 0.0
      %1576 = vmatpush1.xpose.msra.mxu0 0.0
      %1577 = vmatprep.subr.mxu0 0.0
      %1578 = vmatpush1.xpose.msra.mxu0 0.0
      %1579 = vmatprep.subr.mxu0 0.0
      %1580 = vmatpush1.xpose.msra.mxu0 0.0
      %1581 = vmatprep.subr.mxu0 0.0
      %1582 = vmatpush1.xpose.msra.mxu0 0.0
      %1583 = vmatprep.subr.mxu0 0.0
      %1584 = vmatpush1.xpose.msra.mxu0 0.0
      %1585 = vmatprep.subr.mxu0 0.0
      %1586 = vmatpush1.xpose.msra.mxu0 0.0
      %1587 = vmatprep.subr.mxu0 0.0
      %1588 = vmatpush1.xpose.msra.mxu0 0.0
      %1589 = vmatprep.subr.mxu0 0.0
      %1590 = vmatpush1.xpose.msra.mxu0 0.0
      %1591 = vmatprep.subr.mxu0 0.0
      %1592 = vmatpush1.xpose.msra.mxu0 0.0
      %1593 = vmatprep.subr.mxu0 0.0
      %1594 = vmatpush1.xpose.msra.mxu0 0.0
      %1595 = vmatprep.subr.mxu0 0.0
      %1596 = vmatpush1.xpose.msra.mxu0 0.0
      %1597 = vmatprep.mubr.f32.mxu0 0.0
      %1598 = vmatmul.mubr.f32.gmra.mrb[0].mxu0 %v1486
      %v1599 = vpop.f32.mrb[0].mxu0
      %v1600 = vadd.f32 0.0, %v1599
      %v1601 = vpop.f32.mrb[0].mxu0
      %1602 = vmatprep.mubr.f32.mxu0 0.0
      %1603 = vmatmul.mubr.f32.gmra.mrb[0].mxu0 %v1489
      %v1604 = vpop.f32.mrb[0].mxu0
      %v1605 = vadd.f32 0.0, %v1604
      %v1606 = vpop.f32.mrb[0].mxu0
      %1607 = vmatprep.mubr.f32.mxu0 0.0
      %1608 = vmatmul.mubr.f32.gmra.mrb[0].mxu0 %v1492
      %v1609 = vpop.f32.mrb[0].mxu0
      %v1610 = vadd.f32 0.0, %v1609
      %v1611 = vpop.f32.mrb[0].mxu0
      %1612 = vmatprep.mubr.f32.mxu0 0.0
      %1613 = vmatmul.mubr.f32.gmra.mrb[0].mxu0 %v1495
      %v1614 = vpop.f32.mrb[0].mxu0
      %v1615 = vadd.f32 0.0, %v1614
      %v1616 = vpop.f32.mrb[0].mxu0
      %1617 = vmatprep.mubr.f32.mxu0 0.0
      %1618 = vmatmul.mubr.f32.gmra.mrb[0].mxu0 %v1498
      %v1619 = vpop.f32.mrb[0].mxu0
      %v1620 = vadd.f32 0.0, %v1619
      %v1621 = vpop.f32.mrb[0].mxu0
      %1622 = vmatprep.mubr.f32.mxu0 0.0
      %1623 = vmatmul.mubr.f32.gmra.mrb[0].mxu0 %v1501
      %v1624 = vpop.f32.mrb[0].mxu0
      %v1625 = vadd.f32 0.0, %v1624
      %v1626 = vpop.f32.mrb[0].mxu0
      %1627 = vmatprep.mubr.f32.mxu0 0.0
      %1628 = vmatmul.mubr.f32.gmra.mrb[0].mxu0 %v1504
      %v1629 = vpop.f32.mrb[0].mxu0
      %v1630 = vadd.f32 0.0, %v1629
      %v1631 = vpop.f32.mrb[0].mxu0
      %1632 = vmatprep.mubr.f32.mxu0 0.0
      %1633 = vmatmul.mubr.f32.gmra.mrb[0].mxu0 %v1507
      %v1634 = vpop.f32.mrb[0].mxu0
      %v1635 = vadd.f32 0.0, %v1634
      %v1636 = vpop.f32.mrb[0].mxu0
      %1637 = vdwg.mxu0
      %v1639 = vsel %vm1178, %v668, 0
      %v1642 = vsel %vm1178, %v673, 0
      %v1645 = vsel %vm1178, %v678, 0
      %v1648 = vsel %vm1178, %v683, 0
      %v1651 = vsel %vm1178, %v688, 0
      %v1654 = vsel %vm1178, %v693, 0
      %v1657 = vsel %vm1178, %v698, 0
      %v1660 = vsel %vm1178, %v703, 0
      %v1663 = vsel %vm1178, %v904, 0
      %v1666 = vsel %vm1178, %v909, 0
      %v1669 = vsel %vm1178, %v914, 0
      %v1672 = vsel %vm1178, %v919, 0
      %v1675 = vsel %vm1178, %v924, 0
      %v1678 = vsel %vm1178, %v929, 0
      %v1681 = vsel %vm1178, %v934, 0
      %v1684 = vsel %vm1178, %v939, 0
      %1686 = vmatprep.subr.mxu0 0.0
      %1687 = vmatpush1.xpose.msra.mxu0 %v1663
      %1688 = vmatprep.subr.mxu0 0.0
      %1689 = vmatpush1.xpose.msra.mxu0 %v1666
      %1690 = vmatprep.subr.mxu0 0.0
      %1691 = vmatpush1.xpose.msra.mxu0 %v1669
      %1692 = vmatprep.subr.mxu0 0.0
      %1693 = vmatpush1.xpose.msra.mxu0 %v1672
      %1694 = vmatprep.subr.mxu0 0.0
      %1695 = vmatpush1.xpose.msra.mxu0 %v1675
      %1696 = vmatprep.subr.mxu0 0.0
      %1697 = vmatpush1.xpose.msra.mxu0 %v1678
      %1698 = vmatprep.subr.mxu0 0.0
      %1699 = vmatpush1.xpose.msra.mxu0 %v1681
      %1700 = vmatprep.subr.mxu0 0.0
      %1701 = vmatpush1.xpose.msra.mxu0 %v1684
      %1702 = vmatprep.subr.mxu0 0.0
      %1703 = vmatpush1.xpose.msra.mxu0 0.0
      %1704 = vmatprep.subr.mxu0 0.0
      %1705 = vmatpush1.xpose.msra.mxu0 0.0
      %1706 = vmatprep.subr.mxu0 0.0
      %1707 = vmatpush1.xpose.msra.mxu0 0.0
      %1708 = vmatprep.subr.mxu0 0.0
      %1709 = vmatpush1.xpose.msra.mxu0 0.0
      %1710 = vmatprep.subr.mxu0 0.0
      %1711 = vmatpush1.xpose.msra.mxu0 0.0
      %1712 = vmatprep.subr.mxu0 0.0
      %1713 = vmatpush1.xpose.msra.mxu0 0.0
      %1714 = vmatprep.subr.mxu0 0.0
      %1715 = vmatpush1.xpose.msra.mxu0 0.0
      %1716 = vmatprep.subr.mxu0 0.0
      %1717 = vmatpush1.xpose.msra.mxu0 0.0
      %1718 = vmatprep.subr.mxu0 0.0
      %1719 = vmatpush1.xpose.msra.mxu0 0.0
      %1720 = vmatprep.subr.mxu0 0.0
      %1721 = vmatpush1.xpose.msra.mxu0 0.0
      %1722 = vmatprep.subr.mxu0 0.0
      %1723 = vmatpush1.xpose.msra.mxu0 0.0
      %1724 = vmatprep.subr.mxu0 0.0
      %1725 = vmatpush1.xpose.msra.mxu0 0.0
      %1726 = vmatprep.subr.mxu0 0.0
      %1727 = vmatpush1.xpose.msra.mxu0 0.0
      %1728 = vmatprep.subr.mxu0 0.0
      %1729 = vmatpush1.xpose.msra.mxu0 0.0
      %1730 = vmatprep.subr.mxu0 0.0
      %1731 = vmatpush1.xpose.msra.mxu0 0.0
      %1732 = vmatprep.subr.mxu0 0.0
      %1733 = vmatpush1.xpose.msra.mxu0 0.0
      %1734 = vmatprep.subr.mxu0 0.0
      %1735 = vmatpush1.xpose.msra.mxu0 0.0
      %1736 = vmatprep.subr.mxu0 0.0
      %1737 = vmatpush1.xpose.msra.mxu0 0.0
      %1738 = vmatprep.subr.mxu0 0.0
      %1739 = vmatpush1.xpose.msra.mxu0 0.0
      %1740 = vmatprep.subr.mxu0 0.0
      %1741 = vmatpush1.xpose.msra.mxu0 0.0
      %1742 = vmatprep.subr.mxu0 0.0
      %1743 = vmatpush1.xpose.msra.mxu0 0.0
      %1744 = vmatprep.subr.mxu0 0.0
      %1745 = vmatpush1.xpose.msra.mxu0 0.0
      %1746 = vmatprep.subr.mxu0 0.0
      %1747 = vmatpush1.xpose.msra.mxu0 0.0
      %1748 = vmatprep.subr.mxu0 0.0
      %1749 = vmatpush1.xpose.msra.mxu0 0.0
      %1750 = vmatprep.mubr.f32.mxu0 0.0
      %1751 = vmatmul.mubr.f32.gmra.mrb[0].mxu0 %v1639
      %v1752 = vpop.f32.mrb[0].mxu0
      %v1753 = vadd.f32 0.0, %v1752
      %v1754 = vpop.f32.mrb[0].mxu0
      %1755 = vmatprep.mubr.f32.mxu0 0.0
      %1756 = vmatmul.mubr.f32.gmra.mrb[0].mxu0 %v1642
      %v1757 = vpop.f32.mrb[0].mxu0
      %v1758 = vadd.f32 0.0, %v1757
      %v1759 = vpop.f32.mrb[0].mxu0
      %1760 = vmatprep.mubr.f32.mxu0 0.0
      %1761 = vmatmul.mubr.f32.gmra.mrb[0].mxu0 %v1645
      %v1762 = vpop.f32.mrb[0].mxu0
      %v1763 = vadd.f32 0.0, %v1762
      %v1764 = vpop.f32.mrb[0].mxu0
      %1765 = vmatprep.mubr.f32.mxu0 0.0
      %1766 = vmatmul.mubr.f32.gmra.mrb[0].mxu0 %v1648
      %v1767 = vpop.f32.mrb[0].mxu0
      %v1768 = vadd.f32 0.0, %v1767
      %v1769 = vpop.f32.mrb[0].mxu0
      %1770 = vmatprep.mubr.f32.mxu0 0.0
      %1771 = vmatmul.mubr.f32.gmra.mrb[0].mxu0 %v1651
      %v1772 = vpop.f32.mrb[0].mxu0
      %v1773 = vadd.f32 0.0, %v1772
      %v1774 = vpop.f32.mrb[0].mxu0
      %1775 = vmatprep.mubr.f32.mxu0 0.0
      %1776 = vmatmul.mubr.f32.gmra.mrb[0].mxu0 %v1654
      %v1777 = vpop.f32.mrb[0].mxu0
      %v1778 = vadd.f32 0.0, %v1777
      %v1779 = vpop.f32.mrb[0].mxu0
      %1780 = vmatprep.mubr.f32.mxu0 0.0
      %1781 = vmatmul.mubr.f32.gmra.mrb[0].mxu0 %v1657
      %v1782 = vpop.f32.mrb[0].mxu0
      %v1783 = vadd.f32 0.0, %v1782
      %v1784 = vpop.f32.mrb[0].mxu0
      %1785 = vmatprep.mubr.f32.mxu0 0.0
      %1786 = vmatmul.mubr.f32.gmra.mrb[0].mxu0 %v1660
      %v1787 = vpop.f32.mrb[0].mxu0
      %v1788 = vadd.f32 0.0, %v1787
      %v1789 = vpop.f32.mrb[0].mxu0
      %1790 = vdwg.mxu0
      %vm1791 = vcmask 523264
      %v1792 = vsel %vm1791, %v1294, -inf
      %1793 = vmax.xlane.f32.xlu0 %v1792
      %v1794 = vpop.xlane.xlu0 %1793
      %v1795 = vsel %vm1791, %v1299, -inf
      %1796 = vmax.xlane.f32.xlu0 %v1795
      %v1797 = vpop.xlane.xlu0 %1796
      %v1798 = vsel %vm1791, %v1304, -inf
      %1799 = vmax.xlane.f32.xlu0 %v1798
      %v1800 = vpop.xlane.xlu0 %1799
      %v1801 = vsel %vm1791, %v1309, -inf
      %1802 = vmax.xlane.f32.xlu0 %v1801
      %v1803 = vpop.xlane.xlu0 %1802
      %v1804 = vsel %vm1791, %v1314, -inf
      %1805 = vmax.xlane.f32.xlu0 %v1804
      %v1806 = vpop.xlane.xlu0 %1805
      %v1807 = vsel %vm1791, %v1319, -inf
      %1808 = vmax.xlane.f32.xlu0 %v1807
      %v1809 = vpop.xlane.xlu0 %1808
      %v1810 = vsel %vm1791, %v1324, -inf
      %1811 = vmax.xlane.f32.xlu0 %v1810
      %v1812 = vpop.xlane.xlu0 %1811
      %v1813 = vsel %vm1791, %v1329, -inf
      %1814 = vmax.xlane.f32.xlu0 %v1813
      %v1815 = vpop.xlane.xlu0 %1814
      %v1816 = vsel %vm1791, %v1447, -inf
      %1817 = vmax.xlane.f32.xlu0 %v1816
      %v1818 = vpop.xlane.xlu0 %1817
      %v1819 = vsel %vm1791, %v1452, -inf
      %1820 = vmax.xlane.f32.xlu0 %v1819
      %v1821 = vpop.xlane.xlu0 %1820
      %v1822 = vsel %vm1791, %v1457, -inf
      %1823 = vmax.xlane.f32.xlu0 %v1822
      %v1824 = vpop.xlane.xlu0 %1823
      %v1825 = vsel %vm1791, %v1462, -inf
      %1826 = vmax.xlane.f32.xlu0 %v1825
      %v1827 = vpop.xlane.xlu0 %1826
      %v1828 = vsel %vm1791, %v1467, -inf
      %1829 = vmax.xlane.f32.xlu0 %v1828
      %v1830 = vpop.xlane.xlu0 %1829
      %v1831 = vsel %vm1791, %v1472, -inf
      %1832 = vmax.xlane.f32.xlu0 %v1831
      %v1833 = vpop.xlane.xlu0 %1832
      %v1834 = vsel %vm1791, %v1477, -inf
      %1835 = vmax.xlane.f32.xlu0 %v1834
      %v1836 = vpop.xlane.xlu0 %1835
      %v1837 = vsel %vm1791, %v1482, -inf
      %1838 = vmax.xlane.f32.xlu0 %v1837
      %v1839 = vpop.xlane.xlu0 %1838
      %v1840 = vsel %vm1791, %v1600, -inf
      %1841 = vmax.xlane.f32.xlu0 %v1840
      %v1842 = vpop.xlane.xlu0 %1841
      %v1843 = vsel %vm1791, %v1605, -inf
      %1844 = vmax.xlane.f32.xlu0 %v1843
      %v1845 = vpop.xlane.xlu0 %1844
      %v1846 = vsel %vm1791, %v1610, -inf
      %1847 = vmax.xlane.f32.xlu0 %v1846
      %v1848 = vpop.xlane.xlu0 %1847
      %v1849 = vsel %vm1791, %v1615, -inf
      %1850 = vmax.xlane.f32.xlu0 %v1849
      %v1851 = vpop.xlane.xlu0 %1850
      %v1852 = vsel %vm1791, %v1620, -inf
      %1853 = vmax.xlane.f32.xlu0 %v1852
      %v1854 = vpop.xlane.xlu0 %1853
      %v1855 = vsel %vm1791, %v1625, -inf
      %1856 = vmax.xlane.f32.xlu0 %v1855
      %v1857 = vpop.xlane.xlu0 %1856
      %v1858 = vsel %vm1791, %v1630, -inf
      %1859 = vmax.xlane.f32.xlu0 %v1858
      %v1860 = vpop.xlane.xlu0 %1859
      %v1861 = vsel %vm1791, %v1635, -inf
      %1862 = vmax.xlane.f32.xlu0 %v1861
      %v1863 = vpop.xlane.xlu0 %1862
      %v1864 = vsel %vm1791, %v1753, -inf
      %1865 = vmax.xlane.f32.xlu0 %v1864
      %v1866 = vpop.xlane.xlu0 %1865
      %v1867 = vsel %vm1791, %v1758, -inf
      %1868 = vmax.xlane.f32.xlu0 %v1867
      %v1869 = vpop.xlane.xlu0 %1868
      %v1870 = vsel %vm1791, %v1763, -inf
      %1871 = vmax.xlane.f32.xlu0 %v1870
      %v1872 = vpop.xlane.xlu0 %1871
      %v1873 = vsel %vm1791, %v1768, -inf
      %1874 = vmax.xlane.f32.xlu0 %v1873
      %v1875 = vpop.xlane.xlu0 %1874
      %v1876 = vsel %vm1791, %v1773, -inf
      %1877 = vmax.xlane.f32.xlu0 %v1876
      %v1878 = vpop.xlane.xlu0 %1877
      %v1879 = vsel %vm1791, %v1778, -inf
      %1880 = vmax.xlane.f32.xlu0 %v1879
      %v1881 = vpop.xlane.xlu0 %1880
      %v1882 = vsel %vm1791, %v1783, -inf
      %1883 = vmax.xlane.f32.xlu0 %v1882
      %v1884 = vpop.xlane.xlu0 %1883
      %v1885 = vsel %vm1791, %v1788, -inf
      %1886 = vmax.xlane.f32.xlu0 %v1885
      %v1887 = vpop.xlane.xlu0 %1886
      %v1888 = vsub.f32 %v1294, %v1794
      %v1889 = vsub.f32 %v1299, %v1797
      %v1890 = vsub.f32 %v1304, %v1800
      %v1891 = vsub.f32 %v1309, %v1803
      %v1892 = vsub.f32 %v1314, %v1806
      %v1893 = vsub.f32 %v1319, %v1809
      %v1894 = vsub.f32 %v1324, %v1812
      %v1895 = vsub.f32 %v1329, %v1815
      %v1896 = vsub.f32 %v1447, %v1818
      %v1897 = vsub.f32 %v1452, %v1821
      %v1898 = vsub.f32 %v1457, %v1824
      %v1899 = vsub.f32 %v1462, %v1827
      %v1900 = vsub.f32 %v1467, %v1830
      %v1901 = vsub.f32 %v1472, %v1833
      %v1902 = vsub.f32 %v1477, %v1836
      %v1903 = vsub.f32 %v1482, %v1839
      %v1904 = vsub.f32 %v1600, %v1842
      %v1905 = vsub.f32 %v1605, %v1845
      %v1906 = vsub.f32 %v1610, %v1848
      %v1907 = vsub.f32 %v1615, %v1851
      %v1908 = vsub.f32 %v1620, %v1854
      %v1909 = vsub.f32 %v1625, %v1857
      %v1910 = vsub.f32 %v1630, %v1860
      %v1911 = vsub.f32 %v1635, %v1863
      %v1912 = vsub.f32 %v1753, %v1866
      %v1913 = vsub.f32 %v1758, %v1869
      %v1914 = vsub.f32 %v1763, %v1872
      %v1915 = vsub.f32 %v1768, %v1875
      %v1916 = vsub.f32 %v1773, %v1878
      %v1917 = vsub.f32 %v1778, %v1881
      %v1918 = vsub.f32 %v1783, %v1884
      %v1919 = vsub.f32 %v1788, %v1887
      %v1920 = vmul.f32 %v1888, 1.442695
      %v1921 = vpow.pop %v1920
      %v1922 = vmul.f32 %v1889, 1.442695
      %v1923 = vpow.pop %v1922
      %v1924 = vmul.f32 %v1890, 1.442695
      %v1925 = vpow.pop %v1924
      %v1926 = vmul.f32 %v1891, 1.442695
      %v1927 = vpow.pop %v1926
      %v1928 = vmul.f32 %v1892, 1.442695
      %v1929 = vpow.pop %v1928
      %v1930 = vmul.f32 %v1893, 1.442695
      %v1931 = vpow.pop %v1930
      %v1932 = vmul.f32 %v1894, 1.442695
      %v1933 = vpow.pop %v1932
      %v1934 = vmul.f32 %v1895, 1.442695
      %v1935 = vpow.pop %v1934
      %v1936 = vmul.f32 %v1896, 1.442695
      %v1937 = vpow.pop %v1936
      %v1938 = vmul.f32 %v1897, 1.442695
      %v1939 = vpow.pop %v1938
      %v1940 = vmul.f32 %v1898, 1.442695
      %v1941 = vpow.pop %v1940
      %v1942 = vmul.f32 %v1899, 1.442695
      %v1943 = vpow.pop %v1942
      %v1944 = vmul.f32 %v1900, 1.442695
      %v1945 = vpow.pop %v1944
      %v1946 = vmul.f32 %v1901, 1.442695
      %v1947 = vpow.pop %v1946
      %v1948 = vmul.f32 %v1902, 1.442695
      %v1949 = vpow.pop %v1948
      %v1950 = vmul.f32 %v1903, 1.442695
      %v1951 = vpow.pop %v1950
      %v1952 = vmul.f32 %v1904, 1.442695
      %v1953 = vpow.pop %v1952
      %v1954 = vmul.f32 %v1905, 1.442695
      %v1955 = vpow.pop %v1954
      %v1956 = vmul.f32 %v1906, 1.442695
      %v1957 = vpow.pop %v1956
      %v1958 = vmul.f32 %v1907, 1.442695
      %v1959 = vpow.pop %v1958
      %v1960 = vmul.f32 %v1908, 1.442695
      %v1961 = vpow.pop %v1960
      %v1962 = vmul.f32 %v1909, 1.442695
      %v1963 = vpow.pop %v1962
      %v1964 = vmul.f32 %v1910, 1.442695
      %v1965 = vpow.pop %v1964
      %v1966 = vmul.f32 %v1911, 1.442695
      %v1967 = vpow.pop %v1966
      %v1968 = vmul.f32 %v1912, 1.442695
      %v1969 = vpow.pop %v1968
      %v1970 = vmul.f32 %v1913, 1.442695
      %v1971 = vpow.pop %v1970
      %v1972 = vmul.f32 %v1914, 1.442695
      %v1973 = vpow.pop %v1972
      %v1974 = vmul.f32 %v1915, 1.442695
      %v1975 = vpow.pop %v1974
      %v1976 = vmul.f32 %v1916, 1.442695
      %v1977 = vpow.pop %v1976
      %v1978 = vmul.f32 %v1917, 1.442695
      %v1979 = vpow.pop %v1978
      %v1980 = vmul.f32 %v1918, 1.442695
      %v1981 = vpow.pop %v1980
      %v1982 = vmul.f32 %v1919, 1.442695
      %v1983 = vpow.pop %v1982
      %v1984 = vsel %vm1791, %v1921, 0.0
      %1985 = vadd.xlane.f32.xlu0 %v1984
      %v1986 = vpop.xlane.xlu0 %1985
      %v1987 = vsel %vm1791, %v1923, 0.0
      %1988 = vadd.xlane.f32.xlu0 %v1987
      %v1989 = vpop.xlane.xlu0 %1988
      %v1990 = vsel %vm1791, %v1925, 0.0
      %1991 = vadd.xlane.f32.xlu0 %v1990
      %v1992 = vpop.xlane.xlu0 %1991
      %v1993 = vsel %vm1791, %v1927, 0.0
      %1994 = vadd.xlane.f32.xlu0 %v1993
      %v1995 = vpop.xlane.xlu0 %1994
      %v1996 = vsel %vm1791, %v1929, 0.0
      %1997 = vadd.xlane.f32.xlu0 %v1996
      %v1998 = vpop.xlane.xlu0 %1997
      %v1999 = vsel %vm1791, %v1931, 0.0
      %2000 = vadd.xlane.f32.xlu0 %v1999
      %v2001 = vpop.xlane.xlu0 %2000
      %v2002 = vsel %vm1791, %v1933, 0.0
      %2003 = vadd.xlane.f32.xlu0 %v2002
      %v2004 = vpop.xlane.xlu0 %2003
      %v2005 = vsel %vm1791, %v1935, 0.0
      %2006 = vadd.xlane.f32.xlu0 %v2005
      %v2007 = vpop.xlane.xlu0 %2006
      %v2008 = vsel %vm1791, %v1937, 0.0
      %2009 = vadd.xlane.f32.xlu0 %v2008
      %v2010 = vpop.xlane.xlu0 %2009
      %v2011 = vsel %vm1791, %v1939, 0.0
      %2012 = vadd.xlane.f32.xlu0 %v2011
      %v2013 = vpop.xlane.xlu0 %2012
      %v2014 = vsel %vm1791, %v1941, 0.0
      %2015 = vadd.xlane.f32.xlu0 %v2014
      %v2016 = vpop.xlane.xlu0 %2015
      %v2017 = vsel %vm1791, %v1943, 0.0
      %2018 = vadd.xlane.f32.xlu0 %v2017
      %v2019 = vpop.xlane.xlu0 %2018
      %v2020 = vsel %vm1791, %v1945, 0.0
      %2021 = vadd.xlane.f32.xlu0 %v2020
      %v2022 = vpop.xlane.xlu0 %2021
      %v2023 = vsel %vm1791, %v1947, 0.0
      %2024 = vadd.xlane.f32.xlu0 %v2023
      %v2025 = vpop.xlane.xlu0 %2024
      %v2026 = vsel %vm1791, %v1949, 0.0
      %2027 = vadd.xlane.f32.xlu0 %v2026
      %v2028 = vpop.xlane.xlu0 %2027
      %v2029 = vsel %vm1791, %v1951, 0.0
      %2030 = vadd.xlane.f32.xlu0 %v2029
      %v2031 = vpop.xlane.xlu0 %2030
      %v2032 = vsel %vm1791, %v1953, 0.0
      %2033 = vadd.xlane.f32.xlu0 %v2032
      %v2034 = vpop.xlane.xlu0 %2033
      %v2035 = vsel %vm1791, %v1955, 0.0
      %2036 = vadd.xlane.f32.xlu0 %v2035
      %v2037 = vpop.xlane.xlu0 %2036
      %v2038 = vsel %vm1791, %v1957, 0.0
      %2039 = vadd.xlane.f32.xlu0 %v2038
      %v2040 = vpop.xlane.xlu0 %2039
      %v2041 = vsel %vm1791, %v1959, 0.0
      %2042 = vadd.xlane.f32.xlu0 %v2041
      %v2043 = vpop.xlane.xlu0 %2042
      %v2044 = vsel %vm1791, %v1961, 0.0
      %2045 = vadd.xlane.f32.xlu0 %v2044
      %v2046 = vpop.xlane.xlu0 %2045
      %v2047 = vsel %vm1791, %v1963, 0.0
      %2048 = vadd.xlane.f32.xlu0 %v2047
      %v2049 = vpop.xlane.xlu0 %2048
      %v2050 = vsel %vm1791, %v1965, 0.0
      %2051 = vadd.xlane.f32.xlu0 %v2050
      %v2052 = vpop.xlane.xlu0 %2051
      %v2053 = vsel %vm1791, %v1967, 0.0
      %2054 = vadd.xlane.f32.xlu0 %v2053
      %v2055 = vpop.xlane.xlu0 %2054
      %v2056 = vsel %vm1791, %v1969, 0.0
      %2057 = vadd.xlane.f32.xlu0 %v2056
      %v2058 = vpop.xlane.xlu0 %2057
      %v2059 = vsel %vm1791, %v1971, 0.0
      %2060 = vadd.xlane.f32.xlu0 %v2059
      %v2061 = vpop.xlane.xlu0 %2060
      %v2062 = vsel %vm1791, %v1973, 0.0
      %2063 = vadd.xlane.f32.xlu0 %v2062
      %v2064 = vpop.xlane.xlu0 %2063
      %v2065 = vsel %vm1791, %v1975, 0.0
      %2066 = vadd.xlane.f32.xlu0 %v2065
      %v2067 = vpop.xlane.xlu0 %2066
      %v2068 = vsel %vm1791, %v1977, 0.0
      %2069 = vadd.xlane.f32.xlu0 %v2068
      %v2070 = vpop.xlane.xlu0 %2069
      %v2071 = vsel %vm1791, %v1979, 0.0
      %2072 = vadd.xlane.f32.xlu0 %v2071
      %v2073 = vpop.xlane.xlu0 %2072
      %v2074 = vsel %vm1791, %v1981, 0.0
      %2075 = vadd.xlane.f32.xlu0 %v2074
      %v2076 = vpop.xlane.xlu0 %2075
      %v2077 = vsel %vm1791, %v1983, 0.0
      %2078 = vadd.xlane.f32.xlu0 %v2077
      %v2079 = vpop.xlane.xlu0 %2078
      %v2080 = vrcp.pop %v1986
      %v2081 = vrcp.pop %v1989
      %v2082 = vrcp.pop %v1992
      %v2083 = vrcp.pop %v1995
      %v2084 = vrcp.pop %v1998
      %v2085 = vrcp.pop %v2001
      %v2086 = vrcp.pop %v2004
      %v2087 = vrcp.pop %v2007
      %v2088 = vrcp.pop %v2010
      %v2089 = vrcp.pop %v2013
      %v2090 = vrcp.pop %v2016
      %v2091 = vrcp.pop %v2019
      %v2092 = vrcp.pop %v2022
      %v2093 = vrcp.pop %v2025
      %v2094 = vrcp.pop %v2028
      %v2095 = vrcp.pop %v2031
      %v2096 = vrcp.pop %v2034
      %v2097 = vrcp.pop %v2037
      %v2098 = vrcp.pop %v2040
      %v2099 = vrcp.pop %v2043
      %v2100 = vrcp.pop %v2046
      %v2101 = vrcp.pop %v2049
      %v2102 = vrcp.pop %v2052
      %v2103 = vrcp.pop %v2055
      %v2104 = vrcp.pop %v2058
      %v2105 = vrcp.pop %v2061
      %v2106 = vrcp.pop %v2064
      %v2107 = vrcp.pop %v2067
      %v2108 = vrcp.pop %v2070
      %v2109 = vrcp.pop %v2073
      %v2110 = vrcp.pop %v2076
      %v2111 = vrcp.pop %v2079
      %v2112 = vmul.f32 %v1921, %v2080
      %v2113 = vmul.f32 %v1923, %v2081
      %v2114 = vmul.f32 %v1925, %v2082
      %v2115 = vmul.f32 %v1927, %v2083
      %v2116 = vmul.f32 %v1929, %v2084
      %v2117 = vmul.f32 %v1931, %v2085
      %v2118 = vmul.f32 %v1933, %v2086
      %v2119 = vmul.f32 %v1935, %v2087
      %v2120 = vmul.f32 %v1937, %v2088
      %v2121 = vmul.f32 %v1939, %v2089
      %v2122 = vmul.f32 %v1941, %v2090
      %v2123 = vmul.f32 %v1943, %v2091
      %v2124 = vmul.f32 %v1945, %v2092
      %v2125 = vmul.f32 %v1947, %v2093
      %v2126 = vmul.f32 %v1949, %v2094
      %v2127 = vmul.f32 %v1951, %v2095
      %v2128 = vmul.f32 %v1953, %v2096
      %v2129 = vmul.f32 %v1955, %v2097
      %v2130 = vmul.f32 %v1957, %v2098
      %v2131 = vmul.f32 %v1959, %v2099
      %v2132 = vmul.f32 %v1961, %v2100
      %v2133 = vmul.f32 %v1963, %v2101
      %v2134 = vmul.f32 %v1965, %v2102
      %v2135 = vmul.f32 %v1967, %v2103
      %v2136 = vmul.f32 %v1969, %v2104
      %v2137 = vmul.f32 %v1971, %v2105
      %v2138 = vmul.f32 %v1973, %v2106
      %v2139 = vmul.f32 %v1975, %v2107
      %v2140 = vmul.f32 %v1977, %v2108
      %v2141 = vmul.f32 %v1979, %v2109
      %v2142 = vmul.f32 %v1981, %v2110
      %v2143 = vmul.f32 %v1983, %v2111
      %v2145 = vsel %vm1791, %v2112, 0
      %v2148 = vsel %vm1791, %v2113, 0
      %v2151 = vsel %vm1791, %v2114, 0
      %v2154 = vsel %vm1791, %v2115, 0
      %v2157 = vsel %vm1791, %v2116, 0
      %v2160 = vsel %vm1791, %v2117, 0
      %v2163 = vsel %vm1791, %v2118, 0
      %v2166 = vsel %vm1791, %v2119, 0
      %2168 = vmatprep.subr.mxu0 0.0
      %2169 = vmatpush1.msra.mxu0 %v1020
      %2170 = vmatprep.subr.mxu0 0.0
      %2171 = vmatpush1.msra.mxu0 %v1025
      %2172 = vmatprep.subr.mxu0 0.0
      %2173 = vmatpush1.msra.mxu0 %v1030
      %2174 = vmatprep.subr.mxu0 0.0
      %2175 = vmatpush1.msra.mxu0 %v1035
      %2176 = vmatprep.subr.mxu0 0.0
      %2177 = vmatpush1.msra.mxu0 %v1040
      %2178 = vmatprep.subr.mxu0 0.0
      %2179 = vmatpush1.msra.mxu0 %v1045
      %2180 = vmatprep.subr.mxu0 0.0
      %2181 = vmatpush1.msra.mxu0 %v1050
      %2182 = vmatprep.subr.mxu0 0.0
      %2183 = vmatpush1.msra.mxu0 %v1055
      %2184 = vmatprep.subr.mxu0 0.0
      %2185 = vmatpush1.msra.mxu0 0.0
      %2186 = vmatprep.subr.mxu0 0.0
      %2187 = vmatpush1.msra.mxu0 0.0
      %2188 = vmatprep.subr.mxu0 0.0
      %2189 = vmatpush1.msra.mxu0 0.0
      %2190 = vmatprep.subr.mxu0 0.0
      %2191 = vmatpush1.msra.mxu0 0.0
      %2192 = vmatprep.subr.mxu0 0.0
      %2193 = vmatpush1.msra.mxu0 0.0
      %2194 = vmatprep.subr.mxu0 0.0
      %2195 = vmatpush1.msra.mxu0 0.0
      %2196 = vmatprep.subr.mxu0 0.0
      %2197 = vmatpush1.msra.mxu0 0.0
      %2198 = vmatprep.subr.mxu0 0.0
      %2199 = vmatpush1.msra.mxu0 0.0
      %2200 = vmatprep.subr.mxu0 0.0
      %2201 = vmatpush1.msra.mxu0 0.0
      %2202 = vmatprep.subr.mxu0 0.0
      %2203 = vmatpush1.msra.mxu0 0.0
      %2204 = vmatprep.subr.mxu0 0.0
      %2205 = vmatpush1.msra.mxu0 0.0
      %2206 = vmatprep.subr.mxu0 0.0
      %2207 = vmatpush1.msra.mxu0 0.0
      %2208 = vmatprep.subr.mxu0 0.0
      %2209 = vmatpush1.msra.mxu0 0.0
      %2210 = vmatprep.subr.mxu0 0.0
      %2211 = vmatpush1.msra.mxu0 0.0
      %2212 = vmatprep.subr.mxu0 0.0
      %2213 = vmatpush1.msra.mxu0 0.0
      %2214 = vmatprep.subr.mxu0 0.0
      %2215 = vmatpush1.msra.mxu0 0.0
      %2216 = vmatprep.subr.mxu0 0.0
      %2217 = vmatpush1.msra.mxu0 0.0
      %2218 = vmatprep.subr.mxu0 0.0
      %2219 = vmatpush1.msra.mxu0 0.0
      %2220 = vmatprep.subr.mxu0 0.0
      %2221 = vmatpush1.msra.mxu0 0.0
      %2222 = vmatprep.subr.mxu0 0.0
      %2223 = vmatpush1.msra.mxu0 0.0
      %2224 = vmatprep.subr.mxu0 0.0
      %2225 = vmatpush1.msra.mxu0 0.0
      %2226 = vmatprep.subr.mxu0 0.0
      %2227 = vmatpush1.msra.mxu0 0.0
      %2228 = vmatprep.subr.mxu0 0.0
      %2229 = vmatpush1.msra.mxu0 0.0
      %2230 = vmatprep.subr.mxu0 0.0
      %2231 = vmatpush1.msra.mxu0 0.0
      %2232 = vmatprep.mubr.f32.mxu0 0.0
      %2233 = vmatmul.mubr.f32.gmra.mrb[0].mxu0 %v2145
      %v2234 = vpop.f32.mrb[0].mxu0
      %v2235 = vadd.f32 0.0, %v2234
      %v2236 = vpop.f32.mrb[0].mxu0
      %2237 = vmatprep.mubr.f32.mxu0 0.0
      %2238 = vmatmul.mubr.f32.gmra.mrb[0].mxu0 %v2148
      %v2239 = vpop.f32.mrb[0].mxu0
      %v2240 = vadd.f32 0.0, %v2239
      %v2241 = vpop.f32.mrb[0].mxu0
      %2242 = vmatprep.mubr.f32.mxu0 0.0
      %2243 = vmatmul.mubr.f32.gmra.mrb[0].mxu0 %v2151
      %v2244 = vpop.f32.mrb[0].mxu0
      %v2245 = vadd.f32 0.0, %v2244
      %v2246 = vpop.f32.mrb[0].mxu0
      %2247 = vmatprep.mubr.f32.mxu0 0.0
      %2248 = vmatmul.mubr.f32.gmra.mrb[0].mxu0 %v2154
      %v2249 = vpop.f32.mrb[0].mxu0
      %v2250 = vadd.f32 0.0, %v2249
      %v2251 = vpop.f32.mrb[0].mxu0
      %2252 = vmatprep.mubr.f32.mxu0 0.0
      %2253 = vmatmul.mubr.f32.gmra.mrb[0].mxu0 %v2157
      %v2254 = vpop.f32.mrb[0].mxu0
      %v2255 = vadd.f32 0.0, %v2254
      %v2256 = vpop.f32.mrb[0].mxu0
      %2257 = vmatprep.mubr.f32.mxu0 0.0
      %2258 = vmatmul.mubr.f32.gmra.mrb[0].mxu0 %v2160
      %v2259 = vpop.f32.mrb[0].mxu0
      %v2260 = vadd.f32 0.0, %v2259
      %v2261 = vpop.f32.mrb[0].mxu0
      %2262 = vmatprep.mubr.f32.mxu0 0.0
      %2263 = vmatmul.mubr.f32.gmra.mrb[0].mxu0 %v2163
      %v2264 = vpop.f32.mrb[0].mxu0
      %v2265 = vadd.f32 0.0, %v2264
      %v2266 = vpop.f32.mrb[0].mxu0
      %2267 = vmatprep.mubr.f32.mxu0 0.0
      %2268 = vmatmul.mubr.f32.gmra.mrb[0].mxu0 %v2166
      %v2269 = vpop.f32.mrb[0].mxu0
      %v2270 = vadd.f32 0.0, %v2269
      %v2271 = vpop.f32.mrb[0].mxu0
      %2272 = vdwg.mxu0
      %v2274 = vsel %vm1791, %v2120, 0
      %v2277 = vsel %vm1791, %v2121, 0
      %v2280 = vsel %vm1791, %v2122, 0
      %v2283 = vsel %vm1791, %v2123, 0
      %v2286 = vsel %vm1791, %v2124, 0
      %v2289 = vsel %vm1791, %v2125, 0
      %v2292 = vsel %vm1791, %v2126, 0
      %v2295 = vsel %vm1791, %v2127, 0
      %2297 = vmatprep.subr.mxu0 0.0
      %2298 = vmatpush1.msra.mxu0 %v1060
      %2299 = vmatprep.subr.mxu0 0.0
      %2300 = vmatpush1.msra.mxu0 %v1065
      %2301 = vmatprep.subr.mxu0 0.0
      %2302 = vmatpush1.msra.mxu0 %v1070
      %2303 = vmatprep.subr.mxu0 0.0
      %2304 = vmatpush1.msra.mxu0 %v1075
      %2305 = vmatprep.subr.mxu0 0.0
      %2306 = vmatpush1.msra.mxu0 %v1080
      %2307 = vmatprep.subr.mxu0 0.0
      %2308 = vmatpush1.msra.mxu0 %v1085
      %2309 = vmatprep.subr.mxu0 0.0
      %2310 = vmatpush1.msra.mxu0 %v1090
      %2311 = vmatprep.subr.mxu0 0.0
      %2312 = vmatpush1.msra.mxu0 %v1095
      %2313 = vmatprep.subr.mxu0 0.0
      %2314 = vmatpush1.msra.mxu0 0.0
      %2315 = vmatprep.subr.mxu0 0.0
      %2316 = vmatpush1.msra.mxu0 0.0
      %2317 = vmatprep.subr.mxu0 0.0
      %2318 = vmatpush1.msra.mxu0 0.0
      %2319 = vmatprep.subr.mxu0 0.0
      %2320 = vmatpush1.msra.mxu0 0.0
      %2321 = vmatprep.subr.mxu0 0.0
      %2322 = vmatpush1.msra.mxu0 0.0
      %2323 = vmatprep.subr.mxu0 0.0
      %2324 = vmatpush1.msra.mxu0 0.0
      %2325 = vmatprep.subr.mxu0 0.0
      %2326 = vmatpush1.msra.mxu0 0.0
      %2327 = vmatprep.subr.mxu0 0.0
      %2328 = vmatpush1.msra.mxu0 0.0
      %2329 = vmatprep.subr.mxu0 0.0
      %2330 = vmatpush1.msra.mxu0 0.0
      %2331 = vmatprep.subr.mxu0 0.0
      %2332 = vmatpush1.msra.mxu0 0.0
      %2333 = vmatprep.subr.mxu0 0.0
      %2334 = vmatpush1.msra.mxu0 0.0
      %2335 = vmatprep.subr.mxu0 0.0
      %2336 = vmatpush1.msra.mxu0 0.0
      %2337 = vmatprep.subr.mxu0 0.0
      %2338 = vmatpush1.msra.mxu0 0.0
      %2339 = vmatprep.subr.mxu0 0.0
      %2340 = vmatpush1.msra.mxu0 0.0
      %2341 = vmatprep.subr.mxu0 0.0
      %2342 = vmatpush1.msra.mxu0 0.0
      %2343 = vmatprep.subr.mxu0 0.0
      %2344 = vmatpush1.msra.mxu0 0.0
      %2345 = vmatprep.subr.mxu0 0.0
      %2346 = vmatpush1.msra.mxu0 0.0
      %2347 = vmatprep.subr.mxu0 0.0
      %2348 = vmatpush1.msra.mxu0 0.0
      %2349 = vmatprep.subr.mxu0 0.0
      %2350 = vmatpush1.msra.mxu0 0.0
      %2351 = vmatprep.subr.mxu0 0.0
      %2352 = vmatpush1.msra.mxu0 0.0
      %2353 = vmatprep.subr.mxu0 0.0
      %2354 = vmatpush1.msra.mxu0 0.0
      %2355 = vmatprep.subr.mxu0 0.0
      %2356 = vmatpush1.msra.mxu0 0.0
      %2357 = vmatprep.subr.mxu0 0.0
      %2358 = vmatpush1.msra.mxu0 0.0
      %2359 = vmatprep.subr.mxu0 0.0
      %2360 = vmatpush1.msra.mxu0 0.0
      %2361 = vmatprep.mubr.f32.mxu0 0.0
      %2362 = vmatmul.mubr.f32.gmra.mrb[0].mxu0 %v2274
      %v2363 = vpop.f32.mrb[0].mxu0
      %v2364 = vadd.f32 0.0, %v2363
      %v2365 = vpop.f32.mrb[0].mxu0
      %2366 = vmatprep.mubr.f32.mxu0 0.0
      %2367 = vmatmul.mubr.f32.gmra.mrb[0].mxu0 %v2277
      %v2368 = vpop.f32.mrb[0].mxu0
      %v2369 = vadd.f32 0.0, %v2368
      %v2370 = vpop.f32.mrb[0].mxu0
      %2371 = vmatprep.mubr.f32.mxu0 0.0
      %2372 = vmatmul.mubr.f32.gmra.mrb[0].mxu0 %v2280
      %v2373 = vpop.f32.mrb[0].mxu0
      %v2374 = vadd.f32 0.0, %v2373
      %v2375 = vpop.f32.mrb[0].mxu0
      %2376 = vmatprep.mubr.f32.mxu0 0.0
      %2377 = vmatmul.mubr.f32.gmra.mrb[0].mxu0 %v2283
      %v2378 = vpop.f32.mrb[0].mxu0
      %v2379 = vadd.f32 0.0, %v2378
      %v2380 = vpop.f32.mrb[0].mxu0
      %2381 = vmatprep.mubr.f32.mxu0 0.0
      %2382 = vmatmul.mubr.f32.gmra.mrb[0].mxu0 %v2286
      %v2383 = vpop.f32.mrb[0].mxu0
      %v2384 = vadd.f32 0.0, %v2383
      %v2385 = vpop.f32.mrb[0].mxu0
      %2386 = vmatprep.mubr.f32.mxu0 0.0
      %2387 = vmatmul.mubr.f32.gmra.mrb[0].mxu0 %v2289
      %v2388 = vpop.f32.mrb[0].mxu0
      %v2389 = vadd.f32 0.0, %v2388
      %v2390 = vpop.f32.mrb[0].mxu0
      %2391 = vmatprep.mubr.f32.mxu0 0.0
      %2392 = vmatmul.mubr.f32.gmra.mrb[0].mxu0 %v2292
      %v2393 = vpop.f32.mrb[0].mxu0
      %v2394 = vadd.f32 0.0, %v2393
      %v2395 = vpop.f32.mrb[0].mxu0
      %2396 = vmatprep.mubr.f32.mxu0 0.0
      %2397 = vmatmul.mubr.f32.gmra.mrb[0].mxu0 %v2295
      %v2398 = vpop.f32.mrb[0].mxu0
      %v2399 = vadd.f32 0.0, %v2398
      %v2400 = vpop.f32.mrb[0].mxu0
      %2401 = vdwg.mxu0
      %v2403 = vsel %vm1791, %v2128, 0
      %v2406 = vsel %vm1791, %v2129, 0
      %v2409 = vsel %vm1791, %v2130, 0
      %v2412 = vsel %vm1791, %v2131, 0
      %v2415 = vsel %vm1791, %v2132, 0
      %v2418 = vsel %vm1791, %v2133, 0
      %v2421 = vsel %vm1791, %v2134, 0
      %v2424 = vsel %vm1791, %v2135, 0
      %2426 = vmatprep.subr.mxu0 0.0
      %2427 = vmatpush1.msra.mxu0 %v1100
      %2428 = vmatprep.subr.mxu0 0.0
      %2429 = vmatpush1.msra.mxu0 %v1105
      %2430 = vmatprep.subr.mxu0 0.0
      %2431 = vmatpush1.msra.mxu0 %v1110
      %2432 = vmatprep.subr.mxu0 0.0
      %2433 = vmatpush1.msra.mxu0 %v1115
      %2434 = vmatprep.subr.mxu0 0.0
      %2435 = vmatpush1.msra.mxu0 %v1120
      %2436 = vmatprep.subr.mxu0 0.0
      %2437 = vmatpush1.msra.mxu0 %v1125
      %2438 = vmatprep.subr.mxu0 0.0
      %2439 = vmatpush1.msra.mxu0 %v1130
      %2440 = vmatprep.subr.mxu0 0.0
      %2441 = vmatpush1.msra.mxu0 %v1135
      %2442 = vmatprep.subr.mxu0 0.0
      %2443 = vmatpush1.msra.mxu0 0.0
      %2444 = vmatprep.subr.mxu0 0.0
      %2445 = vmatpush1.msra.mxu0 0.0
      %2446 = vmatprep.subr.mxu0 0.0
      %2447 = vmatpush1.msra.mxu0 0.0
      %2448 = vmatprep.subr.mxu0 0.0
      %2449 = vmatpush1.msra.mxu0 0.0
      %2450 = vmatprep.subr.mxu0 0.0
      %2451 = vmatpush1.msra.mxu0 0.0
      %2452 = vmatprep.subr.mxu0 0.0
      %2453 = vmatpush1.msra.mxu0 0.0
      %2454 = vmatprep.subr.mxu0 0.0
      %2455 = vmatpush1.msra.mxu0 0.0
      %2456 = vmatprep.subr.mxu0 0.0
      %2457 = vmatpush1.msra.mxu0 0.0
      %2458 = vmatprep.subr.mxu0 0.0
      %2459 = vmatpush1.msra.mxu0 0.0
      %2460 = vmatprep.subr.mxu0 0.0
      %2461 = vmatpush1.msra.mxu0 0.0
      %2462 = vmatprep.subr.mxu0 0.0
      %2463 = vmatpush1.msra.mxu0 0.0
      %2464 = vmatprep.subr.mxu0 0.0
      %2465 = vmatpush1.msra.mxu0 0.0
      %2466 = vmatprep.subr.mxu0 0.0
      %2467 = vmatpush1.msra.mxu0 0.0
      %2468 = vmatprep.subr.mxu0 0.0
      %2469 = vmatpush1.msra.mxu0 0.0
      %2470 = vmatprep.subr.mxu0 0.0
      %2471 = vmatpush1.msra.mxu0 0.0
      %2472 = vmatprep.subr.mxu0 0.0
      %2473 = vmatpush1.msra.mxu0 0.0
      %2474 = vmatprep.subr.mxu0 0.0
      %2475 = vmatpush1.msra.mxu0 0.0
      %2476 = vmatprep.subr.mxu0 0.0
      %2477 = vmatpush1.msra.mxu0 0.0
      %2478 = vmatprep.subr.mxu0 0.0
      %2479 = vmatpush1.msra.mxu0 0.0
      %2480 = vmatprep.subr.mxu0 0.0
      %2481 = vmatpush1.msra.mxu0 0.0
      %2482 = vmatprep.subr.mxu0 0.0
      %2483 = vmatpush1.msra.mxu0 0.0
      %2484 = vmatprep.subr.mxu0 0.0
      %2485 = vmatpush1.msra.mxu0 0.0
      %2486 = vmatprep.subr.mxu0 0.0
      %2487 = vmatpush1.msra.mxu0 0.0
      %2488 = vmatprep.subr.mxu0 0.0
      %2489 = vmatpush1.msra.mxu0 0.0
      %2490 = vmatprep.mubr.f32.mxu0 0.0
      %2491 = vmatmul.mubr.f32.gmra.mrb[0].mxu0 %v2403
      %v2492 = vpop.f32.mrb[0].mxu0
      %v2493 = vadd.f32 0.0, %v2492
      %v2494 = vpop.f32.mrb[0].mxu0
      %2495 = vmatprep.mubr.f32.mxu0 0.0
      %2496 = vmatmul.mubr.f32.gmra.mrb[0].mxu0 %v2406
      %v2497 = vpop.f32.mrb[0].mxu0
      %v2498 = vadd.f32 0.0, %v2497
      %v2499 = vpop.f32.mrb[0].mxu0
      %2500 = vmatprep.mubr.f32.mxu0 0.0
      %2501 = vmatmul.mubr.f32.gmra.mrb[0].mxu0 %v2409
      %v2502 = vpop.f32.mrb[0].mxu0
      %v2503 = vadd.f32 0.0, %v2502
      %v2504 = vpop.f32.mrb[0].mxu0
      %2505 = vmatprep.mubr.f32.mxu0 0.0
      %2506 = vmatmul.mubr.f32.gmra.mrb[0].mxu0 %v2412
      %v2507 = vpop.f32.mrb[0].mxu0
      %v2508 = vadd.f32 0.0, %v2507
      %v2509 = vpop.f32.mrb[0].mxu0
      %2510 = vmatprep.mubr.f32.mxu0 0.0
      %2511 = vmatmul.mubr.f32.gmra.mrb[0].mxu0 %v2415
      %v2512 = vpop.f32.mrb[0].mxu0
      %v2513 = vadd.f32 0.0, %v2512
      %v2514 = vpop.f32.mrb[0].mxu0
      %2515 = vmatprep.mubr.f32.mxu0 0.0
      %2516 = vmatmul.mubr.f32.gmra.mrb[0].mxu0 %v2418
      %v2517 = vpop.f32.mrb[0].mxu0
      %v2518 = vadd.f32 0.0, %v2517
      %v2519 = vpop.f32.mrb[0].mxu0
      %2520 = vmatprep.mubr.f32.mxu0 0.0
      %2521 = vmatmul.mubr.f32.gmra.mrb[0].mxu0 %v2421
      %v2522 = vpop.f32.mrb[0].mxu0
      %v2523 = vadd.f32 0.0, %v2522
      %v2524 = vpop.f32.mrb[0].mxu0
      %2525 = vmatprep.mubr.f32.mxu0 0.0
      %2526 = vmatmul.mubr.f32.gmra.mrb[0].mxu0 %v2424
      %v2527 = vpop.f32.mrb[0].mxu0
      %v2528 = vadd.f32 0.0, %v2527
      %v2529 = vpop.f32.mrb[0].mxu0
      %2530 = vdwg.mxu0
      %v2532 = vsel %vm1791, %v2136, 0
      %v2535 = vsel %vm1791, %v2137, 0
      %v2538 = vsel %vm1791, %v2138, 0
      %v2541 = vsel %vm1791, %v2139, 0
      %v2544 = vsel %vm1791, %v2140, 0
      %v2547 = vsel %vm1791, %v2141, 0
      %v2550 = vsel %vm1791, %v2142, 0
      %v2553 = vsel %vm1791, %v2143, 0
      %2555 = vmatprep.subr.mxu0 0.0
      %2556 = vmatpush1.msra.mxu0 %v1140
      %2557 = vmatprep.subr.mxu0 0.0
      %2558 = vmatpush1.msra.mxu0 %v1145
      %2559 = vmatprep.subr.mxu0 0.0
      %2560 = vmatpush1.msra.mxu0 %v1150
      %2561 = vmatprep.subr.mxu0 0.0
      %2562 = vmatpush1.msra.mxu0 %v1155
      %2563 = vmatprep.subr.mxu0 0.0
      %2564 = vmatpush1.msra.mxu0 %v1160
      %2565 = vmatprep.subr.mxu0 0.0
      %2566 = vmatpush1.msra.mxu0 %v1165
      %2567 = vmatprep.subr.mxu0 0.0
      %2568 = vmatpush1.msra.mxu0 %v1170
      %2569 = vmatprep.subr.mxu0 0.0
      %2570 = vmatpush1.msra.mxu0 %v1175
      %2571 = vmatprep.subr.mxu0 0.0
      %2572 = vmatpush1.msra.mxu0 0.0
      %2573 = vmatprep.subr.mxu0 0.0
      %2574 = vmatpush1.msra.mxu0 0.0
      %2575 = vmatprep.subr.mxu0 0.0
      %2576 = vmatpush1.msra.mxu0 0.0
      %2577 = vmatprep.subr.mxu0 0.0
      %2578 = vmatpush1.msra.mxu0 0.0
      %2579 = vmatprep.subr.mxu0 0.0
      %2580 = vmatpush1.msra.mxu0 0.0
      %2581 = vmatprep.subr.mxu0 0.0
      %2582 = vmatpush1.msra.mxu0 0.0
      %2583 = vmatprep.subr.mxu0 0.0
      %2584 = vmatpush1.msra.mxu0 0.0
      %2585 = vmatprep.subr.mxu0 0.0
      %2586 = vmatpush1.msra.mxu0 0.0
      %2587 = vmatprep.subr.mxu0 0.0
      %2588 = vmatpush1.msra.mxu0 0.0
      %2589 = vmatprep.subr.mxu0 0.0
      %2590 = vmatpush1.msra.mxu0 0.0
      %2591 = vmatprep.subr.mxu0 0.0
      %2592 = vmatpush1.msra.mxu0 0.0
      %2593 = vmatprep.subr.mxu0 0.0
      %2594 = vmatpush1.msra.mxu0 0.0
      %2595 = vmatprep.subr.mxu0 0.0
      %2596 = vmatpush1.msra.mxu0 0.0
      %2597 = vmatprep.subr.mxu0 0.0
      %2598 = vmatpush1.msra.mxu0 0.0
      %2599 = vmatprep.subr.mxu0 0.0
      %2600 = vmatpush1.msra.mxu0 0.0
      %2601 = vmatprep.subr.mxu0 0.0
      %2602 = vmatpush1.msra.mxu0 0.0
      %2603 = vmatprep.subr.mxu0 0.0
      %2604 = vmatpush1.msra.mxu0 0.0
      %2605 = vmatprep.subr.mxu0 0.0
      %2606 = vmatpush1.msra.mxu0 0.0
      %2607 = vmatprep.subr.mxu0 0.0
      %2608 = vmatpush1.msra.mxu0 0.0
      %2609 = vmatprep.subr.mxu0 0.0
      %2610 = vmatpush1.msra.mxu0 0.0
      %2611 = vmatprep.subr.mxu0 0.0
      %2612 = vmatpush1.msra.mxu0 0.0
      %2613 = vmatprep.subr.mxu0 0.0
      %2614 = vmatpush1.msra.mxu0 0.0
      %2615 = vmatprep.subr.mxu0 0.0
      %2616 = vmatpush1.msra.mxu0 0.0
      %2617 = vmatprep.subr.mxu0 0.0
      %2618 = vmatpush1.msra.mxu0 0.0
      %2619 = vmatprep.mubr.f32.mxu0 0.0
      %2620 = vmatmul.mubr.f32.gmra.mrb[0].mxu0 %v2532
      %v2621 = vpop.f32.mrb[0].mxu0
      %v2622 = vadd.f32 0.0, %v2621
      %v2623 = vpop.f32.mrb[0].mxu0
      %2624 = vmatprep.mubr.f32.mxu0 0.0
      %2625 = vmatmul.mubr.f32.gmra.mrb[0].mxu0 %v2535
      %v2626 = vpop.f32.mrb[0].mxu0
      %v2627 = vadd.f32 0.0, %v2626
      %v2628 = vpop.f32.mrb[0].mxu0
      %2629 = vmatprep.mubr.f32.mxu0 0.0
      %2630 = vmatmul.mubr.f32.gmra.mrb[0].mxu0 %v2538
      %v2631 = vpop.f32.mrb[0].mxu0
      %v2632 = vadd.f32 0.0, %v2631
      %v2633 = vpop.f32.mrb[0].mxu0
      %2634 = vmatprep.mubr.f32.mxu0 0.0
      %2635 = vmatmul.mubr.f32.gmra.mrb[0].mxu0 %v2541
      %v2636 = vpop.f32.mrb[0].mxu0
      %v2637 = vadd.f32 0.0, %v2636
      %v2638 = vpop.f32.mrb[0].mxu0
      %2639 = vmatprep.mubr.f32.mxu0 0.0
      %2640 = vmatmul.mubr.f32.gmra.mrb[0].mxu0 %v2544
      %v2641 = vpop.f32.mrb[0].mxu0
      %v2642 = vadd.f32 0.0, %v2641
      %v2643 = vpop.f32.mrb[0].mxu0
      %2644 = vmatprep.mubr.f32.mxu0 0.0
      %2645 = vmatmul.mubr.f32.gmra.mrb[0].mxu0 %v2547
      %v2646 = vpop.f32.mrb[0].mxu0
      %v2647 = vadd.f32 0.0, %v2646
      %v2648 = vpop.f32.mrb[0].mxu0
      %2649 = vmatprep.mubr.f32.mxu0 0.0
      %2650 = vmatmul.mubr.f32.gmra.mrb[0].mxu0 %v2550
      %v2651 = vpop.f32.mrb[0].mxu0
      %v2652 = vadd.f32 0.0, %v2651
      %v2653 = vpop.f32.mrb[0].mxu0
      %2654 = vmatprep.mubr.f32.mxu0 0.0
      %2655 = vmatmul.mubr.f32.gmra.mrb[0].mxu0 %v2553
      %v2656 = vpop.f32.mrb[0].mxu0
      %v2657 = vadd.f32 0.0, %v2656
      %v2658 = vpop.f32.mrb[0].mxu0
      %2659 = vdwg.mxu0
      %2660 = vst.msk [vmem:[#allocation2] sm:$0xff] %vm1178, %v2235
      %2661 = vst.msk [vmem:[#allocation2 + $0x8] sm:$0xff] %vm1178, %v2240
      %2662 = vst.msk [vmem:[#allocation2 + $0x10] sm:$0xff] %vm1178, %v2245
      %2663 = vst.msk [vmem:[#allocation2 + $0x18] sm:$0xff] %vm1178, %v2250
      %2664 = vst.msk [vmem:[#allocation2 + $0x20] sm:$0xff] %vm1178, %v2255
      %2665 = vst.msk [vmem:[#allocation2 + $0x28] sm:$0xff] %vm1178, %v2260
      %2666 = vst.msk [vmem:[#allocation2 + $0x30] sm:$0xff] %vm1178, %v2265
      %2667 = vst.msk [vmem:[#allocation2 + $0x38] sm:$0xff] %vm1178, %v2270
      %2668 = vst.msk [vmem:[#allocation2 + $0x40] sm:$0xff] %vm1178, %v2364
      %2669 = vst.msk [vmem:[#allocation2 + $0x48] sm:$0xff] %vm1178, %v2369
      %2670 = vst.msk [vmem:[#allocation2 + $0x50] sm:$0xff] %vm1178, %v2374
      %2671 = vst.msk [vmem:[#allocation2 + $0x58] sm:$0xff] %vm1178, %v2379
      %2672 = vst.msk [vmem:[#allocation2 + $0x60] sm:$0xff] %vm1178, %v2384
      %2673 = vst.msk [vmem:[#allocation2 + $0x68] sm:$0xff] %vm1178, %v2389
      %2674 = vst.msk [vmem:[#allocation2 + $0x70] sm:$0xff] %vm1178, %v2394
      %2675 = vst.msk [vmem:[#allocation2 + $0x78] sm:$0xff] %vm1178, %v2399
      %2676 = vst.msk [vmem:[#allocation2 + $0x80] sm:$0xff] %vm1178, %v2493
      %2677 = vst.msk [vmem:[#allocation2 + $0x88] sm:$0xff] %vm1178, %v2498
      %2678 = vst.msk [vmem:[#allocation2 + $0x90] sm:$0xff] %vm1178, %v2503
      %2679 = vst.msk [vmem:[#allocation2 + $0x98] sm:$0xff] %vm1178, %v2508
      %2680 = vst.msk [vmem:[#allocation2 + $0xa0] sm:$0xff] %vm1178, %v2513
      %2681 = vst.msk [vmem:[#allocation2 + $0xa8] sm:$0xff] %vm1178, %v2518
      %2682 = vst.msk [vmem:[#allocation2 + $0xb0] sm:$0xff] %vm1178, %v2523
      %2683 = vst.msk [vmem:[#allocation2 + $0xb8] sm:$0xff] %vm1178, %v2528
      %2684 = vst.msk [vmem:[#allocation2 + $0xc0] sm:$0xff] %vm1178, %v2622
      %2685 = vst.msk [vmem:[#allocation2 + $0xc8] sm:$0xff] %vm1178, %v2627
      %2686 = vst.msk [vmem:[#allocation2 + $0xd0] sm:$0xff] %vm1178, %v2632
      %2687 = vst.msk [vmem:[#allocation2 + $0xd8] sm:$0xff] %vm1178, %v2637
      %2688 = vst.msk [vmem:[#allocation2 + $0xe0] sm:$0xff] %vm1178, %v2642
      %2689 = vst.msk [vmem:[#allocation2 + $0xe8] sm:$0xff] %vm1178, %v2647
      %2690 = vst.msk [vmem:[#allocation2 + $0xf0] sm:$0xff] %vm1178, %v2652
      %2691 = vst.msk [vmem:[#allocation2 + $0xf8] sm:$0xff] %vm1178, %v2657
      %2692 = vrot.lane.b32.xlu0 %v548, 120
      %v2693 = vpop.permute.xlu0 %2692
      %2694 = vrot.lane.b32.xlu0 %v553, 120
      %v2695 = vpop.permute.xlu0 %2694
      %2696 = vrot.lane.b32.xlu0 %v558, 120
      %v2697 = vpop.permute.xlu0 %2696
      %2698 = vrot.lane.b32.xlu0 %v563, 120
      %v2699 = vpop.permute.xlu0 %2698
      %2700 = vrot.lane.b32.xlu0 %v568, 120
      %v2701 = vpop.permute.xlu0 %2700
      %2702 = vrot.lane.b32.xlu0 %v573, 120
      %v2703 = vpop.permute.xlu0 %2702
      %2704 = vrot.lane.b32.xlu0 %v578, 120
      %v2705 = vpop.permute.xlu0 %2704
      %2706 = vrot.lane.b32.xlu0 %v583, 120
      %v2707 = vpop.permute.xlu0 %2706
      %2708 = vrot.lane.b32.xlu0 %v784, 120
      %v2709 = vpop.permute.xlu0 %2708
      %2710 = vrot.lane.b32.xlu0 %v789, 120
      %v2711 = vpop.permute.xlu0 %2710
      %2712 = vrot.lane.b32.xlu0 %v794, 120
      %v2713 = vpop.permute.xlu0 %2712
      %2714 = vrot.lane.b32.xlu0 %v799, 120
      %v2715 = vpop.permute.xlu0 %2714
      %2716 = vrot.lane.b32.xlu0 %v804, 120
      %v2717 = vpop.permute.xlu0 %2716
      %2718 = vrot.lane.b32.xlu0 %v809, 120
      %v2719 = vpop.permute.xlu0 %2718
      %2720 = vrot.lane.b32.xlu0 %v814, 120
      %v2721 = vpop.permute.xlu0 %2720
      %2722 = vrot.lane.b32.xlu0 %v819, 120
      %v2723 = vpop.permute.xlu0 %2722
      %v2724 = vsel %vm1178, %v2693, 0
      %v2726 = vsel %vm1178, %v2695, 0
      %v2728 = vsel %vm1178, %v2697, 0
      %v2730 = vsel %vm1178, %v2699, 0
      %v2732 = vsel %vm1178, %v2701, 0
      %v2734 = vsel %vm1178, %v2703, 0
      %v2736 = vsel %vm1178, %v2705, 0
      %v2738 = vsel %vm1178, %v2707, 0
      %v2740 = vsel %vm1178, %v2709, 0
      %v2742 = vsel %vm1178, %v2711, 0
      %v2744 = vsel %vm1178, %v2713, 0
      %v2746 = vsel %vm1178, %v2715, 0
      %v2748 = vsel %vm1178, %v2717, 0
      %v2750 = vsel %vm1178, %v2719, 0
      %v2752 = vsel %vm1178, %v2721, 0
      %v2754 = vsel %vm1178, %v2723, 0
      %2756 = vmatprep.subr.mxu0 0.0
      %2757 = vmatpush1.xpose.msra.mxu0 %v2740
      %2758 = vmatprep.subr.mxu0 0.0
      %2759 = vmatpush1.xpose.msra.mxu0 %v2742
      %2760 = vmatprep.subr.mxu0 0.0
      %2761 = vmatpush1.xpose.msra.mxu0 %v2744
      %2762 = vmatprep.subr.mxu0 0.0
      %2763 = vmatpush1.xpose.msra.mxu0 %v2746
      %2764 = vmatprep.subr.mxu0 0.0
      %2765 = vmatpush1.xpose.msra.mxu0 %v2748
      %2766 = vmatprep.subr.mxu0 0.0
      %2767 = vmatpush1.xpose.msra.mxu0 %v2750
      %2768 = vmatprep.subr.mxu0 0.0
      %2769 = vmatpush1.xpose.msra.mxu0 %v2752
      %2770 = vmatprep.subr.mxu0 0.0
      %2771 = vmatpush1.xpose.msra.mxu0 %v2754
      %2772 = vmatprep.subr.mxu0 0.0
      %2773 = vmatpush1.xpose.msra.mxu0 0.0
      %2774 = vmatprep.subr.mxu0 0.0
      %2775 = vmatpush1.xpose.msra.mxu0 0.0
      %2776 = vmatprep.subr.mxu0 0.0
      %2777 = vmatpush1.xpose.msra.mxu0 0.0
      %2778 = vmatprep.subr.mxu0 0.0
      %2779 = vmatpush1.xpose.msra.mxu0 0.0
      %2780 = vmatprep.subr.mxu0 0.0
      %2781 = vmatpush1.xpose.msra.mxu0 0.0
      %2782 = vmatprep.subr.mxu0 0.0
      %2783 = vmatpush1.xpose.msra.mxu0 0.0
      %2784 = vmatprep.subr.mxu0 0.0
      %2785 = vmatpush1.xpose.msra.mxu0 0.0
      %2786 = vmatprep.subr.mxu0 0.0
      %2787 = vmatpush1.xpose.msra.mxu0 0.0
      %2788 = vmatprep.subr.mxu0 0.0
      %2789 = vmatpush1.xpose.msra.mxu0 0.0
      %2790 = vmatprep.subr.mxu0 0.0
      %2791 = vmatpush1.xpose.msra.mxu0 0.0
      %2792 = vmatprep.subr.mxu0 0.0
      %2793 = vmatpush1.xpose.msra.mxu0 0.0
      %2794 = vmatprep.subr.mxu0 0.0
      %2795 = vmatpush1.xpose.msra.mxu0 0.0
      %2796 = vmatprep.subr.mxu0 0.0
      %2797 = vmatpush1.xpose.msra.mxu0 0.0
      %2798 = vmatprep.subr.mxu0 0.0
      %2799 = vmatpush1.xpose.msra.mxu0 0.0
      %2800 = vmatprep.subr.mxu0 0.0
      %2801 = vmatpush1.xpose.msra.mxu0 0.0
      %2802 = vmatprep.subr.mxu0 0.0
      %2803 = vmatpush1.xpose.msra.mxu0 0.0
      %2804 = vmatprep.subr.mxu0 0.0
      %2805 = vmatpush1.xpose.msra.mxu0 0.0
      %2806 = vmatprep.subr.mxu0 0.0
      %2807 = vmatpush1.xpose.msra.mxu0 0.0
      %2808 = vmatprep.subr.mxu0 0.0
      %2809 = vmatpush1.xpose.msra.mxu0 0.0
      %2810 = vmatprep.subr.mxu0 0.0
      %2811 = vmatpush1.xpose.msra.mxu0 0.0
      %2812 = vmatprep.subr.mxu0 0.0
      %2813 = vmatpush1.xpose.msra.mxu0 0.0
      %2814 = vmatprep.subr.mxu0 0.0
      %2815 = vmatpush1.xpose.msra.mxu0 0.0
      %2816 = vmatprep.subr.mxu0 0.0
      %2817 = vmatpush1.xpose.msra.mxu0 0.0
      %2818 = vmatprep.subr.mxu0 0.0
      %2819 = vmatpush1.xpose.msra.mxu0 0.0
      %2820 = vmatprep.mubr.f32.mxu0 0.0
      %2821 = vmatmul.mubr.f32.gmra.mrb[0].mxu0 %v2724
      %v2822 = vpop.f32.mrb[0].mxu0
      %v2823 = vadd.f32 0.0, %v2822
      %v2824 = vpop.f32.mrb[0].mxu0
      %2825 = vmatprep.mubr.f32.mxu0 0.0
      %2826 = vmatmul.mubr.f32.gmra.mrb[0].mxu0 %v2726
      %v2827 = vpop.f32.mrb[0].mxu0
      %v2828 = vadd.f32 0.0, %v2827
      %v2829 = vpop.f32.mrb[0].mxu0
      %2830 = vmatprep.mubr.f32.mxu0 0.0
      %2831 = vmatmul.mubr.f32.gmra.mrb[0].mxu0 %v2728
      %v2832 = vpop.f32.mrb[0].mxu0
      %v2833 = vadd.f32 0.0, %v2832
      %v2834 = vpop.f32.mrb[0].mxu0
      %2835 = vmatprep.mubr.f32.mxu0 0.0
      %2836 = vmatmul.mubr.f32.gmra.mrb[0].mxu0 %v2730
      %v2837 = vpop.f32.mrb[0].mxu0
      %v2838 = vadd.f32 0.0, %v2837
      %v2839 = vpop.f32.mrb[0].mxu0
      %2840 = vmatprep.mubr.f32.mxu0 0.0
      %2841 = vmatmul.mubr.f32.gmra.mrb[0].mxu0 %v2732
      %v2842 = vpop.f32.mrb[0].mxu0
      %v2843 = vadd.f32 0.0, %v2842
      %v2844 = vpop.f32.mrb[0].mxu0
      %2845 = vmatprep.mubr.f32.mxu0 0.0
      %2846 = vmatmul.mubr.f32.gmra.mrb[0].mxu0 %v2734
      %v2847 = vpop.f32.mrb[0].mxu0
      %v2848 = vadd.f32 0.0, %v2847
      %v2849 = vpop.f32.mrb[0].mxu0
      %2850 = vmatprep.mubr.f32.mxu0 0.0
      %2851 = vmatmul.mubr.f32.gmra.mrb[0].mxu0 %v2736
      %v2852 = vpop.f32.mrb[0].mxu0
      %v2853 = vadd.f32 0.0, %v2852
      %v2854 = vpop.f32.mrb[0].mxu0
      %2855 = vmatprep.mubr.f32.mxu0 0.0
      %2856 = vmatmul.mubr.f32.gmra.mrb[0].mxu0 %v2738
      %v2857 = vpop.f32.mrb[0].mxu0
      %v2858 = vadd.f32 0.0, %v2857
      %v2859 = vpop.f32.mrb[0].mxu0
      %2860 = vdwg.mxu0
      %2861 = vrot.lane.b32.xlu0 %v588, 120
      %v2862 = vpop.permute.xlu0 %2861
      %2863 = vrot.lane.b32.xlu0 %v593, 120
      %v2864 = vpop.permute.xlu0 %2863
      %2865 = vrot.lane.b32.xlu0 %v598, 120
      %v2866 = vpop.permute.xlu0 %2865
      %2867 = vrot.lane.b32.xlu0 %v603, 120
      %v2868 = vpop.permute.xlu0 %2867
      %2869 = vrot.lane.b32.xlu0 %v608, 120
      %v2870 = vpop.permute.xlu0 %2869
      %2871 = vrot.lane.b32.xlu0 %v613, 120
      %v2872 = vpop.permute.xlu0 %2871
      %2873 = vrot.lane.b32.xlu0 %v618, 120
      %v2874 = vpop.permute.xlu0 %2873
      %2875 = vrot.lane.b32.xlu0 %v623, 120
      %v2876 = vpop.permute.xlu0 %2875
      %2877 = vrot.lane.b32.xlu0 %v824, 120
      %v2878 = vpop.permute.xlu0 %2877
      %2879 = vrot.lane.b32.xlu0 %v829, 120
      %v2880 = vpop.permute.xlu0 %2879
      %2881 = vrot.lane.b32.xlu0 %v834, 120
      %v2882 = vpop.permute.xlu0 %2881
      %2883 = vrot.lane.b32.xlu0 %v839, 120
      %v2884 = vpop.permute.xlu0 %2883
      %2885 = vrot.lane.b32.xlu0 %v844, 120
      %v2886 = vpop.permute.xlu0 %2885
      %2887 = vrot.lane.b32.xlu0 %v849, 120
      %v2888 = vpop.permute.xlu0 %2887
      %2889 = vrot.lane.b32.xlu0 %v854, 120
      %v2890 = vpop.permute.xlu0 %2889
      %2891 = vrot.lane.b32.xlu0 %v859, 120
      %v2892 = vpop.permute.xlu0 %2891
      %v2893 = vsel %vm1178, %v2862, 0
      %v2895 = vsel %vm1178, %v2864, 0
      %v2897 = vsel %vm1178, %v2866, 0
      %v2899 = vsel %vm1178, %v2868, 0
      %v2901 = vsel %vm1178, %v2870, 0
      %v2903 = vsel %vm1178, %v2872, 0
      %v2905 = vsel %vm1178, %v2874, 0
      %v2907 = vsel %vm1178, %v2876, 0
      %v2909 = vsel %vm1178, %v2878, 0
      %v2911 = vsel %vm1178, %v2880, 0
      %v2913 = vsel %vm1178, %v2882, 0
      %v2915 = vsel %vm1178, %v2884, 0
      %v2917 = vsel %vm1178, %v2886, 0
      %v2919 = vsel %vm1178, %v2888, 0
      %v2921 = vsel %vm1178, %v2890, 0
      %v2923 = vsel %vm1178, %v2892, 0
      %2925 = vmatprep.subr.mxu0 0.0
      %2926 = vmatpush1.xpose.msra.mxu0 %v2909
      %2927 = vmatprep.subr.mxu0 0.0
      %2928 = vmatpush1.xpose.msra.mxu0 %v2911
      %2929 = vmatprep.subr.mxu0 0.0
      %2930 = vmatpush1.xpose.msra.mxu0 %v2913
      %2931 = vmatprep.subr.mxu0 0.0
      %2932 = vmatpush1.xpose.msra.mxu0 %v2915
      %2933 = vmatprep.subr.mxu0 0.0
      %2934 = vmatpush1.xpose.msra.mxu0 %v2917
      %2935 = vmatprep.subr.mxu0 0.0
      %2936 = vmatpush1.xpose.msra.mxu0 %v2919
      %2937 = vmatprep.subr.mxu0 0.0
      %2938 = vmatpush1.xpose.msra.mxu0 %v2921
      %2939 = vmatprep.subr.mxu0 0.0
      %2940 = vmatpush1.xpose.msra.mxu0 %v2923
      %2941 = vmatprep.subr.mxu0 0.0
      %2942 = vmatpush1.xpose.msra.mxu0 0.0
      %2943 = vmatprep.subr.mxu0 0.0
      %2944 = vmatpush1.xpose.msra.mxu0 0.0
      %2945 = vmatprep.subr.mxu0 0.0
      %2946 = vmatpush1.xpose.msra.mxu0 0.0
      %2947 = vmatprep.subr.mxu0 0.0
      %2948 = vmatpush1.xpose.msra.mxu0 0.0
      %2949 = vmatprep.subr.mxu0 0.0
      %2950 = vmatpush1.xpose.msra.mxu0 0.0
      %2951 = vmatprep.subr.mxu0 0.0
      %2952 = vmatpush1.xpose.msra.mxu0 0.0
      %2953 = vmatprep.subr.mxu0 0.0
      %2954 = vmatpush1.xpose.msra.mxu0 0.0
      %2955 = vmatprep.subr.mxu0 0.0
      %2956 = vmatpush1.xpose.msra.mxu0 0.0
      %2957 = vmatprep.subr.mxu0 0.0
      %2958 = vmatpush1.xpose.msra.mxu0 0.0
      %2959 = vmatprep.subr.mxu0 0.0
      %2960 = vmatpush1.xpose.msra.mxu0 0.0
      %2961 = vmatprep.subr.mxu0 0.0
      %2962 = vmatpush1.xpose.msra.mxu0 0.0
      %2963 = vmatprep.subr.mxu0 0.0
      %2964 = vmatpush1.xpose.msra.mxu0 0.0
      %2965 = vmatprep.subr.mxu0 0.0
      %2966 = vmatpush1.xpose.msra.mxu0 0.0
      %2967 = vmatprep.subr.mxu0 0.0
      %2968 = vmatpush1.xpose.msra.mxu0 0.0
      %2969 = vmatprep.subr.mxu0 0.0
      %2970 = vmatpush1.xpose.msra.mxu0 0.0
      %2971 = vmatprep.subr.mxu0 0.0
      %2972 = vmatpush1.xpose.msra.mxu0 0.0
      %2973 = vmatprep.subr.mxu0 0.0
      %2974 = vmatpush1.xpose.msra.mxu0 0.0
      %2975 = vmatprep.subr.mxu0 0.0
      %2976 = vmatpush1.xpose.msra.mxu0 0.0
      %2977 = vmatprep.subr.mxu0 0.0
      %2978 = vmatpush1.xpose.msra.mxu0 0.0
      %2979 = vmatprep.subr.mxu0 0.0
      %2980 = vmatpush1.xpose.msra.mxu0 0.0
      %2981 = vmatprep.subr.mxu0 0.0
      %2982 = vmatpush1.xpose.msra.mxu0 0.0
      %2983 = vmatprep.subr.mxu0 0.0
      %2984 = vmatpush1.xpose.msra.mxu0 0.0
      %2985 = vmatprep.subr.mxu0 0.0
      %2986 = vmatpush1.xpose.msra.mxu0 0.0
      %2987 = vmatprep.subr.mxu0 0.0
      %2988 = vmatpush1.xpose.msra.mxu0 0.0
      %2989 = vmatprep.mubr.f32.mxu0 0.0
      %2990 = vmatmul.mubr.f32.gmra.mrb[0].mxu0 %v2893
      %v2991 = vpop.f32.mrb[0].mxu0
      %v2992 = vadd.f32 0.0, %v2991
      %v2993 = vpop.f32.mrb[0].mxu0
      %2994 = vmatprep.mubr.f32.mxu0 0.0
      %2995 = vmatmul.mubr.f32.gmra.mrb[0].mxu0 %v2895
      %v2996 = vpop.f32.mrb[0].mxu0
      %v2997 = vadd.f32 0.0, %v2996
      %v2998 = vpop.f32.mrb[0].mxu0
      %2999 = vmatprep.mubr.f32.mxu0 0.0
      %3000 = vmatmul.mubr.f32.gmra.mrb[0].mxu0 %v2897
      %v3001 = vpop.f32.mrb[0].mxu0
      %v3002 = vadd.f32 0.0, %v3001
      %v3003 = vpop.f32.mrb[0].mxu0
      %3004 = vmatprep.mubr.f32.mxu0 0.0
      %3005 = vmatmul.mubr.f32.gmra.mrb[0].mxu0 %v2899
      %v3006 = vpop.f32.mrb[0].mxu0
      %v3007 = vadd.f32 0.0, %v3006
      %v3008 = vpop.f32.mrb[0].mxu0
      %3009 = vmatprep.mubr.f32.mxu0 0.0
      %3010 = vmatmul.mubr.f32.gmra.mrb[0].mxu0 %v2901
      %v3011 = vpop.f32.mrb[0].mxu0
      %v3012 = vadd.f32 0.0, %v3011
      %v3013 = vpop.f32.mrb[0].mxu0
      %3014 = vmatprep.mubr.f32.mxu0 0.0
      %3015 = vmatmul.mubr.f32.gmra.mrb[0].mxu0 %v2903
      %v3016 = vpop.f32.mrb[0].mxu0
      %v3017 = vadd.f32 0.0, %v3016
      %v3018 = vpop.f32.mrb[0].mxu0
      %3019 = vmatprep.mubr.f32.mxu0 0.0
      %3020 = vmatmul.mubr.f32.gmra.mrb[0].mxu0 %v2905
      %v3021 = vpop.f32.mrb[0].mxu0
      %v3022 = vadd.f32 0.0, %v3021
      %v3023 = vpop.f32.mrb[0].mxu0
      %3024 = vmatprep.mubr.f32.mxu0 0.0
      %3025 = vmatmul.mubr.f32.gmra.mrb[0].mxu0 %v2907
      %v3026 = vpop.f32.mrb[0].mxu0
      %v3027 = vadd.f32 0.0, %v3026
      %v3028 = vpop.f32.mrb[0].mxu0
      %3029 = vdwg.mxu0
      %3030 = vrot.lane.b32.xlu0 %v628, 120
      %v3031 = vpop.permute.xlu0 %3030
      %3032 = vrot.lane.b32.xlu0 %v633, 120
      %v3033 = vpop.permute.xlu0 %3032
      %3034 = vrot.lane.b32.xlu0 %v638, 120
      %v3035 = vpop.permute.xlu0 %3034
      %3036 = vrot.lane.b32.xlu0 %v643, 120
      %v3037 = vpop.permute.xlu0 %3036
      %3038 = vrot.lane.b32.xlu0 %v648, 120
      %v3039 = vpop.permute.xlu0 %3038
      %3040 = vrot.lane.b32.xlu0 %v653, 120
      %v3041 = vpop.permute.xlu0 %3040
      %3042 = vrot.lane.b32.xlu0 %v658, 120
      %v3043 = vpop.permute.xlu0 %3042
      %3044 = vrot.lane.b32.xlu0 %v663, 120
      %v3045 = vpop.permute.xlu0 %3044
      %3046 = vrot.lane.b32.xlu0 %v864, 120
      %v3047 = vpop.permute.xlu0 %3046
      %3048 = vrot.lane.b32.xlu0 %v869, 120
      %v3049 = vpop.permute.xlu0 %3048
      %3050 = vrot.lane.b32.xlu0 %v874, 120
      %v3051 = vpop.permute.xlu0 %3050
      %3052 = vrot.lane.b32.xlu0 %v879, 120
      %v3053 = vpop.permute.xlu0 %3052
      %3054 = vrot.lane.b32.xlu0 %v884, 120
      %v3055 = vpop.permute.xlu0 %3054
      %3056 = vrot.lane.b32.xlu0 %v889, 120
      %v3057 = vpop.permute.xlu0 %3056
      %3058 = vrot.lane.b32.xlu0 %v894, 120
      %v3059 = vpop.permute.xlu0 %3058
      %3060 = vrot.lane.b32.xlu0 %v899, 120
      %v3061 = vpop.permute.xlu0 %3060
      %v3062 = vsel %vm1178, %v3031, 0
      %v3064 = vsel %vm1178, %v3033, 0
      %v3066 = vsel %vm1178, %v3035, 0
      %v3068 = vsel %vm1178, %v3037, 0
      %v3070 = vsel %vm1178, %v3039, 0
      %v3072 = vsel %vm1178, %v3041, 0
      %v3074 = vsel %vm1178, %v3043, 0
      %v3076 = vsel %vm1178, %v3045, 0
      %v3078 = vsel %vm1178, %v3047, 0
      %v3080 = vsel %vm1178, %v3049, 0
      %v3082 = vsel %vm1178, %v3051, 0
      %v3084 = vsel %vm1178, %v3053, 0
      %v3086 = vsel %vm1178, %v3055, 0
      %v3088 = vsel %vm1178, %v3057, 0
      %v3090 = vsel %vm1178, %v3059, 0
      %v3092 = vsel %vm1178, %v3061, 0
      %3094 = vmatprep.subr.mxu0 0.0
      %3095 = vmatpush1.xpose.msra.mxu0 %v3078
      %3096 = vmatprep.subr.mxu0 0.0
      %3097 = vmatpush1.xpose.msra.mxu0 %v3080
      %3098 = vmatprep.subr.mxu0 0.0
      %3099 = vmatpush1.xpose.msra.mxu0 %v3082
      %3100 = vmatprep.subr.mxu0 0.0
      %3101 = vmatpush1.xpose.msra.mxu0 %v3084
      %3102 = vmatprep.subr.mxu0 0.0
      %3103 = vmatpush1.xpose.msra.mxu0 %v3086
      %3104 = vmatprep.subr.mxu0 0.0
      %3105 = vmatpush1.xpose.msra.mxu0 %v3088
      %3106 = vmatprep.subr.mxu0 0.0
      %3107 = vmatpush1.xpose.msra.mxu0 %v3090
      %3108 = vmatprep.subr.mxu0 0.0
      %3109 = vmatpush1.xpose.msra.mxu0 %v3092
      %3110 = vmatprep.subr.mxu0 0.0
      %3111 = vmatpush1.xpose.msra.mxu0 0.0
      %3112 = vmatprep.subr.mxu0 0.0
      %3113 = vmatpush1.xpose.msra.mxu0 0.0
      %3114 = vmatprep.subr.mxu0 0.0
      %3115 = vmatpush1.xpose.msra.mxu0 0.0
      %3116 = vmatprep.subr.mxu0 0.0
      %3117 = vmatpush1.xpose.msra.mxu0 0.0
      %3118 = vmatprep.subr.mxu0 0.0
      %3119 = vmatpush1.xpose.msra.mxu0 0.0
      %3120 = vmatprep.subr.mxu0 0.0
      %3121 = vmatpush1.xpose.msra.mxu0 0.0
      %3122 = vmatprep.subr.mxu0 0.0
      %3123 = vmatpush1.xpose.msra.mxu0 0.0
      %3124 = vmatprep.subr.mxu0 0.0
      %3125 = vmatpush1.xpose.msra.mxu0 0.0
      %3126 = vmatprep.subr.mxu0 0.0
      %3127 = vmatpush1.xpose.msra.mxu0 0.0
      %3128 = vmatprep.subr.mxu0 0.0
      %3129 = vmatpush1.xpose.msra.mxu0 0.0
      %3130 = vmatprep.subr.mxu0 0.0
      %3131 = vmatpush1.xpose.msra.mxu0 0.0
      %3132 = vmatprep.subr.mxu0 0.0
      %3133 = vmatpush1.xpose.msra.mxu0 0.0
      %3134 = vmatprep.subr.mxu0 0.0
      %3135 = vmatpush1.xpose.msra.mxu0 0.0
      %3136 = vmatprep.subr.mxu0 0.0
      %3137 = vmatpush1.xpose.msra.mxu0 0.0
      %3138 = vmatprep.subr.mxu0 0.0
      %3139 = vmatpush1.xpose.msra.mxu0 0.0
      %3140 = vmatprep.subr.mxu0 0.0
      %3141 = vmatpush1.xpose.msra.mxu0 0.0
      %3142 = vmatprep.subr.mxu0 0.0
      %3143 = vmatpush1.xpose.msra.mxu0 0.0
      %3144 = vmatprep.subr.mxu0 0.0
      %3145 = vmatpush1.xpose.msra.mxu0 0.0
      %3146 = vmatprep.subr.mxu0 0.0
      %3147 = vmatpush1.xpose.msra.mxu0 0.0
      %3148 = vmatprep.subr.mxu0 0.0
      %3149 = vmatpush1.xpose.msra.mxu0 0.0
      %3150 = vmatprep.subr.mxu0 0.0
      %3151 = vmatpush1.xpose.msra.mxu0 0.0
      %3152 = vmatprep.subr.mxu0 0.0
      %3153 = vmatpush1.xpose.msra.mxu0 0.0
      %3154 = vmatprep.subr.mxu0 0.0
      %3155 = vmatpush1.xpose.msra.mxu0 0.0
      %3156 = vmatprep.subr.mxu0 0.0
      %3157 = vmatpush1.xpose.msra.mxu0 0.0
      %3158 = vmatprep.mubr.f32.mxu0 0.0
      %3159 = vmatmul.mubr.f32.gmra.mrb[0].mxu0 %v3062
      %v3160 = vpop.f32.mrb[0].mxu0
      %v3161 = vadd.f32 0.0, %v3160
      %v3162 = vpop.f32.mrb[0].mxu0
      %3163 = vmatprep.mubr.f32.mxu0 0.0
      %3164 = vmatmul.mubr.f32.gmra.mrb[0].mxu0 %v3064
      %v3165 = vpop.f32.mrb[0].mxu0
      %v3166 = vadd.f32 0.0, %v3165
      %v3167 = vpop.f32.mrb[0].mxu0
      %3168 = vmatprep.mubr.f32.mxu0 0.0
      %3169 = vmatmul.mubr.f32.gmra.mrb[0].mxu0 %v3066
      %v3170 = vpop.f32.mrb[0].mxu0
      %v3171 = vadd.f32 0.0, %v3170
      %v3172 = vpop.f32.mrb[0].mxu0
      %3173 = vmatprep.mubr.f32.mxu0 0.0
      %3174 = vmatmul.mubr.f32.gmra.mrb[0].mxu0 %v3068
      %v3175 = vpop.f32.mrb[0].mxu0
      %v3176 = vadd.f32 0.0, %v3175
      %v3177 = vpop.f32.mrb[0].mxu0
      %3178 = vmatprep.mubr.f32.mxu0 0.0
      %3179 = vmatmul.mubr.f32.gmra.mrb[0].mxu0 %v3070
      %v3180 = vpop.f32.mrb[0].mxu0
      %v3181 = vadd.f32 0.0, %v3180
      %v3182 = vpop.f32.mrb[0].mxu0
      %3183 = vmatprep.mubr.f32.mxu0 0.0
      %3184 = vmatmul.mubr.f32.gmra.mrb[0].mxu0 %v3072
      %v3185 = vpop.f32.mrb[0].mxu0
      %v3186 = vadd.f32 0.0, %v3185
      %v3187 = vpop.f32.mrb[0].mxu0
      %3188 = vmatprep.mubr.f32.mxu0 0.0
      %3189 = vmatmul.mubr.f32.gmra.mrb[0].mxu0 %v3074
      %v3190 = vpop.f32.mrb[0].mxu0
      %v3191 = vadd.f32 0.0, %v3190
      %v3192 = vpop.f32.mrb[0].mxu0
      %3193 = vmatprep.mubr.f32.mxu0 0.0
      %3194 = vmatmul.mubr.f32.gmra.mrb[0].mxu0 %v3076
      %v3195 = vpop.f32.mrb[0].mxu0
      %v3196 = vadd.f32 0.0, %v3195
      %v3197 = vpop.f32.mrb[0].mxu0
      %3198 = vdwg.mxu0
      %3199 = vrot.lane.b32.xlu0 %v668, 120
      %v3200 = vpop.permute.xlu0 %3199
      %3201 = vrot.lane.b32.xlu0 %v673, 120
      %v3202 = vpop.permute.xlu0 %3201
      %3203 = vrot.lane.b32.xlu0 %v678, 120
      %v3204 = vpop.permute.xlu0 %3203
      %3205 = vrot.lane.b32.xlu0 %v683, 120
      %v3206 = vpop.permute.xlu0 %3205
      %3207 = vrot.lane.b32.xlu0 %v688, 120
      %v3208 = vpop.permute.xlu0 %3207
      %3209 = vrot.lane.b32.xlu0 %v693, 120
      %v3210 = vpop.permute.xlu0 %3209
      %3211 = vrot.lane.b32.xlu0 %v698, 120
      %v3212 = vpop.permute.xlu0 %3211
      %3213 = vrot.lane.b32.xlu0 %v703, 120
      %v3214 = vpop.permute.xlu0 %3213
      %3215 = vrot.lane.b32.xlu0 %v904, 120
      %v3216 = vpop.permute.xlu0 %3215
      %3217 = vrot.lane.b32.xlu0 %v909, 120
      %v3218 = vpop.permute.xlu0 %3217
      %3219 = vrot.lane.b32.xlu0 %v914, 120
      %v3220 = vpop.permute.xlu0 %3219
      %3221 = vrot.lane.b32.xlu0 %v919, 120
      %v3222 = vpop.permute.xlu0 %3221
      %3223 = vrot.lane.b32.xlu0 %v924, 120
      %v3224 = vpop.permute.xlu0 %3223
      %3225 = vrot.lane.b32.xlu0 %v929, 120
      %v3226 = vpop.permute.xlu0 %3225
      %3227 = vrot.lane.b32.xlu0 %v934, 120
      %v3228 = vpop.permute.xlu0 %3227
      %3229 = vrot.lane.b32.xlu0 %v939, 120
      %v3230 = vpop.permute.xlu0 %3229
      %v3231 = vsel %vm1178, %v3200, 0
      %v3233 = vsel %vm1178, %v3202, 0
      %v3235 = vsel %vm1178, %v3204, 0
      %v3237 = vsel %vm1178, %v3206, 0
      %v3239 = vsel %vm1178, %v3208, 0
      %v3241 = vsel %vm1178, %v3210, 0
      %v3243 = vsel %vm1178, %v3212, 0
      %v3245 = vsel %vm1178, %v3214, 0
      %v3247 = vsel %vm1178, %v3216, 0
      %v3249 = vsel %vm1178, %v3218, 0
      %v3251 = vsel %vm1178, %v3220, 0
      %v3253 = vsel %vm1178, %v3222, 0
      %v3255 = vsel %vm1178, %v3224, 0
      %v3257 = vsel %vm1178, %v3226, 0
      %v3259 = vsel %vm1178, %v3228, 0
      %v3261 = vsel %vm1178, %v3230, 0
      %3263 = vmatprep.subr.mxu0 0.0
      %3264 = vmatpush1.xpose.msra.mxu0 %v3247
      %3265 = vmatprep.subr.mxu0 0.0
      %3266 = vmatpush1.xpose.msra.mxu0 %v3249
      %3267 = vmatprep.subr.mxu0 0.0
      %3268 = vmatpush1.xpose.msra.mxu0 %v3251
      %3269 = vmatprep.subr.mxu0 0.0
      %3270 = vmatpush1.xpose.msra.mxu0 %v3253
      %3271 = vmatprep.subr.mxu0 0.0
      %3272 = vmatpush1.xpose.msra.mxu0 %v3255
      %3273 = vmatprep.subr.mxu0 0.0
      %3274 = vmatpush1.xpose.msra.mxu0 %v3257
      %3275 = vmatprep.subr.mxu0 0.0
      %3276 = vmatpush1.xpose.msra.mxu0 %v3259
      %3277 = vmatprep.subr.mxu0 0.0
      %3278 = vmatpush1.xpose.msra.mxu0 %v3261
      %3279 = vmatprep.subr.mxu0 0.0
      %3280 = vmatpush1.xpose.msra.mxu0 0.0
      %3281 = vmatprep.subr.mxu0 0.0
      %3282 = vmatpush1.xpose.msra.mxu0 0.0
      %3283 = vmatprep.subr.mxu0 0.0
      %3284 = vmatpush1.xpose.msra.mxu0 0.0
      %3285 = vmatprep.subr.mxu0 0.0
      %3286 = vmatpush1.xpose.msra.mxu0 0.0
      %3287 = vmatprep.subr.mxu0 0.0
      %3288 = vmatpush1.xpose.msra.mxu0 0.0
      %3289 = vmatprep.subr.mxu0 0.0
      %3290 = vmatpush1.xpose.msra.mxu0 0.0
      %3291 = vmatprep.subr.mxu0 0.0
      %3292 = vmatpush1.xpose.msra.mxu0 0.0
      %3293 = vmatprep.subr.mxu0 0.0
      %3294 = vmatpush1.xpose.msra.mxu0 0.0
      %3295 = vmatprep.subr.mxu0 0.0
      %3296 = vmatpush1.xpose.msra.mxu0 0.0
      %3297 = vmatprep.subr.mxu0 0.0
      %3298 = vmatpush1.xpose.msra.mxu0 0.0
      %3299 = vmatprep.subr.mxu0 0.0
      %3300 = vmatpush1.xpose.msra.mxu0 0.0
      %3301 = vmatprep.subr.mxu0 0.0
      %3302 = vmatpush1.xpose.msra.mxu0 0.0
      %3303 = vmatprep.subr.mxu0 0.0
      %3304 = vmatpush1.xpose.msra.mxu0 0.0
      %3305 = vmatprep.subr.mxu0 0.0
      %3306 = vmatpush1.xpose.msra.mxu0 0.0
      %3307 = vmatprep.subr.mxu0 0.0
      %3308 = vmatpush1.xpose.msra.mxu0 0.0
      %3309 = vmatprep.subr.mxu0 0.0
      %3310 = vmatpush1.xpose.msra.mxu0 0.0
      %3311 = vmatprep.subr.mxu0 0.0
      %3312 = vmatpush1.xpose.msra.mxu0 0.0
      %3313 = vmatprep.subr.mxu0 0.0
      %3314 = vmatpush1.xpose.msra.mxu0 0.0
      %3315 = vmatprep.subr.mxu0 0.0
      %3316 = vmatpush1.xpose.msra.mxu0 0.0
      %3317 = vmatprep.subr.mxu0 0.0
      %3318 = vmatpush1.xpose.msra.mxu0 0.0
      %3319 = vmatprep.subr.mxu0 0.0
      %3320 = vmatpush1.xpose.msra.mxu0 0.0
      %3321 = vmatprep.subr.mxu0 0.0
      %3322 = vmatpush1.xpose.msra.mxu0 0.0
      %3323 = vmatprep.subr.mxu0 0.0
      %3324 = vmatpush1.xpose.msra.mxu0 0.0
      %3325 = vmatprep.subr.mxu0 0.0
      %3326 = vmatpush1.xpose.msra.mxu0 0.0
      %3327 = vmatprep.mubr.f32.mxu0 0.0
      %3328 = vmatmul.mubr.f32.gmra.mrb[0].mxu0 %v3231
      %v3329 = vpop.f32.mrb[0].mxu0
      %v3330 = vadd.f32 0.0, %v3329
      %v3331 = vpop.f32.mrb[0].mxu0
      %3332 = vmatprep.mubr.f32.mxu0 0.0
      %3333 = vmatmul.mubr.f32.gmra.mrb[0].mxu0 %v3233
      %v3334 = vpop.f32.mrb[0].mxu0
      %v3335 = vadd.f32 0.0, %v3334
      %v3336 = vpop.f32.mrb[0].mxu0
      %3337 = vmatprep.mubr.f32.mxu0 0.0
      %3338 = vmatmul.mubr.f32.gmra.mrb[0].mxu0 %v3235
      %v3339 = vpop.f32.mrb[0].mxu0
      %v3340 = vadd.f32 0.0, %v3339
      %v3341 = vpop.f32.mrb[0].mxu0
      %3342 = vmatprep.mubr.f32.mxu0 0.0
      %3343 = vmatmul.mubr.f32.gmra.mrb[0].mxu0 %v3237
      %v3344 = vpop.f32.mrb[0].mxu0
      %v3345 = vadd.f32 0.0, %v3344
      %v3346 = vpop.f32.mrb[0].mxu0
      %3347 = vmatprep.mubr.f32.mxu0 0.0
      %3348 = vmatmul.mubr.f32.gmra.mrb[0].mxu0 %v3239
      %v3349 = vpop.f32.mrb[0].mxu0
      %v3350 = vadd.f32 0.0, %v3349
      %v3351 = vpop.f32.mrb[0].mxu0
      %3352 = vmatprep.mubr.f32.mxu0 0.0
      %3353 = vmatmul.mubr.f32.gmra.mrb[0].mxu0 %v3241
      %v3354 = vpop.f32.mrb[0].mxu0
      %v3355 = vadd.f32 0.0, %v3354
      %v3356 = vpop.f32.mrb[0].mxu0
      %3357 = vmatprep.mubr.f32.mxu0 0.0
      %3358 = vmatmul.mubr.f32.gmra.mrb[0].mxu0 %v3243
      %v3359 = vpop.f32.mrb[0].mxu0
      %v3360 = vadd.f32 0.0, %v3359
      %v3361 = vpop.f32.mrb[0].mxu0
      %3362 = vmatprep.mubr.f32.mxu0 0.0
      %3363 = vmatmul.mubr.f32.gmra.mrb[0].mxu0 %v3245
      %v3364 = vpop.f32.mrb[0].mxu0
      %v3365 = vadd.f32 0.0, %v3364
      %v3366 = vpop.f32.mrb[0].mxu0
      %3367 = vdwg.mxu0
      %v3368 = vsel %vm1791, %v2823, -inf
      %3369 = vmax.xlane.f32.xlu0 %v3368
      %v3370 = vpop.xlane.xlu0 %3369
      %v3371 = vsel %vm1791, %v2828, -inf
      %3372 = vmax.xlane.f32.xlu0 %v3371
      %v3373 = vpop.xlane.xlu0 %3372
      %v3374 = vsel %vm1791, %v2833, -inf
      %3375 = vmax.xlane.f32.xlu0 %v3374
      %v3376 = vpop.xlane.xlu0 %3375
      %v3377 = vsel %vm1791, %v2838, -inf
      %3378 = vmax.xlane.f32.xlu0 %v3377
      %v3379 = vpop.xlane.xlu0 %3378
      %v3380 = vsel %vm1791, %v2843, -inf
      %3381 = vmax.xlane.f32.xlu0 %v3380
      %v3382 = vpop.xlane.xlu0 %3381
      %v3383 = vsel %vm1791, %v2848, -inf
      %3384 = vmax.xlane.f32.xlu0 %v3383
      %v3385 = vpop.xlane.xlu0 %3384
      %v3386 = vsel %vm1791, %v2853, -inf
      %3387 = vmax.xlane.f32.xlu0 %v3386
      %v3388 = vpop.xlane.xlu0 %3387
      %v3389 = vsel %vm1791, %v2858, -inf
      %3390 = vmax.xlane.f32.xlu0 %v3389
      %v3391 = vpop.xlane.xlu0 %3390
      %v3392 = vsel %vm1791, %v2992, -inf
      %3393 = vmax.xlane.f32.xlu0 %v3392
      %v3394 = vpop.xlane.xlu0 %3393
      %v3395 = vsel %vm1791, %v2997, -inf
      %3396 = vmax.xlane.f32.xlu0 %v3395
      %v3397 = vpop.xlane.xlu0 %3396
      %v3398 = vsel %vm1791, %v3002, -inf
      %3399 = vmax.xlane.f32.xlu0 %v3398
      %v3400 = vpop.xlane.xlu0 %3399
      %v3401 = vsel %vm1791, %v3007, -inf
      %3402 = vmax.xlane.f32.xlu0 %v3401
      %v3403 = vpop.xlane.xlu0 %3402
      %v3404 = vsel %vm1791, %v3012, -inf
      %3405 = vmax.xlane.f32.xlu0 %v3404
      %v3406 = vpop.xlane.xlu0 %3405
      %v3407 = vsel %vm1791, %v3017, -inf
      %3408 = vmax.xlane.f32.xlu0 %v3407
      %v3409 = vpop.xlane.xlu0 %3408
      %v3410 = vsel %vm1791, %v3022, -inf
      %3411 = vmax.xlane.f32.xlu0 %v3410
      %v3412 = vpop.xlane.xlu0 %3411
      %v3413 = vsel %vm1791, %v3027, -inf
      %3414 = vmax.xlane.f32.xlu0 %v3413
      %v3415 = vpop.xlane.xlu0 %3414
      %v3416 = vsel %vm1791, %v3161, -inf
      %3417 = vmax.xlane.f32.xlu0 %v3416
      %v3418 = vpop.xlane.xlu0 %3417
      %v3419 = vsel %vm1791, %v3166, -inf
      %3420 = vmax.xlane.f32.xlu0 %v3419
      %v3421 = vpop.xlane.xlu0 %3420
      %v3422 = vsel %vm1791, %v3171, -inf
      %3423 = vmax.xlane.f32.xlu0 %v3422
      %v3424 = vpop.xlane.xlu0 %3423
      %v3425 = vsel %vm1791, %v3176, -inf
      %3426 = vmax.xlane.f32.xlu0 %v3425
      %v3427 = vpop.xlane.xlu0 %3426
      %v3428 = vsel %vm1791, %v3181, -inf
      %3429 = vmax.xlane.f32.xlu0 %v3428
      %v3430 = vpop.xlane.xlu0 %3429
      %v3431 = vsel %vm1791, %v3186, -inf
      %3432 = vmax.xlane.f32.xlu0 %v3431
      %v3433 = vpop.xlane.xlu0 %3432
      %v3434 = vsel %vm1791, %v3191, -inf
      %3435 = vmax.xlane.f32.xlu0 %v3434
      %v3436 = vpop.xlane.xlu0 %3435
      %v3437 = vsel %vm1791, %v3196, -inf
      %3438 = vmax.xlane.f32.xlu0 %v3437
      %v3439 = vpop.xlane.xlu0 %3438
      %v3440 = vsel %vm1791, %v3330, -inf
      %3441 = vmax.xlane.f32.xlu0 %v3440
      %v3442 = vpop.xlane.xlu0 %3441
      %v3443 = vsel %vm1791, %v3335, -inf
      %3444 = vmax.xlane.f32.xlu0 %v3443
      %v3445 = vpop.xlane.xlu0 %3444
      %v3446 = vsel %vm1791, %v3340, -inf
      %3447 = vmax.xlane.f32.xlu0 %v3446
      %v3448 = vpop.xlane.xlu0 %3447
      %v3449 = vsel %vm1791, %v3345, -inf
      %3450 = vmax.xlane.f32.xlu0 %v3449
      %v3451 = vpop.xlane.xlu0 %3450
      %v3452 = vsel %vm1791, %v3350, -inf
      %3453 = vmax.xlane.f32.xlu0 %v3452
      %v3454 = vpop.xlane.xlu0 %3453
      %v3455 = vsel %vm1791, %v3355, -inf
      %3456 = vmax.xlane.f32.xlu0 %v3455
      %v3457 = vpop.xlane.xlu0 %3456
      %v3458 = vsel %vm1791, %v3360, -inf
      %3459 = vmax.xlane.f32.xlu0 %v3458
      %v3460 = vpop.xlane.xlu0 %3459
      %v3461 = vsel %vm1791, %v3365, -inf
      %3462 = vmax.xlane.f32.xlu0 %v3461
      %v3463 = vpop.xlane.xlu0 %3462
      %v3464 = vsub.f32 %v2823, %v3370
      %v3465 = vsub.f32 %v2828, %v3373
      %v3466 = vsub.f32 %v2833, %v3376
      %v3467 = vsub.f32 %v2838, %v3379
      %v3468 = vsub.f32 %v2843, %v3382
      %v3469 = vsub.f32 %v2848, %v3385
      %v3470 = vsub.f32 %v2853, %v3388
      %v3471 = vsub.f32 %v2858, %v3391
      %v3472 = vsub.f32 %v2992, %v3394
      %v3473 = vsub.f32 %v2997, %v3397
      %v3474 = vsub.f32 %v3002, %v3400
      %v3475 = vsub.f32 %v3007, %v3403
      %v3476 = vsub.f32 %v3012, %v3406
      %v3477 = vsub.f32 %v3017, %v3409
      %v3478 = vsub.f32 %v3022, %v3412
      %v3479 = vsub.f32 %v3027, %v3415
      %v3480 = vsub.f32 %v3161, %v3418
      %v3481 = vsub.f32 %v3166, %v3421
      %v3482 = vsub.f32 %v3171, %v3424
      %v3483 = vsub.f32 %v3176, %v3427
      %v3484 = vsub.f32 %v3181, %v3430
      %v3485 = vsub.f32 %v3186, %v3433
      %v3486 = vsub.f32 %v3191, %v3436
      %v3487 = vsub.f32 %v3196, %v3439
      %v3488 = vsub.f32 %v3330, %v3442
      %v3489 = vsub.f32 %v3335, %v3445
      %v3490 = vsub.f32 %v3340, %v3448
      %v3491 = vsub.f32 %v3345, %v3451
      %v3492 = vsub.f32 %v3350, %v3454
      %v3493 = vsub.f32 %v3355, %v3457
      %v3494 = vsub.f32 %v3360, %v3460
      %v3495 = vsub.f32 %v3365, %v3463
      %v3496 = vmul.f32 %v3464, 1.442695
      %v3497 = vpow.pop %v3496
      %v3498 = vmul.f32 %v3465, 1.442695
      %v3499 = vpow.pop %v3498
      %v3500 = vmul.f32 %v3466, 1.442695
      %v3501 = vpow.pop %v3500
      %v3502 = vmul.f32 %v3467, 1.442695
      %v3503 = vpow.pop %v3502
      %v3504 = vmul.f32 %v3468, 1.442695
      %v3505 = vpow.pop %v3504
      %v3506 = vmul.f32 %v3469, 1.442695
      %v3507 = vpow.pop %v3506
      %v3508 = vmul.f32 %v3470, 1.442695
      %v3509 = vpow.pop %v3508
      %v3510 = vmul.f32 %v3471, 1.442695
      %v3511 = vpow.pop %v3510
      %v3512 = vmul.f32 %v3472, 1.442695
      %v3513 = vpow.pop %v3512
      %v3514 = vmul.f32 %v3473, 1.442695
      %v3515 = vpow.pop %v3514
      %v3516 = vmul.f32 %v3474, 1.442695
      %v3517 = vpow.pop %v3516
      %v3518 = vmul.f32 %v3475, 1.442695
      %v3519 = vpow.pop %v3518
      %v3520 = vmul.f32 %v3476, 1.442695
      %v3521 = vpow.pop %v3520
      %v3522 = vmul.f32 %v3477, 1.442695
      %v3523 = vpow.pop %v3522
      %v3524 = vmul.f32 %v3478, 1.442695
      %v3525 = vpow.pop %v3524
      %v3526 = vmul.f32 %v3479, 1.442695
      %v3527 = vpow.pop %v3526
      %v3528 = vmul.f32 %v3480, 1.442695
      %v3529 = vpow.pop %v3528
      %v3530 = vmul.f32 %v3481, 1.442695
      %v3531 = vpow.pop %v3530
      %v3532 = vmul.f32 %v3482, 1.442695
      %v3533 = vpow.pop %v3532
      %v3534 = vmul.f32 %v3483, 1.442695
      %v3535 = vpow.pop %v3534
      %v3536 = vmul.f32 %v3484, 1.442695
      %v3537 = vpow.pop %v3536
      %v3538 = vmul.f32 %v3485, 1.442695
      %v3539 = vpow.pop %v3538
      %v3540 = vmul.f32 %v3486, 1.442695
      %v3541 = vpow.pop %v3540
      %v3542 = vmul.f32 %v3487, 1.442695
      %v3543 = vpow.pop %v3542
      %v3544 = vmul.f32 %v3488, 1.442695
      %v3545 = vpow.pop %v3544
      %v3546 = vmul.f32 %v3489, 1.442695
      %v3547 = vpow.pop %v3546
      %v3548 = vmul.f32 %v3490, 1.442695
      %v3549 = vpow.pop %v3548
      %v3550 = vmul.f32 %v3491, 1.442695
      %v3551 = vpow.pop %v3550
      %v3552 = vmul.f32 %v3492, 1.442695
      %v3553 = vpow.pop %v3552
      %v3554 = vmul.f32 %v3493, 1.442695
      %v3555 = vpow.pop %v3554
      %v3556 = vmul.f32 %v3494, 1.442695
      %v3557 = vpow.pop %v3556
      %v3558 = vmul.f32 %v3495, 1.442695
      %v3559 = vpow.pop %v3558
      %v3560 = vsel %vm1791, %v3497, 0.0
      %3561 = vadd.xlane.f32.xlu0 %v3560
      %v3562 = vpop.xlane.xlu0 %3561
      %v3563 = vsel %vm1791, %v3499, 0.0
      %3564 = vadd.xlane.f32.xlu0 %v3563
      %v3565 = vpop.xlane.xlu0 %3564
      %v3566 = vsel %vm1791, %v3501, 0.0
      %3567 = vadd.xlane.f32.xlu0 %v3566
      %v3568 = vpop.xlane.xlu0 %3567
      %v3569 = vsel %vm1791, %v3503, 0.0
      %3570 = vadd.xlane.f32.xlu0 %v3569
      %v3571 = vpop.xlane.xlu0 %3570
      %v3572 = vsel %vm1791, %v3505, 0.0
      %3573 = vadd.xlane.f32.xlu0 %v3572
      %v3574 = vpop.xlane.xlu0 %3573
      %v3575 = vsel %vm1791, %v3507, 0.0
      %3576 = vadd.xlane.f32.xlu0 %v3575
      %v3577 = vpop.xlane.xlu0 %3576
      %v3578 = vsel %vm1791, %v3509, 0.0
      %3579 = vadd.xlane.f32.xlu0 %v3578
      %v3580 = vpop.xlane.xlu0 %3579
      %v3581 = vsel %vm1791, %v3511, 0.0
      %3582 = vadd.xlane.f32.xlu0 %v3581
      %v3583 = vpop.xlane.xlu0 %3582
      %v3584 = vsel %vm1791, %v3513, 0.0
      %3585 = vadd.xlane.f32.xlu0 %v3584
      %v3586 = vpop.xlane.xlu0 %3585
      %v3587 = vsel %vm1791, %v3515, 0.0
      %3588 = vadd.xlane.f32.xlu0 %v3587
      %v3589 = vpop.xlane.xlu0 %3588
      %v3590 = vsel %vm1791, %v3517, 0.0
      %3591 = vadd.xlane.f32.xlu0 %v3590
      %v3592 = vpop.xlane.xlu0 %3591
      %v3593 = vsel %vm1791, %v3519, 0.0
      %3594 = vadd.xlane.f32.xlu0 %v3593
      %v3595 = vpop.xlane.xlu0 %3594
      %v3596 = vsel %vm1791, %v3521, 0.0
      %3597 = vadd.xlane.f32.xlu0 %v3596
      %v3598 = vpop.xlane.xlu0 %3597
      %v3599 = vsel %vm1791, %v3523, 0.0
      %3600 = vadd.xlane.f32.xlu0 %v3599
      %v3601 = vpop.xlane.xlu0 %3600
      %v3602 = vsel %vm1791, %v3525, 0.0
      %3603 = vadd.xlane.f32.xlu0 %v3602
      %v3604 = vpop.xlane.xlu0 %3603
      %v3605 = vsel %vm1791, %v3527, 0.0
      %3606 = vadd.xlane.f32.xlu0 %v3605
      %v3607 = vpop.xlane.xlu0 %3606
      %v3608 = vsel %vm1791, %v3529, 0.0
      %3609 = vadd.xlane.f32.xlu0 %v3608
      %v3610 = vpop.xlane.xlu0 %3609
      %v3611 = vsel %vm1791, %v3531, 0.0
      %3612 = vadd.xlane.f32.xlu0 %v3611
      %v3613 = vpop.xlane.xlu0 %3612
      %v3614 = vsel %vm1791, %v3533, 0.0
      %3615 = vadd.xlane.f32.xlu0 %v3614
      %v3616 = vpop.xlane.xlu0 %3615
      %v3617 = vsel %vm1791, %v3535, 0.0
      %3618 = vadd.xlane.f32.xlu0 %v3617
      %v3619 = vpop.xlane.xlu0 %3618
      %v3620 = vsel %vm1791, %v3537, 0.0
      %3621 = vadd.xlane.f32.xlu0 %v3620
      %v3622 = vpop.xlane.xlu0 %3621
      %v3623 = vsel %vm1791, %v3539, 0.0
      %3624 = vadd.xlane.f32.xlu0 %v3623
      %v3625 = vpop.xlane.xlu0 %3624
      %v3626 = vsel %vm1791, %v3541, 0.0
      %3627 = vadd.xlane.f32.xlu0 %v3626
      %v3628 = vpop.xlane.xlu0 %3627
      %v3629 = vsel %vm1791, %v3543, 0.0
      %3630 = vadd.xlane.f32.xlu0 %v3629
      %v3631 = vpop.xlane.xlu0 %3630
      %v3632 = vsel %vm1791, %v3545, 0.0
      %3633 = vadd.xlane.f32.xlu0 %v3632
      %v3634 = vpop.xlane.xlu0 %3633
      %v3635 = vsel %vm1791, %v3547, 0.0
      %3636 = vadd.xlane.f32.xlu0 %v3635
      %v3637 = vpop.xlane.xlu0 %3636
      %v3638 = vsel %vm1791, %v3549, 0.0
      %3639 = vadd.xlane.f32.xlu0 %v3638
      %v3640 = vpop.xlane.xlu0 %3639
      %v3641 = vsel %vm1791, %v3551, 0.0
      %3642 = vadd.xlane.f32.xlu0 %v3641
      %v3643 = vpop.xlane.xlu0 %3642
      %v3644 = vsel %vm1791, %v3553, 0.0
      %3645 = vadd.xlane.f32.xlu0 %v3644
      %v3646 = vpop.xlane.xlu0 %3645
      %v3647 = vsel %vm1791, %v3555, 0.0
      %3648 = vadd.xlane.f32.xlu0 %v3647
      %v3649 = vpop.xlane.xlu0 %3648
      %v3650 = vsel %vm1791, %v3557, 0.0
      %3651 = vadd.xlane.f32.xlu0 %v3650
      %v3652 = vpop.xlane.xlu0 %3651
      %v3653 = vsel %vm1791, %v3559, 0.0
      %3654 = vadd.xlane.f32.xlu0 %v3653
      %v3655 = vpop.xlane.xlu0 %3654
      %v3656 = vrcp.pop %v3562
      %v3657 = vrcp.pop %v3565
      %v3658 = vrcp.pop %v3568
      %v3659 = vrcp.pop %v3571
      %v3660 = vrcp.pop %v3574
      %v3661 = vrcp.pop %v3577
      %v3662 = vrcp.pop %v3580
      %v3663 = vrcp.pop %v3583
      %v3664 = vrcp.pop %v3586
      %v3665 = vrcp.pop %v3589
      %v3666 = vrcp.pop %v3592
      %v3667 = vrcp.pop %v3595
      %v3668 = vrcp.pop %v3598
      %v3669 = vrcp.pop %v3601
      %v3670 = vrcp.pop %v3604
      %v3671 = vrcp.pop %v3607
      %v3672 = vrcp.pop %v3610
      %v3673 = vrcp.pop %v3613
      %v3674 = vrcp.pop %v3616
      %v3675 = vrcp.pop %v3619
      %v3676 = vrcp.pop %v3622
      %v3677 = vrcp.pop %v3625
      %v3678 = vrcp.pop %v3628
      %v3679 = vrcp.pop %v3631
      %v3680 = vrcp.pop %v3634
      %v3681 = vrcp.pop %v3637
      %v3682 = vrcp.pop %v3640
      %v3683 = vrcp.pop %v3643
      %v3684 = vrcp.pop %v3646
      %v3685 = vrcp.pop %v3649
      %v3686 = vrcp.pop %v3652
      %v3687 = vrcp.pop %v3655
      %v3688 = vmul.f32 %v3497, %v3656
      %v3689 = vmul.f32 %v3499, %v3657
      %v3690 = vmul.f32 %v3501, %v3658
      %v3691 = vmul.f32 %v3503, %v3659
      %v3692 = vmul.f32 %v3505, %v3660
      %v3693 = vmul.f32 %v3507, %v3661
      %v3694 = vmul.f32 %v3509, %v3662
      %v3695 = vmul.f32 %v3511, %v3663
      %v3696 = vmul.f32 %v3513, %v3664
      %v3697 = vmul.f32 %v3515, %v3665
      %v3698 = vmul.f32 %v3517, %v3666
      %v3699 = vmul.f32 %v3519, %v3667
      %v3700 = vmul.f32 %v3521, %v3668
      %v3701 = vmul.f32 %v3523, %v3669
      %v3702 = vmul.f32 %v3525, %v3670
      %v3703 = vmul.f32 %v3527, %v3671
      %v3704 = vmul.f32 %v3529, %v3672
      %v3705 = vmul.f32 %v3531, %v3673
      %v3706 = vmul.f32 %v3533, %v3674
      %v3707 = vmul.f32 %v3535, %v3675
      %v3708 = vmul.f32 %v3537, %v3676
      %v3709 = vmul.f32 %v3539, %v3677
      %v3710 = vmul.f32 %v3541, %v3678
      %v3711 = vmul.f32 %v3543, %v3679
      %v3712 = vmul.f32 %v3545, %v3680
      %v3713 = vmul.f32 %v3547, %v3681
      %v3714 = vmul.f32 %v3549, %v3682
      %v3715 = vmul.f32 %v3551, %v3683
      %v3716 = vmul.f32 %v3553, %v3684
      %v3717 = vmul.f32 %v3555, %v3685
      %v3718 = vmul.f32 %v3557, %v3686
      %v3719 = vmul.f32 %v3559, %v3687
      %3728 = vrot.lane.b32.xlu0 %v1020, 120
      %v3729 = vpop.permute.xlu0 %3728
      %3730 = vrot.lane.b32.xlu0 %v1025, 120
      %v3731 = vpop.permute.xlu0 %3730
      %3732 = vrot.lane.b32.xlu0 %v1030, 120
      %v3733 = vpop.permute.xlu0 %3732
      %3734 = vrot.lane.b32.xlu0 %v1035, 120
      %v3735 = vpop.permute.xlu0 %3734
      %3736 = vrot.lane.b32.xlu0 %v1040, 120
      %v3737 = vpop.permute.xlu0 %3736
      %3738 = vrot.lane.b32.xlu0 %v1045, 120
      %v3739 = vpop.permute.xlu0 %3738
      %3740 = vrot.lane.b32.xlu0 %v1050, 120
      %v3741 = vpop.permute.xlu0 %3740
      %3742 = vrot.lane.b32.xlu0 %v1055, 120
      %v3743 = vpop.permute.xlu0 %3742
      %v3753 = vsel %vm1791, %v3688, 0
      %v3756 = vsel %vm1791, %v3689, 0
      %v3759 = vsel %vm1791, %v3690, 0
      %v3762 = vsel %vm1791, %v3691, 0
      %v3765 = vsel %vm1791, %v3692, 0
      %v3768 = vsel %vm1791, %v3693, 0
      %v3771 = vsel %vm1791, %v3694, 0
      %v3774 = vsel %vm1791, %v3695, 0
      %3776 = vmatprep.subr.mxu0 0.0
      %3777 = vmatpush1.msra.mxu0 %v3729
      %3778 = vmatprep.subr.mxu0 0.0
      %3779 = vmatpush1.msra.mxu0 %v3731
      %3780 = vmatprep.subr.mxu0 0.0
      %3781 = vmatpush1.msra.mxu0 %v3733
      %3782 = vmatprep.subr.mxu0 0.0
      %3783 = vmatpush1.msra.mxu0 %v3735
      %3784 = vmatprep.subr.mxu0 0.0
      %3785 = vmatpush1.msra.mxu0 %v3737
      %3786 = vmatprep.subr.mxu0 0.0
      %3787 = vmatpush1.msra.mxu0 %v3739
      %3788 = vmatprep.subr.mxu0 0.0
      %3789 = vmatpush1.msra.mxu0 %v3741
      %3790 = vmatprep.subr.mxu0 0.0
      %3791 = vmatpush1.msra.mxu0 %v3743
      %3792 = vmatprep.subr.mxu0 0.0
      %3793 = vmatpush1.msra.mxu0 0.0
      %3794 = vmatprep.subr.mxu0 0.0
      %3795 = vmatpush1.msra.mxu0 0.0
      %3796 = vmatprep.subr.mxu0 0.0
      %3797 = vmatpush1.msra.mxu0 0.0
      %3798 = vmatprep.subr.mxu0 0.0
      %3799 = vmatpush1.msra.mxu0 0.0
      %3800 = vmatprep.subr.mxu0 0.0
      %3801 = vmatpush1.msra.mxu0 0.0
      %3802 = vmatprep.subr.mxu0 0.0
      %3803 = vmatpush1.msra.mxu0 0.0
      %3804 = vmatprep.subr.mxu0 0.0
      %3805 = vmatpush1.msra.mxu0 0.0
      %3806 = vmatprep.subr.mxu0 0.0
      %3807 = vmatpush1.msra.mxu0 0.0
      %3808 = vmatprep.subr.mxu0 0.0
      %3809 = vmatpush1.msra.mxu0 0.0
      %3810 = vmatprep.subr.mxu0 0.0
      %3811 = vmatpush1.msra.mxu0 0.0
      %3812 = vmatprep.subr.mxu0 0.0
      %3813 = vmatpush1.msra.mxu0 0.0
      %3814 = vmatprep.subr.mxu0 0.0
      %3815 = vmatpush1.msra.mxu0 0.0
      %3816 = vmatprep.subr.mxu0 0.0
      %3817 = vmatpush1.msra.mxu0 0.0
      %3818 = vmatprep.subr.mxu0 0.0
      %3819 = vmatpush1.msra.mxu0 0.0
      %3820 = vmatprep.subr.mxu0 0.0
      %3821 = vmatpush1.msra.mxu0 0.0
      %3822 = vmatprep.subr.mxu0 0.0
      %3823 = vmatpush1.msra.mxu0 0.0
      %3824 = vmatprep.subr.mxu0 0.0
      %3825 = vmatpush1.msra.mxu0 0.0
      %3826 = vmatprep.subr.mxu0 0.0
      %3827 = vmatpush1.msra.mxu0 0.0
      %3828 = vmatprep.subr.mxu0 0.0
      %3829 = vmatpush1.msra.mxu0 0.0
      %3830 = vmatprep.subr.mxu0 0.0
      %3831 = vmatpush1.msra.mxu0 0.0
      %3832 = vmatprep.subr.mxu0 0.0
      %3833 = vmatpush1.msra.mxu0 0.0
      %3834 = vmatprep.subr.mxu0 0.0
      %3835 = vmatpush1.msra.mxu0 0.0
      %3836 = vmatprep.subr.mxu0 0.0
      %3837 = vmatpush1.msra.mxu0 0.0
      %3838 = vmatprep.subr.mxu0 0.0
      %3839 = vmatpush1.msra.mxu0 0.0
      %3840 = vmatprep.mubr.f32.mxu0 0.0
      %3841 = vmatmul.mubr.f32.gmra.mrb[0].mxu0 %v3753
      %v3842 = vpop.f32.mrb[0].mxu0
      %v3843 = vadd.f32 0.0, %v3842
      %v3844 = vpop.f32.mrb[0].mxu0
      %3845 = vmatprep.mubr.f32.mxu0 0.0
      %3846 = vmatmul.mubr.f32.gmra.mrb[0].mxu0 %v3756
      %v3847 = vpop.f32.mrb[0].mxu0
      %v3848 = vadd.f32 0.0, %v3847
      %v3849 = vpop.f32.mrb[0].mxu0
      %3850 = vmatprep.mubr.f32.mxu0 0.0
      %3851 = vmatmul.mubr.f32.gmra.mrb[0].mxu0 %v3759
      %v3852 = vpop.f32.mrb[0].mxu0
      %v3853 = vadd.f32 0.0, %v3852
      %v3854 = vpop.f32.mrb[0].mxu0
      %3855 = vmatprep.mubr.f32.mxu0 0.0
      %3856 = vmatmul.mubr.f32.gmra.mrb[0].mxu0 %v3762
      %v3857 = vpop.f32.mrb[0].mxu0
      %v3858 = vadd.f32 0.0, %v3857
      %v3859 = vpop.f32.mrb[0].mxu0
      %3860 = vmatprep.mubr.f32.mxu0 0.0
      %3861 = vmatmul.mubr.f32.gmra.mrb[0].mxu0 %v3765
      %v3862 = vpop.f32.mrb[0].mxu0
      %v3863 = vadd.f32 0.0, %v3862
      %v3864 = vpop.f32.mrb[0].mxu0
      %3865 = vmatprep.mubr.f32.mxu0 0.0
      %3866 = vmatmul.mubr.f32.gmra.mrb[0].mxu0 %v3768
      %v3867 = vpop.f32.mrb[0].mxu0
      %v3868 = vadd.f32 0.0, %v3867
      %v3869 = vpop.f32.mrb[0].mxu0
      %3870 = vmatprep.mubr.f32.mxu0 0.0
      %3871 = vmatmul.mubr.f32.gmra.mrb[0].mxu0 %v3771
      %v3872 = vpop.f32.mrb[0].mxu0
      %v3873 = vadd.f32 0.0, %v3872
      %v3874 = vpop.f32.mrb[0].mxu0
      %3875 = vmatprep.mubr.f32.mxu0 0.0
      %3876 = vmatmul.mubr.f32.gmra.mrb[0].mxu0 %v3774
      %v3877 = vpop.f32.mrb[0].mxu0
      %v3878 = vadd.f32 0.0, %v3877
      %v3879 = vpop.f32.mrb[0].mxu0
      %3880 = vdwg.mxu0
      %3889 = vrot.lane.b32.xlu0 %v1060, 120
      %v3890 = vpop.permute.xlu0 %3889
      %3891 = vrot.lane.b32.xlu0 %v1065, 120
      %v3892 = vpop.permute.xlu0 %3891
      %3893 = vrot.lane.b32.xlu0 %v1070, 120
      %v3894 = vpop.permute.xlu0 %3893
      %3895 = vrot.lane.b32.xlu0 %v1075, 120
      %v3896 = vpop.permute.xlu0 %3895
      %3897 = vrot.lane.b32.xlu0 %v1080, 120
      %v3898 = vpop.permute.xlu0 %3897
      %3899 = vrot.lane.b32.xlu0 %v1085, 120
      %v3900 = vpop.permute.xlu0 %3899
      %3901 = vrot.lane.b32.xlu0 %v1090, 120
      %v3902 = vpop.permute.xlu0 %3901
      %3903 = vrot.lane.b32.xlu0 %v1095, 120
      %v3904 = vpop.permute.xlu0 %3903
      %v3914 = vsel %vm1791, %v3696, 0
      %v3917 = vsel %vm1791, %v3697, 0
      %v3920 = vsel %vm1791, %v3698, 0
      %v3923 = vsel %vm1791, %v3699, 0
      %v3926 = vsel %vm1791, %v3700, 0
      %v3929 = vsel %vm1791, %v3701, 0
      %v3932 = vsel %vm1791, %v3702, 0
      %v3935 = vsel %vm1791, %v3703, 0
      %3937 = vmatprep.subr.mxu0 0.0
      %3938 = vmatpush1.msra.mxu0 %v3890
      %3939 = vmatprep.subr.mxu0 0.0
      %3940 = vmatpush1.msra.mxu0 %v3892
      %3941 = vmatprep.subr.mxu0 0.0
      %3942 = vmatpush1.msra.mxu0 %v3894
      %3943 = vmatprep.subr.mxu0 0.0
      %3944 = vmatpush1.msra.mxu0 %v3896
      %3945 = vmatprep.subr.mxu0 0.0
      %3946 = vmatpush1.msra.mxu0 %v3898
      %3947 = vmatprep.subr.mxu0 0.0
      %3948 = vmatpush1.msra.mxu0 %v3900
      %3949 = vmatprep.subr.mxu0 0.0
      %3950 = vmatpush1.msra.mxu0 %v3902
      %3951 = vmatprep.subr.mxu0 0.0
      %3952 = vmatpush1.msra.mxu0 %v3904
      %3953 = vmatprep.subr.mxu0 0.0
      %3954 = vmatpush1.msra.mxu0 0.0
      %3955 = vmatprep.subr.mxu0 0.0
      %3956 = vmatpush1.msra.mxu0 0.0
      %3957 = vmatprep.subr.mxu0 0.0
      %3958 = vmatpush1.msra.mxu0 0.0
      %3959 = vmatprep.subr.mxu0 0.0
      %3960 = vmatpush1.msra.mxu0 0.0
      %3961 = vmatprep.subr.mxu0 0.0
      %3962 = vmatpush1.msra.mxu0 0.0
      %3963 = vmatprep.subr.mxu0 0.0
      %3964 = vmatpush1.msra.mxu0 0.0
      %3965 = vmatprep.subr.mxu0 0.0
      %3966 = vmatpush1.msra.mxu0 0.0
      %3967 = vmatprep.subr.mxu0 0.0
      %3968 = vmatpush1.msra.mxu0 0.0
      %3969 = vmatprep.subr.mxu0 0.0
      %3970 = vmatpush1.msra.mxu0 0.0
      %3971 = vmatprep.subr.mxu0 0.0
      %3972 = vmatpush1.msra.mxu0 0.0
      %3973 = vmatprep.subr.mxu0 0.0
      %3974 = vmatpush1.msra.mxu0 0.0
      %3975 = vmatprep.subr.mxu0 0.0
      %3976 = vmatpush1.msra.mxu0 0.0
      %3977 = vmatprep.subr.mxu0 0.0
      %3978 = vmatpush1.msra.mxu0 0.0
      %3979 = vmatprep.subr.mxu0 0.0
      %3980 = vmatpush1.msra.mxu0 0.0
      %3981 = vmatprep.subr.mxu0 0.0
      %3982 = vmatpush1.msra.mxu0 0.0
      %3983 = vmatprep.subr.mxu0 0.0
      %3984 = vmatpush1.msra.mxu0 0.0
      %3985 = vmatprep.subr.mxu0 0.0
      %3986 = vmatpush1.msra.mxu0 0.0
      %3987 = vmatprep.subr.mxu0 0.0
      %3988 = vmatpush1.msra.mxu0 0.0
      %3989 = vmatprep.subr.mxu0 0.0
      %3990 = vmatpush1.msra.mxu0 0.0
      %3991 = vmatprep.subr.mxu0 0.0
      %3992 = vmatpush1.msra.mxu0 0.0
      %3993 = vmatprep.subr.mxu0 0.0
      %3994 = vmatpush1.msra.mxu0 0.0
      %3995 = vmatprep.subr.mxu0 0.0
      %3996 = vmatpush1.msra.mxu0 0.0
      %3997 = vmatprep.subr.mxu0 0.0
      %3998 = vmatpush1.msra.mxu0 0.0
      %3999 = vmatprep.subr.mxu0 0.0
      %4000 = vmatpush1.msra.mxu0 0.0
      %4001 = vmatprep.mubr.f32.mxu0 0.0
      %4002 = vmatmul.mubr.f32.gmra.mrb[0].mxu0 %v3914
      %v4003 = vpop.f32.mrb[0].mxu0
      %v4004 = vadd.f32 0.0, %v4003
      %v4005 = vpop.f32.mrb[0].mxu0
      %4006 = vmatprep.mubr.f32.mxu0 0.0
      %4007 = vmatmul.mubr.f32.gmra.mrb[0].mxu0 %v3917
      %v4008 = vpop.f32.mrb[0].mxu0
      %v4009 = vadd.f32 0.0, %v4008
      %v4010 = vpop.f32.mrb[0].mxu0
      %4011 = vmatprep.mubr.f32.mxu0 0.0
      %4012 = vmatmul.mubr.f32.gmra.mrb[0].mxu0 %v3920
      %v4013 = vpop.f32.mrb[0].mxu0
      %v4014 = vadd.f32 0.0, %v4013
      %v4015 = vpop.f32.mrb[0].mxu0
      %4016 = vmatprep.mubr.f32.mxu0 0.0
      %4017 = vmatmul.mubr.f32.gmra.mrb[0].mxu0 %v3923
      %v4018 = vpop.f32.mrb[0].mxu0
      %v4019 = vadd.f32 0.0, %v4018
      %v4020 = vpop.f32.mrb[0].mxu0
      %4021 = vmatprep.mubr.f32.mxu0 0.0
      %4022 = vmatmul.mubr.f32.gmra.mrb[0].mxu0 %v3926
      %v4023 = vpop.f32.mrb[0].mxu0
      %v4024 = vadd.f32 0.0, %v4023
      %v4025 = vpop.f32.mrb[0].mxu0
      %4026 = vmatprep.mubr.f32.mxu0 0.0
      %4027 = vmatmul.mubr.f32.gmra.mrb[0].mxu0 %v3929
      %v4028 = vpop.f32.mrb[0].mxu0
      %v4029 = vadd.f32 0.0, %v4028
      %v4030 = vpop.f32.mrb[0].mxu0
      %4031 = vmatprep.mubr.f32.mxu0 0.0
      %4032 = vmatmul.mubr.f32.gmra.mrb[0].mxu0 %v3932
      %v4033 = vpop.f32.mrb[0].mxu0
      %v4034 = vadd.f32 0.0, %v4033
      %v4035 = vpop.f32.mrb[0].mxu0
      %4036 = vmatprep.mubr.f32.mxu0 0.0
      %4037 = vmatmul.mubr.f32.gmra.mrb[0].mxu0 %v3935
      %v4038 = vpop.f32.mrb[0].mxu0
      %v4039 = vadd.f32 0.0, %v4038
      %v4040 = vpop.f32.mrb[0].mxu0
      %4041 = vdwg.mxu0
      %4050 = vrot.lane.b32.xlu0 %v1100, 120
      %v4051 = vpop.permute.xlu0 %4050
      %4052 = vrot.lane.b32.xlu0 %v1105, 120
      %v4053 = vpop.permute.xlu0 %4052
      %4054 = vrot.lane.b32.xlu0 %v1110, 120
      %v4055 = vpop.permute.xlu0 %4054
      %4056 = vrot.lane.b32.xlu0 %v1115, 120
      %v4057 = vpop.permute.xlu0 %4056
      %4058 = vrot.lane.b32.xlu0 %v1120, 120
      %v4059 = vpop.permute.xlu0 %4058
      %4060 = vrot.lane.b32.xlu0 %v1125, 120
      %v4061 = vpop.permute.xlu0 %4060
      %4062 = vrot.lane.b32.xlu0 %v1130, 120
      %v4063 = vpop.permute.xlu0 %4062
      %4064 = vrot.lane.b32.xlu0 %v1135, 120
      %v4065 = vpop.permute.xlu0 %4064
      %v4075 = vsel %vm1791, %v3704, 0
      %v4078 = vsel %vm1791, %v3705, 0
      %v4081 = vsel %vm1791, %v3706, 0
      %v4084 = vsel %vm1791, %v3707, 0
      %v4087 = vsel %vm1791, %v3708, 0
      %v4090 = vsel %vm1791, %v3709, 0
      %v4093 = vsel %vm1791, %v3710, 0
      %v4096 = vsel %vm1791, %v3711, 0
      %4098 = vmatprep.subr.mxu0 0.0
      %4099 = vmatpush1.msra.mxu0 %v4051
      %4100 = vmatprep.subr.mxu0 0.0
      %4101 = vmatpush1.msra.mxu0 %v4053
      %4102 = vmatprep.subr.mxu0 0.0
      %4103 = vmatpush1.msra.mxu0 %v4055
      %4104 = vmatprep.subr.mxu0 0.0
      %4105 = vmatpush1.msra.mxu0 %v4057
      %4106 = vmatprep.subr.mxu0 0.0
      %4107 = vmatpush1.msra.mxu0 %v4059
      %4108 = vmatprep.subr.mxu0 0.0
      %4109 = vmatpush1.msra.mxu0 %v4061
      %4110 = vmatprep.subr.mxu0 0.0
      %4111 = vmatpush1.msra.mxu0 %v4063
      %4112 = vmatprep.subr.mxu0 0.0
      %4113 = vmatpush1.msra.mxu0 %v4065
      %4114 = vmatprep.subr.mxu0 0.0
      %4115 = vmatpush1.msra.mxu0 0.0
      %4116 = vmatprep.subr.mxu0 0.0
      %4117 = vmatpush1.msra.mxu0 0.0
      %4118 = vmatprep.subr.mxu0 0.0
      %4119 = vmatpush1.msra.mxu0 0.0
      %4120 = vmatprep.subr.mxu0 0.0
      %4121 = vmatpush1.msra.mxu0 0.0
      %4122 = vmatprep.subr.mxu0 0.0
      %4123 = vmatpush1.msra.mxu0 0.0
      %4124 = vmatprep.subr.mxu0 0.0
      %4125 = vmatpush1.msra.mxu0 0.0
      %4126 = vmatprep.subr.mxu0 0.0
      %4127 = vmatpush1.msra.mxu0 0.0
      %4128 = vmatprep.subr.mxu0 0.0
      %4129 = vmatpush1.msra.mxu0 0.0
      %4130 = vmatprep.subr.mxu0 0.0
      %4131 = vmatpush1.msra.mxu0 0.0
      %4132 = vmatprep.subr.mxu0 0.0
      %4133 = vmatpush1.msra.mxu0 0.0
      %4134 = vmatprep.subr.mxu0 0.0
      %4135 = vmatpush1.msra.mxu0 0.0
      %4136 = vmatprep.subr.mxu0 0.0
      %4137 = vmatpush1.msra.mxu0 0.0
      %4138 = vmatprep.subr.mxu0 0.0
      %4139 = vmatpush1.msra.mxu0 0.0
      %4140 = vmatprep.subr.mxu0 0.0
      %4141 = vmatpush1.msra.mxu0 0.0
      %4142 = vmatprep.subr.mxu0 0.0
      %4143 = vmatpush1.msra.mxu0 0.0
      %4144 = vmatprep.subr.mxu0 0.0
      %4145 = vmatpush1.msra.mxu0 0.0
      %4146 = vmatprep.subr.mxu0 0.0
      %4147 = vmatpush1.msra.mxu0 0.0
      %4148 = vmatprep.subr.mxu0 0.0
      %4149 = vmatpush1.msra.mxu0 0.0
      %4150 = vmatprep.subr.mxu0 0.0
      %4151 = vmatpush1.msra.mxu0 0.0
      %4152 = vmatprep.subr.mxu0 0.0
      %4153 = vmatpush1.msra.mxu0 0.0
      %4154 = vmatprep.subr.mxu0 0.0
      %4155 = vmatpush1.msra.mxu0 0.0
      %4156 = vmatprep.subr.mxu0 0.0
      %4157 = vmatpush1.msra.mxu0 0.0
      %4158 = vmatprep.subr.mxu0 0.0
      %4159 = vmatpush1.msra.mxu0 0.0
      %4160 = vmatprep.subr.mxu0 0.0
      %4161 = vmatpush1.msra.mxu0 0.0
      %4162 = vmatprep.mubr.f32.mxu0 0.0
      %4163 = vmatmul.mubr.f32.gmra.mrb[0].mxu0 %v4075
      %v4164 = vpop.f32.mrb[0].mxu0
      %v4165 = vadd.f32 0.0, %v4164
      %v4166 = vpop.f32.mrb[0].mxu0
      %4167 = vmatprep.mubr.f32.mxu0 0.0
      %4168 = vmatmul.mubr.f32.gmra.mrb[0].mxu0 %v4078
      %v4169 = vpop.f32.mrb[0].mxu0
      %v4170 = vadd.f32 0.0, %v4169
      %v4171 = vpop.f32.mrb[0].mxu0
      %4172 = vmatprep.mubr.f32.mxu0 0.0
      %4173 = vmatmul.mubr.f32.gmra.mrb[0].mxu0 %v4081
      %v4174 = vpop.f32.mrb[0].mxu0
      %v4175 = vadd.f32 0.0, %v4174
      %v4176 = vpop.f32.mrb[0].mxu0
      %4177 = vmatprep.mubr.f32.mxu0 0.0
      %4178 = vmatmul.mubr.f32.gmra.mrb[0].mxu0 %v4084
      %v4179 = vpop.f32.mrb[0].mxu0
      %v4180 = vadd.f32 0.0, %v4179
      %v4181 = vpop.f32.mrb[0].mxu0
      %4182 = vmatprep.mubr.f32.mxu0 0.0
      %4183 = vmatmul.mubr.f32.gmra.mrb[0].mxu0 %v4087
      %v4184 = vpop.f32.mrb[0].mxu0
      %v4185 = vadd.f32 0.0, %v4184
      %v4186 = vpop.f32.mrb[0].mxu0
      %4187 = vmatprep.mubr.f32.mxu0 0.0
      %4188 = vmatmul.mubr.f32.gmra.mrb[0].mxu0 %v4090
      %v4189 = vpop.f32.mrb[0].mxu0
      %v4190 = vadd.f32 0.0, %v4189
      %v4191 = vpop.f32.mrb[0].mxu0
      %4192 = vmatprep.mubr.f32.mxu0 0.0
      %4193 = vmatmul.mubr.f32.gmra.mrb[0].mxu0 %v4093
      %v4194 = vpop.f32.mrb[0].mxu0
      %v4195 = vadd.f32 0.0, %v4194
      %v4196 = vpop.f32.mrb[0].mxu0
      %4197 = vmatprep.mubr.f32.mxu0 0.0
      %4198 = vmatmul.mubr.f32.gmra.mrb[0].mxu0 %v4096
      %v4199 = vpop.f32.mrb[0].mxu0
      %v4200 = vadd.f32 0.0, %v4199
      %v4201 = vpop.f32.mrb[0].mxu0
      %4202 = vdwg.mxu0
      %4211 = vrot.lane.b32.xlu0 %v1140, 120
      %v4212 = vpop.permute.xlu0 %4211
      %4213 = vrot.lane.b32.xlu0 %v1145, 120
      %v4214 = vpop.permute.xlu0 %4213
      %4215 = vrot.lane.b32.xlu0 %v1150, 120
      %v4216 = vpop.permute.xlu0 %4215
      %4217 = vrot.lane.b32.xlu0 %v1155, 120
      %v4218 = vpop.permute.xlu0 %4217
      %4219 = vrot.lane.b32.xlu0 %v1160, 120
      %v4220 = vpop.permute.xlu0 %4219
      %4221 = vrot.lane.b32.xlu0 %v1165, 120
      %v4222 = vpop.permute.xlu0 %4221
      %4223 = vrot.lane.b32.xlu0 %v1170, 120
      %v4224 = vpop.permute.xlu0 %4223
      %4225 = vrot.lane.b32.xlu0 %v1175, 120
      %v4226 = vpop.permute.xlu0 %4225
      %v4236 = vsel %vm1791, %v3712, 0
      %v4239 = vsel %vm1791, %v3713, 0
      %v4242 = vsel %vm1791, %v3714, 0
      %v4245 = vsel %vm1791, %v3715, 0
      %v4248 = vsel %vm1791, %v3716, 0
      %v4251 = vsel %vm1791, %v3717, 0
      %v4254 = vsel %vm1791, %v3718, 0
      %v4257 = vsel %vm1791, %v3719, 0
      %4259 = vmatprep.subr.mxu0 0.0
      %4260 = vmatpush1.msra.mxu0 %v4212
      %4261 = vmatprep.subr.mxu0 0.0
      %4262 = vmatpush1.msra.mxu0 %v4214
      %4263 = vmatprep.subr.mxu0 0.0
      %4264 = vmatpush1.msra.mxu0 %v4216
      %4265 = vmatprep.subr.mxu0 0.0
      %4266 = vmatpush1.msra.mxu0 %v4218
      %4267 = vmatprep.subr.mxu0 0.0
      %4268 = vmatpush1.msra.mxu0 %v4220
      %4269 = vmatprep.subr.mxu0 0.0
      %4270 = vmatpush1.msra.mxu0 %v4222
      %4271 = vmatprep.subr.mxu0 0.0
      %4272 = vmatpush1.msra.mxu0 %v4224
      %4273 = vmatprep.subr.mxu0 0.0
      %4274 = vmatpush1.msra.mxu0 %v4226
      %4275 = vmatprep.subr.mxu0 0.0
      %4276 = vmatpush1.msra.mxu0 0.0
      %4277 = vmatprep.subr.mxu0 0.0
      %4278 = vmatpush1.msra.mxu0 0.0
      %4279 = vmatprep.subr.mxu0 0.0
      %4280 = vmatpush1.msra.mxu0 0.0
      %4281 = vmatprep.subr.mxu0 0.0
      %4282 = vmatpush1.msra.mxu0 0.0
      %4283 = vmatprep.subr.mxu0 0.0
      %4284 = vmatpush1.msra.mxu0 0.0
      %4285 = vmatprep.subr.mxu0 0.0
      %4286 = vmatpush1.msra.mxu0 0.0
      %4287 = vmatprep.subr.mxu0 0.0
      %4288 = vmatpush1.msra.mxu0 0.0
      %4289 = vmatprep.subr.mxu0 0.0
      %4290 = vmatpush1.msra.mxu0 0.0
      %4291 = vmatprep.subr.mxu0 0.0
      %4292 = vmatpush1.msra.mxu0 0.0
      %4293 = vmatprep.subr.mxu0 0.0
      %4294 = vmatpush1.msra.mxu0 0.0
      %4295 = vmatprep.subr.mxu0 0.0
      %4296 = vmatpush1.msra.mxu0 0.0
      %4297 = vmatprep.subr.mxu0 0.0
      %4298 = vmatpush1.msra.mxu0 0.0
      %4299 = vmatprep.subr.mxu0 0.0
      %4300 = vmatpush1.msra.mxu0 0.0
      %4301 = vmatprep.subr.mxu0 0.0
      %4302 = vmatpush1.msra.mxu0 0.0
      %4303 = vmatprep.subr.mxu0 0.0
      %4304 = vmatpush1.msra.mxu0 0.0
      %4305 = vmatprep.subr.mxu0 0.0
      %4306 = vmatpush1.msra.mxu0 0.0
      %4307 = vmatprep.subr.mxu0 0.0
      %4308 = vmatpush1.msra.mxu0 0.0
      %4309 = vmatprep.subr.mxu0 0.0
      %4310 = vmatpush1.msra.mxu0 0.0
      %4311 = vmatprep.subr.mxu0 0.0
      %4312 = vmatpush1.msra.mxu0 0.0
      %4313 = vmatprep.subr.mxu0 0.0
      %4314 = vmatpush1.msra.mxu0 0.0
      %4315 = vmatprep.subr.mxu0 0.0
      %4316 = vmatpush1.msra.mxu0 0.0
      %4317 = vmatprep.subr.mxu0 0.0
      %4318 = vmatpush1.msra.mxu0 0.0
      %4319 = vmatprep.subr.mxu0 0.0
      %4320 = vmatpush1.msra.mxu0 0.0
      %4321 = vmatprep.subr.mxu0 0.0
      %4322 = vmatpush1.msra.mxu0 0.0
      %4323 = vmatprep.mubr.f32.mxu0 0.0
      %4324 = vmatmul.mubr.f32.gmra.mrb[0].mxu0 %v4236
      %v4325 = vpop.f32.mrb[0].mxu0
      %v4326 = vadd.f32 0.0, %v4325
      %v4327 = vpop.f32.mrb[0].mxu0
      %4328 = vmatprep.mubr.f32.mxu0 0.0
      %4329 = vmatmul.mubr.f32.gmra.mrb[0].mxu0 %v4239
      %v4330 = vpop.f32.mrb[0].mxu0
      %v4331 = vadd.f32 0.0, %v4330
      %v4332 = vpop.f32.mrb[0].mxu0
      %4333 = vmatprep.mubr.f32.mxu0 0.0
      %4334 = vmatmul.mubr.f32.gmra.mrb[0].mxu0 %v4242
      %v4335 = vpop.f32.mrb[0].mxu0
      %v4336 = vadd.f32 0.0, %v4335
      %v4337 = vpop.f32.mrb[0].mxu0
      %4338 = vmatprep.mubr.f32.mxu0 0.0
      %4339 = vmatmul.mubr.f32.gmra.mrb[0].mxu0 %v4245
      %v4340 = vpop.f32.mrb[0].mxu0
      %v4341 = vadd.f32 0.0, %v4340
      %v4342 = vpop.f32.mrb[0].mxu0
      %4343 = vmatprep.mubr.f32.mxu0 0.0
      %4344 = vmatmul.mubr.f32.gmra.mrb[0].mxu0 %v4248
      %v4345 = vpop.f32.mrb[0].mxu0
      %v4346 = vadd.f32 0.0, %v4345
      %v4347 = vpop.f32.mrb[0].mxu0
      %4348 = vmatprep.mubr.f32.mxu0 0.0
      %4349 = vmatmul.mubr.f32.gmra.mrb[0].mxu0 %v4251
      %v4350 = vpop.f32.mrb[0].mxu0
      %v4351 = vadd.f32 0.0, %v4350
      %v4352 = vpop.f32.mrb[0].mxu0
      %4353 = vmatprep.mubr.f32.mxu0 0.0
      %4354 = vmatmul.mubr.f32.gmra.mrb[0].mxu0 %v4254
      %v4355 = vpop.f32.mrb[0].mxu0
      %v4356 = vadd.f32 0.0, %v4355
      %v4357 = vpop.f32.mrb[0].mxu0
      %4358 = vmatprep.mubr.f32.mxu0 0.0
      %4359 = vmatmul.mubr.f32.gmra.mrb[0].mxu0 %v4257
      %v4360 = vpop.f32.mrb[0].mxu0
      %v4361 = vadd.f32 0.0, %v4360
      %v4362 = vpop.f32.mrb[0].mxu0
      %4363 = vdwg.mxu0
      %4396 = vrot.lane.b32.xlu0 %v3843, 8
      %v4397 = vpop.permute.xlu0 %4396
      %4398 = vrot.lane.b32.xlu0 %v3848, 8
      %v4399 = vpop.permute.xlu0 %4398
      %4400 = vrot.lane.b32.xlu0 %v3853, 8
      %v4401 = vpop.permute.xlu0 %4400
      %4402 = vrot.lane.b32.xlu0 %v3858, 8
      %v4403 = vpop.permute.xlu0 %4402
      %4404 = vrot.lane.b32.xlu0 %v3863, 8
      %v4405 = vpop.permute.xlu0 %4404
      %4406 = vrot.lane.b32.xlu0 %v3868, 8
      %v4407 = vpop.permute.xlu0 %4406
      %4408 = vrot.lane.b32.xlu0 %v3873, 8
      %v4409 = vpop.permute.xlu0 %4408
      %4410 = vrot.lane.b32.xlu0 %v3878, 8
      %v4411 = vpop.permute.xlu0 %4410
      %4412 = vrot.lane.b32.xlu0 %v4004, 8
      %v4413 = vpop.permute.xlu0 %4412
      %4414 = vrot.lane.b32.xlu0 %v4009, 8
      %v4415 = vpop.permute.xlu0 %4414
      %4416 = vrot.lane.b32.xlu0 %v4014, 8
      %v4417 = vpop.permute.xlu0 %4416
      %4418 = vrot.lane.b32.xlu0 %v4019, 8
      %v4419 = vpop.permute.xlu0 %4418
      %4420 = vrot.lane.b32.xlu0 %v4024, 8
      %v4421 = vpop.permute.xlu0 %4420
      %4422 = vrot.lane.b32.xlu0 %v4029, 8
      %v4423 = vpop.permute.xlu0 %4422
      %4424 = vrot.lane.b32.xlu0 %v4034, 8
      %v4425 = vpop.permute.xlu0 %4424
      %4426 = vrot.lane.b32.xlu0 %v4039, 8
      %v4427 = vpop.permute.xlu0 %4426
      %4428 = vrot.lane.b32.xlu0 %v4165, 8
      %v4429 = vpop.permute.xlu0 %4428
      %4430 = vrot.lane.b32.xlu0 %v4170, 8
      %v4431 = vpop.permute.xlu0 %4430
      %4432 = vrot.lane.b32.xlu0 %v4175, 8
      %v4433 = vpop.permute.xlu0 %4432
      %4434 = vrot.lane.b32.xlu0 %v4180, 8
      %v4435 = vpop.permute.xlu0 %4434
      %4436 = vrot.lane.b32.xlu0 %v4185, 8
      %v4437 = vpop.permute.xlu0 %4436
      %4438 = vrot.lane.b32.xlu0 %v4190, 8
      %v4439 = vpop.permute.xlu0 %4438
      %4440 = vrot.lane.b32.xlu0 %v4195, 8
      %v4441 = vpop.permute.xlu0 %4440
      %4442 = vrot.lane.b32.xlu0 %v4200, 8
      %v4443 = vpop.permute.xlu0 %4442
      %4444 = vrot.lane.b32.xlu0 %v4326, 8
      %v4445 = vpop.permute.xlu0 %4444
      %4446 = vrot.lane.b32.xlu0 %v4331, 8
      %v4447 = vpop.permute.xlu0 %4446
      %4448 = vrot.lane.b32.xlu0 %v4336, 8
      %v4449 = vpop.permute.xlu0 %4448
      %4450 = vrot.lane.b32.xlu0 %v4341, 8
      %v4451 = vpop.permute.xlu0 %4450
      %4452 = vrot.lane.b32.xlu0 %v4346, 8
      %v4453 = vpop.permute.xlu0 %4452
      %4454 = vrot.lane.b32.xlu0 %v4351, 8
      %v4455 = vpop.permute.xlu0 %4454
      %4456 = vrot.lane.b32.xlu0 %v4356, 8
      %v4457 = vpop.permute.xlu0 %4456
      %4458 = vrot.lane.b32.xlu0 %v4361, 8
      %v4459 = vpop.permute.xlu0 %4458
      %vm4492 = vcmask 130112
      %4493 = vst.msk [vmem:[#allocation2] sm:$0xff] %vm4492, %v4397
      %4494 = vst.msk [vmem:[#allocation2 + $0x8] sm:$0xff] %vm4492, %v4399
      %4495 = vst.msk [vmem:[#allocation2 + $0x10] sm:$0xff] %vm4492, %v4401
      %4496 = vst.msk [vmem:[#allocation2 + $0x18] sm:$0xff] %vm4492, %v4403
      %4497 = vst.msk [vmem:[#allocation2 + $0x20] sm:$0xff] %vm4492, %v4405
      %4498 = vst.msk [vmem:[#allocation2 + $0x28] sm:$0xff] %vm4492, %v4407
      %4499 = vst.msk [vmem:[#allocation2 + $0x30] sm:$0xff] %vm4492, %v4409
      %4500 = vst.msk [vmem:[#allocation2 + $0x38] sm:$0xff] %vm4492, %v4411
      %4501 = vst.msk [vmem:[#allocation2 + $0x40] sm:$0xff] %vm4492, %v4413
      %4502 = vst.msk [vmem:[#allocation2 + $0x48] sm:$0xff] %vm4492, %v4415
      %4503 = vst.msk [vmem:[#allocation2 + $0x50] sm:$0xff] %vm4492, %v4417
      %4504 = vst.msk [vmem:[#allocation2 + $0x58] sm:$0xff] %vm4492, %v4419
      %4505 = vst.msk [vmem:[#allocation2 + $0x60] sm:$0xff] %vm4492, %v4421
      %4506 = vst.msk [vmem:[#allocation2 + $0x68] sm:$0xff] %vm4492, %v4423
      %4507 = vst.msk [vmem:[#allocation2 + $0x70] sm:$0xff] %vm4492, %v4425
      %4508 = vst.msk [vmem:[#allocation2 + $0x78] sm:$0xff] %vm4492, %v4427
      %4509 = vst.msk [vmem:[#allocation2 + $0x80] sm:$0xff] %vm4492, %v4429
      %4510 = vst.msk [vmem:[#allocation2 + $0x88] sm:$0xff] %vm4492, %v4431
      %4511 = vst.msk [vmem:[#allocation2 + $0x90] sm:$0xff] %vm4492, %v4433
      %4512 = vst.msk [vmem:[#allocation2 + $0x98] sm:$0xff] %vm4492, %v4435
      %4513 = vst.msk [vmem:[#allocation2 + $0xa0] sm:$0xff] %vm4492, %v4437
      %4514 = vst.msk [vmem:[#allocation2 + $0xa8] sm:$0xff] %vm4492, %v4439
      %4515 = vst.msk [vmem:[#allocation2 + $0xb0] sm:$0xff] %vm4492, %v4441
      %4516 = vst.msk [vmem:[#allocation2 + $0xb8] sm:$0xff] %vm4492, %v4443
      %4517 = vst.msk [vmem:[#allocation2 + $0xc0] sm:$0xff] %vm4492, %v4445
      %4518 = vst.msk [vmem:[#allocation2 + $0xc8] sm:$0xff] %vm4492, %v4447
      %4519 = vst.msk [vmem:[#allocation2 + $0xd0] sm:$0xff] %vm4492, %v4449
      %4520 = vst.msk [vmem:[#allocation2 + $0xd8] sm:$0xff] %vm4492, %v4451
      %4521 = vst.msk [vmem:[#allocation2 + $0xe0] sm:$0xff] %vm4492, %v4453
      %4522 = vst.msk [vmem:[#allocation2 + $0xe8] sm:$0xff] %vm4492, %v4455
      %4523 = vst.msk [vmem:[#allocation2 + $0xf0] sm:$0xff] %vm4492, %v4457
      %4524 = vst.msk [vmem:[#allocation2 + $0xf8] sm:$0xff] %vm4492, %v4459
      %4525 = vrot.lane.b32.xlu0 %v548, 112
      %v4526 = vpop.permute.xlu0 %4525
      %4527 = vrot.lane.b32.xlu0 %v553, 112
      %v4528 = vpop.permute.xlu0 %4527
      %4529 = vrot.lane.b32.xlu0 %v558, 112
      %v4530 = vpop.permute.xlu0 %4529
      %4531 = vrot.lane.b32.xlu0 %v563, 112
      %v4532 = vpop.permute.xlu0 %4531
      %4533 = vrot.lane.b32.xlu0 %v568, 112
      %v4534 = vpop.permute.xlu0 %4533
      %4535 = vrot.lane.b32.xlu0 %v573, 112
      %v4536 = vpop.permute.xlu0 %4535
      %4537 = vrot.lane.b32.xlu0 %v578, 112
      %v4538 = vpop.permute.xlu0 %4537
      %4539 = vrot.lane.b32.xlu0 %v583, 112
      %v4540 = vpop.permute.xlu0 %4539
      %4541 = vrot.lane.b32.xlu0 %v784, 112
      %v4542 = vpop.permute.xlu0 %4541
      %4543 = vrot.lane.b32.xlu0 %v789, 112
      %v4544 = vpop.permute.xlu0 %4543
      %4545 = vrot.lane.b32.xlu0 %v794, 112
      %v4546 = vpop.permute.xlu0 %4545
      %4547 = vrot.lane.b32.xlu0 %v799, 112
      %v4548 = vpop.permute.xlu0 %4547
      %4549 = vrot.lane.b32.xlu0 %v804, 112
      %v4550 = vpop.permute.xlu0 %4549
      %4551 = vrot.lane.b32.xlu0 %v809, 112
      %v4552 = vpop.permute.xlu0 %4551
      %4553 = vrot.lane.b32.xlu0 %v814, 112
      %v4554 = vpop.permute.xlu0 %4553
      %4555 = vrot.lane.b32.xlu0 %v819, 112
      %v4556 = vpop.permute.xlu0 %4555
      %v4557 = vsel %vm1178, %v4526, 0
      %v4559 = vsel %vm1178, %v4528, 0
      %v4561 = vsel %vm1178, %v4530, 0
      %v4563 = vsel %vm1178, %v4532, 0
      %v4565 = vsel %vm1178, %v4534, 0
      %v4567 = vsel %vm1178, %v4536, 0
      %v4569 = vsel %vm1178, %v4538, 0
      %v4571 = vsel %vm1178, %v4540, 0
      %v4573 = vsel %vm1178, %v4542, 0
      %v4575 = vsel %vm1178, %v4544, 0
      %v4577 = vsel %vm1178, %v4546, 0
      %v4579 = vsel %vm1178, %v4548, 0
      %v4581 = vsel %vm1178, %v4550, 0
      %v4583 = vsel %vm1178, %v4552, 0
      %v4585 = vsel %vm1178, %v4554, 0
      %v4587 = vsel %vm1178, %v4556, 0
      %4589 = vmatprep.subr.mxu0 0.0
      %4590 = vmatpush1.xpose.msra.mxu0 %v4573
      %4591 = vmatprep.subr.mxu0 0.0
      %4592 = vmatpush1.xpose.msra.mxu0 %v4575
      %4593 = vmatprep.subr.mxu0 0.0
      %4594 = vmatpush1.xpose.msra.mxu0 %v4577
      %4595 = vmatprep.subr.mxu0 0.0
      %4596 = vmatpush1.xpose.msra.mxu0 %v4579
      %4597 = vmatprep.subr.mxu0 0.0
      %4598 = vmatpush1.xpose.msra.mxu0 %v4581
      %4599 = vmatprep.subr.mxu0 0.0
      %4600 = vmatpush1.xpose.msra.mxu0 %v4583
      %4601 = vmatprep.subr.mxu0 0.0
      %4602 = vmatpush1.xpose.msra.mxu0 %v4585
      %4603 = vmatprep.subr.mxu0 0.0
      %4604 = vmatpush1.xpose.msra.mxu0 %v4587
      %4605 = vmatprep.subr.mxu0 0.0
      %4606 = vmatpush1.xpose.msra.mxu0 0.0
      %4607 = vmatprep.subr.mxu0 0.0
      %4608 = vmatpush1.xpose.msra.mxu0 0.0
      %4609 = vmatprep.subr.mxu0 0.0
      %4610 = vmatpush1.xpose.msra.mxu0 0.0
      %4611 = vmatprep.subr.mxu0 0.0
      %4612 = vmatpush1.xpose.msra.mxu0 0.0
      %4613 = vmatprep.subr.mxu0 0.0
      %4614 = vmatpush1.xpose.msra.mxu0 0.0
      %4615 = vmatprep.subr.mxu0 0.0
      %4616 = vmatpush1.xpose.msra.mxu0 0.0
      %4617 = vmatprep.subr.mxu0 0.0
      %4618 = vmatpush1.xpose.msra.mxu0 0.0
      %4619 = vmatprep.subr.mxu0 0.0
      %4620 = vmatpush1.xpose.msra.mxu0 0.0
      %4621 = vmatprep.subr.mxu0 0.0
      %4622 = vmatpush1.xpose.msra.mxu0 0.0
      %4623 = vmatprep.subr.mxu0 0.0
      %4624 = vmatpush1.xpose.msra.mxu0 0.0
      %4625 = vmatprep.subr.mxu0 0.0
      %4626 = vmatpush1.xpose.msra.mxu0 0.0
      %4627 = vmatprep.subr.mxu0 0.0
      %4628 = vmatpush1.xpose.msra.mxu0 0.0
      %4629 = vmatprep.subr.mxu0 0.0
      %4630 = vmatpush1.xpose.msra.mxu0 0.0
      %4631 = vmatprep.subr.mxu0 0.0
      %4632 = vmatpush1.xpose.msra.mxu0 0.0
      %4633 = vmatprep.subr.mxu0 0.0
      %4634 = vmatpush1.xpose.msra.mxu0 0.0
      %4635 = vmatprep.subr.mxu0 0.0
      %4636 = vmatpush1.xpose.msra.mxu0 0.0
      %4637 = vmatprep.subr.mxu0 0.0
      %4638 = vmatpush1.xpose.msra.mxu0 0.0
      %4639 = vmatprep.subr.mxu0 0.0
      %4640 = vmatpush1.xpose.msra.mxu0 0.0
      %4641 = vmatprep.subr.mxu0 0.0
      %4642 = vmatpush1.xpose.msra.mxu0 0.0
      %4643 = vmatprep.subr.mxu0 0.0
      %4644 = vmatpush1.xpose.msra.mxu0 0.0
      %4645 = vmatprep.subr.mxu0 0.0
      %4646 = vmatpush1.xpose.msra.mxu0 0.0
      %4647 = vmatprep.subr.mxu0 0.0
      %4648 = vmatpush1.xpose.msra.mxu0 0.0
      %4649 = vmatprep.subr.mxu0 0.0
      %4650 = vmatpush1.xpose.msra.mxu0 0.0
      %4651 = vmatprep.subr.mxu0 0.0
      %4652 = vmatpush1.xpose.msra.mxu0 0.0
      %4653 = vmatprep.mubr.f32.mxu0 0.0
      %4654 = vmatmul.mubr.f32.gmra.mrb[0].mxu0 %v4557
      %v4655 = vpop.f32.mrb[0].mxu0
      %v4656 = vadd.f32 0.0, %v4655
      %v4657 = vpop.f32.mrb[0].mxu0
      %4658 = vmatprep.mubr.f32.mxu0 0.0
      %4659 = vmatmul.mubr.f32.gmra.mrb[0].mxu0 %v4559
      %v4660 = vpop.f32.mrb[0].mxu0
      %v4661 = vadd.f32 0.0, %v4660
      %v4662 = vpop.f32.mrb[0].mxu0
      %4663 = vmatprep.mubr.f32.mxu0 0.0
      %4664 = vmatmul.mubr.f32.gmra.mrb[0].mxu0 %v4561
      %v4665 = vpop.f32.mrb[0].mxu0
      %v4666 = vadd.f32 0.0, %v4665
      %v4667 = vpop.f32.mrb[0].mxu0
      %4668 = vmatprep.mubr.f32.mxu0 0.0
      %4669 = vmatmul.mubr.f32.gmra.mrb[0].mxu0 %v4563
      %v4670 = vpop.f32.mrb[0].mxu0
      %v4671 = vadd.f32 0.0, %v4670
      %v4672 = vpop.f32.mrb[0].mxu0
      %4673 = vmatprep.mubr.f32.mxu0 0.0
      %4674 = vmatmul.mubr.f32.gmra.mrb[0].mxu0 %v4565
      %v4675 = vpop.f32.mrb[0].mxu0
      %v4676 = vadd.f32 0.0, %v4675
      %v4677 = vpop.f32.mrb[0].mxu0
      %4678 = vmatprep.mubr.f32.mxu0 0.0
      %4679 = vmatmul.mubr.f32.gmra.mrb[0].mxu0 %v4567
      %v4680 = vpop.f32.mrb[0].mxu0
      %v4681 = vadd.f32 0.0, %v4680
      %v4682 = vpop.f32.mrb[0].mxu0
      %4683 = vmatprep.mubr.f32.mxu0 0.0
      %4684 = vmatmul.mubr.f32.gmra.mrb[0].mxu0 %v4569
      %v4685 = vpop.f32.mrb[0].mxu0
      %v4686 = vadd.f32 0.0, %v4685
      %v4687 = vpop.f32.mrb[0].mxu0
      %4688 = vmatprep.mubr.f32.mxu0 0.0
      %4689 = vmatmul.mubr.f32.gmra.mrb[0].mxu0 %v4571
      %v4690 = vpop.f32.mrb[0].mxu0
      %v4691 = vadd.f32 0.0, %v4690
      %v4692 = vpop.f32.mrb[0].mxu0
      %4693 = vdwg.mxu0
      %4694 = vrot.lane.b32.xlu0 %v588, 112
      %v4695 = vpop.permute.xlu0 %4694
      %4696 = vrot.lane.b32.xlu0 %v593, 112
      %v4697 = vpop.permute.xlu0 %4696
      %4698 = vrot.lane.b32.xlu0 %v598, 112
      %v4699 = vpop.permute.xlu0 %4698
      %4700 = vrot.lane.b32.xlu0 %v603, 112
      %v4701 = vpop.permute.xlu0 %4700
      %4702 = vrot.lane.b32.xlu0 %v608, 112
      %v4703 = vpop.permute.xlu0 %4702
      %4704 = vrot.lane.b32.xlu0 %v613, 112
      %v4705 = vpop.permute.xlu0 %4704
      %4706 = vrot.lane.b32.xlu0 %v618, 112
      %v4707 = vpop.permute.xlu0 %4706
      %4708 = vrot.lane.b32.xlu0 %v623, 112
      %v4709 = vpop.permute.xlu0 %4708
      %4710 = vrot.lane.b32.xlu0 %v824, 112
      %v4711 = vpop.permute.xlu0 %4710
      %4712 = vrot.lane.b32.xlu0 %v829, 112
      %v4713 = vpop.permute.xlu0 %4712
      %4714 = vrot.lane.b32.xlu0 %v834, 112
      %v4715 = vpop.permute.xlu0 %4714
      %4716 = vrot.lane.b32.xlu0 %v839, 112
      %v4717 = vpop.permute.xlu0 %4716
      %4718 = vrot.lane.b32.xlu0 %v844, 112
      %v4719 = vpop.permute.xlu0 %4718
      %4720 = vrot.lane.b32.xlu0 %v849, 112
      %v4721 = vpop.permute.xlu0 %4720
      %4722 = vrot.lane.b32.xlu0 %v854, 112
      %v4723 = vpop.permute.xlu0 %4722
      %4724 = vrot.lane.b32.xlu0 %v859, 112
      %v4725 = vpop.permute.xlu0 %4724
      %v4726 = vsel %vm1178, %v4695, 0
      %v4728 = vsel %vm1178, %v4697, 0
      %v4730 = vsel %vm1178, %v4699, 0
      %v4732 = vsel %vm1178, %v4701, 0
      %v4734 = vsel %vm1178, %v4703, 0
      %v4736 = vsel %vm1178, %v4705, 0
      %v4738 = vsel %vm1178, %v4707, 0
      %v4740 = vsel %vm1178, %v4709, 0
      %v4742 = vsel %vm1178, %v4711, 0
      %v4744 = vsel %vm1178, %v4713, 0
      %v4746 = vsel %vm1178, %v4715, 0
      %v4748 = vsel %vm1178, %v4717, 0
      %v4750 = vsel %vm1178, %v4719, 0
      %v4752 = vsel %vm1178, %v4721, 0
      %v4754 = vsel %vm1178, %v4723, 0
      %v4756 = vsel %vm1178, %v4725, 0
      %4758 = vmatprep.subr.mxu0 0.0
      %4759 = vmatpush1.xpose.msra.mxu0 %v4742
      %4760 = vmatprep.subr.mxu0 0.0
      %4761 = vmatpush1.xpose.msra.mxu0 %v4744
      %4762 = vmatprep.subr.mxu0 0.0
      %4763 = vmatpush1.xpose.msra.mxu0 %v4746
      %4764 = vmatprep.subr.mxu0 0.0
      %4765 = vmatpush1.xpose.msra.mxu0 %v4748
      %4766 = vmatprep.subr.mxu0 0.0
      %4767 = vmatpush1.xpose.msra.mxu0 %v4750
      %4768 = vmatprep.subr.mxu0 0.0
      %4769 = vmatpush1.xpose.msra.mxu0 %v4752
      %4770 = vmatprep.subr.mxu0 0.0
      %4771 = vmatpush1.xpose.msra.mxu0 %v4754
      %4772 = vmatprep.subr.mxu0 0.0
      %4773 = vmatpush1.xpose.msra.mxu0 %v4756
      %4774 = vmatprep.subr.mxu0 0.0
      %4775 = vmatpush1.xpose.msra.mxu0 0.0
      %4776 = vmatprep.subr.mxu0 0.0
      %4777 = vmatpush1.xpose.msra.mxu0 0.0
      %4778 = vmatprep.subr.mxu0 0.0
      %4779 = vmatpush1.xpose.msra.mxu0 0.0
      %4780 = vmatprep.subr.mxu0 0.0
      %4781 = vmatpush1.xpose.msra.mxu0 0.0
      %4782 = vmatprep.subr.mxu0 0.0
      %4783 = vmatpush1.xpose.msra.mxu0 0.0
      %4784 = vmatprep.subr.mxu0 0.0
      %4785 = vmatpush1.xpose.msra.mxu0 0.0
      %4786 = vmatprep.subr.mxu0 0.0
      %4787 = vmatpush1.xpose.msra.mxu0 0.0
      %4788 = vmatprep.subr.mxu0 0.0
      %4789 = vmatpush1.xpose.msra.mxu0 0.0
      %4790 = vmatprep.subr.mxu0 0.0
      %4791 = vmatpush1.xpose.msra.mxu0 0.0
      %4792 = vmatprep.subr.mxu0 0.0
      %4793 = vmatpush1.xpose.msra.mxu0 0.0
      %4794 = vmatprep.subr.mxu0 0.0
      %4795 = vmatpush1.xpose.msra.mxu0 0.0
      %4796 = vmatprep.subr.mxu0 0.0
      %4797 = vmatpush1.xpose.msra.mxu0 0.0
      %4798 = vmatprep.subr.mxu0 0.0
      %4799 = vmatpush1.xpose.msra.mxu0 0.0
      %4800 = vmatprep.subr.mxu0 0.0
      %4801 = vmatpush1.xpose.msra.mxu0 0.0
      %4802 = vmatprep.subr.mxu0 0.0
      %4803 = vmatpush1.xpose.msra.mxu0 0.0
      %4804 = vmatprep.subr.mxu0 0.0
      %4805 = vmatpush1.xpose.msra.mxu0 0.0
      %4806 = vmatprep.subr.mxu0 0.0
      %4807 = vmatpush1.xpose.msra.mxu0 0.0
      %4808 = vmatprep.subr.mxu0 0.0
      %4809 = vmatpush1.xpose.msra.mxu0 0.0
      %4810 = vmatprep.subr.mxu0 0.0
      %4811 = vmatpush1.xpose.msra.mxu0 0.0
      %4812 = vmatprep.subr.mxu0 0.0
      %4813 = vmatpush1.xpose.msra.mxu0 0.0
      %4814 = vmatprep.subr.mxu0 0.0
      %4815 = vmatpush1.xpose.msra.mxu0 0.0
      %4816 = vmatprep.subr.mxu0 0.0
      %4817 = vmatpush1.xpose.msra.mxu0 0.0
      %4818 = vmatprep.subr.mxu0 0.0
      %4819 = vmatpush1.xpose.msra.mxu0 0.0
      %4820 = vmatprep.subr.mxu0 0.0
      %4821 = vmatpush1.xpose.msra.mxu0 0.0
      %4822 = vmatprep.mubr.f32.mxu0 0.0
      %4823 = vmatmul.mubr.f32.gmra.mrb[0].mxu0 %v4726
      %v4824 = vpop.f32.mrb[0].mxu0
      %v4825 = vadd.f32 0.0, %v4824
      %v4826 = vpop.f32.mrb[0].mxu0
      %4827 = vmatprep.mubr.f32.mxu0 0.0
      %4828 = vmatmul.mubr.f32.gmra.mrb[0].mxu0 %v4728
      %v4829 = vpop.f32.mrb[0].mxu0
      %v4830 = vadd.f32 0.0, %v4829
      %v4831 = vpop.f32.mrb[0].mxu0
      %4832 = vmatprep.mubr.f32.mxu0 0.0
      %4833 = vmatmul.mubr.f32.gmra.mrb[0].mxu0 %v4730
      %v4834 = vpop.f32.mrb[0].mxu0
      %v4835 = vadd.f32 0.0, %v4834
      %v4836 = vpop.f32.mrb[0].mxu0
      %4837 = vmatprep.mubr.f32.mxu0 0.0
      %4838 = vmatmul.mubr.f32.gmra.mrb[0].mxu0 %v4732
      %v4839 = vpop.f32.mrb[0].mxu0
      %v4840 = vadd.f32 0.0, %v4839
      %v4841 = vpop.f32.mrb[0].mxu0
      %4842 = vmatprep.mubr.f32.mxu0 0.0
      %4843 = vmatmul.mubr.f32.gmra.mrb[0].mxu0 %v4734
      %v4844 = vpop.f32.mrb[0].mxu0
      %v4845 = vadd.f32 0.0, %v4844
      %v4846 = vpop.f32.mrb[0].mxu0
      %4847 = vmatprep.mubr.f32.mxu0 0.0
      %4848 = vmatmul.mubr.f32.gmra.mrb[0].mxu0 %v4736
      %v4849 = vpop.f32.mrb[0].mxu0
      %v4850 = vadd.f32 0.0, %v4849
      %v4851 = vpop.f32.mrb[0].mxu0
      %4852 = vmatprep.mubr.f32.mxu0 0.0
      %4853 = vmatmul.mubr.f32.gmra.mrb[0].mxu0 %v4738
      %v4854 = vpop.f32.mrb[0].mxu0
      %v4855 = vadd.f32 0.0, %v4854
      %v4856 = vpop.f32.mrb[0].mxu0
      %4857 = vmatprep.mubr.f32.mxu0 0.0
      %4858 = vmatmul.mubr.f32.gmra.mrb[0].mxu0 %v4740
      %v4859 = vpop.f32.mrb[0].mxu0
      %v4860 = vadd.f32 0.0, %v4859
      %v4861 = vpop.f32.mrb[0].mxu0
      %4862 = vdwg.mxu0
      %4863 = vrot.lane.b32.xlu0 %v628, 112
      %v4864 = vpop.permute.xlu0 %4863
      %4865 = vrot.lane.b32.xlu0 %v633, 112
      %v4866 = vpop.permute.xlu0 %4865
      %4867 = vrot.lane.b32.xlu0 %v638, 112
      %v4868 = vpop.permute.xlu0 %4867
      %4869 = vrot.lane.b32.xlu0 %v643, 112
      %v4870 = vpop.permute.xlu0 %4869
      %4871 = vrot.lane.b32.xlu0 %v648, 112
      %v4872 = vpop.permute.xlu0 %4871
      %4873 = vrot.lane.b32.xlu0 %v653, 112
      %v4874 = vpop.permute.xlu0 %4873
      %4875 = vrot.lane.b32.xlu0 %v658, 112
      %v4876 = vpop.permute.xlu0 %4875
      %4877 = vrot.lane.b32.xlu0 %v663, 112
      %v4878 = vpop.permute.xlu0 %4877
      %4879 = vrot.lane.b32.xlu0 %v864, 112
      %v4880 = vpop.permute.xlu0 %4879
      %4881 = vrot.lane.b32.xlu0 %v869, 112
      %v4882 = vpop.permute.xlu0 %4881
      %4883 = vrot.lane.b32.xlu0 %v874, 112
      %v4884 = vpop.permute.xlu0 %4883
      %4885 = vrot.lane.b32.xlu0 %v879, 112
      %v4886 = vpop.permute.xlu0 %4885
      %4887 = vrot.lane.b32.xlu0 %v884, 112
      %v4888 = vpop.permute.xlu0 %4887
      %4889 = vrot.lane.b32.xlu0 %v889, 112
      %v4890 = vpop.permute.xlu0 %4889
      %4891 = vrot.lane.b32.xlu0 %v894, 112
      %v4892 = vpop.permute.xlu0 %4891
      %4893 = vrot.lane.b32.xlu0 %v899, 112
      %v4894 = vpop.permute.xlu0 %4893
      %v4895 = vsel %vm1178, %v4864, 0
      %v4897 = vsel %vm1178, %v4866, 0
      %v4899 = vsel %vm1178, %v4868, 0
      %v4901 = vsel %vm1178, %v4870, 0
      %v4903 = vsel %vm1178, %v4872, 0
      %v4905 = vsel %vm1178, %v4874, 0
      %v4907 = vsel %vm1178, %v4876, 0
      %v4909 = vsel %vm1178, %v4878, 0
      %v4911 = vsel %vm1178, %v4880, 0
      %v4913 = vsel %vm1178, %v4882, 0
      %v4915 = vsel %vm1178, %v4884, 0
      %v4917 = vsel %vm1178, %v4886, 0
      %v4919 = vsel %vm1178, %v4888, 0
      %v4921 = vsel %vm1178, %v4890, 0
      %v4923 = vsel %vm1178, %v4892, 0
      %v4925 = vsel %vm1178, %v4894, 0
      %4927 = vmatprep.subr.mxu0 0.0
      %4928 = vmatpush1.xpose.msra.mxu0 %v4911
      %4929 = vmatprep.subr.mxu0 0.0
      %4930 = vmatpush1.xpose.msra.mxu0 %v4913
      %4931 = vmatprep.subr.mxu0 0.0
      %4932 = vmatpush1.xpose.msra.mxu0 %v4915
      %4933 = vmatprep.subr.mxu0 0.0
      %4934 = vmatpush1.xpose.msra.mxu0 %v4917
      %4935 = vmatprep.subr.mxu0 0.0
      %4936 = vmatpush1.xpose.msra.mxu0 %v4919
      %4937 = vmatprep.subr.mxu0 0.0
      %4938 = vmatpush1.xpose.msra.mxu0 %v4921
      %4939 = vmatprep.subr.mxu0 0.0
      %4940 = vmatpush1.xpose.msra.mxu0 %v4923
      %4941 = vmatprep.subr.mxu0 0.0
      %4942 = vmatpush1.xpose.msra.mxu0 %v4925
      %4943 = vmatprep.subr.mxu0 0.0
      %4944 = vmatpush1.xpose.msra.mxu0 0.0
      %4945 = vmatprep.subr.mxu0 0.0
      %4946 = vmatpush1.xpose.msra.mxu0 0.0
      %4947 = vmatprep.subr.mxu0 0.0
      %4948 = vmatpush1.xpose.msra.mxu0 0.0
      %4949 = vmatprep.subr.mxu0 0.0
      %4950 = vmatpush1.xpose.msra.mxu0 0.0
      %4951 = vmatprep.subr.mxu0 0.0
      %4952 = vmatpush1.xpose.msra.mxu0 0.0
      %4953 = vmatprep.subr.mxu0 0.0
      %4954 = vmatpush1.xpose.msra.mxu0 0.0
      %4955 = vmatprep.subr.mxu0 0.0
      %4956 = vmatpush1.xpose.msra.mxu0 0.0
      %4957 = vmatprep.subr.mxu0 0.0
      %4958 = vmatpush1.xpose.msra.mxu0 0.0
      %4959 = vmatprep.subr.mxu0 0.0
      %4960 = vmatpush1.xpose.msra.mxu0 0.0
      %4961 = vmatprep.subr.mxu0 0.0
      %4962 = vmatpush1.xpose.msra.mxu0 0.0
      %4963 = vmatprep.subr.mxu0 0.0
      %4964 = vmatpush1.xpose.msra.mxu0 0.0
      %4965 = vmatprep.subr.mxu0 0.0
      %4966 = vmatpush1.xpose.msra.mxu0 0.0
      %4967 = vmatprep.subr.mxu0 0.0
      %4968 = vmatpush1.xpose.msra.mxu0 0.0
      %4969 = vmatprep.subr.mxu0 0.0
      %4970 = vmatpush1.xpose.msra.mxu0 0.0
      %4971 = vmatprep.subr.mxu0 0.0
      %4972 = vmatpush1.xpose.msra.mxu0 0.0
      %4973 = vmatprep.subr.mxu0 0.0
      %4974 = vmatpush1.xpose.msra.mxu0 0.0
      %4975 = vmatprep.subr.mxu0 0.0
      %4976 = vmatpush1.xpose.msra.mxu0 0.0
      %4977 = vmatprep.subr.mxu0 0.0
      %4978 = vmatpush1.xpose.msra.mxu0 0.0
      %4979 = vmatprep.subr.mxu0 0.0
      %4980 = vmatpush1.xpose.msra.mxu0 0.0
      %4981 = vmatprep.subr.mxu0 0.0
      %4982 = vmatpush1.xpose.msra.mxu0 0.0
      %4983 = vmatprep.subr.mxu0 0.0
      %4984 = vmatpush1.xpose.msra.mxu0 0.0
      %4985 = vmatprep.subr.mxu0 0.0
      %4986 = vmatpush1.xpose.msra.mxu0 0.0
      %4987 = vmatprep.subr.mxu0 0.0
      %4988 = vmatpush1.xpose.msra.mxu0 0.0
      %4989 = vmatprep.subr.mxu0 0.0
      %4990 = vmatpush1.xpose.msra.mxu0 0.0
      %4991 = vmatprep.mubr.f32.mxu0 0.0
      %4992 = vmatmul.mubr.f32.gmra.mrb[0].mxu0 %v4895
      %v4993 = vpop.f32.mrb[0].mxu0
      %v4994 = vadd.f32 0.0, %v4993
      %v4995 = vpop.f32.mrb[0].mxu0
      %4996 = vmatprep.mubr.f32.mxu0 0.0
      %4997 = vmatmul.mubr.f32.gmra.mrb[0].mxu0 %v4897
      %v4998 = vpop.f32.mrb[0].mxu0
      %v4999 = vadd.f32 0.0, %v4998
      %v5000 = vpop.f32.mrb[0].mxu0
      %5001 = vmatprep.mubr.f32.mxu0 0.0
      %5002 = vmatmul.mubr.f32.gmra.mrb[0].mxu0 %v4899
      %v5003 = vpop.f32.mrb[0].mxu0
      %v5004 = vadd.f32 0.0, %v5003
      %v5005 = vpop.f32.mrb[0].mxu0
      %5006 = vmatprep.mubr.f32.mxu0 0.0
      %5007 = vmatmul.mubr.f32.gmra.mrb[0].mxu0 %v4901
      %v5008 = vpop.f32.mrb[0].mxu0
      %v5009 = vadd.f32 0.0, %v5008
      %v5010 = vpop.f32.mrb[0].mxu0
      %5011 = vmatprep.mubr.f32.mxu0 0.0
      %5012 = vmatmul.mubr.f32.gmra.mrb[0].mxu0 %v4903
      %v5013 = vpop.f32.mrb[0].mxu0
      %v5014 = vadd.f32 0.0, %v5013
      %v5015 = vpop.f32.mrb[0].mxu0
      %5016 = vmatprep.mubr.f32.mxu0 0.0
      %5017 = vmatmul.mubr.f32.gmra.mrb[0].mxu0 %v4905
      %v5018 = vpop.f32.mrb[0].mxu0
      %v5019 = vadd.f32 0.0, %v5018
      %v5020 = vpop.f32.mrb[0].mxu0
      %5021 = vmatprep.mubr.f32.mxu0 0.0
      %5022 = vmatmul.mubr.f32.gmra.mrb[0].mxu0 %v4907
      %v5023 = vpop.f32.mrb[0].mxu0
      %v5024 = vadd.f32 0.0, %v5023
      %v5025 = vpop.f32.mrb[0].mxu0
      %5026 = vmatprep.mubr.f32.mxu0 0.0
      %5027 = vmatmul.mubr.f32.gmra.mrb[0].mxu0 %v4909
      %v5028 = vpop.f32.mrb[0].mxu0
      %v5029 = vadd.f32 0.0, %v5028
      %v5030 = vpop.f32.mrb[0].mxu0
      %5031 = vdwg.mxu0
      %5032 = vrot.lane.b32.xlu0 %v668, 112
      %v5033 = vpop.permute.xlu0 %5032
      %5034 = vrot.lane.b32.xlu0 %v673, 112
      %v5035 = vpop.permute.xlu0 %5034
      %5036 = vrot.lane.b32.xlu0 %v678, 112
      %v5037 = vpop.permute.xlu0 %5036
      %5038 = vrot.lane.b32.xlu0 %v683, 112
      %v5039 = vpop.permute.xlu0 %5038
      %5040 = vrot.lane.b32.xlu0 %v688, 112
      %v5041 = vpop.permute.xlu0 %5040
      %5042 = vrot.lane.b32.xlu0 %v693, 112
      %v5043 = vpop.permute.xlu0 %5042
      %5044 = vrot.lane.b32.xlu0 %v698, 112
      %v5045 = vpop.permute.xlu0 %5044
      %5046 = vrot.lane.b32.xlu0 %v703, 112
      %v5047 = vpop.permute.xlu0 %5046
      %5048 = vrot.lane.b32.xlu0 %v904, 112
      %v5049 = vpop.permute.xlu0 %5048
      %5050 = vrot.lane.b32.xlu0 %v909, 112
      %v5051 = vpop.permute.xlu0 %5050
      %5052 = vrot.lane.b32.xlu0 %v914, 112
      %v5053 = vpop.permute.xlu0 %5052
      %5054 = vrot.lane.b32.xlu0 %v919, 112
      %v5055 = vpop.permute.xlu0 %5054
      %5056 = vrot.lane.b32.xlu0 %v924, 112
      %v5057 = vpop.permute.xlu0 %5056
      %5058 = vrot.lane.b32.xlu0 %v929, 112
      %v5059 = vpop.permute.xlu0 %5058
      %5060 = vrot.lane.b32.xlu0 %v934, 112
      %v5061 = vpop.permute.xlu0 %5060
      %5062 = vrot.lane.b32.xlu0 %v939, 112
      %v5063 = vpop.permute.xlu0 %5062
      %v5064 = vsel %vm1178, %v5033, 0
      %v5066 = vsel %vm1178, %v5035, 0
      %v5068 = vsel %vm1178, %v5037, 0
      %v5070 = vsel %vm1178, %v5039, 0
      %v5072 = vsel %vm1178, %v5041, 0
      %v5074 = vsel %vm1178, %v5043, 0
      %v5076 = vsel %vm1178, %v5045, 0
      %v5078 = vsel %vm1178, %v5047, 0
      %v5080 = vsel %vm1178, %v5049, 0
      %v5082 = vsel %vm1178, %v5051, 0
      %v5084 = vsel %vm1178, %v5053, 0
      %v5086 = vsel %vm1178, %v5055, 0
      %v5088 = vsel %vm1178, %v5057, 0
      %v5090 = vsel %vm1178, %v5059, 0
      %v5092 = vsel %vm1178, %v5061, 0
      %v5094 = vsel %vm1178, %v5063, 0
      %5096 = vmatprep.subr.mxu0 0.0
      %5097 = vmatpush1.xpose.msra.mxu0 %v5080
      %5098 = vmatprep.subr.mxu0 0.0
      %5099 = vmatpush1.xpose.msra.mxu0 %v5082
      %5100 = vmatprep.subr.mxu0 0.0
      %5101 = vmatpush1.xpose.msra.mxu0 %v5084
      %5102 = vmatprep.subr.mxu0 0.0
      %5103 = vmatpush1.xpose.msra.mxu0 %v5086
      %5104 = vmatprep.subr.mxu0 0.0
      %5105 = vmatpush1.xpose.msra.mxu0 %v5088
      %5106 = vmatprep.subr.mxu0 0.0
      %5107 = vmatpush1.xpose.msra.mxu0 %v5090
      %5108 = vmatprep.subr.mxu0 0.0
      %5109 = vmatpush1.xpose.msra.mxu0 %v5092
      %5110 = vmatprep.subr.mxu0 0.0
      %5111 = vmatpush1.xpose.msra.mxu0 %v5094
      %5112 = vmatprep.subr.mxu0 0.0
      %5113 = vmatpush1.xpose.msra.mxu0 0.0
      %5114 = vmatprep.subr.mxu0 0.0
      %5115 = vmatpush1.xpose.msra.mxu0 0.0
      %5116 = vmatprep.subr.mxu0 0.0
      %5117 = vmatpush1.xpose.msra.mxu0 0.0
      %5118 = vmatprep.subr.mxu0 0.0
      %5119 = vmatpush1.xpose.msra.mxu0 0.0
      %5120 = vmatprep.subr.mxu0 0.0
      %5121 = vmatpush1.xpose.msra.mxu0 0.0
      %5122 = vmatprep.subr.mxu0 0.0
      %5123 = vmatpush1.xpose.msra.mxu0 0.0
      %5124 = vmatprep.subr.mxu0 0.0
      %5125 = vmatpush1.xpose.msra.mxu0 0.0
      %5126 = vmatprep.subr.mxu0 0.0
      %5127 = vmatpush1.xpose.msra.mxu0 0.0
      %5128 = vmatprep.subr.mxu0 0.0
      %5129 = vmatpush1.xpose.msra.mxu0 0.0
      %5130 = vmatprep.subr.mxu0 0.0
      %5131 = vmatpush1.xpose.msra.mxu0 0.0
      %5132 = vmatprep.subr.mxu0 0.0
      %5133 = vmatpush1.xpose.msra.mxu0 0.0
      %5134 = vmatprep.subr.mxu0 0.0
      %5135 = vmatpush1.xpose.msra.mxu0 0.0
      %5136 = vmatprep.subr.mxu0 0.0
      %5137 = vmatpush1.xpose.msra.mxu0 0.0
      %5138 = vmatprep.subr.mxu0 0.0
      %5139 = vmatpush1.xpose.msra.mxu0 0.0
      %5140 = vmatprep.subr.mxu0 0.0
      %5141 = vmatpush1.xpose.msra.mxu0 0.0
      %5142 = vmatprep.subr.mxu0 0.0
      %5143 = vmatpush1.xpose.msra.mxu0 0.0
      %5144 = vmatprep.subr.mxu0 0.0
      %5145 = vmatpush1.xpose.msra.mxu0 0.0
      %5146 = vmatprep.subr.mxu0 0.0
      %5147 = vmatpush1.xpose.msra.mxu0 0.0
      %5148 = vmatprep.subr.mxu0 0.0
      %5149 = vmatpush1.xpose.msra.mxu0 0.0
      %5150 = vmatprep.subr.mxu0 0.0
      %5151 = vmatpush1.xpose.msra.mxu0 0.0
      %5152 = vmatprep.subr.mxu0 0.0
      %5153 = vmatpush1.xpose.msra.mxu0 0.0
      %5154 = vmatprep.subr.mxu0 0.0
      %5155 = vmatpush1.xpose.msra.mxu0 0.0
      %5156 = vmatprep.subr.mxu0 0.0
      %5157 = vmatpush1.xpose.msra.mxu0 0.0
      %5158 = vmatprep.subr.mxu0 0.0
      %5159 = vmatpush1.xpose.msra.mxu0 0.0
      %5160 = vmatprep.mubr.f32.mxu0 0.0
      %5161 = vmatmul.mubr.f32.gmra.mrb[0].mxu0 %v5064
      %v5162 = vpop.f32.mrb[0].mxu0
      %v5163 = vadd.f32 0.0, %v5162
      %v5164 = vpop.f32.mrb[0].mxu0
      %5165 = vmatprep.mubr.f32.mxu0 0.0
      %5166 = vmatmul.mubr.f32.gmra.mrb[0].mxu0 %v5066
      %v5167 = vpop.f32.mrb[0].mxu0
      %v5168 = vadd.f32 0.0, %v5167
      %v5169 = vpop.f32.mrb[0].mxu0
      %5170 = vmatprep.mubr.f32.mxu0 0.0
      %5171 = vmatmul.mubr.f32.gmra.mrb[0].mxu0 %v5068
      %v5172 = vpop.f32.mrb[0].mxu0
      %v5173 = vadd.f32 0.0, %v5172
      %v5174 = vpop.f32.mrb[0].mxu0
      %5175 = vmatprep.mubr.f32.mxu0 0.0
      %5176 = vmatmul.mubr.f32.gmra.mrb[0].mxu0 %v5070
      %v5177 = vpop.f32.mrb[0].mxu0
      %v5178 = vadd.f32 0.0, %v5177
      %v5179 = vpop.f32.mrb[0].mxu0
      %5180 = vmatprep.mubr.f32.mxu0 0.0
      %5181 = vmatmul.mubr.f32.gmra.mrb[0].mxu0 %v5072
      %v5182 = vpop.f32.mrb[0].mxu0
      %v5183 = vadd.f32 0.0, %v5182
      %v5184 = vpop.f32.mrb[0].mxu0
      %5185 = vmatprep.mubr.f32.mxu0 0.0
      %5186 = vmatmul.mubr.f32.gmra.mrb[0].mxu0 %v5074
      %v5187 = vpop.f32.mrb[0].mxu0
      %v5188 = vadd.f32 0.0, %v5187
      %v5189 = vpop.f32.mrb[0].mxu0
      %5190 = vmatprep.mubr.f32.mxu0 0.0
      %5191 = vmatmul.mubr.f32.gmra.mrb[0].mxu0 %v5076
      %v5192 = vpop.f32.mrb[0].mxu0
      %v5193 = vadd.f32 0.0, %v5192
      %v5194 = vpop.f32.mrb[0].mxu0
      %5195 = vmatprep.mubr.f32.mxu0 0.0
      %5196 = vmatmul.mubr.f32.gmra.mrb[0].mxu0 %v5078
      %v5197 = vpop.f32.mrb[0].mxu0
      %v5198 = vadd.f32 0.0, %v5197
      %v5199 = vpop.f32.mrb[0].mxu0
      %5200 = vdwg.mxu0
      %v5201 = vsel %vm1791, %v4656, -inf
      %5202 = vmax.xlane.f32.xlu0 %v5201
      %v5203 = vpop.xlane.xlu0 %5202
      %v5204 = vsel %vm1791, %v4661, -inf
      %5205 = vmax.xlane.f32.xlu0 %v5204
      %v5206 = vpop.xlane.xlu0 %5205
      %v5207 = vsel %vm1791, %v4666, -inf
      %5208 = vmax.xlane.f32.xlu0 %v5207
      %v5209 = vpop.xlane.xlu0 %5208
      %v5210 = vsel %vm1791, %v4671, -inf
      %5211 = vmax.xlane.f32.xlu0 %v5210
      %v5212 = vpop.xlane.xlu0 %5211
      %v5213 = vsel %vm1791, %v4676, -inf
      %5214 = vmax.xlane.f32.xlu0 %v5213
      %v5215 = vpop.xlane.xlu0 %5214
      %v5216 = vsel %vm1791, %v4681, -inf
      %5217 = vmax.xlane.f32.xlu0 %v5216
      %v5218 = vpop.xlane.xlu0 %5217
      %v5219 = vsel %vm1791, %v4686, -inf
      %5220 = vmax.xlane.f32.xlu0 %v5219
      %v5221 = vpop.xlane.xlu0 %5220
      %v5222 = vsel %vm1791, %v4691, -inf
      %5223 = vmax.xlane.f32.xlu0 %v5222
      %v5224 = vpop.xlane.xlu0 %5223
      %v5225 = vsel %vm1791, %v4825, -inf
      %5226 = vmax.xlane.f32.xlu0 %v5225
      %v5227 = vpop.xlane.xlu0 %5226
      %v5228 = vsel %vm1791, %v4830, -inf
      %5229 = vmax.xlane.f32.xlu0 %v5228
      %v5230 = vpop.xlane.xlu0 %5229
      %v5231 = vsel %vm1791, %v4835, -inf
      %5232 = vmax.xlane.f32.xlu0 %v5231
      %v5233 = vpop.xlane.xlu0 %5232
      %v5234 = vsel %vm1791, %v4840, -inf
      %5235 = vmax.xlane.f32.xlu0 %v5234
      %v5236 = vpop.xlane.xlu0 %5235
      %v5237 = vsel %vm1791, %v4845, -inf
      %5238 = vmax.xlane.f32.xlu0 %v5237
      %v5239 = vpop.xlane.xlu0 %5238
      %v5240 = vsel %vm1791, %v4850, -inf
      %5241 = vmax.xlane.f32.xlu0 %v5240
      %v5242 = vpop.xlane.xlu0 %5241
      %v5243 = vsel %vm1791, %v4855, -inf
      %5244 = vmax.xlane.f32.xlu0 %v5243
      %v5245 = vpop.xlane.xlu0 %5244
      %v5246 = vsel %vm1791, %v4860, -inf
      %5247 = vmax.xlane.f32.xlu0 %v5246
      %v5248 = vpop.xlane.xlu0 %5247
      %v5249 = vsel %vm1791, %v4994, -inf
      %5250 = vmax.xlane.f32.xlu0 %v5249
      %v5251 = vpop.xlane.xlu0 %5250
      %v5252 = vsel %vm1791, %v4999, -inf
      %5253 = vmax.xlane.f32.xlu0 %v5252
      %v5254 = vpop.xlane.xlu0 %5253
      %v5255 = vsel %vm1791, %v5004, -inf
      %5256 = vmax.xlane.f32.xlu0 %v5255
      %v5257 = vpop.xlane.xlu0 %5256
      %v5258 = vsel %vm1791, %v5009, -inf
      %5259 = vmax.xlane.f32.xlu0 %v5258
      %v5260 = vpop.xlane.xlu0 %5259
      %v5261 = vsel %vm1791, %v5014, -inf
      %5262 = vmax.xlane.f32.xlu0 %v5261
      %v5263 = vpop.xlane.xlu0 %5262
      %v5264 = vsel %vm1791, %v5019, -inf
      %5265 = vmax.xlane.f32.xlu0 %v5264
      %v5266 = vpop.xlane.xlu0 %5265
      %v5267 = vsel %vm1791, %v5024, -inf
      %5268 = vmax.xlane.f32.xlu0 %v5267
      %v5269 = vpop.xlane.xlu0 %5268
      %v5270 = vsel %vm1791, %v5029, -inf
      %5271 = vmax.xlane.f32.xlu0 %v5270
      %v5272 = vpop.xlane.xlu0 %5271
      %v5273 = vsel %vm1791, %v5163, -inf
      %5274 = vmax.xlane.f32.xlu0 %v5273
      %v5275 = vpop.xlane.xlu0 %5274
      %v5276 = vsel %vm1791, %v5168, -inf
      %5277 = vmax.xlane.f32.xlu0 %v5276
      %v5278 = vpop.xlane.xlu0 %5277
      %v5279 = vsel %vm1791, %v5173, -inf
      %5280 = vmax.xlane.f32.xlu0 %v5279
      %v5281 = vpop.xlane.xlu0 %5280
      %v5282 = vsel %vm1791, %v5178, -inf
      %5283 = vmax.xlane.f32.xlu0 %v5282
      %v5284 = vpop.xlane.xlu0 %5283
      %v5285 = vsel %vm1791, %v5183, -inf
      %5286 = vmax.xlane.f32.xlu0 %v5285
      %v5287 = vpop.xlane.xlu0 %5286
      %v5288 = vsel %vm1791, %v5188, -inf
      %5289 = vmax.xlane.f32.xlu0 %v5288
      %v5290 = vpop.xlane.xlu0 %5289
      %v5291 = vsel %vm1791, %v5193, -inf
      %5292 = vmax.xlane.f32.xlu0 %v5291
      %v5293 = vpop.xlane.xlu0 %5292
      %v5294 = vsel %vm1791, %v5198, -inf
      %5295 = vmax.xlane.f32.xlu0 %v5294
      %v5296 = vpop.xlane.xlu0 %5295
      %v5297 = vsub.f32 %v4656, %v5203
      %v5298 = vsub.f32 %v4661, %v5206
      %v5299 = vsub.f32 %v4666, %v5209
      %v5300 = vsub.f32 %v4671, %v5212
      %v5301 = vsub.f32 %v4676, %v5215
      %v5302 = vsub.f32 %v4681, %v5218
      %v5303 = vsub.f32 %v4686, %v5221
      %v5304 = vsub.f32 %v4691, %v5224
      %v5305 = vsub.f32 %v4825, %v5227
      %v5306 = vsub.f32 %v4830, %v5230
      %v5307 = vsub.f32 %v4835, %v5233
      %v5308 = vsub.f32 %v4840, %v5236
      %v5309 = vsub.f32 %v4845, %v5239
      %v5310 = vsub.f32 %v4850, %v5242
      %v5311 = vsub.f32 %v4855, %v5245
      %v5312 = vsub.f32 %v4860, %v5248
      %v5313 = vsub.f32 %v4994, %v5251
      %v5314 = vsub.f32 %v4999, %v5254
      %v5315 = vsub.f32 %v5004, %v5257
      %v5316 = vsub.f32 %v5009, %v5260
      %v5317 = vsub.f32 %v5014, %v5263
      %v5318 = vsub.f32 %v5019, %v5266
      %v5319 = vsub.f32 %v5024, %v5269
      %v5320 = vsub.f32 %v5029, %v5272
      %v5321 = vsub.f32 %v5163, %v5275
      %v5322 = vsub.f32 %v5168, %v5278
      %v5323 = vsub.f32 %v5173, %v5281
      %v5324 = vsub.f32 %v5178, %v5284
      %v5325 = vsub.f32 %v5183, %v5287
      %v5326 = vsub.f32 %v5188, %v5290
      %v5327 = vsub.f32 %v5193, %v5293
      %v5328 = vsub.f32 %v5198, %v5296
      %v5329 = vmul.f32 %v5297, 1.442695
      %v5330 = vpow.pop %v5329
      %v5331 = vmul.f32 %v5298, 1.442695
      %v5332 = vpow.pop %v5331
      %v5333 = vmul.f32 %v5299, 1.442695
      %v5334 = vpow.pop %v5333
      %v5335 = vmul.f32 %v5300, 1.442695
      %v5336 = vpow.pop %v5335
      %v5337 = vmul.f32 %v5301, 1.442695
      %v5338 = vpow.pop %v5337
      %v5339 = vmul.f32 %v5302, 1.442695
      %v5340 = vpow.pop %v5339
      %v5341 = vmul.f32 %v5303, 1.442695
      %v5342 = vpow.pop %v5341
      %v5343 = vmul.f32 %v5304, 1.442695
      %v5344 = vpow.pop %v5343
      %v5345 = vmul.f32 %v5305, 1.442695
      %v5346 = vpow.pop %v5345
      %v5347 = vmul.f32 %v5306, 1.442695
      %v5348 = vpow.pop %v5347
      %v5349 = vmul.f32 %v5307, 1.442695
      %v5350 = vpow.pop %v5349
      %v5351 = vmul.f32 %v5308, 1.442695
      %v5352 = vpow.pop %v5351
      %v5353 = vmul.f32 %v5309, 1.442695
      %v5354 = vpow.pop %v5353
      %v5355 = vmul.f32 %v5310, 1.442695
      %v5356 = vpow.pop %v5355
      %v5357 = vmul.f32 %v5311, 1.442695
      %v5358 = vpow.pop %v5357
      %v5359 = vmul.f32 %v5312, 1.442695
      %v5360 = vpow.pop %v5359
      %v5361 = vmul.f32 %v5313, 1.442695
      %v5362 = vpow.pop %v5361
      %v5363 = vmul.f32 %v5314, 1.442695
      %v5364 = vpow.pop %v5363
      %v5365 = vmul.f32 %v5315, 1.442695
      %v5366 = vpow.pop %v5365
      %v5367 = vmul.f32 %v5316, 1.442695
      %v5368 = vpow.pop %v5367
      %v5369 = vmul.f32 %v5317, 1.442695
      %v5370 = vpow.pop %v5369
      %v5371 = vmul.f32 %v5318, 1.442695
      %v5372 = vpow.pop %v5371
      %v5373 = vmul.f32 %v5319, 1.442695
      %v5374 = vpow.pop %v5373
      %v5375 = vmul.f32 %v5320, 1.442695
      %v5376 = vpow.pop %v5375
      %v5377 = vmul.f32 %v5321, 1.442695
      %v5378 = vpow.pop %v5377
      %v5379 = vmul.f32 %v5322, 1.442695
      %v5380 = vpow.pop %v5379
      %v5381 = vmul.f32 %v5323, 1.442695
      %v5382 = vpow.pop %v5381
      %v5383 = vmul.f32 %v5324, 1.442695
      %v5384 = vpow.pop %v5383
      %v5385 = vmul.f32 %v5325, 1.442695
      %v5386 = vpow.pop %v5385
      %v5387 = vmul.f32 %v5326, 1.442695
      %v5388 = vpow.pop %v5387
      %v5389 = vmul.f32 %v5327, 1.442695
      %v5390 = vpow.pop %v5389
      %v5391 = vmul.f32 %v5328, 1.442695
      %v5392 = vpow.pop %v5391
      %v5393 = vsel %vm1791, %v5330, 0.0
      %5394 = vadd.xlane.f32.xlu0 %v5393
      %v5395 = vpop.xlane.xlu0 %5394
      %v5396 = vsel %vm1791, %v5332, 0.0
      %5397 = vadd.xlane.f32.xlu0 %v5396
      %v5398 = vpop.xlane.xlu0 %5397
      %v5399 = vsel %vm1791, %v5334, 0.0
      %5400 = vadd.xlane.f32.xlu0 %v5399
      %v5401 = vpop.xlane.xlu0 %5400
      %v5402 = vsel %vm1791, %v5336, 0.0
      %5403 = vadd.xlane.f32.xlu0 %v5402
      %v5404 = vpop.xlane.xlu0 %5403
      %v5405 = vsel %vm1791, %v5338, 0.0
      %5406 = vadd.xlane.f32.xlu0 %v5405
      %v5407 = vpop.xlane.xlu0 %5406
      %v5408 = vsel %vm1791, %v5340, 0.0
      %5409 = vadd.xlane.f32.xlu0 %v5408
      %v5410 = vpop.xlane.xlu0 %5409
      %v5411 = vsel %vm1791, %v5342, 0.0
      %5412 = vadd.xlane.f32.xlu0 %v5411
      %v5413 = vpop.xlane.xlu0 %5412
      %v5414 = vsel %vm1791, %v5344, 0.0
      %5415 = vadd.xlane.f32.xlu0 %v5414
      %v5416 = vpop.xlane.xlu0 %5415
      %v5417 = vsel %vm1791, %v5346, 0.0
      %5418 = vadd.xlane.f32.xlu0 %v5417
      %v5419 = vpop.xlane.xlu0 %5418
      %v5420 = vsel %vm1791, %v5348, 0.0
      %5421 = vadd.xlane.f32.xlu0 %v5420
      %v5422 = vpop.xlane.xlu0 %5421
      %v5423 = vsel %vm1791, %v5350, 0.0
      %5424 = vadd.xlane.f32.xlu0 %v5423
      %v5425 = vpop.xlane.xlu0 %5424
      %v5426 = vsel %vm1791, %v5352, 0.0
      %5427 = vadd.xlane.f32.xlu0 %v5426
      %v5428 = vpop.xlane.xlu0 %5427
      %v5429 = vsel %vm1791, %v5354, 0.0
      %5430 = vadd.xlane.f32.xlu0 %v5429
      %v5431 = vpop.xlane.xlu0 %5430
      %v5432 = vsel %vm1791, %v5356, 0.0
      %5433 = vadd.xlane.f32.xlu0 %v5432
      %v5434 = vpop.xlane.xlu0 %5433
      %v5435 = vsel %vm1791, %v5358, 0.0
      %5436 = vadd.xlane.f32.xlu0 %v5435
      %v5437 = vpop.xlane.xlu0 %5436
      %v5438 = vsel %vm1791, %v5360, 0.0
      %5439 = vadd.xlane.f32.xlu0 %v5438
      %v5440 = vpop.xlane.xlu0 %5439
      %v5441 = vsel %vm1791, %v5362, 0.0
      %5442 = vadd.xlane.f32.xlu0 %v5441
      %v5443 = vpop.xlane.xlu0 %5442
      %v5444 = vsel %vm1791, %v5364, 0.0
      %5445 = vadd.xlane.f32.xlu0 %v5444
      %v5446 = vpop.xlane.xlu0 %5445
      %v5447 = vsel %vm1791, %v5366, 0.0
      %5448 = vadd.xlane.f32.xlu0 %v5447
      %v5449 = vpop.xlane.xlu0 %5448
      %v5450 = vsel %vm1791, %v5368, 0.0
      %5451 = vadd.xlane.f32.xlu0 %v5450
      %v5452 = vpop.xlane.xlu0 %5451
      %v5453 = vsel %vm1791, %v5370, 0.0
      %5454 = vadd.xlane.f32.xlu0 %v5453
      %v5455 = vpop.xlane.xlu0 %5454
      %v5456 = vsel %vm1791, %v5372, 0.0
      %5457 = vadd.xlane.f32.xlu0 %v5456
      %v5458 = vpop.xlane.xlu0 %5457
      %v5459 = vsel %vm1791, %v5374, 0.0
      %5460 = vadd.xlane.f32.xlu0 %v5459
      %v5461 = vpop.xlane.xlu0 %5460
      %v5462 = vsel %vm1791, %v5376, 0.0
      %5463 = vadd.xlane.f32.xlu0 %v5462
      %v5464 = vpop.xlane.xlu0 %5463
      %v5465 = vsel %vm1791, %v5378, 0.0
      %5466 = vadd.xlane.f32.xlu0 %v5465
      %v5467 = vpop.xlane.xlu0 %5466
      %v5468 = vsel %vm1791, %v5380, 0.0
      %5469 = vadd.xlane.f32.xlu0 %v5468
      %v5470 = vpop.xlane.xlu0 %5469
      %v5471 = vsel %vm1791, %v5382, 0.0
      %5472 = vadd.xlane.f32.xlu0 %v5471
      %v5473 = vpop.xlane.xlu0 %5472
      %v5474 = vsel %vm1791, %v5384, 0.0
      %5475 = vadd.xlane.f32.xlu0 %v5474
      %v5476 = vpop.xlane.xlu0 %5475
      %v5477 = vsel %vm1791, %v5386, 0.0
      %5478 = vadd.xlane.f32.xlu0 %v5477
      %v5479 = vpop.xlane.xlu0 %5478
      %v5480 = vsel %vm1791, %v5388, 0.0
      %5481 = vadd.xlane.f32.xlu0 %v5480
      %v5482 = vpop.xlane.xlu0 %5481
      %v5483 = vsel %vm1791, %v5390, 0.0
      %5484 = vadd.xlane.f32.xlu0 %v5483
      %v5485 = vpop.xlane.xlu0 %5484
      %v5486 = vsel %vm1791, %v5392, 0.0
      %5487 = vadd.xlane.f32.xlu0 %v5486
      %v5488 = vpop.xlane.xlu0 %5487
      %v5489 = vrcp.pop %v5395
      %v5490 = vrcp.pop %v5398
      %v5491 = vrcp.pop %v5401
      %v5492 = vrcp.pop %v5404
      %v5493 = vrcp.pop %v5407
      %v5494 = vrcp.pop %v5410
      %v5495 = vrcp.pop %v5413
      %v5496 = vrcp.pop %v5416
      %v5497 = vrcp.pop %v5419
      %v5498 = vrcp.pop %v5422
      %v5499 = vrcp.pop %v5425
      %v5500 = vrcp.pop %v5428
      %v5501 = vrcp.pop %v5431
      %v5502 = vrcp.pop %v5434
      %v5503 = vrcp.pop %v5437
      %v5504 = vrcp.pop %v5440
      %v5505 = vrcp.pop %v5443
      %v5506 = vrcp.pop %v5446
      %v5507 = vrcp.pop %v5449
      %v5508 = vrcp.pop %v5452
      %v5509 = vrcp.pop %v5455
      %v5510 = vrcp.pop %v5458
      %v5511 = vrcp.pop %v5461
      %v5512 = vrcp.pop %v5464
      %v5513 = vrcp.pop %v5467
      %v5514 = vrcp.pop %v5470
      %v5515 = vrcp.pop %v5473
      %v5516 = vrcp.pop %v5476
      %v5517 = vrcp.pop %v5479
      %v5518 = vrcp.pop %v5482
      %v5519 = vrcp.pop %v5485
      %v5520 = vrcp.pop %v5488
      %v5521 = vmul.f32 %v5330, %v5489
      %v5522 = vmul.f32 %v5332, %v5490
      %v5523 = vmul.f32 %v5334, %v5491
      %v5524 = vmul.f32 %v5336, %v5492
      %v5525 = vmul.f32 %v5338, %v5493
      %v5526 = vmul.f32 %v5340, %v5494
      %v5527 = vmul.f32 %v5342, %v5495
      %v5528 = vmul.f32 %v5344, %v5496
      %v5529 = vmul.f32 %v5346, %v5497
      %v5530 = vmul.f32 %v5348, %v5498
      %v5531 = vmul.f32 %v5350, %v5499
      %v5532 = vmul.f32 %v5352, %v5500
      %v5533 = vmul.f32 %v5354, %v5501
      %v5534 = vmul.f32 %v5356, %v5502
      %v5535 = vmul.f32 %v5358, %v5503
      %v5536 = vmul.f32 %v5360, %v5504
      %v5537 = vmul.f32 %v5362, %v5505
      %v5538 = vmul.f32 %v5364, %v5506
      %v5539 = vmul.f32 %v5366, %v5507
      %v5540 = vmul.f32 %v5368, %v5508
      %v5541 = vmul.f32 %v5370, %v5509
      %v5542 = vmul.f32 %v5372, %v5510
      %v5543 = vmul.f32 %v5374, %v5511
      %v5544 = vmul.f32 %v5376, %v5512
      %v5545 = vmul.f32 %v5378, %v5513
      %v5546 = vmul.f32 %v5380, %v5514
      %v5547 = vmul.f32 %v5382, %v5515
      %v5548 = vmul.f32 %v5384, %v5516
      %v5549 = vmul.f32 %v5386, %v5517
      %v5550 = vmul.f32 %v5388, %v5518
      %v5551 = vmul.f32 %v5390, %v5519
      %v5552 = vmul.f32 %v5392, %v5520
      %5553 = vrot.lane.b32.xlu0 %v1020, 112
      %v5554 = vpop.permute.xlu0 %5553
      %5555 = vrot.lane.b32.xlu0 %v1025, 112
      %v5556 = vpop.permute.xlu0 %5555
      %5557 = vrot.lane.b32.xlu0 %v1030, 112
      %v5558 = vpop.permute.xlu0 %5557
      %5559 = vrot.lane.b32.xlu0 %v1035, 112
      %v5560 = vpop.permute.xlu0 %5559
      %5561 = vrot.lane.b32.xlu0 %v1040, 112
      %v5562 = vpop.permute.xlu0 %5561
      %5563 = vrot.lane.b32.xlu0 %v1045, 112
      %v5564 = vpop.permute.xlu0 %5563
      %5565 = vrot.lane.b32.xlu0 %v1050, 112
      %v5566 = vpop.permute.xlu0 %5565
      %5567 = vrot.lane.b32.xlu0 %v1055, 112
      %v5568 = vpop.permute.xlu0 %5567
      %v5578 = vsel %vm1791, %v5521, 0
      %v5581 = vsel %vm1791, %v5522, 0
      %v5584 = vsel %vm1791, %v5523, 0
      %v5587 = vsel %vm1791, %v5524, 0
      %v5590 = vsel %vm1791, %v5525, 0
      %v5593 = vsel %vm1791, %v5526, 0
      %v5596 = vsel %vm1791, %v5527, 0
      %v5599 = vsel %vm1791, %v5528, 0
      %5601 = vmatprep.subr.mxu0 0.0
      %5602 = vmatpush1.msra.mxu0 %v5554
      %5603 = vmatprep.subr.mxu0 0.0
      %5604 = vmatpush1.msra.mxu0 %v5556
      %5605 = vmatprep.subr.mxu0 0.0
      %5606 = vmatpush1.msra.mxu0 %v5558
      %5607 = vmatprep.subr.mxu0 0.0
      %5608 = vmatpush1.msra.mxu0 %v5560
      %5609 = vmatprep.subr.mxu0 0.0
      %5610 = vmatpush1.msra.mxu0 %v5562
      %5611 = vmatprep.subr.mxu0 0.0
      %5612 = vmatpush1.msra.mxu0 %v5564
      %5613 = vmatprep.subr.mxu0 0.0
      %5614 = vmatpush1.msra.mxu0 %v5566
      %5615 = vmatprep.subr.mxu0 0.0
      %5616 = vmatpush1.msra.mxu0 %v5568
      %5617 = vmatprep.subr.mxu0 0.0
      %5618 = vmatpush1.msra.mxu0 0.0
      %5619 = vmatprep.subr.mxu0 0.0
      %5620 = vmatpush1.msra.mxu0 0.0
      %5621 = vmatprep.subr.mxu0 0.0
      %5622 = vmatpush1.msra.mxu0 0.0
      %5623 = vmatprep.subr.mxu0 0.0
      %5624 = vmatpush1.msra.mxu0 0.0
      %5625 = vmatprep.subr.mxu0 0.0
      %5626 = vmatpush1.msra.mxu0 0.0
      %5627 = vmatprep.subr.mxu0 0.0
      %5628 = vmatpush1.msra.mxu0 0.0
      %5629 = vmatprep.subr.mxu0 0.0
      %5630 = vmatpush1.msra.mxu0 0.0
      %5631 = vmatprep.subr.mxu0 0.0
      %5632 = vmatpush1.msra.mxu0 0.0
      %5633 = vmatprep.subr.mxu0 0.0
      %5634 = vmatpush1.msra.mxu0 0.0
      %5635 = vmatprep.subr.mxu0 0.0
      %5636 = vmatpush1.msra.mxu0 0.0
      %5637 = vmatprep.subr.mxu0 0.0
      %5638 = vmatpush1.msra.mxu0 0.0
      %5639 = vmatprep.subr.mxu0 0.0
      %5640 = vmatpush1.msra.mxu0 0.0
      %5641 = vmatprep.subr.mxu0 0.0
      %5642 = vmatpush1.msra.mxu0 0.0
      %5643 = vmatprep.subr.mxu0 0.0
      %5644 = vmatpush1.msra.mxu0 0.0
      %5645 = vmatprep.subr.mxu0 0.0
      %5646 = vmatpush1.msra.mxu0 0.0
      %5647 = vmatprep.subr.mxu0 0.0
      %5648 = vmatpush1.msra.mxu0 0.0
      %5649 = vmatprep.subr.mxu0 0.0
      %5650 = vmatpush1.msra.mxu0 0.0
      %5651 = vmatprep.subr.mxu0 0.0
      %5652 = vmatpush1.msra.mxu0 0.0
      %5653 = vmatprep.subr.mxu0 0.0
      %5654 = vmatpush1.msra.mxu0 0.0
      %5655 = vmatprep.subr.mxu0 0.0
      %5656 = vmatpush1.msra.mxu0 0.0
      %5657 = vmatprep.subr.mxu0 0.0
      %5658 = vmatpush1.msra.mxu0 0.0
      %5659 = vmatprep.subr.mxu0 0.0
      %5660 = vmatpush1.msra.mxu0 0.0
      %5661 = vmatprep.subr.mxu0 0.0
      %5662 = vmatpush1.msra.mxu0 0.0
      %5663 = vmatprep.subr.mxu0 0.0
      %5664 = vmatpush1.msra.mxu0 0.0
      %5665 = vmatprep.mubr.f32.mxu0 0.0
      %5666 = vmatmul.mubr.f32.gmra.mrb[0].mxu0 %v5578
      %v5667 = vpop.f32.mrb[0].mxu0
      %v5668 = vadd.f32 0.0, %v5667
      %v5669 = vpop.f32.mrb[0].mxu0
      %5670 = vmatprep.mubr.f32.mxu0 0.0
      %5671 = vmatmul.mubr.f32.gmra.mrb[0].mxu0 %v5581
      %v5672 = vpop.f32.mrb[0].mxu0
      %v5673 = vadd.f32 0.0, %v5672
      %v5674 = vpop.f32.mrb[0].mxu0
      %5675 = vmatprep.mubr.f32.mxu0 0.0
      %5676 = vmatmul.mubr.f32.gmra.mrb[0].mxu0 %v5584
      %v5677 = vpop.f32.mrb[0].mxu0
      %v5678 = vadd.f32 0.0, %v5677
      %v5679 = vpop.f32.mrb[0].mxu0
      %5680 = vmatprep.mubr.f32.mxu0 0.0
      %5681 = vmatmul.mubr.f32.gmra.mrb[0].mxu0 %v5587
      %v5682 = vpop.f32.mrb[0].mxu0
      %v5683 = vadd.f32 0.0, %v5682
      %v5684 = vpop.f32.mrb[0].mxu0
      %5685 = vmatprep.mubr.f32.mxu0 0.0
      %5686 = vmatmul.mubr.f32.gmra.mrb[0].mxu0 %v5590
      %v5687 = vpop.f32.mrb[0].mxu0
      %v5688 = vadd.f32 0.0, %v5687
      %v5689 = vpop.f32.mrb[0].mxu0
      %5690 = vmatprep.mubr.f32.mxu0 0.0
      %5691 = vmatmul.mubr.f32.gmra.mrb[0].mxu0 %v5593
      %v5692 = vpop.f32.mrb[0].mxu0
      %v5693 = vadd.f32 0.0, %v5692
      %v5694 = vpop.f32.mrb[0].mxu0
      %5695 = vmatprep.mubr.f32.mxu0 0.0
      %5696 = vmatmul.mubr.f32.gmra.mrb[0].mxu0 %v5596
      %v5697 = vpop.f32.mrb[0].mxu0
      %v5698 = vadd.f32 0.0, %v5697
      %v5699 = vpop.f32.mrb[0].mxu0
      %5700 = vmatprep.mubr.f32.mxu0 0.0
      %5701 = vmatmul.mubr.f32.gmra.mrb[0].mxu0 %v5599
      %v5702 = vpop.f32.mrb[0].mxu0
      %v5703 = vadd.f32 0.0, %v5702
      %v5704 = vpop.f32.mrb[0].mxu0
      %5705 = vdwg.mxu0
      %5706 = vrot.lane.b32.xlu0 %v1060, 112
      %v5707 = vpop.permute.xlu0 %5706
      %5708 = vrot.lane.b32.xlu0 %v1065, 112
      %v5709 = vpop.permute.xlu0 %5708
      %5710 = vrot.lane.b32.xlu0 %v1070, 112
      %v5711 = vpop.permute.xlu0 %5710
      %5712 = vrot.lane.b32.xlu0 %v1075, 112
      %v5713 = vpop.permute.xlu0 %5712
      %5714 = vrot.lane.b32.xlu0 %v1080, 112
      %v5715 = vpop.permute.xlu0 %5714
      %5716 = vrot.lane.b32.xlu0 %v1085, 112
      %v5717 = vpop.permute.xlu0 %5716
      %5718 = vrot.lane.b32.xlu0 %v1090, 112
      %v5719 = vpop.permute.xlu0 %5718
      %5720 = vrot.lane.b32.xlu0 %v1095, 112
      %v5721 = vpop.permute.xlu0 %5720
      %v5731 = vsel %vm1791, %v5529, 0
      %v5734 = vsel %vm1791, %v5530, 0
      %v5737 = vsel %vm1791, %v5531, 0
      %v5740 = vsel %vm1791, %v5532, 0
      %v5743 = vsel %vm1791, %v5533, 0
      %v5746 = vsel %vm1791, %v5534, 0
      %v5749 = vsel %vm1791, %v5535, 0
      %v5752 = vsel %vm1791, %v5536, 0
      %5754 = vmatprep.subr.mxu0 0.0
      %5755 = vmatpush1.msra.mxu0 %v5707
      %5756 = vmatprep.subr.mxu0 0.0
      %5757 = vmatpush1.msra.mxu0 %v5709
      %5758 = vmatprep.subr.mxu0 0.0
      %5759 = vmatpush1.msra.mxu0 %v5711
      %5760 = vmatprep.subr.mxu0 0.0
      %5761 = vmatpush1.msra.mxu0 %v5713
      %5762 = vmatprep.subr.mxu0 0.0
      %5763 = vmatpush1.msra.mxu0 %v5715
      %5764 = vmatprep.subr.mxu0 0.0
      %5765 = vmatpush1.msra.mxu0 %v5717
      %5766 = vmatprep.subr.mxu0 0.0
      %5767 = vmatpush1.msra.mxu0 %v5719
      %5768 = vmatprep.subr.mxu0 0.0
      %5769 = vmatpush1.msra.mxu0 %v5721
      %5770 = vmatprep.subr.mxu0 0.0
      %5771 = vmatpush1.msra.mxu0 0.0
      %5772 = vmatprep.subr.mxu0 0.0
      %5773 = vmatpush1.msra.mxu0 0.0
      %5774 = vmatprep.subr.mxu0 0.0
      %5775 = vmatpush1.msra.mxu0 0.0
      %5776 = vmatprep.subr.mxu0 0.0
      %5777 = vmatpush1.msra.mxu0 0.0
      %5778 = vmatprep.subr.mxu0 0.0
      %5779 = vmatpush1.msra.mxu0 0.0
      %5780 = vmatprep.subr.mxu0 0.0
      %5781 = vmatpush1.msra.mxu0 0.0
      %5782 = vmatprep.subr.mxu0 0.0
      %5783 = vmatpush1.msra.mxu0 0.0
      %5784 = vmatprep.subr.mxu0 0.0
      %5785 = vmatpush1.msra.mxu0 0.0
      %5786 = vmatprep.subr.mxu0 0.0
      %5787 = vmatpush1.msra.mxu0 0.0
      %5788 = vmatprep.subr.mxu0 0.0
      %5789 = vmatpush1.msra.mxu0 0.0
      %5790 = vmatprep.subr.mxu0 0.0
      %5791 = vmatpush1.msra.mxu0 0.0
      %5792 = vmatprep.subr.mxu0 0.0
      %5793 = vmatpush1.msra.mxu0 0.0
      %5794 = vmatprep.subr.mxu0 0.0
      %5795 = vmatpush1.msra.mxu0 0.0
      %5796 = vmatprep.subr.mxu0 0.0
      %5797 = vmatpush1.msra.mxu0 0.0
      %5798 = vmatprep.subr.mxu0 0.0
      %5799 = vmatpush1.msra.mxu0 0.0
      %5800 = vmatprep.subr.mxu0 0.0
      %5801 = vmatpush1.msra.mxu0 0.0
      %5802 = vmatprep.subr.mxu0 0.0
      %5803 = vmatpush1.msra.mxu0 0.0
      %5804 = vmatprep.subr.mxu0 0.0
      %5805 = vmatpush1.msra.mxu0 0.0
      %5806 = vmatprep.subr.mxu0 0.0
      %5807 = vmatpush1.msra.mxu0 0.0
      %5808 = vmatprep.subr.mxu0 0.0
      %5809 = vmatpush1.msra.mxu0 0.0
      %5810 = vmatprep.subr.mxu0 0.0
      %5811 = vmatpush1.msra.mxu0 0.0
      %5812 = vmatprep.subr.mxu0 0.0
      %5813 = vmatpush1.msra.mxu0 0.0
      %5814 = vmatprep.subr.mxu0 0.0
      %5815 = vmatpush1.msra.mxu0 0.0
      %5816 = vmatprep.subr.mxu0 0.0
      %5817 = vmatpush1.msra.mxu0 0.0
      %5818 = vmatprep.mubr.f32.mxu0 0.0
      %5819 = vmatmul.mubr.f32.gmra.mrb[0].mxu0 %v5731
      %v5820 = vpop.f32.mrb[0].mxu0
      %v5821 = vadd.f32 0.0, %v5820
      %v5822 = vpop.f32.mrb[0].mxu0
      %5823 = vmatprep.mubr.f32.mxu0 0.0
      %5824 = vmatmul.mubr.f32.gmra.mrb[0].mxu0 %v5734
      %v5825 = vpop.f32.mrb[0].mxu0
      %v5826 = vadd.f32 0.0, %v5825
      %v5827 = vpop.f32.mrb[0].mxu0
      %5828 = vmatprep.mubr.f32.mxu0 0.0
      %5829 = vmatmul.mubr.f32.gmra.mrb[0].mxu0 %v5737
      %v5830 = vpop.f32.mrb[0].mxu0
      %v5831 = vadd.f32 0.0, %v5830
      %v5832 = vpop.f32.mrb[0].mxu0
      %5833 = vmatprep.mubr.f32.mxu0 0.0
      %5834 = vmatmul.mubr.f32.gmra.mrb[0].mxu0 %v5740
      %v5835 = vpop.f32.mrb[0].mxu0
      %v5836 = vadd.f32 0.0, %v5835
      %v5837 = vpop.f32.mrb[0].mxu0
      %5838 = vmatprep.mubr.f32.mxu0 0.0
      %5839 = vmatmul.mubr.f32.gmra.mrb[0].mxu0 %v5743
      %v5840 = vpop.f32.mrb[0].mxu0
      %v5841 = vadd.f32 0.0, %v5840
      %v5842 = vpop.f32.mrb[0].mxu0
      %5843 = vmatprep.mubr.f32.mxu0 0.0
      %5844 = vmatmul.mubr.f32.gmra.mrb[0].mxu0 %v5746
      %v5845 = vpop.f32.mrb[0].mxu0
      %v5846 = vadd.f32 0.0, %v5845
      %v5847 = vpop.f32.mrb[0].mxu0
      %5848 = vmatprep.mubr.f32.mxu0 0.0
      %5849 = vmatmul.mubr.f32.gmra.mrb[0].mxu0 %v5749
      %v5850 = vpop.f32.mrb[0].mxu0
      %v5851 = vadd.f32 0.0, %v5850
      %v5852 = vpop.f32.mrb[0].mxu0
      %5853 = vmatprep.mubr.f32.mxu0 0.0
      %5854 = vmatmul.mubr.f32.gmra.mrb[0].mxu0 %v5752
      %v5855 = vpop.f32.mrb[0].mxu0
      %v5856 = vadd.f32 0.0, %v5855
      %v5857 = vpop.f32.mrb[0].mxu0
      %5858 = vdwg.mxu0
      %5859 = vrot.lane.b32.xlu0 %v1100, 112
      %v5860 = vpop.permute.xlu0 %5859
      %5861 = vrot.lane.b32.xlu0 %v1105, 112
      %v5862 = vpop.permute.xlu0 %5861
      %5863 = vrot.lane.b32.xlu0 %v1110, 112
      %v5864 = vpop.permute.xlu0 %5863
      %5865 = vrot.lane.b32.xlu0 %v1115, 112
      %v5866 = vpop.permute.xlu0 %5865
      %5867 = vrot.lane.b32.xlu0 %v1120, 112
      %v5868 = vpop.permute.xlu0 %5867
      %5869 = vrot.lane.b32.xlu0 %v1125, 112
      %v5870 = vpop.permute.xlu0 %5869
      %5871 = vrot.lane.b32.xlu0 %v1130, 112
      %v5872 = vpop.permute.xlu0 %5871
      %5873 = vrot.lane.b32.xlu0 %v1135, 112
      %v5874 = vpop.permute.xlu0 %5873
      %v5884 = vsel %vm1791, %v5537, 0
      %v5887 = vsel %vm1791, %v5538, 0
      %v5890 = vsel %vm1791, %v5539, 0
      %v5893 = vsel %vm1791, %v5540, 0
      %v5896 = vsel %vm1791, %v5541, 0
      %v5899 = vsel %vm1791, %v5542, 0
      %v5902 = vsel %vm1791, %v5543, 0
      %v5905 = vsel %vm1791, %v5544, 0
      %5907 = vmatprep.subr.mxu0 0.0
      %5908 = vmatpush1.msra.mxu0 %v5860
      %5909 = vmatprep.subr.mxu0 0.0
      %5910 = vmatpush1.msra.mxu0 %v5862
      %5911 = vmatprep.subr.mxu0 0.0
      %5912 = vmatpush1.msra.mxu0 %v5864
      %5913 = vmatprep.subr.mxu0 0.0
      %5914 = vmatpush1.msra.mxu0 %v5866
      %5915 = vmatprep.subr.mxu0 0.0
      %5916 = vmatpush1.msra.mxu0 %v5868
      %5917 = vmatprep.subr.mxu0 0.0
      %5918 = vmatpush1.msra.mxu0 %v5870
      %5919 = vmatprep.subr.mxu0 0.0
      %5920 = vmatpush1.msra.mxu0 %v5872
      %5921 = vmatprep.subr.mxu0 0.0
      %5922 = vmatpush1.msra.mxu0 %v5874
      %5923 = vmatprep.subr.mxu0 0.0
      %5924 = vmatpush1.msra.mxu0 0.0
      %5925 = vmatprep.subr.mxu0 0.0
      %5926 = vmatpush1.msra.mxu0 0.0
      %5927 = vmatprep.subr.mxu0 0.0
      %5928 = vmatpush1.msra.mxu0 0.0
      %5929 = vmatprep.subr.mxu0 0.0
      %5930 = vmatpush1.msra.mxu0 0.0
      %5931 = vmatprep.subr.mxu0 0.0
      %5932 = vmatpush1.msra.mxu0 0.0
      %5933 = vmatprep.subr.mxu0 0.0
      %5934 = vmatpush1.msra.mxu0 0.0
      %5935 = vmatprep.subr.mxu0 0.0
      %5936 = vmatpush1.msra.mxu0 0.0
      %5937 = vmatprep.subr.mxu0 0.0
      %5938 = vmatpush1.msra.mxu0 0.0
      %5939 = vmatprep.subr.mxu0 0.0
      %5940 = vmatpush1.msra.mxu0 0.0
      %5941 = vmatprep.subr.mxu0 0.0
      %5942 = vmatpush1.msra.mxu0 0.0
      %5943 = vmatprep.subr.mxu0 0.0
      %5944 = vmatpush1.msra.mxu0 0.0
      %5945 = vmatprep.subr.mxu0 0.0
      %5946 = vmatpush1.msra.mxu0 0.0
      %5947 = vmatprep.subr.mxu0 0.0
      %5948 = vmatpush1.msra.mxu0 0.0
      %5949 = vmatprep.subr.mxu0 0.0
      %5950 = vmatpush1.msra.mxu0 0.0
      %5951 = vmatprep.subr.mxu0 0.0
      %5952 = vmatpush1.msra.mxu0 0.0
      %5953 = vmatprep.subr.mxu0 0.0
      %5954 = vmatpush1.msra.mxu0 0.0
      %5955 = vmatprep.subr.mxu0 0.0
      %5956 = vmatpush1.msra.mxu0 0.0
      %5957 = vmatprep.subr.mxu0 0.0
      %5958 = vmatpush1.msra.mxu0 0.0
      %5959 = vmatprep.subr.mxu0 0.0
      %5960 = vmatpush1.msra.mxu0 0.0
      %5961 = vmatprep.subr.mxu0 0.0
      %5962 = vmatpush1.msra.mxu0 0.0
      %5963 = vmatprep.subr.mxu0 0.0
      %5964 = vmatpush1.msra.mxu0 0.0
      %5965 = vmatprep.subr.mxu0 0.0
      %5966 = vmatpush1.msra.mxu0 0.0
      %5967 = vmatprep.subr.mxu0 0.0
      %5968 = vmatpush1.msra.mxu0 0.0
      %5969 = vmatprep.subr.mxu0 0.0
      %5970 = vmatpush1.msra.mxu0 0.0
      %5971 = vmatprep.mubr.f32.mxu0 0.0
      %5972 = vmatmul.mubr.f32.gmra.mrb[0].mxu0 %v5884
      %v5973 = vpop.f32.mrb[0].mxu0
      %v5974 = vadd.f32 0.0, %v5973
      %v5975 = vpop.f32.mrb[0].mxu0
      %5976 = vmatprep.mubr.f32.mxu0 0.0
      %5977 = vmatmul.mubr.f32.gmra.mrb[0].mxu0 %v5887
      %v5978 = vpop.f32.mrb[0].mxu0
      %v5979 = vadd.f32 0.0, %v5978
      %v5980 = vpop.f32.mrb[0].mxu0
      %5981 = vmatprep.mubr.f32.mxu0 0.0
      %5982 = vmatmul.mubr.f32.gmra.mrb[0].mxu0 %v5890
      %v5983 = vpop.f32.mrb[0].mxu0
      %v5984 = vadd.f32 0.0, %v5983
      %v5985 = vpop.f32.mrb[0].mxu0
      %5986 = vmatprep.mubr.f32.mxu0 0.0
      %5987 = vmatmul.mubr.f32.gmra.mrb[0].mxu0 %v5893
      %v5988 = vpop.f32.mrb[0].mxu0
      %v5989 = vadd.f32 0.0, %v5988
      %v5990 = vpop.f32.mrb[0].mxu0
      %5991 = vmatprep.mubr.f32.mxu0 0.0
      %5992 = vmatmul.mubr.f32.gmra.mrb[0].mxu0 %v5896
      %v5993 = vpop.f32.mrb[0].mxu0
      %v5994 = vadd.f32 0.0, %v5993
      %v5995 = vpop.f32.mrb[0].mxu0
      %5996 = vmatprep.mubr.f32.mxu0 0.0
      %5997 = vmatmul.mubr.f32.gmra.mrb[0].mxu0 %v5899
      %v5998 = vpop.f32.mrb[0].mxu0
      %v5999 = vadd.f32 0.0, %v5998
      %v6000 = vpop.f32.mrb[0].mxu0
      %6001 = vmatprep.mubr.f32.mxu0 0.0
      %6002 = vmatmul.mubr.f32.gmra.mrb[0].mxu0 %v5902
      %v6003 = vpop.f32.mrb[0].mxu0
      %v6004 = vadd.f32 0.0, %v6003
      %v6005 = vpop.f32.mrb[0].mxu0
      %6006 = vmatprep.mubr.f32.mxu0 0.0
      %6007 = vmatmul.mubr.f32.gmra.mrb[0].mxu0 %v5905
      %v6008 = vpop.f32.mrb[0].mxu0
      %v6009 = vadd.f32 0.0, %v6008
      %v6010 = vpop.f32.mrb[0].mxu0
      %6011 = vdwg.mxu0
      %6012 = vrot.lane.b32.xlu0 %v1140, 112
      %v6013 = vpop.permute.xlu0 %6012
      %6014 = vrot.lane.b32.xlu0 %v1145, 112
      %v6015 = vpop.permute.xlu0 %6014
      %6016 = vrot.lane.b32.xlu0 %v1150, 112
      %v6017 = vpop.permute.xlu0 %6016
      %6018 = vrot.lane.b32.xlu0 %v1155, 112
      %v6019 = vpop.permute.xlu0 %6018
      %6020 = vrot.lane.b32.xlu0 %v1160, 112
      %v6021 = vpop.permute.xlu0 %6020
      %6022 = vrot.lane.b32.xlu0 %v1165, 112
      %v6023 = vpop.permute.xlu0 %6022
      %6024 = vrot.lane.b32.xlu0 %v1170, 112
      %v6025 = vpop.permute.xlu0 %6024
      %6026 = vrot.lane.b32.xlu0 %v1175, 112
      %v6027 = vpop.permute.xlu0 %6026
      %v6037 = vsel %vm1791, %v5545, 0
      %v6040 = vsel %vm1791, %v5546, 0
      %v6043 = vsel %vm1791, %v5547, 0
      %v6046 = vsel %vm1791, %v5548, 0
      %v6049 = vsel %vm1791, %v5549, 0
      %v6052 = vsel %vm1791, %v5550, 0
      %v6055 = vsel %vm1791, %v5551, 0
      %v6058 = vsel %vm1791, %v5552, 0
      %6060 = vmatprep.subr.mxu0 0.0
      %6061 = vmatpush1.msra.mxu0 %v6013
      %6062 = vmatprep.subr.mxu0 0.0
      %6063 = vmatpush1.msra.mxu0 %v6015
      %6064 = vmatprep.subr.mxu0 0.0
      %6065 = vmatpush1.msra.mxu0 %v6017
      %6066 = vmatprep.subr.mxu0 0.0
      %6067 = vmatpush1.msra.mxu0 %v6019
      %6068 = vmatprep.subr.mxu0 0.0
      %6069 = vmatpush1.msra.mxu0 %v6021
      %6070 = vmatprep.subr.mxu0 0.0
      %6071 = vmatpush1.msra.mxu0 %v6023
      %6072 = vmatprep.subr.mxu0 0.0
      %6073 = vmatpush1.msra.mxu0 %v6025
      %6074 = vmatprep.subr.mxu0 0.0
      %6075 = vmatpush1.msra.mxu0 %v6027
      %6076 = vmatprep.subr.mxu0 0.0
      %6077 = vmatpush1.msra.mxu0 0.0
      %6078 = vmatprep.subr.mxu0 0.0
      %6079 = vmatpush1.msra.mxu0 0.0
      %6080 = vmatprep.subr.mxu0 0.0
      %6081 = vmatpush1.msra.mxu0 0.0
      %6082 = vmatprep.subr.mxu0 0.0
      %6083 = vmatpush1.msra.mxu0 0.0
      %6084 = vmatprep.subr.mxu0 0.0
      %6085 = vmatpush1.msra.mxu0 0.0
      %6086 = vmatprep.subr.mxu0 0.0
      %6087 = vmatpush1.msra.mxu0 0.0
      %6088 = vmatprep.subr.mxu0 0.0
      %6089 = vmatpush1.msra.mxu0 0.0
      %6090 = vmatprep.subr.mxu0 0.0
      %6091 = vmatpush1.msra.mxu0 0.0
      %6092 = vmatprep.subr.mxu0 0.0
      %6093 = vmatpush1.msra.mxu0 0.0
      %6094 = vmatprep.subr.mxu0 0.0
      %6095 = vmatpush1.msra.mxu0 0.0
      %6096 = vmatprep.subr.mxu0 0.0
      %6097 = vmatpush1.msra.mxu0 0.0
      %6098 = vmatprep.subr.mxu0 0.0
      %6099 = vmatpush1.msra.mxu0 0.0
      %6100 = vmatprep.subr.mxu0 0.0
      %6101 = vmatpush1.msra.mxu0 0.0
      %6102 = vmatprep.subr.mxu0 0.0
      %6103 = vmatpush1.msra.mxu0 0.0
      %6104 = vmatprep.subr.mxu0 0.0
      %6105 = vmatpush1.msra.mxu0 0.0
      %6106 = vmatprep.subr.mxu0 0.0
      %6107 = vmatpush1.msra.mxu0 0.0
      %6108 = vmatprep.subr.mxu0 0.0
      %6109 = vmatpush1.msra.mxu0 0.0
      %6110 = vmatprep.subr.mxu0 0.0
      %6111 = vmatpush1.msra.mxu0 0.0
      %6112 = vmatprep.subr.mxu0 0.0
      %6113 = vmatpush1.msra.mxu0 0.0
      %6114 = vmatprep.subr.mxu0 0.0
      %6115 = vmatpush1.msra.mxu0 0.0
      %6116 = vmatprep.subr.mxu0 0.0
      %6117 = vmatpush1.msra.mxu0 0.0
      %6118 = vmatprep.subr.mxu0 0.0
      %6119 = vmatpush1.msra.mxu0 0.0
      %6120 = vmatprep.subr.mxu0 0.0
      %6121 = vmatpush1.msra.mxu0 0.0
      %6122 = vmatprep.subr.mxu0 0.0
      %6123 = vmatpush1.msra.mxu0 0.0
      %6124 = vmatprep.mubr.f32.mxu0 0.0
      %6125 = vmatmul.mubr.f32.gmra.mrb[0].mxu0 %v6037
      %v6126 = vpop.f32.mrb[0].mxu0
      %v6127 = vadd.f32 0.0, %v6126
      %v6128 = vpop.f32.mrb[0].mxu0
      %6129 = vmatprep.mubr.f32.mxu0 0.0
      %6130 = vmatmul.mubr.f32.gmra.mrb[0].mxu0 %v6040
      %v6131 = vpop.f32.mrb[0].mxu0
      %v6132 = vadd.f32 0.0, %v6131
      %v6133 = vpop.f32.mrb[0].mxu0
      %6134 = vmatprep.mubr.f32.mxu0 0.0
      %6135 = vmatmul.mubr.f32.gmra.mrb[0].mxu0 %v6043
      %v6136 = vpop.f32.mrb[0].mxu0
      %v6137 = vadd.f32 0.0, %v6136
      %v6138 = vpop.f32.mrb[0].mxu0
      %6139 = vmatprep.mubr.f32.mxu0 0.0
      %6140 = vmatmul.mubr.f32.gmra.mrb[0].mxu0 %v6046
      %v6141 = vpop.f32.mrb[0].mxu0
      %v6142 = vadd.f32 0.0, %v6141
      %v6143 = vpop.f32.mrb[0].mxu0
      %6144 = vmatprep.mubr.f32.mxu0 0.0
      %6145 = vmatmul.mubr.f32.gmra.mrb[0].mxu0 %v6049
      %v6146 = vpop.f32.mrb[0].mxu0
      %v6147 = vadd.f32 0.0, %v6146
      %v6148 = vpop.f32.mrb[0].mxu0
      %6149 = vmatprep.mubr.f32.mxu0 0.0
      %6150 = vmatmul.mubr.f32.gmra.mrb[0].mxu0 %v6052
      %v6151 = vpop.f32.mrb[0].mxu0
      %v6152 = vadd.f32 0.0, %v6151
      %v6153 = vpop.f32.mrb[0].mxu0
      %6154 = vmatprep.mubr.f32.mxu0 0.0
      %6155 = vmatmul.mubr.f32.gmra.mrb[0].mxu0 %v6055
      %v6156 = vpop.f32.mrb[0].mxu0
      %v6157 = vadd.f32 0.0, %v6156
      %v6158 = vpop.f32.mrb[0].mxu0
      %6159 = vmatprep.mubr.f32.mxu0 0.0
      %6160 = vmatmul.mubr.f32.gmra.mrb[0].mxu0 %v6058
      %v6161 = vpop.f32.mrb[0].mxu0
      %v6162 = vadd.f32 0.0, %v6161
      %v6163 = vpop.f32.mrb[0].mxu0
      %6164 = vdwg.mxu0
      %6197 = vrot.lane.b32.xlu0 %v5668, 16
      %v6198 = vpop.permute.xlu0 %6197
      %6199 = vrot.lane.b32.xlu0 %v5673, 16
      %v6200 = vpop.permute.xlu0 %6199
      %6201 = vrot.lane.b32.xlu0 %v5678, 16
      %v6202 = vpop.permute.xlu0 %6201
      %6203 = vrot.lane.b32.xlu0 %v5683, 16
      %v6204 = vpop.permute.xlu0 %6203
      %6205 = vrot.lane.b32.xlu0 %v5688, 16
      %v6206 = vpop.permute.xlu0 %6205
      %6207 = vrot.lane.b32.xlu0 %v5693, 16
      %v6208 = vpop.permute.xlu0 %6207
      %6209 = vrot.lane.b32.xlu0 %v5698, 16
      %v6210 = vpop.permute.xlu0 %6209
      %6211 = vrot.lane.b32.xlu0 %v5703, 16
      %v6212 = vpop.permute.xlu0 %6211
      %6213 = vrot.lane.b32.xlu0 %v5821, 16
      %v6214 = vpop.permute.xlu0 %6213
      %6215 = vrot.lane.b32.xlu0 %v5826, 16
      %v6216 = vpop.permute.xlu0 %6215
      %6217 = vrot.lane.b32.xlu0 %v5831, 16
      %v6218 = vpop.permute.xlu0 %6217
      %6219 = vrot.lane.b32.xlu0 %v5836, 16
      %v6220 = vpop.permute.xlu0 %6219
      %6221 = vrot.lane.b32.xlu0 %v5841, 16
      %v6222 = vpop.permute.xlu0 %6221
      %6223 = vrot.lane.b32.xlu0 %v5846, 16
      %v6224 = vpop.permute.xlu0 %6223
      %6225 = vrot.lane.b32.xlu0 %v5851, 16
      %v6226 = vpop.permute.xlu0 %6225
      %6227 = vrot.lane.b32.xlu0 %v5856, 16
      %v6228 = vpop.permute.xlu0 %6227
      %6229 = vrot.lane.b32.xlu0 %v5974, 16
      %v6230 = vpop.permute.xlu0 %6229
      %6231 = vrot.lane.b32.xlu0 %v5979, 16
      %v6232 = vpop.permute.xlu0 %6231
      %6233 = vrot.lane.b32.xlu0 %v5984, 16
      %v6234 = vpop.permute.xlu0 %6233
      %6235 = vrot.lane.b32.xlu0 %v5989, 16
      %v6236 = vpop.permute.xlu0 %6235
      %6237 = vrot.lane.b32.xlu0 %v5994, 16
      %v6238 = vpop.permute.xlu0 %6237
      %6239 = vrot.lane.b32.xlu0 %v5999, 16
      %v6240 = vpop.permute.xlu0 %6239
      %6241 = vrot.lane.b32.xlu0 %v6004, 16
      %v6242 = vpop.permute.xlu0 %6241
      %6243 = vrot.lane.b32.xlu0 %v6009, 16
      %v6244 = vpop.permute.xlu0 %6243
      %6245 = vrot.lane.b32.xlu0 %v6127, 16
      %v6246 = vpop.permute.xlu0 %6245
      %6247 = vrot.lane.b32.xlu0 %v6132, 16
      %v6248 = vpop.permute.xlu0 %6247
      %6249 = vrot.lane.b32.xlu0 %v6137, 16
      %v6250 = vpop.permute.xlu0 %6249
      %6251 = vrot.lane.b32.xlu0 %v6142, 16
      %v6252 = vpop.permute.xlu0 %6251
      %6253 = vrot.lane.b32.xlu0 %v6147, 16
      %v6254 = vpop.permute.xlu0 %6253
      %6255 = vrot.lane.b32.xlu0 %v6152, 16
      %v6256 = vpop.permute.xlu0 %6255
      %6257 = vrot.lane.b32.xlu0 %v6157, 16
      %v6258 = vpop.permute.xlu0 %6257
      %6259 = vrot.lane.b32.xlu0 %v6162, 16
      %v6260 = vpop.permute.xlu0 %6259
      %vm6293 = vcmask 195712
      %6294 = vst.msk [vmem:[#allocation2] sm:$0xff] %vm6293, %v6198
      %6295 = vst.msk [vmem:[#allocation2 + $0x8] sm:$0xff] %vm6293, %v6200
      %6296 = vst.msk [vmem:[#allocation2 + $0x10] sm:$0xff] %vm6293, %v6202
      %6297 = vst.msk [vmem:[#allocation2 + $0x18] sm:$0xff] %vm6293, %v6204
      %6298 = vst.msk [vmem:[#allocation2 + $0x20] sm:$0xff] %vm6293, %v6206
      %6299 = vst.msk [vmem:[#allocation2 + $0x28] sm:$0xff] %vm6293, %v6208
      %6300 = vst.msk [vmem:[#allocation2 + $0x30] sm:$0xff] %vm6293, %v6210
      %6301 = vst.msk [vmem:[#allocation2 + $0x38] sm:$0xff] %vm6293, %v6212
      %6302 = vst.msk [vmem:[#allocation2 + $0x40] sm:$0xff] %vm6293, %v6214
      %6303 = vst.msk [vmem:[#allocation2 + $0x48] sm:$0xff] %vm6293, %v6216
      %6304 = vst.msk [vmem:[#allocation2 + $0x50] sm:$0xff] %vm6293, %v6218
      %6305 = vst.msk [vmem:[#allocation2 + $0x58] sm:$0xff] %vm6293, %v6220
      %6306 = vst.msk [vmem:[#allocation2 + $0x60] sm:$0xff] %vm6293, %v6222
      %6307 = vst.msk [vmem:[#allocation2 + $0x68] sm:$0xff] %vm6293, %v6224
      %6308 = vst.msk [vmem:[#allocation2 + $0x70] sm:$0xff] %vm6293, %v6226
      %6309 = vst.msk [vmem:[#allocation2 + $0x78] sm:$0xff] %vm6293, %v6228
      %6310 = vst.msk [vmem:[#allocation2 + $0x80] sm:$0xff] %vm6293, %v6230
      %6311 = vst.msk [vmem:[#allocation2 + $0x88] sm:$0xff] %vm6293, %v6232
      %6312 = vst.msk [vmem:[#allocation2 + $0x90] sm:$0xff] %vm6293, %v6234
      %6313 = vst.msk [vmem:[#allocation2 + $0x98] sm:$0xff] %vm6293, %v6236
      %6314 = vst.msk [vmem:[#allocation2 + $0xa0] sm:$0xff] %vm6293, %v6238
      %6315 = vst.msk [vmem:[#allocation2 + $0xa8] sm:$0xff] %vm6293, %v6240
      %6316 = vst.msk [vmem:[#allocation2 + $0xb0] sm:$0xff] %vm6293, %v6242
      %6317 = vst.msk [vmem:[#allocation2 + $0xb8] sm:$0xff] %vm6293, %v6244
      %6318 = vst.msk [vmem:[#allocation2 + $0xc0] sm:$0xff] %vm6293, %v6246
      %6319 = vst.msk [vmem:[#allocation2 + $0xc8] sm:$0xff] %vm6293, %v6248
      %6320 = vst.msk [vmem:[#allocation2 + $0xd0] sm:$0xff] %vm6293, %v6250
      %6321 = vst.msk [vmem:[#allocation2 + $0xd8] sm:$0xff] %vm6293, %v6252
      %6322 = vst.msk [vmem:[#allocation2 + $0xe0] sm:$0xff] %vm6293, %v6254
      %6323 = vst.msk [vmem:[#allocation2 + $0xe8] sm:$0xff] %vm6293, %v6256
      %6324 = vst.msk [vmem:[#allocation2 + $0xf0] sm:$0xff] %vm6293, %v6258
      %6325 = vst.msk [vmem:[#allocation2 + $0xf8] sm:$0xff] %vm6293, %v6260
      %6326 = vrot.lane.b32.xlu0 %v548, 104
      %v6327 = vpop.permute.xlu0 %6326
      %6328 = vrot.lane.b32.xlu0 %v553, 104
      %v6329 = vpop.permute.xlu0 %6328
      %6330 = vrot.lane.b32.xlu0 %v558, 104
      %v6331 = vpop.permute.xlu0 %6330
      %6332 = vrot.lane.b32.xlu0 %v563, 104
      %v6333 = vpop.permute.xlu0 %6332
      %6334 = vrot.lane.b32.xlu0 %v568, 104
      %v6335 = vpop.permute.xlu0 %6334
      %6336 = vrot.lane.b32.xlu0 %v573, 104
      %v6337 = vpop.permute.xlu0 %6336
      %6338 = vrot.lane.b32.xlu0 %v578, 104
      %v6339 = vpop.permute.xlu0 %6338
      %6340 = vrot.lane.b32.xlu0 %v583, 104
      %v6341 = vpop.permute.xlu0 %6340
      %6342 = vrot.lane.b32.xlu0 %v784, 104
      %v6343 = vpop.permute.xlu0 %6342
      %6344 = vrot.lane.b32.xlu0 %v789, 104
      %v6345 = vpop.permute.xlu0 %6344
      %6346 = vrot.lane.b32.xlu0 %v794, 104
      %v6347 = vpop.permute.xlu0 %6346
      %6348 = vrot.lane.b32.xlu0 %v799, 104
      %v6349 = vpop.permute.xlu0 %6348
      %6350 = vrot.lane.b32.xlu0 %v804, 104
      %v6351 = vpop.permute.xlu0 %6350
      %6352 = vrot.lane.b32.xlu0 %v809, 104
      %v6353 = vpop.permute.xlu0 %6352
      %6354 = vrot.lane.b32.xlu0 %v814, 104
      %v6355 = vpop.permute.xlu0 %6354
      %6356 = vrot.lane.b32.xlu0 %v819, 104
      %v6357 = vpop.permute.xlu0 %6356
      %v6358 = vsel %vm1178, %v6327, 0
      %v6360 = vsel %vm1178, %v6329, 0
      %v6362 = vsel %vm1178, %v6331, 0
      %v6364 = vsel %vm1178, %v6333, 0
      %v6366 = vsel %vm1178, %v6335, 0
      %v6368 = vsel %vm1178, %v6337, 0
      %v6370 = vsel %vm1178, %v6339, 0
      %v6372 = vsel %vm1178, %v6341, 0
      %v6374 = vsel %vm1178, %v6343, 0
      %v6376 = vsel %vm1178, %v6345, 0
      %v6378 = vsel %vm1178, %v6347, 0
      %v6380 = vsel %vm1178, %v6349, 0
      %v6382 = vsel %vm1178, %v6351, 0
      %v6384 = vsel %vm1178, %v6353, 0
      %v6386 = vsel %vm1178, %v6355, 0
      %v6388 = vsel %vm1178, %v6357, 0
      %6390 = vmatprep.subr.mxu0 0.0
      %6391 = vmatpush1.xpose.msra.mxu0 %v6374
      %6392 = vmatprep.subr.mxu0 0.0
      %6393 = vmatpush1.xpose.msra.mxu0 %v6376
      %6394 = vmatprep.subr.mxu0 0.0
      %6395 = vmatpush1.xpose.msra.mxu0 %v6378
      %6396 = vmatprep.subr.mxu0 0.0
      %6397 = vmatpush1.xpose.msra.mxu0 %v6380
      %6398 = vmatprep.subr.mxu0 0.0
      %6399 = vmatpush1.xpose.msra.mxu0 %v6382
      %6400 = vmatprep.subr.mxu0 0.0
      %6401 = vmatpush1.xpose.msra.mxu0 %v6384
      %6402 = vmatprep.subr.mxu0 0.0
      %6403 = vmatpush1.xpose.msra.mxu0 %v6386
      %6404 = vmatprep.subr.mxu0 0.0
      %6405 = vmatpush1.xpose.msra.mxu0 %v6388
      %6406 = vmatprep.subr.mxu0 0.0
      %6407 = vmatpush1.xpose.msra.mxu0 0.0
      %6408 = vmatprep.subr.mxu0 0.0
      %6409 = vmatpush1.xpose.msra.mxu0 0.0
      %6410 = vmatprep.subr.mxu0 0.0
      %6411 = vmatpush1.xpose.msra.mxu0 0.0
      %6412 = vmatprep.subr.mxu0 0.0
      %6413 = vmatpush1.xpose.msra.mxu0 0.0
      %6414 = vmatprep.subr.mxu0 0.0
      %6415 = vmatpush1.xpose.msra.mxu0 0.0
      %6416 = vmatprep.subr.mxu0 0.0
      %6417 = vmatpush1.xpose.msra.mxu0 0.0
      %6418 = vmatprep.subr.mxu0 0.0
      %6419 = vmatpush1.xpose.msra.mxu0 0.0
      %6420 = vmatprep.subr.mxu0 0.0
      %6421 = vmatpush1.xpose.msra.mxu0 0.0
      %6422 = vmatprep.subr.mxu0 0.0
      %6423 = vmatpush1.xpose.msra.mxu0 0.0
      %6424 = vmatprep.subr.mxu0 0.0
      %6425 = vmatpush1.xpose.msra.mxu0 0.0
      %6426 = vmatprep.subr.mxu0 0.0
      %6427 = vmatpush1.xpose.msra.mxu0 0.0
      %6428 = vmatprep.subr.mxu0 0.0
      %6429 = vmatpush1.xpose.msra.mxu0 0.0
      %6430 = vmatprep.subr.mxu0 0.0
      %6431 = vmatpush1.xpose.msra.mxu0 0.0
      %6432 = vmatprep.subr.mxu0 0.0
      %6433 = vmatpush1.xpose.msra.mxu0 0.0
      %6434 = vmatprep.subr.mxu0 0.0
      %6435 = vmatpush1.xpose.msra.mxu0 0.0
      %6436 = vmatprep.subr.mxu0 0.0
      %6437 = vmatpush1.xpose.msra.mxu0 0.0
      %6438 = vmatprep.subr.mxu0 0.0
      %6439 = vmatpush1.xpose.msra.mxu0 0.0
      %6440 = vmatprep.subr.mxu0 0.0
      %6441 = vmatpush1.xpose.msra.mxu0 0.0
      %6442 = vmatprep.subr.mxu0 0.0
      %6443 = vmatpush1.xpose.msra.mxu0 0.0
      %6444 = vmatprep.subr.mxu0 0.0
      %6445 = vmatpush1.xpose.msra.mxu0 0.0
      %6446 = vmatprep.subr.mxu0 0.0
      %6447 = vmatpush1.xpose.msra.mxu0 0.0
      %6448 = vmatprep.subr.mxu0 0.0
      %6449 = vmatpush1.xpose.msra.mxu0 0.0
      %6450 = vmatprep.subr.mxu0 0.0
      %6451 = vmatpush1.xpose.msra.mxu0 0.0
      %6452 = vmatprep.subr.mxu0 0.0
      %6453 = vmatpush1.xpose.msra.mxu0 0.0
      %6454 = vmatprep.mubr.f32.mxu0 0.0
      %6455 = vmatmul.mubr.f32.gmra.mrb[0].mxu0 %v6358
      %v6456 = vpop.f32.mrb[0].mxu0
      %v6457 = vadd.f32 0.0, %v6456
      %v6458 = vpop.f32.mrb[0].mxu0
      %6459 = vmatprep.mubr.f32.mxu0 0.0
      %6460 = vmatmul.mubr.f32.gmra.mrb[0].mxu0 %v6360
      %v6461 = vpop.f32.mrb[0].mxu0
      %v6462 = vadd.f32 0.0, %v6461
      %v6463 = vpop.f32.mrb[0].mxu0
      %6464 = vmatprep.mubr.f32.mxu0 0.0
      %6465 = vmatmul.mubr.f32.gmra.mrb[0].mxu0 %v6362
      %v6466 = vpop.f32.mrb[0].mxu0
      %v6467 = vadd.f32 0.0, %v6466
      %v6468 = vpop.f32.mrb[0].mxu0
      %6469 = vmatprep.mubr.f32.mxu0 0.0
      %6470 = vmatmul.mubr.f32.gmra.mrb[0].mxu0 %v6364
      %v6471 = vpop.f32.mrb[0].mxu0
      %v6472 = vadd.f32 0.0, %v6471
      %v6473 = vpop.f32.mrb[0].mxu0
      %6474 = vmatprep.mubr.f32.mxu0 0.0
      %6475 = vmatmul.mubr.f32.gmra.mrb[0].mxu0 %v6366
      %v6476 = vpop.f32.mrb[0].mxu0
      %v6477 = vadd.f32 0.0, %v6476
      %v6478 = vpop.f32.mrb[0].mxu0
      %6479 = vmatprep.mubr.f32.mxu0 0.0
      %6480 = vmatmul.mubr.f32.gmra.mrb[0].mxu0 %v6368
      %v6481 = vpop.f32.mrb[0].mxu0
      %v6482 = vadd.f32 0.0, %v6481
      %v6483 = vpop.f32.mrb[0].mxu0
      %6484 = vmatprep.mubr.f32.mxu0 0.0
      %6485 = vmatmul.mubr.f32.gmra.mrb[0].mxu0 %v6370
      %v6486 = vpop.f32.mrb[0].mxu0
      %v6487 = vadd.f32 0.0, %v6486
      %v6488 = vpop.f32.mrb[0].mxu0
      %6489 = vmatprep.mubr.f32.mxu0 0.0
      %6490 = vmatmul.mubr.f32.gmra.mrb[0].mxu0 %v6372
      %v6491 = vpop.f32.mrb[0].mxu0
      %v6492 = vadd.f32 0.0, %v6491
      %v6493 = vpop.f32.mrb[0].mxu0
      %6494 = vdwg.mxu0
      %6495 = vrot.lane.b32.xlu0 %v588, 104
      %v6496 = vpop.permute.xlu0 %6495
      %6497 = vrot.lane.b32.xlu0 %v593, 104
      %v6498 = vpop.permute.xlu0 %6497
      %6499 = vrot.lane.b32.xlu0 %v598, 104
      %v6500 = vpop.permute.xlu0 %6499
      %6501 = vrot.lane.b32.xlu0 %v603, 104
      %v6502 = vpop.permute.xlu0 %6501
      %6503 = vrot.lane.b32.xlu0 %v608, 104
      %v6504 = vpop.permute.xlu0 %6503
      %6505 = vrot.lane.b32.xlu0 %v613, 104
      %v6506 = vpop.permute.xlu0 %6505
      %6507 = vrot.lane.b32.xlu0 %v618, 104
      %v6508 = vpop.permute.xlu0 %6507
      %6509 = vrot.lane.b32.xlu0 %v623, 104
      %v6510 = vpop.permute.xlu0 %6509
      %6511 = vrot.lane.b32.xlu0 %v824, 104
      %v6512 = vpop.permute.xlu0 %6511
      %6513 = vrot.lane.b32.xlu0 %v829, 104
      %v6514 = vpop.permute.xlu0 %6513
      %6515 = vrot.lane.b32.xlu0 %v834, 104
      %v6516 = vpop.permute.xlu0 %6515
      %6517 = vrot.lane.b32.xlu0 %v839, 104
      %v6518 = vpop.permute.xlu0 %6517
      %6519 = vrot.lane.b32.xlu0 %v844, 104
      %v6520 = vpop.permute.xlu0 %6519
      %6521 = vrot.lane.b32.xlu0 %v849, 104
      %v6522 = vpop.permute.xlu0 %6521
      %6523 = vrot.lane.b32.xlu0 %v854, 104
      %v6524 = vpop.permute.xlu0 %6523
      %6525 = vrot.lane.b32.xlu0 %v859, 104
      %v6526 = vpop.permute.xlu0 %6525
      %v6527 = vsel %vm1178, %v6496, 0
      %v6529 = vsel %vm1178, %v6498, 0
      %v6531 = vsel %vm1178, %v6500, 0
      %v6533 = vsel %vm1178, %v6502, 0
      %v6535 = vsel %vm1178, %v6504, 0
      %v6537 = vsel %vm1178, %v6506, 0
      %v6539 = vsel %vm1178, %v6508, 0
      %v6541 = vsel %vm1178, %v6510, 0
      %v6543 = vsel %vm1178, %v6512, 0
      %v6545 = vsel %vm1178, %v6514, 0
      %v6547 = vsel %vm1178, %v6516, 0
      %v6549 = vsel %vm1178, %v6518, 0
      %v6551 = vsel %vm1178, %v6520, 0
      %v6553 = vsel %vm1178, %v6522, 0
      %v6555 = vsel %vm1178, %v6524, 0
      %v6557 = vsel %vm1178, %v6526, 0
      %6559 = vmatprep.subr.mxu0 0.0
      %6560 = vmatpush1.xpose.msra.mxu0 %v6543
      %6561 = vmatprep.subr.mxu0 0.0
      %6562 = vmatpush1.xpose.msra.mxu0 %v6545
      %6563 = vmatprep.subr.mxu0 0.0
      %6564 = vmatpush1.xpose.msra.mxu0 %v6547
      %6565 = vmatprep.subr.mxu0 0.0
      %6566 = vmatpush1.xpose.msra.mxu0 %v6549
      %6567 = vmatprep.subr.mxu0 0.0
      %6568 = vmatpush1.xpose.msra.mxu0 %v6551
      %6569 = vmatprep.subr.mxu0 0.0
      %6570 = vmatpush1.xpose.msra.mxu0 %v6553
      %6571 = vmatprep.subr.mxu0 0.0
      %6572 = vmatpush1.xpose.msra.mxu0 %v6555
      %6573 = vmatprep.subr.mxu0 0.0
      %6574 = vmatpush1.xpose.msra.mxu0 %v6557
      %6575 = vmatprep.subr.mxu0 0.0
      %6576 = vmatpush1.xpose.msra.mxu0 0.0
      %6577 = vmatprep.subr.mxu0 0.0
      %6578 = vmatpush1.xpose.msra.mxu0 0.0
      %6579 = vmatprep.subr.mxu0 0.0
      %6580 = vmatpush1.xpose.msra.mxu0 0.0
      %6581 = vmatprep.subr.mxu0 0.0
      %6582 = vmatpush1.xpose.msra.mxu0 0.0
      %6583 = vmatprep.subr.mxu0 0.0
      %6584 = vmatpush1.xpose.msra.mxu0 0.0
      %6585 = vmatprep.subr.mxu0 0.0
      %6586 = vmatpush1.xpose.msra.mxu0 0.0
      %6587 = vmatprep.subr.mxu0 0.0
      %6588 = vmatpush1.xpose.msra.mxu0 0.0
      %6589 = vmatprep.subr.mxu0 0.0
      %6590 = vmatpush1.xpose.msra.mxu0 0.0
      %6591 = vmatprep.subr.mxu0 0.0
      %6592 = vmatpush1.xpose.msra.mxu0 0.0
      %6593 = vmatprep.subr.mxu0 0.0
      %6594 = vmatpush1.xpose.msra.mxu0 0.0
      %6595 = vmatprep.subr.mxu0 0.0
      %6596 = vmatpush1.xpose.msra.mxu0 0.0
      %6597 = vmatprep.subr.mxu0 0.0
      %6598 = vmatpush1.xpose.msra.mxu0 0.0
      %6599 = vmatprep.subr.mxu0 0.0
      %6600 = vmatpush1.xpose.msra.mxu0 0.0
      %6601 = vmatprep.subr.mxu0 0.0
      %6602 = vmatpush1.xpose.msra.mxu0 0.0
      %6603 = vmatprep.subr.mxu0 0.0
      %6604 = vmatpush1.xpose.msra.mxu0 0.0
      %6605 = vmatprep.subr.mxu0 0.0
      %6606 = vmatpush1.xpose.msra.mxu0 0.0
      %6607 = vmatprep.subr.mxu0 0.0
      %6608 = vmatpush1.xpose.msra.mxu0 0.0
      %6609 = vmatprep.subr.mxu0 0.0
      %6610 = vmatpush1.xpose.msra.mxu0 0.0
      %6611 = vmatprep.subr.mxu0 0.0
      %6612 = vmatpush1.xpose.msra.mxu0 0.0
      %6613 = vmatprep.subr.mxu0 0.0
      %6614 = vmatpush1.xpose.msra.mxu0 0.0
      %6615 = vmatprep.subr.mxu0 0.0
      %6616 = vmatpush1.xpose.msra.mxu0 0.0
      %6617 = vmatprep.subr.mxu0 0.0
      %6618 = vmatpush1.xpose.msra.mxu0 0.0
      %6619 = vmatprep.subr.mxu0 0.0
      %6620 = vmatpush1.xpose.msra.mxu0 0.0
      %6621 = vmatprep.subr.mxu0 0.0
      %6622 = vmatpush1.xpose.msra.mxu0 0.0
      %6623 = vmatprep.mubr.f32.mxu0 0.0
      %6624 = vmatmul.mubr.f32.gmra.mrb[0].mxu0 %v6527
      %v6625 = vpop.f32.mrb[0].mxu0
      %v6626 = vadd.f32 0.0, %v6625
      %v6627 = vpop.f32.mrb[0].mxu0
      %6628 = vmatprep.mubr.f32.mxu0 0.0
      %6629 = vmatmul.mubr.f32.gmra.mrb[0].mxu0 %v6529
      %v6630 = vpop.f32.mrb[0].mxu0
      %v6631 = vadd.f32 0.0, %v6630
      %v6632 = vpop.f32.mrb[0].mxu0
      %6633 = vmatprep.mubr.f32.mxu0 0.0
      %6634 = vmatmul.mubr.f32.gmra.mrb[0].mxu0 %v6531
      %v6635 = vpop.f32.mrb[0].mxu0
      %v6636 = vadd.f32 0.0, %v6635
      %v6637 = vpop.f32.mrb[0].mxu0
      %6638 = vmatprep.mubr.f32.mxu0 0.0
      %6639 = vmatmul.mubr.f32.gmra.mrb[0].mxu0 %v6533
      %v6640 = vpop.f32.mrb[0].mxu0
      %v6641 = vadd.f32 0.0, %v6640
      %v6642 = vpop.f32.mrb[0].mxu0
      %6643 = vmatprep.mubr.f32.mxu0 0.0
      %6644 = vmatmul.mubr.f32.gmra.mrb[0].mxu0 %v6535
      %v6645 = vpop.f32.mrb[0].mxu0
      %v6646 = vadd.f32 0.0, %v6645
      %v6647 = vpop.f32.mrb[0].mxu0
      %6648 = vmatprep.mubr.f32.mxu0 0.0
      %6649 = vmatmul.mubr.f32.gmra.mrb[0].mxu0 %v6537
      %v6650 = vpop.f32.mrb[0].mxu0
      %v6651 = vadd.f32 0.0, %v6650
      %v6652 = vpop.f32.mrb[0].mxu0
      %6653 = vmatprep.mubr.f32.mxu0 0.0
      %6654 = vmatmul.mubr.f32.gmra.mrb[0].mxu0 %v6539
      %v6655 = vpop.f32.mrb[0].mxu0
      %v6656 = vadd.f32 0.0, %v6655
      %v6657 = vpop.f32.mrb[0].mxu0
      %6658 = vmatprep.mubr.f32.mxu0 0.0
      %6659 = vmatmul.mubr.f32.gmra.mrb[0].mxu0 %v6541
      %v6660 = vpop.f32.mrb[0].mxu0
      %v6661 = vadd.f32 0.0, %v6660
      %v6662 = vpop.f32.mrb[0].mxu0
      %6663 = vdwg.mxu0
      %6664 = vrot.lane.b32.xlu0 %v628, 104
      %v6665 = vpop.permute.xlu0 %6664
      %6666 = vrot.lane.b32.xlu0 %v633, 104
      %v6667 = vpop.permute.xlu0 %6666
      %6668 = vrot.lane.b32.xlu0 %v638, 104
      %v6669 = vpop.permute.xlu0 %6668
      %6670 = vrot.lane.b32.xlu0 %v643, 104
      %v6671 = vpop.permute.xlu0 %6670
      %6672 = vrot.lane.b32.xlu0 %v648, 104
      %v6673 = vpop.permute.xlu0 %6672
      %6674 = vrot.lane.b32.xlu0 %v653, 104
      %v6675 = vpop.permute.xlu0 %6674
      %6676 = vrot.lane.b32.xlu0 %v658, 104
      %v6677 = vpop.permute.xlu0 %6676
      %6678 = vrot.lane.b32.xlu0 %v663, 104
      %v6679 = vpop.permute.xlu0 %6678
      %6680 = vrot.lane.b32.xlu0 %v864, 104
      %v6681 = vpop.permute.xlu0 %6680
      %6682 = vrot.lane.b32.xlu0 %v869, 104
      %v6683 = vpop.permute.xlu0 %6682
      %6684 = vrot.lane.b32.xlu0 %v874, 104
      %v6685 = vpop.permute.xlu0 %6684
      %6686 = vrot.lane.b32.xlu0 %v879, 104
      %v6687 = vpop.permute.xlu0 %6686
      %6688 = vrot.lane.b32.xlu0 %v884, 104
      %v6689 = vpop.permute.xlu0 %6688
      %6690 = vrot.lane.b32.xlu0 %v889, 104
      %v6691 = vpop.permute.xlu0 %6690
      %6692 = vrot.lane.b32.xlu0 %v894, 104
      %v6693 = vpop.permute.xlu0 %6692
      %6694 = vrot.lane.b32.xlu0 %v899, 104
      %v6695 = vpop.permute.xlu0 %6694
      %v6696 = vsel %vm1178, %v6665, 0
      %v6698 = vsel %vm1178, %v6667, 0
      %v6700 = vsel %vm1178, %v6669, 0
      %v6702 = vsel %vm1178, %v6671, 0
      %v6704 = vsel %vm1178, %v6673, 0
      %v6706 = vsel %vm1178, %v6675, 0
      %v6708 = vsel %vm1178, %v6677, 0
      %v6710 = vsel %vm1178, %v6679, 0
      %v6712 = vsel %vm1178, %v6681, 0
      %v6714 = vsel %vm1178, %v6683, 0
      %v6716 = vsel %vm1178, %v6685, 0
      %v6718 = vsel %vm1178, %v6687, 0
      %v6720 = vsel %vm1178, %v6689, 0
      %v6722 = vsel %vm1178, %v6691, 0
      %v6724 = vsel %vm1178, %v6693, 0
      %v6726 = vsel %vm1178, %v6695, 0
      %6728 = vmatprep.subr.mxu0 0.0
      %6729 = vmatpush1.xpose.msra.mxu0 %v6712
      %6730 = vmatprep.subr.mxu0 0.0
      %6731 = vmatpush1.xpose.msra.mxu0 %v6714
      %6732 = vmatprep.subr.mxu0 0.0
      %6733 = vmatpush1.xpose.msra.mxu0 %v6716
      %6734 = vmatprep.subr.mxu0 0.0
      %6735 = vmatpush1.xpose.msra.mxu0 %v6718
      %6736 = vmatprep.subr.mxu0 0.0
      %6737 = vmatpush1.xpose.msra.mxu0 %v6720
      %6738 = vmatprep.subr.mxu0 0.0
      %6739 = vmatpush1.xpose.msra.mxu0 %v6722
      %6740 = vmatprep.subr.mxu0 0.0
      %6741 = vmatpush1.xpose.msra.mxu0 %v6724
      %6742 = vmatprep.subr.mxu0 0.0
      %6743 = vmatpush1.xpose.msra.mxu0 %v6726
      %6744 = vmatprep.subr.mxu0 0.0
      %6745 = vmatpush1.xpose.msra.mxu0 0.0
      %6746 = vmatprep.subr.mxu0 0.0
      %6747 = vmatpush1.xpose.msra.mxu0 0.0
      %6748 = vmatprep.subr.mxu0 0.0
      %6749 = vmatpush1.xpose.msra.mxu0 0.0
      %6750 = vmatprep.subr.mxu0 0.0
      %6751 = vmatpush1.xpose.msra.mxu0 0.0
      %6752 = vmatprep.subr.mxu0 0.0
      %6753 = vmatpush1.xpose.msra.mxu0 0.0
      %6754 = vmatprep.subr.mxu0 0.0
      %6755 = vmatpush1.xpose.msra.mxu0 0.0
      %6756 = vmatprep.subr.mxu0 0.0
      %6757 = vmatpush1.xpose.msra.mxu0 0.0
      %6758 = vmatprep.subr.mxu0 0.0
      %6759 = vmatpush1.xpose.msra.mxu0 0.0
      %6760 = vmatprep.subr.mxu0 0.0
      %6761 = vmatpush1.xpose.msra.mxu0 0.0
      %6762 = vmatprep.subr.mxu0 0.0
      %6763 = vmatpush1.xpose.msra.mxu0 0.0
      %6764 = vmatprep.subr.mxu0 0.0
      %6765 = vmatpush1.xpose.msra.mxu0 0.0
      %6766 = vmatprep.subr.mxu0 0.0
      %6767 = vmatpush1.xpose.msra.mxu0 0.0
      %6768 = vmatprep.subr.mxu0 0.0
      %6769 = vmatpush1.xpose.msra.mxu0 0.0
      %6770 = vmatprep.subr.mxu0 0.0
      %6771 = vmatpush1.xpose.msra.mxu0 0.0
      %6772 = vmatprep.subr.mxu0 0.0
      %6773 = vmatpush1.xpose.msra.mxu0 0.0
      %6774 = vmatprep.subr.mxu0 0.0
      %6775 = vmatpush1.xpose.msra.mxu0 0.0
      %6776 = vmatprep.subr.mxu0 0.0
      %6777 = vmatpush1.xpose.msra.mxu0 0.0
      %6778 = vmatprep.subr.mxu0 0.0
      %6779 = vmatpush1.xpose.msra.mxu0 0.0
      %6780 = vmatprep.subr.mxu0 0.0
      %6781 = vmatpush1.xpose.msra.mxu0 0.0
      %6782 = vmatprep.subr.mxu0 0.0
      %6783 = vmatpush1.xpose.msra.mxu0 0.0
      %6784 = vmatprep.subr.mxu0 0.0
      %6785 = vmatpush1.xpose.msra.mxu0 0.0
      %6786 = vmatprep.subr.mxu0 0.0
      %6787 = vmatpush1.xpose.msra.mxu0 0.0
      %6788 = vmatprep.subr.mxu0 0.0
      %6789 = vmatpush1.xpose.msra.mxu0 0.0
      %6790 = vmatprep.subr.mxu0 0.0
      %6791 = vmatpush1.xpose.msra.mxu0 0.0
      %6792 = vmatprep.mubr.f32.mxu0 0.0
      %6793 = vmatmul.mubr.f32.gmra.mrb[0].mxu0 %v6696
      %v6794 = vpop.f32.mrb[0].mxu0
      %v6795 = vadd.f32 0.0, %v6794
      %v6796 = vpop.f32.mrb[0].mxu0
      %6797 = vmatprep.mubr.f32.mxu0 0.0
      %6798 = vmatmul.mubr.f32.gmra.mrb[0].mxu0 %v6698
      %v6799 = vpop.f32.mrb[0].mxu0
      %v6800 = vadd.f32 0.0, %v6799
      %v6801 = vpop.f32.mrb[0].mxu0
      %6802 = vmatprep.mubr.f32.mxu0 0.0
      %6803 = vmatmul.mubr.f32.gmra.mrb[0].mxu0 %v6700
      %v6804 = vpop.f32.mrb[0].mxu0
      %v6805 = vadd.f32 0.0, %v6804
      %v6806 = vpop.f32.mrb[0].mxu0
      %6807 = vmatprep.mubr.f32.mxu0 0.0
      %6808 = vmatmul.mubr.f32.gmra.mrb[0].mxu0 %v6702
      %v6809 = vpop.f32.mrb[0].mxu0
      %v6810 = vadd.f32 0.0, %v6809
      %v6811 = vpop.f32.mrb[0].mxu0
      %6812 = vmatprep.mubr.f32.mxu0 0.0
      %6813 = vmatmul.mubr.f32.gmra.mrb[0].mxu0 %v6704
      %v6814 = vpop.f32.mrb[0].mxu0
      %v6815 = vadd.f32 0.0, %v6814
      %v6816 = vpop.f32.mrb[0].mxu0
      %6817 = vmatprep.mubr.f32.mxu0 0.0
      %6818 = vmatmul.mubr.f32.gmra.mrb[0].mxu0 %v6706
      %v6819 = vpop.f32.mrb[0].mxu0
      %v6820 = vadd.f32 0.0, %v6819
      %v6821 = vpop.f32.mrb[0].mxu0
      %6822 = vmatprep.mubr.f32.mxu0 0.0
      %6823 = vmatmul.mubr.f32.gmra.mrb[0].mxu0 %v6708
      %v6824 = vpop.f32.mrb[0].mxu0
      %v6825 = vadd.f32 0.0, %v6824
      %v6826 = vpop.f32.mrb[0].mxu0
      %6827 = vmatprep.mubr.f32.mxu0 0.0
      %6828 = vmatmul.mubr.f32.gmra.mrb[0].mxu0 %v6710
      %v6829 = vpop.f32.mrb[0].mxu0
      %v6830 = vadd.f32 0.0, %v6829
      %v6831 = vpop.f32.mrb[0].mxu0
      %6832 = vdwg.mxu0
      %6833 = vrot.lane.b32.xlu0 %v668, 104
      %v6834 = vpop.permute.xlu0 %6833
      %6835 = vrot.lane.b32.xlu0 %v673, 104
      %v6836 = vpop.permute.xlu0 %6835
      %6837 = vrot.lane.b32.xlu0 %v678, 104
      %v6838 = vpop.permute.xlu0 %6837
      %6839 = vrot.lane.b32.xlu0 %v683, 104
      %v6840 = vpop.permute.xlu0 %6839
      %6841 = vrot.lane.b32.xlu0 %v688, 104
      %v6842 = vpop.permute.xlu0 %6841
      %6843 = vrot.lane.b32.xlu0 %v693, 104
      %v6844 = vpop.permute.xlu0 %6843
      %6845 = vrot.lane.b32.xlu0 %v698, 104
      %v6846 = vpop.permute.xlu0 %6845
      %6847 = vrot.lane.b32.xlu0 %v703, 104
      %v6848 = vpop.permute.xlu0 %6847
      %6849 = vrot.lane.b32.xlu0 %v904, 104
      %v6850 = vpop.permute.xlu0 %6849
      %6851 = vrot.lane.b32.xlu0 %v909, 104
      %v6852 = vpop.permute.xlu0 %6851
      %6853 = vrot.lane.b32.xlu0 %v914, 104
      %v6854 = vpop.permute.xlu0 %6853
      %6855 = vrot.lane.b32.xlu0 %v919, 104
      %v6856 = vpop.permute.xlu0 %6855
      %6857 = vrot.lane.b32.xlu0 %v924, 104
      %v6858 = vpop.permute.xlu0 %6857
      %6859 = vrot.lane.b32.xlu0 %v929, 104
      %v6860 = vpop.permute.xlu0 %6859
      %6861 = vrot.lane.b32.xlu0 %v934, 104
      %v6862 = vpop.permute.xlu0 %6861
      %6863 = vrot.lane.b32.xlu0 %v939, 104
      %v6864 = vpop.permute.xlu0 %6863
      %v6865 = vsel %vm1178, %v6834, 0
      %v6867 = vsel %vm1178, %v6836, 0
      %v6869 = vsel %vm1178, %v6838, 0
      %v6871 = vsel %vm1178, %v6840, 0
      %v6873 = vsel %vm1178, %v6842, 0
      %v6875 = vsel %vm1178, %v6844, 0
      %v6877 = vsel %vm1178, %v6846, 0
      %v6879 = vsel %vm1178, %v6848, 0
      %v6881 = vsel %vm1178, %v6850, 0
      %v6883 = vsel %vm1178, %v6852, 0
      %v6885 = vsel %vm1178, %v6854, 0
      %v6887 = vsel %vm1178, %v6856, 0
      %v6889 = vsel %vm1178, %v6858, 0
      %v6891 = vsel %vm1178, %v6860, 0
      %v6893 = vsel %vm1178, %v6862, 0
      %v6895 = vsel %vm1178, %v6864, 0
      %6897 = vmatprep.subr.mxu0 0.0
      %6898 = vmatpush1.xpose.msra.mxu0 %v6881
      %6899 = vmatprep.subr.mxu0 0.0
      %6900 = vmatpush1.xpose.msra.mxu0 %v6883
      %6901 = vmatprep.subr.mxu0 0.0
      %6902 = vmatpush1.xpose.msra.mxu0 %v6885
      %6903 = vmatprep.subr.mxu0 0.0
      %6904 = vmatpush1.xpose.msra.mxu0 %v6887
      %6905 = vmatprep.subr.mxu0 0.0
      %6906 = vmatpush1.xpose.msra.mxu0 %v6889
      %6907 = vmatprep.subr.mxu0 0.0
      %6908 = vmatpush1.xpose.msra.mxu0 %v6891
      %6909 = vmatprep.subr.mxu0 0.0
      %6910 = vmatpush1.xpose.msra.mxu0 %v6893
      %6911 = vmatprep.subr.mxu0 0.0
      %6912 = vmatpush1.xpose.msra.mxu0 %v6895
      %6913 = vmatprep.subr.mxu0 0.0
      %6914 = vmatpush1.xpose.msra.mxu0 0.0
      %6915 = vmatprep.subr.mxu0 0.0
      %6916 = vmatpush1.xpose.msra.mxu0 0.0
      %6917 = vmatprep.subr.mxu0 0.0
      %6918 = vmatpush1.xpose.msra.mxu0 0.0
      %6919 = vmatprep.subr.mxu0 0.0
      %6920 = vmatpush1.xpose.msra.mxu0 0.0
      %6921 = vmatprep.subr.mxu0 0.0
      %6922 = vmatpush1.xpose.msra.mxu0 0.0
      %6923 = vmatprep.subr.mxu0 0.0
      %6924 = vmatpush1.xpose.msra.mxu0 0.0
      %6925 = vmatprep.subr.mxu0 0.0
      %6926 = vmatpush1.xpose.msra.mxu0 0.0
      %6927 = vmatprep.subr.mxu0 0.0
      %6928 = vmatpush1.xpose.msra.mxu0 0.0
      %6929 = vmatprep.subr.mxu0 0.0
      %6930 = vmatpush1.xpose.msra.mxu0 0.0
      %6931 = vmatprep.subr.mxu0 0.0
      %6932 = vmatpush1.xpose.msra.mxu0 0.0
      %6933 = vmatprep.subr.mxu0 0.0
      %6934 = vmatpush1.xpose.msra.mxu0 0.0
      %6935 = vmatprep.subr.mxu0 0.0
      %6936 = vmatpush1.xpose.msra.mxu0 0.0
      %6937 = vmatprep.subr.mxu0 0.0
      %6938 = vmatpush1.xpose.msra.mxu0 0.0
      %6939 = vmatprep.subr.mxu0 0.0
      %6940 = vmatpush1.xpose.msra.mxu0 0.0
      %6941 = vmatprep.subr.mxu0 0.0
      %6942 = vmatpush1.xpose.msra.mxu0 0.0
      %6943 = vmatprep.subr.mxu0 0.0
      %6944 = vmatpush1.xpose.msra.mxu0 0.0
      %6945 = vmatprep.subr.mxu0 0.0
      %6946 = vmatpush1.xpose.msra.mxu0 0.0
      %6947 = vmatprep.subr.mxu0 0.0
      %6948 = vmatpush1.xpose.msra.mxu0 0.0
      %6949 = vmatprep.subr.mxu0 0.0
      %6950 = vmatpush1.xpose.msra.mxu0 0.0
      %6951 = vmatprep.subr.mxu0 0.0
      %6952 = vmatpush1.xpose.msra.mxu0 0.0
      %6953 = vmatprep.subr.mxu0 0.0
      %6954 = vmatpush1.xpose.msra.mxu0 0.0
      %6955 = vmatprep.subr.mxu0 0.0
      %6956 = vmatpush1.xpose.msra.mxu0 0.0
      %6957 = vmatprep.subr.mxu0 0.0
      %6958 = vmatpush1.xpose.msra.mxu0 0.0
      %6959 = vmatprep.subr.mxu0 0.0
      %6960 = vmatpush1.xpose.msra.mxu0 0.0
      %6961 = vmatprep.mubr.f32.mxu0 0.0
      %6962 = vmatmul.mubr.f32.gmra.mrb[0].mxu0 %v6865
      %v6963 = vpop.f32.mrb[0].mxu0
      %v6964 = vadd.f32 0.0, %v6963
      %v6965 = vpop.f32.mrb[0].mxu0
      %6966 = vmatprep.mubr.f32.mxu0 0.0
      %6967 = vmatmul.mubr.f32.gmra.mrb[0].mxu0 %v6867
      %v6968 = vpop.f32.mrb[0].mxu0
      %v6969 = vadd.f32 0.0, %v6968
      %v6970 = vpop.f32.mrb[0].mxu0
      %6971 = vmatprep.mubr.f32.mxu0 0.0
      %6972 = vmatmul.mubr.f32.gmra.mrb[0].mxu0 %v6869
      %v6973 = vpop.f32.mrb[0].mxu0
      %v6974 = vadd.f32 0.0, %v6973
      %v6975 = vpop.f32.mrb[0].mxu0
      %6976 = vmatprep.mubr.f32.mxu0 0.0
      %6977 = vmatmul.mubr.f32.gmra.mrb[0].mxu0 %v6871
      %v6978 = vpop.f32.mrb[0].mxu0
      %v6979 = vadd.f32 0.0, %v6978
      %v6980 = vpop.f32.mrb[0].mxu0
      %6981 = vmatprep.mubr.f32.mxu0 0.0
      %6982 = vmatmul.mubr.f32.gmra.mrb[0].mxu0 %v6873
      %v6983 = vpop.f32.mrb[0].mxu0
      %v6984 = vadd.f32 0.0, %v6983
      %v6985 = vpop.f32.mrb[0].mxu0
      %6986 = vmatprep.mubr.f32.mxu0 0.0
      %6987 = vmatmul.mubr.f32.gmra.mrb[0].mxu0 %v6875
      %v6988 = vpop.f32.mrb[0].mxu0
      %v6989 = vadd.f32 0.0, %v6988
      %v6990 = vpop.f32.mrb[0].mxu0
      %6991 = vmatprep.mubr.f32.mxu0 0.0
      %6992 = vmatmul.mubr.f32.gmra.mrb[0].mxu0 %v6877
      %v6993 = vpop.f32.mrb[0].mxu0
      %v6994 = vadd.f32 0.0, %v6993
      %v6995 = vpop.f32.mrb[0].mxu0
      %6996 = vmatprep.mubr.f32.mxu0 0.0
      %6997 = vmatmul.mubr.f32.gmra.mrb[0].mxu0 %v6879
      %v6998 = vpop.f32.mrb[0].mxu0
      %v6999 = vadd.f32 0.0, %v6998
      %v7000 = vpop.f32.mrb[0].mxu0
      %7001 = vdwg.mxu0
      %v7002 = vsel %vm1791, %v6457, -inf
      %7003 = vmax.xlane.f32.xlu0 %v7002
      %v7004 = vpop.xlane.xlu0 %7003
      %v7005 = vsel %vm1791, %v6462, -inf
      %7006 = vmax.xlane.f32.xlu0 %v7005
      %v7007 = vpop.xlane.xlu0 %7006
      %v7008 = vsel %vm1791, %v6467, -inf
      %7009 = vmax.xlane.f32.xlu0 %v7008
      %v7010 = vpop.xlane.xlu0 %7009
      %v7011 = vsel %vm1791, %v6472, -inf
      %7012 = vmax.xlane.f32.xlu0 %v7011
      %v7013 = vpop.xlane.xlu0 %7012
      %v7014 = vsel %vm1791, %v6477, -inf
      %7015 = vmax.xlane.f32.xlu0 %v7014
      %v7016 = vpop.xlane.xlu0 %7015
      %v7017 = vsel %vm1791, %v6482, -inf
      %7018 = vmax.xlane.f32.xlu0 %v7017
      %v7019 = vpop.xlane.xlu0 %7018
      %v7020 = vsel %vm1791, %v6487, -inf
      %7021 = vmax.xlane.f32.xlu0 %v7020
      %v7022 = vpop.xlane.xlu0 %7021
      %v7023 = vsel %vm1791, %v6492, -inf
      %7024 = vmax.xlane.f32.xlu0 %v7023
      %v7025 = vpop.xlane.xlu0 %7024
      %v7026 = vsel %vm1791, %v6626, -inf
      %7027 = vmax.xlane.f32.xlu0 %v7026
      %v7028 = vpop.xlane.xlu0 %7027
      %v7029 = vsel %vm1791, %v6631, -inf
      %7030 = vmax.xlane.f32.xlu0 %v7029
      %v7031 = vpop.xlane.xlu0 %7030
      %v7032 = vsel %vm1791, %v6636, -inf
      %7033 = vmax.xlane.f32.xlu0 %v7032
      %v7034 = vpop.xlane.xlu0 %7033
      %v7035 = vsel %vm1791, %v6641, -inf
      %7036 = vmax.xlane.f32.xlu0 %v7035
      %v7037 = vpop.xlane.xlu0 %7036
      %v7038 = vsel %vm1791, %v6646, -inf
      %7039 = vmax.xlane.f32.xlu0 %v7038
      %v7040 = vpop.xlane.xlu0 %7039
      %v7041 = vsel %vm1791, %v6651, -inf
      %7042 = vmax.xlane.f32.xlu0 %v7041
      %v7043 = vpop.xlane.xlu0 %7042
      %v7044 = vsel %vm1791, %v6656, -inf
      %7045 = vmax.xlane.f32.xlu0 %v7044
      %v7046 = vpop.xlane.xlu0 %7045
      %v7047 = vsel %vm1791, %v6661, -inf
      %7048 = vmax.xlane.f32.xlu0 %v7047
      %v7049 = vpop.xlane.xlu0 %7048
      %v7050 = vsel %vm1791, %v6795, -inf
      %7051 = vmax.xlane.f32.xlu0 %v7050
      %v7052 = vpop.xlane.xlu0 %7051
      %v7053 = vsel %vm1791, %v6800, -inf
      %7054 = vmax.xlane.f32.xlu0 %v7053
      %v7055 = vpop.xlane.xlu0 %7054
      %v7056 = vsel %vm1791, %v6805, -inf
      %7057 = vmax.xlane.f32.xlu0 %v7056
      %v7058 = vpop.xlane.xlu0 %7057
      %v7059 = vsel %vm1791, %v6810, -inf
      %7060 = vmax.xlane.f32.xlu0 %v7059
      %v7061 = vpop.xlane.xlu0 %7060
      %v7062 = vsel %vm1791, %v6815, -inf
      %7063 = vmax.xlane.f32.xlu0 %v7062
      %v7064 = vpop.xlane.xlu0 %7063
      %v7065 = vsel %vm1791, %v6820, -inf
      %7066 = vmax.xlane.f32.xlu0 %v7065
      %v7067 = vpop.xlane.xlu0 %7066
      %v7068 = vsel %vm1791, %v6825, -inf
      %7069 = vmax.xlane.f32.xlu0 %v7068
      %v7070 = vpop.xlane.xlu0 %7069
      %v7071 = vsel %vm1791, %v6830, -inf
      %7072 = vmax.xlane.f32.xlu0 %v7071
      %v7073 = vpop.xlane.xlu0 %7072
      %v7074 = vsel %vm1791, %v6964, -inf
      %7075 = vmax.xlane.f32.xlu0 %v7074
      %v7076 = vpop.xlane.xlu0 %7075
      %v7077 = vsel %vm1791, %v6969, -inf
      %7078 = vmax.xlane.f32.xlu0 %v7077
      %v7079 = vpop.xlane.xlu0 %7078
      %v7080 = vsel %vm1791, %v6974, -inf
      %7081 = vmax.xlane.f32.xlu0 %v7080
      %v7082 = vpop.xlane.xlu0 %7081
      %v7083 = vsel %vm1791, %v6979, -inf
      %7084 = vmax.xlane.f32.xlu0 %v7083
      %v7085 = vpop.xlane.xlu0 %7084
      %v7086 = vsel %vm1791, %v6984, -inf
      %7087 = vmax.xlane.f32.xlu0 %v7086
      %v7088 = vpop.xlane.xlu0 %7087
      %v7089 = vsel %vm1791, %v6989, -inf
      %7090 = vmax.xlane.f32.xlu0 %v7089
      %v7091 = vpop.xlane.xlu0 %7090
      %v7092 = vsel %vm1791, %v6994, -inf
      %7093 = vmax.xlane.f32.xlu0 %v7092
      %v7094 = vpop.xlane.xlu0 %7093
      %v7095 = vsel %vm1791, %v6999, -inf
      %7096 = vmax.xlane.f32.xlu0 %v7095
      %v7097 = vpop.xlane.xlu0 %7096
      %v7098 = vsub.f32 %v6457, %v7004
      %v7099 = vsub.f32 %v6462, %v7007
      %v7100 = vsub.f32 %v6467, %v7010
      %v7101 = vsub.f32 %v6472, %v7013
      %v7102 = vsub.f32 %v6477, %v7016
      %v7103 = vsub.f32 %v6482, %v7019
      %v7104 = vsub.f32 %v6487, %v7022
      %v7105 = vsub.f32 %v6492, %v7025
      %v7106 = vsub.f32 %v6626, %v7028
      %v7107 = vsub.f32 %v6631, %v7031
      %v7108 = vsub.f32 %v6636, %v7034
      %v7109 = vsub.f32 %v6641, %v7037
      %v7110 = vsub.f32 %v6646, %v7040
      %v7111 = vsub.f32 %v6651, %v7043
      %v7112 = vsub.f32 %v6656, %v7046
      %v7113 = vsub.f32 %v6661, %v7049
      %v7114 = vsub.f32 %v6795, %v7052
      %v7115 = vsub.f32 %v6800, %v7055
      %v7116 = vsub.f32 %v6805, %v7058
      %v7117 = vsub.f32 %v6810, %v7061
      %v7118 = vsub.f32 %v6815, %v7064
      %v7119 = vsub.f32 %v6820, %v7067
      %v7120 = vsub.f32 %v6825, %v7070
      %v7121 = vsub.f32 %v6830, %v7073
      %v7122 = vsub.f32 %v6964, %v7076
      %v7123 = vsub.f32 %v6969, %v7079
      %v7124 = vsub.f32 %v6974, %v7082
      %v7125 = vsub.f32 %v6979, %v7085
      %v7126 = vsub.f32 %v6984, %v7088
      %v7127 = vsub.f32 %v6989, %v7091
      %v7128 = vsub.f32 %v6994, %v7094
      %v7129 = vsub.f32 %v6999, %v7097
      %v7130 = vmul.f32 %v7098, 1.442695
      %v7131 = vpow.pop %v7130
      %v7132 = vmul.f32 %v7099, 1.442695
      %v7133 = vpow.pop %v7132
      %v7134 = vmul.f32 %v7100, 1.442695
      %v7135 = vpow.pop %v7134
      %v7136 = vmul.f32 %v7101, 1.442695
      %v7137 = vpow.pop %v7136
      %v7138 = vmul.f32 %v7102, 1.442695
      %v7139 = vpow.pop %v7138
      %v7140 = vmul.f32 %v7103, 1.442695
      %v7141 = vpow.pop %v7140
      %v7142 = vmul.f32 %v7104, 1.442695
      %v7143 = vpow.pop %v7142
      %v7144 = vmul.f32 %v7105, 1.442695
      %v7145 = vpow.pop %v7144
      %v7146 = vmul.f32 %v7106, 1.442695
      %v7147 = vpow.pop %v7146
      %v7148 = vmul.f32 %v7107, 1.442695
      %v7149 = vpow.pop %v7148
      %v7150 = vmul.f32 %v7108, 1.442695
      %v7151 = vpow.pop %v7150
      %v7152 = vmul.f32 %v7109, 1.442695
      %v7153 = vpow.pop %v7152
      %v7154 = vmul.f32 %v7110, 1.442695
      %v7155 = vpow.pop %v7154
      %v7156 = vmul.f32 %v7111, 1.442695
      %v7157 = vpow.pop %v7156
      %v7158 = vmul.f32 %v7112, 1.442695
      %v7159 = vpow.pop %v7158
      %v7160 = vmul.f32 %v7113, 1.442695
      %v7161 = vpow.pop %v7160
      %v7162 = vmul.f32 %v7114, 1.442695
      %v7163 = vpow.pop %v7162
      %v7164 = vmul.f32 %v7115, 1.442695
      %v7165 = vpow.pop %v7164
      %v7166 = vmul.f32 %v7116, 1.442695
      %v7167 = vpow.pop %v7166
      %v7168 = vmul.f32 %v7117, 1.442695
      %v7169 = vpow.pop %v7168
      %v7170 = vmul.f32 %v7118, 1.442695
      %v7171 = vpow.pop %v7170
      %v7172 = vmul.f32 %v7119, 1.442695
      %v7173 = vpow.pop %v7172
      %v7174 = vmul.f32 %v7120, 1.442695
      %v7175 = vpow.pop %v7174
      %v7176 = vmul.f32 %v7121, 1.442695
      %v7177 = vpow.pop %v7176
      %v7178 = vmul.f32 %v7122, 1.442695
      %v7179 = vpow.pop %v7178
      %v7180 = vmul.f32 %v7123, 1.442695
      %v7181 = vpow.pop %v7180
      %v7182 = vmul.f32 %v7124, 1.442695
      %v7183 = vpow.pop %v7182
      %v7184 = vmul.f32 %v7125, 1.442695
      %v7185 = vpow.pop %v7184
      %v7186 = vmul.f32 %v7126, 1.442695
      %v7187 = vpow.pop %v7186
      %v7188 = vmul.f32 %v7127, 1.442695
      %v7189 = vpow.pop %v7188
      %v7190 = vmul.f32 %v7128, 1.442695
      %v7191 = vpow.pop %v7190
      %v7192 = vmul.f32 %v7129, 1.442695
      %v7193 = vpow.pop %v7192
      %v7194 = vsel %vm1791, %v7131, 0.0
      %7195 = vadd.xlane.f32.xlu0 %v7194
      %v7196 = vpop.xlane.xlu0 %7195
      %v7197 = vsel %vm1791, %v7133, 0.0
      %7198 = vadd.xlane.f32.xlu0 %v7197
      %v7199 = vpop.xlane.xlu0 %7198
      %v7200 = vsel %vm1791, %v7135, 0.0
      %7201 = vadd.xlane.f32.xlu0 %v7200
      %v7202 = vpop.xlane.xlu0 %7201
      %v7203 = vsel %vm1791, %v7137, 0.0
      %7204 = vadd.xlane.f32.xlu0 %v7203
      %v7205 = vpop.xlane.xlu0 %7204
      %v7206 = vsel %vm1791, %v7139, 0.0
      %7207 = vadd.xlane.f32.xlu0 %v7206
      %v7208 = vpop.xlane.xlu0 %7207
      %v7209 = vsel %vm1791, %v7141, 0.0
      %7210 = vadd.xlane.f32.xlu0 %v7209
      %v7211 = vpop.xlane.xlu0 %7210
      %v7212 = vsel %vm1791, %v7143, 0.0
      %7213 = vadd.xlane.f32.xlu0 %v7212
      %v7214 = vpop.xlane.xlu0 %7213
      %v7215 = vsel %vm1791, %v7145, 0.0
      %7216 = vadd.xlane.f32.xlu0 %v7215
      %v7217 = vpop.xlane.xlu0 %7216
      %v7218 = vsel %vm1791, %v7147, 0.0
      %7219 = vadd.xlane.f32.xlu0 %v7218
      %v7220 = vpop.xlane.xlu0 %7219
      %v7221 = vsel %vm1791, %v7149, 0.0
      %7222 = vadd.xlane.f32.xlu0 %v7221
      %v7223 = vpop.xlane.xlu0 %7222
      %v7224 = vsel %vm1791, %v7151, 0.0
      %7225 = vadd.xlane.f32.xlu0 %v7224
      %v7226 = vpop.xlane.xlu0 %7225
      %v7227 = vsel %vm1791, %v7153, 0.0
      %7228 = vadd.xlane.f32.xlu0 %v7227
      %v7229 = vpop.xlane.xlu0 %7228
      %v7230 = vsel %vm1791, %v7155, 0.0
      %7231 = vadd.xlane.f32.xlu0 %v7230
      %v7232 = vpop.xlane.xlu0 %7231
      %v7233 = vsel %vm1791, %v7157, 0.0
      %7234 = vadd.xlane.f32.xlu0 %v7233
      %v7235 = vpop.xlane.xlu0 %7234
      %v7236 = vsel %vm1791, %v7159, 0.0
      %7237 = vadd.xlane.f32.xlu0 %v7236
      %v7238 = vpop.xlane.xlu0 %7237
      %v7239 = vsel %vm1791, %v7161, 0.0
      %7240 = vadd.xlane.f32.xlu0 %v7239
      %v7241 = vpop.xlane.xlu0 %7240
      %v7242 = vsel %vm1791, %v7163, 0.0
      %7243 = vadd.xlane.f32.xlu0 %v7242
      %v7244 = vpop.xlane.xlu0 %7243
      %v7245 = vsel %vm1791, %v7165, 0.0
      %7246 = vadd.xlane.f32.xlu0 %v7245
      %v7247 = vpop.xlane.xlu0 %7246
      %v7248 = vsel %vm1791, %v7167, 0.0
      %7249 = vadd.xlane.f32.xlu0 %v7248
      %v7250 = vpop.xlane.xlu0 %7249
      %v7251 = vsel %vm1791, %v7169, 0.0
      %7252 = vadd.xlane.f32.xlu0 %v7251
      %v7253 = vpop.xlane.xlu0 %7252
      %v7254 = vsel %vm1791, %v7171, 0.0
      %7255 = vadd.xlane.f32.xlu0 %v7254
      %v7256 = vpop.xlane.xlu0 %7255
      %v7257 = vsel %vm1791, %v7173, 0.0
      %7258 = vadd.xlane.f32.xlu0 %v7257
      %v7259 = vpop.xlane.xlu0 %7258
      %v7260 = vsel %vm1791, %v7175, 0.0
      %7261 = vadd.xlane.f32.xlu0 %v7260
      %v7262 = vpop.xlane.xlu0 %7261
      %v7263 = vsel %vm1791, %v7177, 0.0
      %7264 = vadd.xlane.f32.xlu0 %v7263
      %v7265 = vpop.xlane.xlu0 %7264
      %v7266 = vsel %vm1791, %v7179, 0.0
      %7267 = vadd.xlane.f32.xlu0 %v7266
      %v7268 = vpop.xlane.xlu0 %7267
      %v7269 = vsel %vm1791, %v7181, 0.0
      %7270 = vadd.xlane.f32.xlu0 %v7269
      %v7271 = vpop.xlane.xlu0 %7270
      %v7272 = vsel %vm1791, %v7183, 0.0
      %7273 = vadd.xlane.f32.xlu0 %v7272
      %v7274 = vpop.xlane.xlu0 %7273
      %v7275 = vsel %vm1791, %v7185, 0.0
      %7276 = vadd.xlane.f32.xlu0 %v7275
      %v7277 = vpop.xlane.xlu0 %7276
      %v7278 = vsel %vm1791, %v7187, 0.0
      %7279 = vadd.xlane.f32.xlu0 %v7278
      %v7280 = vpop.xlane.xlu0 %7279
      %v7281 = vsel %vm1791, %v7189, 0.0
      %7282 = vadd.xlane.f32.xlu0 %v7281
      %v7283 = vpop.xlane.xlu0 %7282
      %v7284 = vsel %vm1791, %v7191, 0.0
      %7285 = vadd.xlane.f32.xlu0 %v7284
      %v7286 = vpop.xlane.xlu0 %7285
      %v7287 = vsel %vm1791, %v7193, 0.0
      %7288 = vadd.xlane.f32.xlu0 %v7287
      %v7289 = vpop.xlane.xlu0 %7288
      %v7290 = vrcp.pop %v7196
      %v7291 = vrcp.pop %v7199
      %v7292 = vrcp.pop %v7202
      %v7293 = vrcp.pop %v7205
      %v7294 = vrcp.pop %v7208
      %v7295 = vrcp.pop %v7211
      %v7296 = vrcp.pop %v7214
      %v7297 = vrcp.pop %v7217
      %v7298 = vrcp.pop %v7220
      %v7299 = vrcp.pop %v7223
      %v7300 = vrcp.pop %v7226
      %v7301 = vrcp.pop %v7229
      %v7302 = vrcp.pop %v7232
      %v7303 = vrcp.pop %v7235
      %v7304 = vrcp.pop %v7238
      %v7305 = vrcp.pop %v7241
      %v7306 = vrcp.pop %v7244
      %v7307 = vrcp.pop %v7247
      %v7308 = vrcp.pop %v7250
      %v7309 = vrcp.pop %v7253
      %v7310 = vrcp.pop %v7256
      %v7311 = vrcp.pop %v7259
      %v7312 = vrcp.pop %v7262
      %v7313 = vrcp.pop %v7265
      %v7314 = vrcp.pop %v7268
      %v7315 = vrcp.pop %v7271
      %v7316 = vrcp.pop %v7274
      %v7317 = vrcp.pop %v7277
      %v7318 = vrcp.pop %v7280
      %v7319 = vrcp.pop %v7283
      %v7320 = vrcp.pop %v7286
      %v7321 = vrcp.pop %v7289
      %v7322 = vmul.f32 %v7131, %v7290
      %v7323 = vmul.f32 %v7133, %v7291
      %v7324 = vmul.f32 %v7135, %v7292
      %v7325 = vmul.f32 %v7137, %v7293
      %v7326 = vmul.f32 %v7139, %v7294
      %v7327 = vmul.f32 %v7141, %v7295
      %v7328 = vmul.f32 %v7143, %v7296
      %v7329 = vmul.f32 %v7145, %v7297
      %v7330 = vmul.f32 %v7147, %v7298
      %v7331 = vmul.f32 %v7149, %v7299
      %v7332 = vmul.f32 %v7151, %v7300
      %v7333 = vmul.f32 %v7153, %v7301
      %v7334 = vmul.f32 %v7155, %v7302
      %v7335 = vmul.f32 %v7157, %v7303
      %v7336 = vmul.f32 %v7159, %v7304
      %v7337 = vmul.f32 %v7161, %v7305
      %v7338 = vmul.f32 %v7163, %v7306
      %v7339 = vmul.f32 %v7165, %v7307
      %v7340 = vmul.f32 %v7167, %v7308
      %v7341 = vmul.f32 %v7169, %v7309
      %v7342 = vmul.f32 %v7171, %v7310
      %v7343 = vmul.f32 %v7173, %v7311
      %v7344 = vmul.f32 %v7175, %v7312
      %v7345 = vmul.f32 %v7177, %v7313
      %v7346 = vmul.f32 %v7179, %v7314
      %v7347 = vmul.f32 %v7181, %v7315
      %v7348 = vmul.f32 %v7183, %v7316
      %v7349 = vmul.f32 %v7185, %v7317
      %v7350 = vmul.f32 %v7187, %v7318
      %v7351 = vmul.f32 %v7189, %v7319
      %v7352 = vmul.f32 %v7191, %v7320
      %v7353 = vmul.f32 %v7193, %v7321
      %7354 = vrot.lane.b32.xlu0 %v1020, 104
      %v7355 = vpop.permute.xlu0 %7354
      %7356 = vrot.lane.b32.xlu0 %v1025, 104
      %v7357 = vpop.permute.xlu0 %7356
      %7358 = vrot.lane.b32.xlu0 %v1030, 104
      %v7359 = vpop.permute.xlu0 %7358
      %7360 = vrot.lane.b32.xlu0 %v1035, 104
      %v7361 = vpop.permute.xlu0 %7360
      %7362 = vrot.lane.b32.xlu0 %v1040, 104
      %v7363 = vpop.permute.xlu0 %7362
      %7364 = vrot.lane.b32.xlu0 %v1045, 104
      %v7365 = vpop.permute.xlu0 %7364
      %7366 = vrot.lane.b32.xlu0 %v1050, 104
      %v7367 = vpop.permute.xlu0 %7366
      %7368 = vrot.lane.b32.xlu0 %v1055, 104
      %v7369 = vpop.permute.xlu0 %7368
      %v7379 = vsel %vm1791, %v7322, 0
      %v7382 = vsel %vm1791, %v7323, 0
      %v7385 = vsel %vm1791, %v7324, 0
      %v7388 = vsel %vm1791, %v7325, 0
      %v7391 = vsel %vm1791, %v7326, 0
      %v7394 = vsel %vm1791, %v7327, 0
      %v7397 = vsel %vm1791, %v7328, 0
      %v7400 = vsel %vm1791, %v7329, 0
      %7402 = vmatprep.subr.mxu0 0.0
      %7403 = vmatpush1.msra.mxu0 %v7355
      %7404 = vmatprep.subr.mxu0 0.0
      %7405 = vmatpush1.msra.mxu0 %v7357
      %7406 = vmatprep.subr.mxu0 0.0
      %7407 = vmatpush1.msra.mxu0 %v7359
      %7408 = vmatprep.subr.mxu0 0.0
      %7409 = vmatpush1.msra.mxu0 %v7361
      %7410 = vmatprep.subr.mxu0 0.0
      %7411 = vmatpush1.msra.mxu0 %v7363
      %7412 = vmatprep.subr.mxu0 0.0
      %7413 = vmatpush1.msra.mxu0 %v7365
      %7414 = vmatprep.subr.mxu0 0.0
      %7415 = vmatpush1.msra.mxu0 %v7367
      %7416 = vmatprep.subr.mxu0 0.0
      %7417 = vmatpush1.msra.mxu0 %v7369
      %7418 = vmatprep.subr.mxu0 0.0
      %7419 = vmatpush1.msra.mxu0 0.0
      %7420 = vmatprep.subr.mxu0 0.0
      %7421 = vmatpush1.msra.mxu0 0.0
      %7422 = vmatprep.subr.mxu0 0.0
      %7423 = vmatpush1.msra.mxu0 0.0
      %7424 = vmatprep.subr.mxu0 0.0
      %7425 = vmatpush1.msra.mxu0 0.0
      %7426 = vmatprep.subr.mxu0 0.0
      %7427 = vmatpush1.msra.mxu0 0.0
      %7428 = vmatprep.subr.mxu0 0.0
      %7429 = vmatpush1.msra.mxu0 0.0
      %7430 = vmatprep.subr.mxu0 0.0
      %7431 = vmatpush1.msra.mxu0 0.0
      %7432 = vmatprep.subr.mxu0 0.0
      %7433 = vmatpush1.msra.mxu0 0.0
      %7434 = vmatprep.subr.mxu0 0.0
      %7435 = vmatpush1.msra.mxu0 0.0
      %7436 = vmatprep.subr.mxu0 0.0
      %7437 = vmatpush1.msra.mxu0 0.0
      %7438 = vmatprep.subr.mxu0 0.0
      %7439 = vmatpush1.msra.mxu0 0.0
      %7440 = vmatprep.subr.mxu0 0.0
      %7441 = vmatpush1.msra.mxu0 0.0
      %7442 = vmatprep.subr.mxu0 0.0
      %7443 = vmatpush1.msra.mxu0 0.0
      %7444 = vmatprep.subr.mxu0 0.0
      %7445 = vmatpush1.msra.mxu0 0.0
      %7446 = vmatprep.subr.mxu0 0.0
      %7447 = vmatpush1.msra.mxu0 0.0
      %7448 = vmatprep.subr.mxu0 0.0
      %7449 = vmatpush1.msra.mxu0 0.0
      %7450 = vmatprep.subr.mxu0 0.0
      %7451 = vmatpush1.msra.mxu0 0.0
      %7452 = vmatprep.subr.mxu0 0.0
      %7453 = vmatpush1.msra.mxu0 0.0
      %7454 = vmatprep.subr.mxu0 0.0
      %7455 = vmatpush1.msra.mxu0 0.0
      %7456 = vmatprep.subr.mxu0 0.0
      %7457 = vmatpush1.msra.mxu0 0.0
      %7458 = vmatprep.subr.mxu0 0.0
      %7459 = vmatpush1.msra.mxu0 0.0
      %7460 = vmatprep.subr.mxu0 0.0
      %7461 = vmatpush1.msra.mxu0 0.0
      %7462 = vmatprep.subr.mxu0 0.0
      %7463 = vmatpush1.msra.mxu0 0.0
      %7464 = vmatprep.subr.mxu0 0.0
      %7465 = vmatpush1.msra.mxu0 0.0
      %7466 = vmatprep.mubr.f32.mxu0 0.0
      %7467 = vmatmul.mubr.f32.gmra.mrb[0].mxu0 %v7379
      %v7468 = vpop.f32.mrb[0].mxu0
      %v7469 = vadd.f32 0.0, %v7468
      %v7470 = vpop.f32.mrb[0].mxu0
      %7471 = vmatprep.mubr.f32.mxu0 0.0
      %7472 = vmatmul.mubr.f32.gmra.mrb[0].mxu0 %v7382
      %v7473 = vpop.f32.mrb[0].mxu0
      %v7474 = vadd.f32 0.0, %v7473
      %v7475 = vpop.f32.mrb[0].mxu0
      %7476 = vmatprep.mubr.f32.mxu0 0.0
      %7477 = vmatmul.mubr.f32.gmra.mrb[0].mxu0 %v7385
      %v7478 = vpop.f32.mrb[0].mxu0
      %v7479 = vadd.f32 0.0, %v7478
      %v7480 = vpop.f32.mrb[0].mxu0
      %7481 = vmatprep.mubr.f32.mxu0 0.0
      %7482 = vmatmul.mubr.f32.gmra.mrb[0].mxu0 %v7388
      %v7483 = vpop.f32.mrb[0].mxu0
      %v7484 = vadd.f32 0.0, %v7483
      %v7485 = vpop.f32.mrb[0].mxu0
      %7486 = vmatprep.mubr.f32.mxu0 0.0
      %7487 = vmatmul.mubr.f32.gmra.mrb[0].mxu0 %v7391
      %v7488 = vpop.f32.mrb[0].mxu0
      %v7489 = vadd.f32 0.0, %v7488
      %v7490 = vpop.f32.mrb[0].mxu0
      %7491 = vmatprep.mubr.f32.mxu0 0.0
      %7492 = vmatmul.mubr.f32.gmra.mrb[0].mxu0 %v7394
      %v7493 = vpop.f32.mrb[0].mxu0
      %v7494 = vadd.f32 0.0, %v7493
      %v7495 = vpop.f32.mrb[0].mxu0
      %7496 = vmatprep.mubr.f32.mxu0 0.0
      %7497 = vmatmul.mubr.f32.gmra.mrb[0].mxu0 %v7397
      %v7498 = vpop.f32.mrb[0].mxu0
      %v7499 = vadd.f32 0.0, %v7498
      %v7500 = vpop.f32.mrb[0].mxu0
      %7501 = vmatprep.mubr.f32.mxu0 0.0
      %7502 = vmatmul.mubr.f32.gmra.mrb[0].mxu0 %v7400
      %v7503 = vpop.f32.mrb[0].mxu0
      %v7504 = vadd.f32 0.0, %v7503
      %v7505 = vpop.f32.mrb[0].mxu0
      %7506 = vdwg.mxu0
      %7507 = vrot.lane.b32.xlu0 %v1060, 104
      %v7508 = vpop.permute.xlu0 %7507
      %7509 = vrot.lane.b32.xlu0 %v1065, 104
      %v7510 = vpop.permute.xlu0 %7509
      %7511 = vrot.lane.b32.xlu0 %v1070, 104
      %v7512 = vpop.permute.xlu0 %7511
      %7513 = vrot.lane.b32.xlu0 %v1075, 104
      %v7514 = vpop.permute.xlu0 %7513
      %7515 = vrot.lane.b32.xlu0 %v1080, 104
      %v7516 = vpop.permute.xlu0 %7515
      %7517 = vrot.lane.b32.xlu0 %v1085, 104
      %v7518 = vpop.permute.xlu0 %7517
      %7519 = vrot.lane.b32.xlu0 %v1090, 104
      %v7520 = vpop.permute.xlu0 %7519
      %7521 = vrot.lane.b32.xlu0 %v1095, 104
      %v7522 = vpop.permute.xlu0 %7521
      %v7532 = vsel %vm1791, %v7330, 0
      %v7535 = vsel %vm1791, %v7331, 0
      %v7538 = vsel %vm1791, %v7332, 0
      %v7541 = vsel %vm1791, %v7333, 0
      %v7544 = vsel %vm1791, %v7334, 0
      %v7547 = vsel %vm1791, %v7335, 0
      %v7550 = vsel %vm1791, %v7336, 0
      %v7553 = vsel %vm1791, %v7337, 0
      %7555 = vmatprep.subr.mxu0 0.0
      %7556 = vmatpush1.msra.mxu0 %v7508
      %7557 = vmatprep.subr.mxu0 0.0
      %7558 = vmatpush1.msra.mxu0 %v7510
      %7559 = vmatprep.subr.mxu0 0.0
      %7560 = vmatpush1.msra.mxu0 %v7512
      %7561 = vmatprep.subr.mxu0 0.0
      %7562 = vmatpush1.msra.mxu0 %v7514
      %7563 = vmatprep.subr.mxu0 0.0
      %7564 = vmatpush1.msra.mxu0 %v7516
      %7565 = vmatprep.subr.mxu0 0.0
      %7566 = vmatpush1.msra.mxu0 %v7518
      %7567 = vmatprep.subr.mxu0 0.0
      %7568 = vmatpush1.msra.mxu0 %v7520
      %7569 = vmatprep.subr.mxu0 0.0
      %7570 = vmatpush1.msra.mxu0 %v7522
      %7571 = vmatprep.subr.mxu0 0.0
      %7572 = vmatpush1.msra.mxu0 0.0
      %7573 = vmatprep.subr.mxu0 0.0
      %7574 = vmatpush1.msra.mxu0 0.0
      %7575 = vmatprep.subr.mxu0 0.0
      %7576 = vmatpush1.msra.mxu0 0.0
      %7577 = vmatprep.subr.mxu0 0.0
      %7578 = vmatpush1.msra.mxu0 0.0
      %7579 = vmatprep.subr.mxu0 0.0
      %7580 = vmatpush1.msra.mxu0 0.0
      %7581 = vmatprep.subr.mxu0 0.0
      %7582 = vmatpush1.msra.mxu0 0.0
      %7583 = vmatprep.subr.mxu0 0.0
      %7584 = vmatpush1.msra.mxu0 0.0
      %7585 = vmatprep.subr.mxu0 0.0
      %7586 = vmatpush1.msra.mxu0 0.0
      %7587 = vmatprep.subr.mxu0 0.0
      %7588 = vmatpush1.msra.mxu0 0.0
      %7589 = vmatprep.subr.mxu0 0.0
      %7590 = vmatpush1.msra.mxu0 0.0
      %7591 = vmatprep.subr.mxu0 0.0
      %7592 = vmatpush1.msra.mxu0 0.0
      %7593 = vmatprep.subr.mxu0 0.0
      %7594 = vmatpush1.msra.mxu0 0.0
      %7595 = vmatprep.subr.mxu0 0.0
      %7596 = vmatpush1.msra.mxu0 0.0
      %7597 = vmatprep.subr.mxu0 0.0
      %7598 = vmatpush1.msra.mxu0 0.0
      %7599 = vmatprep.subr.mxu0 0.0
      %7600 = vmatpush1.msra.mxu0 0.0
      %7601 = vmatprep.subr.mxu0 0.0
      %7602 = vmatpush1.msra.mxu0 0.0
      %7603 = vmatprep.subr.mxu0 0.0
      %7604 = vmatpush1.msra.mxu0 0.0
      %7605 = vmatprep.subr.mxu0 0.0
      %7606 = vmatpush1.msra.mxu0 0.0
      %7607 = vmatprep.subr.mxu0 0.0
      %7608 = vmatpush1.msra.mxu0 0.0
      %7609 = vmatprep.subr.mxu0 0.0
      %7610 = vmatpush1.msra.mxu0 0.0
      %7611 = vmatprep.subr.mxu0 0.0
      %7612 = vmatpush1.msra.mxu0 0.0
      %7613 = vmatprep.subr.mxu0 0.0
      %7614 = vmatpush1.msra.mxu0 0.0
      %7615 = vmatprep.subr.mxu0 0.0
      %7616 = vmatpush1.msra.mxu0 0.0
      %7617 = vmatprep.subr.mxu0 0.0
      %7618 = vmatpush1.msra.mxu0 0.0
      %7619 = vmatprep.mubr.f32.mxu0 0.0
      %7620 = vmatmul.mubr.f32.gmra.mrb[0].mxu0 %v7532
      %v7621 = vpop.f32.mrb[0].mxu0
      %v7622 = vadd.f32 0.0, %v7621
      %v7623 = vpop.f32.mrb[0].mxu0
      %7624 = vmatprep.mubr.f32.mxu0 0.0
      %7625 = vmatmul.mubr.f32.gmra.mrb[0].mxu0 %v7535
      %v7626 = vpop.f32.mrb[0].mxu0
      %v7627 = vadd.f32 0.0, %v7626
      %v7628 = vpop.f32.mrb[0].mxu0
      %7629 = vmatprep.mubr.f32.mxu0 0.0
      %7630 = vmatmul.mubr.f32.gmra.mrb[0].mxu0 %v7538
      %v7631 = vpop.f32.mrb[0].mxu0
      %v7632 = vadd.f32 0.0, %v7631
      %v7633 = vpop.f32.mrb[0].mxu0
      %7634 = vmatprep.mubr.f32.mxu0 0.0
      %7635 = vmatmul.mubr.f32.gmra.mrb[0].mxu0 %v7541
      %v7636 = vpop.f32.mrb[0].mxu0
      %v7637 = vadd.f32 0.0, %v7636
      %v7638 = vpop.f32.mrb[0].mxu0
      %7639 = vmatprep.mubr.f32.mxu0 0.0
      %7640 = vmatmul.mubr.f32.gmra.mrb[0].mxu0 %v7544
      %v7641 = vpop.f32.mrb[0].mxu0
      %v7642 = vadd.f32 0.0, %v7641
      %v7643 = vpop.f32.mrb[0].mxu0
      %7644 = vmatprep.mubr.f32.mxu0 0.0
      %7645 = vmatmul.mubr.f32.gmra.mrb[0].mxu0 %v7547
      %v7646 = vpop.f32.mrb[0].mxu0
      %v7647 = vadd.f32 0.0, %v7646
      %v7648 = vpop.f32.mrb[0].mxu0
      %7649 = vmatprep.mubr.f32.mxu0 0.0
      %7650 = vmatmul.mubr.f32.gmra.mrb[0].mxu0 %v7550
      %v7651 = vpop.f32.mrb[0].mxu0
      %v7652 = vadd.f32 0.0, %v7651
      %v7653 = vpop.f32.mrb[0].mxu0
      %7654 = vmatprep.mubr.f32.mxu0 0.0
      %7655 = vmatmul.mubr.f32.gmra.mrb[0].mxu0 %v7553
      %v7656 = vpop.f32.mrb[0].mxu0
      %v7657 = vadd.f32 0.0, %v7656
      %v7658 = vpop.f32.mrb[0].mxu0
      %7659 = vdwg.mxu0
      %7660 = vrot.lane.b32.xlu0 %v1100, 104
      %v7661 = vpop.permute.xlu0 %7660
      %7662 = vrot.lane.b32.xlu0 %v1105, 104
      %v7663 = vpop.permute.xlu0 %7662
      %7664 = vrot.lane.b32.xlu0 %v1110, 104
      %v7665 = vpop.permute.xlu0 %7664
      %7666 = vrot.lane.b32.xlu0 %v1115, 104
      %v7667 = vpop.permute.xlu0 %7666
      %7668 = vrot.lane.b32.xlu0 %v1120, 104
      %v7669 = vpop.permute.xlu0 %7668
      %7670 = vrot.lane.b32.xlu0 %v1125, 104
      %v7671 = vpop.permute.xlu0 %7670
      %7672 = vrot.lane.b32.xlu0 %v1130, 104
      %v7673 = vpop.permute.xlu0 %7672
      %7674 = vrot.lane.b32.xlu0 %v1135, 104
      %v7675 = vpop.permute.xlu0 %7674
      %v7685 = vsel %vm1791, %v7338, 0
      %v7688 = vsel %vm1791, %v7339, 0
      %v7691 = vsel %vm1791, %v7340, 0
      %v7694 = vsel %vm1791, %v7341, 0
      %v7697 = vsel %vm1791, %v7342, 0
      %v7700 = vsel %vm1791, %v7343, 0
      %v7703 = vsel %vm1791, %v7344, 0
      %v7706 = vsel %vm1791, %v7345, 0
      %7708 = vmatprep.subr.mxu0 0.0
      %7709 = vmatpush1.msra.mxu0 %v7661
      %7710 = vmatprep.subr.mxu0 0.0
      %7711 = vmatpush1.msra.mxu0 %v7663
      %7712 = vmatprep.subr.mxu0 0.0
      %7713 = vmatpush1.msra.mxu0 %v7665
      %7714 = vmatprep.subr.mxu0 0.0
      %7715 = vmatpush1.msra.mxu0 %v7667
      %7716 = vmatprep.subr.mxu0 0.0
      %7717 = vmatpush1.msra.mxu0 %v7669
      %7718 = vmatprep.subr.mxu0 0.0
      %7719 = vmatpush1.msra.mxu0 %v7671
      %7720 = vmatprep.subr.mxu0 0.0
      %7721 = vmatpush1.msra.mxu0 %v7673
      %7722 = vmatprep.subr.mxu0 0.0
      %7723 = vmatpush1.msra.mxu0 %v7675
      %7724 = vmatprep.subr.mxu0 0.0
      %7725 = vmatpush1.msra.mxu0 0.0
      %7726 = vmatprep.subr.mxu0 0.0
      %7727 = vmatpush1.msra.mxu0 0.0
      %7728 = vmatprep.subr.mxu0 0.0
      %7729 = vmatpush1.msra.mxu0 0.0
      %7730 = vmatprep.subr.mxu0 0.0
      %7731 = vmatpush1.msra.mxu0 0.0
      %7732 = vmatprep.subr.mxu0 0.0
      %7733 = vmatpush1.msra.mxu0 0.0
      %7734 = vmatprep.subr.mxu0 0.0
      %7735 = vmatpush1.msra.mxu0 0.0
      %7736 = vmatprep.subr.mxu0 0.0
      %7737 = vmatpush1.msra.mxu0 0.0
      %7738 = vmatprep.subr.mxu0 0.0
      %7739 = vmatpush1.msra.mxu0 0.0
      %7740 = vmatprep.subr.mxu0 0.0
      %7741 = vmatpush1.msra.mxu0 0.0
      %7742 = vmatprep.subr.mxu0 0.0
      %7743 = vmatpush1.msra.mxu0 0.0
      %7744 = vmatprep.subr.mxu0 0.0
      %7745 = vmatpush1.msra.mxu0 0.0
      %7746 = vmatprep.subr.mxu0 0.0
      %7747 = vmatpush1.msra.mxu0 0.0
      %7748 = vmatprep.subr.mxu0 0.0
      %7749 = vmatpush1.msra.mxu0 0.0
      %7750 = vmatprep.subr.mxu0 0.0
      %7751 = vmatpush1.msra.mxu0 0.0
      %7752 = vmatprep.subr.mxu0 0.0
      %7753 = vmatpush1.msra.mxu0 0.0
      %7754 = vmatprep.subr.mxu0 0.0
      %7755 = vmatpush1.msra.mxu0 0.0
      %7756 = vmatprep.subr.mxu0 0.0
      %7757 = vmatpush1.msra.mxu0 0.0
      %7758 = vmatprep.subr.mxu0 0.0
      %7759 = vmatpush1.msra.mxu0 0.0
      %7760 = vmatprep.subr.mxu0 0.0
      %7761 = vmatpush1.msra.mxu0 0.0
      %7762 = vmatprep.subr.mxu0 0.0
      %7763 = vmatpush1.msra.mxu0 0.0
      %7764 = vmatprep.subr.mxu0 0.0
      %7765 = vmatpush1.msra.mxu0 0.0
      %7766 = vmatprep.subr.mxu0 0.0
      %7767 = vmatpush1.msra.mxu0 0.0
      %7768 = vmatprep.subr.mxu0 0.0
      %7769 = vmatpush1.msra.mxu0 0.0
      %7770 = vmatprep.subr.mxu0 0.0
      %7771 = vmatpush1.msra.mxu0 0.0
      %7772 = vmatprep.mubr.f32.mxu0 0.0
      %7773 = vmatmul.mubr.f32.gmra.mrb[0].mxu0 %v7685
      %v7774 = vpop.f32.mrb[0].mxu0
      %v7775 = vadd.f32 0.0, %v7774
      %v7776 = vpop.f32.mrb[0].mxu0
      %7777 = vmatprep.mubr.f32.mxu0 0.0
      %7778 = vmatmul.mubr.f32.gmra.mrb[0].mxu0 %v7688
      %v7779 = vpop.f32.mrb[0].mxu0
      %v7780 = vadd.f32 0.0, %v7779
      %v7781 = vpop.f32.mrb[0].mxu0
      %7782 = vmatprep.mubr.f32.mxu0 0.0
      %7783 = vmatmul.mubr.f32.gmra.mrb[0].mxu0 %v7691
      %v7784 = vpop.f32.mrb[0].mxu0
      %v7785 = vadd.f32 0.0, %v7784
      %v7786 = vpop.f32.mrb[0].mxu0
      %7787 = vmatprep.mubr.f32.mxu0 0.0
      %7788 = vmatmul.mubr.f32.gmra.mrb[0].mxu0 %v7694
      %v7789 = vpop.f32.mrb[0].mxu0
      %v7790 = vadd.f32 0.0, %v7789
      %v7791 = vpop.f32.mrb[0].mxu0
      %7792 = vmatprep.mubr.f32.mxu0 0.0
      %7793 = vmatmul.mubr.f32.gmra.mrb[0].mxu0 %v7697
      %v7794 = vpop.f32.mrb[0].mxu0
      %v7795 = vadd.f32 0.0, %v7794
      %v7796 = vpop.f32.mrb[0].mxu0
      %7797 = vmatprep.mubr.f32.mxu0 0.0
      %7798 = vmatmul.mubr.f32.gmra.mrb[0].mxu0 %v7700
      %v7799 = vpop.f32.mrb[0].mxu0
      %v7800 = vadd.f32 0.0, %v7799
      %v7801 = vpop.f32.mrb[0].mxu0
      %7802 = vmatprep.mubr.f32.mxu0 0.0
      %7803 = vmatmul.mubr.f32.gmra.mrb[0].mxu0 %v7703
      %v7804 = vpop.f32.mrb[0].mxu0
      %v7805 = vadd.f32 0.0, %v7804
      %v7806 = vpop.f32.mrb[0].mxu0
      %7807 = vmatprep.mubr.f32.mxu0 0.0
      %7808 = vmatmul.mubr.f32.gmra.mrb[0].mxu0 %v7706
      %v7809 = vpop.f32.mrb[0].mxu0
      %v7810 = vadd.f32 0.0, %v7809
      %v7811 = vpop.f32.mrb[0].mxu0
      %7812 = vdwg.mxu0
      %7813 = vrot.lane.b32.xlu0 %v1140, 104
      %v7814 = vpop.permute.xlu0 %7813
      %7815 = vrot.lane.b32.xlu0 %v1145, 104
      %v7816 = vpop.permute.xlu0 %7815
      %7817 = vrot.lane.b32.xlu0 %v1150, 104
      %v7818 = vpop.permute.xlu0 %7817
      %7819 = vrot.lane.b32.xlu0 %v1155, 104
      %v7820 = vpop.permute.xlu0 %7819
      %7821 = vrot.lane.b32.xlu0 %v1160, 104
      %v7822 = vpop.permute.xlu0 %7821
      %7823 = vrot.lane.b32.xlu0 %v1165, 104
      %v7824 = vpop.permute.xlu0 %7823
      %7825 = vrot.lane.b32.xlu0 %v1170, 104
      %v7826 = vpop.permute.xlu0 %7825
      %7827 = vrot.lane.b32.xlu0 %v1175, 104
      %v7828 = vpop.permute.xlu0 %7827
      %v7838 = vsel %vm1791, %v7346, 0
      %v7841 = vsel %vm1791, %v7347, 0
      %v7844 = vsel %vm1791, %v7348, 0
      %v7847 = vsel %vm1791, %v7349, 0
      %v7850 = vsel %vm1791, %v7350, 0
      %v7853 = vsel %vm1791, %v7351, 0
      %v7856 = vsel %vm1791, %v7352, 0
      %v7859 = vsel %vm1791, %v7353, 0
      %7861 = vmatprep.subr.mxu0 0.0
      %7862 = vmatpush1.msra.mxu0 %v7814
      %7863 = vmatprep.subr.mxu0 0.0
      %7864 = vmatpush1.msra.mxu0 %v7816
      %7865 = vmatprep.subr.mxu0 0.0
      %7866 = vmatpush1.msra.mxu0 %v7818
      %7867 = vmatprep.subr.mxu0 0.0
      %7868 = vmatpush1.msra.mxu0 %v7820
      %7869 = vmatprep.subr.mxu0 0.0
      %7870 = vmatpush1.msra.mxu0 %v7822
      %7871 = vmatprep.subr.mxu0 0.0
      %7872 = vmatpush1.msra.mxu0 %v7824
      %7873 = vmatprep.subr.mxu0 0.0
      %7874 = vmatpush1.msra.mxu0 %v7826
      %7875 = vmatprep.subr.mxu0 0.0
      %7876 = vmatpush1.msra.mxu0 %v7828
      %7877 = vmatprep.subr.mxu0 0.0
      %7878 = vmatpush1.msra.mxu0 0.0
      %7879 = vmatprep.subr.mxu0 0.0
      %7880 = vmatpush1.msra.mxu0 0.0
      %7881 = vmatprep.subr.mxu0 0.0
      %7882 = vmatpush1.msra.mxu0 0.0
      %7883 = vmatprep.subr.mxu0 0.0
      %7884 = vmatpush1.msra.mxu0 0.0
      %7885 = vmatprep.subr.mxu0 0.0
      %7886 = vmatpush1.msra.mxu0 0.0
      %7887 = vmatprep.subr.mxu0 0.0
      %7888 = vmatpush1.msra.mxu0 0.0
      %7889 = vmatprep.subr.mxu0 0.0
      %7890 = vmatpush1.msra.mxu0 0.0
      %7891 = vmatprep.subr.mxu0 0.0
      %7892 = vmatpush1.msra.mxu0 0.0
      %7893 = vmatprep.subr.mxu0 0.0
      %7894 = vmatpush1.msra.mxu0 0.0
      %7895 = vmatprep.subr.mxu0 0.0
      %7896 = vmatpush1.msra.mxu0 0.0
      %7897 = vmatprep.subr.mxu0 0.0
      %7898 = vmatpush1.msra.mxu0 0.0
      %7899 = vmatprep.subr.mxu0 0.0
      %7900 = vmatpush1.msra.mxu0 0.0
      %7901 = vmatprep.subr.mxu0 0.0
      %7902 = vmatpush1.msra.mxu0 0.0
      %7903 = vmatprep.subr.mxu0 0.0
      %7904 = vmatpush1.msra.mxu0 0.0
      %7905 = vmatprep.subr.mxu0 0.0
      %7906 = vmatpush1.msra.mxu0 0.0
      %7907 = vmatprep.subr.mxu0 0.0
      %7908 = vmatpush1.msra.mxu0 0.0
      %7909 = vmatprep.subr.mxu0 0.0
      %7910 = vmatpush1.msra.mxu0 0.0
      %7911 = vmatprep.subr.mxu0 0.0
      %7912 = vmatpush1.msra.mxu0 0.0
      %7913 = vmatprep.subr.mxu0 0.0
      %7914 = vmatpush1.msra.mxu0 0.0
      %7915 = vmatprep.subr.mxu0 0.0
      %7916 = vmatpush1.msra.mxu0 0.0
      %7917 = vmatprep.subr.mxu0 0.0
      %7918 = vmatpush1.msra.mxu0 0.0
      %7919 = vmatprep.subr.mxu0 0.0
      %7920 = vmatpush1.msra.mxu0 0.0
      %7921 = vmatprep.subr.mxu0 0.0
      %7922 = vmatpush1.msra.mxu0 0.0
      %7923 = vmatprep.subr.mxu0 0.0
      %7924 = vmatpush1.msra.mxu0 0.0
      %7925 = vmatprep.mubr.f32.mxu0 0.0
      %7926 = vmatmul.mubr.f32.gmra.mrb[0].mxu0 %v7838
      %v7927 = vpop.f32.mrb[0].mxu0
      %v7928 = vadd.f32 0.0, %v7927
      %v7929 = vpop.f32.mrb[0].mxu0
      %7930 = vmatprep.mubr.f32.mxu0 0.0
      %7931 = vmatmul.mubr.f32.gmra.mrb[0].mxu0 %v7841
      %v7932 = vpop.f32.mrb[0].mxu0
      %v7933 = vadd.f32 0.0, %v7932
      %v7934 = vpop.f32.mrb[0].mxu0
      %7935 = vmatprep.mubr.f32.mxu0 0.0
      %7936 = vmatmul.mubr.f32.gmra.mrb[0].mxu0 %v7844
      %v7937 = vpop.f32.mrb[0].mxu0
      %v7938 = vadd.f32 0.0, %v7937
      %v7939 = vpop.f32.mrb[0].mxu0
      %7940 = vmatprep.mubr.f32.mxu0 0.0
      %7941 = vmatmul.mubr.f32.gmra.mrb[0].mxu0 %v7847
      %v7942 = vpop.f32.mrb[0].mxu0
      %v7943 = vadd.f32 0.0, %v7942
      %v7944 = vpop.f32.mrb[0].mxu0
      %7945 = vmatprep.mubr.f32.mxu0 0.0
      %7946 = vmatmul.mubr.f32.gmra.mrb[0].mxu0 %v7850
      %v7947 = vpop.f32.mrb[0].mxu0
      %v7948 = vadd.f32 0.0, %v7947
      %v7949 = vpop.f32.mrb[0].mxu0
      %7950 = vmatprep.mubr.f32.mxu0 0.0
      %7951 = vmatmul.mubr.f32.gmra.mrb[0].mxu0 %v7853
      %v7952 = vpop.f32.mrb[0].mxu0
      %v7953 = vadd.f32 0.0, %v7952
      %v7954 = vpop.f32.mrb[0].mxu0
      %7955 = vmatprep.mubr.f32.mxu0 0.0
      %7956 = vmatmul.mubr.f32.gmra.mrb[0].mxu0 %v7856
      %v7957 = vpop.f32.mrb[0].mxu0
      %v7958 = vadd.f32 0.0, %v7957
      %v7959 = vpop.f32.mrb[0].mxu0
      %7960 = vmatprep.mubr.f32.mxu0 0.0
      %7961 = vmatmul.mubr.f32.gmra.mrb[0].mxu0 %v7859
      %v7962 = vpop.f32.mrb[0].mxu0
      %v7963 = vadd.f32 0.0, %v7962
      %v7964 = vpop.f32.mrb[0].mxu0
      %7965 = vdwg.mxu0
      %7998 = vrot.lane.b32.xlu0 %v7469, 24
      %v7999 = vpop.permute.xlu0 %7998
      %8000 = vrot.lane.b32.xlu0 %v7474, 24
      %v8001 = vpop.permute.xlu0 %8000
      %8002 = vrot.lane.b32.xlu0 %v7479, 24
      %v8003 = vpop.permute.xlu0 %8002
      %8004 = vrot.lane.b32.xlu0 %v7484, 24
      %v8005 = vpop.permute.xlu0 %8004
      %8006 = vrot.lane.b32.xlu0 %v7489, 24
      %v8007 = vpop.permute.xlu0 %8006
      %8008 = vrot.lane.b32.xlu0 %v7494, 24
      %v8009 = vpop.permute.xlu0 %8008
      %8010 = vrot.lane.b32.xlu0 %v7499, 24
      %v8011 = vpop.permute.xlu0 %8010
      %8012 = vrot.lane.b32.xlu0 %v7504, 24
      %v8013 = vpop.permute.xlu0 %8012
      %8014 = vrot.lane.b32.xlu0 %v7622, 24
      %v8015 = vpop.permute.xlu0 %8014
      %8016 = vrot.lane.b32.xlu0 %v7627, 24
      %v8017 = vpop.permute.xlu0 %8016
      %8018 = vrot.lane.b32.xlu0 %v7632, 24
      %v8019 = vpop.permute.xlu0 %8018
      %8020 = vrot.lane.b32.xlu0 %v7637, 24
      %v8021 = vpop.permute.xlu0 %8020
      %8022 = vrot.lane.b32.xlu0 %v7642, 24
      %v8023 = vpop.permute.xlu0 %8022
      %8024 = vrot.lane.b32.xlu0 %v7647, 24
      %v8025 = vpop.permute.xlu0 %8024
      %8026 = vrot.lane.b32.xlu0 %v7652, 24
      %v8027 = vpop.permute.xlu0 %8026
      %8028 = vrot.lane.b32.xlu0 %v7657, 24
      %v8029 = vpop.permute.xlu0 %8028
      %8030 = vrot.lane.b32.xlu0 %v7775, 24
      %v8031 = vpop.permute.xlu0 %8030
      %8032 = vrot.lane.b32.xlu0 %v7780, 24
      %v8033 = vpop.permute.xlu0 %8032
      %8034 = vrot.lane.b32.xlu0 %v7785, 24
      %v8035 = vpop.permute.xlu0 %8034
      %8036 = vrot.lane.b32.xlu0 %v7790, 24
      %v8037 = vpop.permute.xlu0 %8036
      %8038 = vrot.lane.b32.xlu0 %v7795, 24
      %v8039 = vpop.permute.xlu0 %8038
      %8040 = vrot.lane.b32.xlu0 %v7800, 24
      %v8041 = vpop.permute.xlu0 %8040
      %8042 = vrot.lane.b32.xlu0 %v7805, 24
      %v8043 = vpop.permute.xlu0 %8042
      %8044 = vrot.lane.b32.xlu0 %v7810, 24
      %v8045 = vpop.permute.xlu0 %8044
      %8046 = vrot.lane.b32.xlu0 %v7928, 24
      %v8047 = vpop.permute.xlu0 %8046
      %8048 = vrot.lane.b32.xlu0 %v7933, 24
      %v8049 = vpop.permute.xlu0 %8048
      %8050 = vrot.lane.b32.xlu0 %v7938, 24
      %v8051 = vpop.permute.xlu0 %8050
      %8052 = vrot.lane.b32.xlu0 %v7943, 24
      %v8053 = vpop.permute.xlu0 %8052
      %8054 = vrot.lane.b32.xlu0 %v7948, 24
      %v8055 = vpop.permute.xlu0 %8054
      %8056 = vrot.lane.b32.xlu0 %v7953, 24
      %v8057 = vpop.permute.xlu0 %8056
      %8058 = vrot.lane.b32.xlu0 %v7958, 24
      %v8059 = vpop.permute.xlu0 %8058
      %8060 = vrot.lane.b32.xlu0 %v7963, 24
      %v8061 = vpop.permute.xlu0 %8060
      %vm8094 = vcmask 261312
      %8095 = vst.msk [vmem:[#allocation2] sm:$0xff] %vm8094, %v7999
      %8096 = vst.msk [vmem:[#allocation2 + $0x8] sm:$0xff] %vm8094, %v8001
      %8097 = vst.msk [vmem:[#allocation2 + $0x10] sm:$0xff] %vm8094, %v8003
      %8098 = vst.msk [vmem:[#allocation2 + $0x18] sm:$0xff] %vm8094, %v8005
      %8099 = vst.msk [vmem:[#allocation2 + $0x20] sm:$0xff] %vm8094, %v8007
      %8100 = vst.msk [vmem:[#allocation2 + $0x28] sm:$0xff] %vm8094, %v8009
      %8101 = vst.msk [vmem:[#allocation2 + $0x30] sm:$0xff] %vm8094, %v8011
      %8102 = vst.msk [vmem:[#allocation2 + $0x38] sm:$0xff] %vm8094, %v8013
      %8103 = vst.msk [vmem:[#allocation2 + $0x40] sm:$0xff] %vm8094, %v8015
      %8104 = vst.msk [vmem:[#allocation2 + $0x48] sm:$0xff] %vm8094, %v8017
      %8105 = vst.msk [vmem:[#allocation2 + $0x50] sm:$0xff] %vm8094, %v8019
      %8106 = vst.msk [vmem:[#allocation2 + $0x58] sm:$0xff] %vm8094, %v8021
      %8107 = vst.msk [vmem:[#allocation2 + $0x60] sm:$0xff] %vm8094, %v8023
      %8108 = vst.msk [vmem:[#allocation2 + $0x68] sm:$0xff] %vm8094, %v8025
      %8109 = vst.msk [vmem:[#allocation2 + $0x70] sm:$0xff] %vm8094, %v8027
      %8110 = vst.msk [vmem:[#allocation2 + $0x78] sm:$0xff] %vm8094, %v8029
      %8111 = vst.msk [vmem:[#allocation2 + $0x80] sm:$0xff] %vm8094, %v8031
      %8112 = vst.msk [vmem:[#allocation2 + $0x88] sm:$0xff] %vm8094, %v8033
      %8113 = vst.msk [vmem:[#allocation2 + $0x90] sm:$0xff] %vm8094, %v8035
      %8114 = vst.msk [vmem:[#allocation2 + $0x98] sm:$0xff] %vm8094, %v8037
      %8115 = vst.msk [vmem:[#allocation2 + $0xa0] sm:$0xff] %vm8094, %v8039
      %8116 = vst.msk [vmem:[#allocation2 + $0xa8] sm:$0xff] %vm8094, %v8041
      %8117 = vst.msk [vmem:[#allocation2 + $0xb0] sm:$0xff] %vm8094, %v8043
      %8118 = vst.msk [vmem:[#allocation2 + $0xb8] sm:$0xff] %vm8094, %v8045
      %8119 = vst.msk [vmem:[#allocation2 + $0xc0] sm:$0xff] %vm8094, %v8047
      %8120 = vst.msk [vmem:[#allocation2 + $0xc8] sm:$0xff] %vm8094, %v8049
      %8121 = vst.msk [vmem:[#allocation2 + $0xd0] sm:$0xff] %vm8094, %v8051
      %8122 = vst.msk [vmem:[#allocation2 + $0xd8] sm:$0xff] %vm8094, %v8053
      %8123 = vst.msk [vmem:[#allocation2 + $0xe0] sm:$0xff] %vm8094, %v8055
      %8124 = vst.msk [vmem:[#allocation2 + $0xe8] sm:$0xff] %vm8094, %v8057
      %8125 = vst.msk [vmem:[#allocation2 + $0xf0] sm:$0xff] %vm8094, %v8059
      %8126 = vst.msk [vmem:[#allocation2 + $0xf8] sm:$0xff] %vm8094, %v8061
      %v8127 = vld [vmem:[#allocation2] sm:$0xff]
      %v8128 = vld [vmem:[#allocation2 + $0x8] sm:$0xff]
      %v8129 = vld [vmem:[#allocation2 + $0x10] sm:$0xff]
      %v8130 = vld [vmem:[#allocation2 + $0x18] sm:$0xff]
      %v8131 = vld [vmem:[#allocation2 + $0x20] sm:$0xff]
      %v8132 = vld [vmem:[#allocation2 + $0x28] sm:$0xff]
      %v8133 = vld [vmem:[#allocation2 + $0x30] sm:$0xff]
      %v8134 = vld [vmem:[#allocation2 + $0x38] sm:$0xff]
      %v8135 = vld [vmem:[#allocation2 + $0x40] sm:$0xff]
      %v8136 = vld [vmem:[#allocation2 + $0x48] sm:$0xff]
      %v8137 = vld [vmem:[#allocation2 + $0x50] sm:$0xff]
      %v8138 = vld [vmem:[#allocation2 + $0x58] sm:$0xff]
      %v8139 = vld [vmem:[#allocation2 + $0x60] sm:$0xff]
      %v8140 = vld [vmem:[#allocation2 + $0x68] sm:$0xff]
      %v8141 = vld [vmem:[#allocation2 + $0x70] sm:$0xff]
      %v8142 = vld [vmem:[#allocation2 + $0x78] sm:$0xff]
      %v8143 = vld [vmem:[#allocation2 + $0x80] sm:$0xff]
      %v8144 = vld [vmem:[#allocation2 + $0x88] sm:$0xff]
      %v8145 = vld [vmem:[#allocation2 + $0x90] sm:$0xff]
      %v8146 = vld [vmem:[#allocation2 + $0x98] sm:$0xff]
      %v8147 = vld [vmem:[#allocation2 + $0xa0] sm:$0xff]
      %v8148 = vld [vmem:[#allocation2 + $0xa8] sm:$0xff]
      %v8149 = vld [vmem:[#allocation2 + $0xb0] sm:$0xff]
      %v8150 = vld [vmem:[#allocation2 + $0xb8] sm:$0xff]
      %v8151 = vld [vmem:[#allocation2 + $0xc0] sm:$0xff]
      %v8152 = vld [vmem:[#allocation2 + $0xc8] sm:$0xff]
      %v8153 = vld [vmem:[#allocation2 + $0xd0] sm:$0xff]
      %v8154 = vld [vmem:[#allocation2 + $0xd8] sm:$0xff]
      %v8155 = vld [vmem:[#allocation2 + $0xe0] sm:$0xff]
      %v8156 = vld [vmem:[#allocation2 + $0xe8] sm:$0xff]
      %v8157 = vld [vmem:[#allocation2 + $0xf0] sm:$0xff]
      %v8158 = vld [vmem:[#allocation2 + $0xf8] sm:$0xff]
      %v8159 = vld [vmem:[%s7] sm:$0xff]
      %v8160 = vld [vmem:[%s7 + $0x8] sm:$0xff]
      %v8161 = vld [vmem:[%s7 + $0x10] sm:$0xff]
      %v8162 = vld [vmem:[%s7 + $0x18] sm:$0xff]
      %v8163 = vld [vmem:[%s8] sm:$0x1]
      %v8165 = vlaneseq
      %v8166 = vshrl.u32 %v8165, 7
      %v8167 = vsub.s32 0, %v8166
      %v8168 = vrot.slane %v8163, %v8167
      %v8171 = vsel %vm384, %v8127, 0
      %v8174 = vsel %vm384, %v8128, 0
      %v8177 = vsel %vm384, %v8129, 0
      %v8180 = vsel %vm384, %v8130, 0
      %v8183 = vsel %vm384, %v8131, 0
      %v8186 = vsel %vm384, %v8132, 0
      %v8189 = vsel %vm384, %v8133, 0
      %v8192 = vsel %vm384, %v8134, 0
      %v8195 = vsel %vm384, %v8135, 0
      %v8198 = vsel %vm384, %v8136, 0
      %v8201 = vsel %vm384, %v8137, 0
      %v8204 = vsel %vm384, %v8138, 0
      %v8207 = vsel %vm384, %v8139, 0
      %v8210 = vsel %vm384, %v8140, 0
      %v8213 = vsel %vm384, %v8141, 0
      %v8216 = vsel %vm384, %v8142, 0
      %v8219 = vsel %vm384, %v8143, 0
      %v8222 = vsel %vm384, %v8144, 0
      %v8225 = vsel %vm384, %v8145, 0
      %v8228 = vsel %vm384, %v8146, 0
      %v8231 = vsel %vm384, %v8147, 0
      %v8234 = vsel %vm384, %v8148, 0
      %v8237 = vsel %vm384, %v8149, 0
      %v8240 = vsel %vm384, %v8150, 0
      %v8243 = vsel %vm384, %v8151, 0
      %v8246 = vsel %vm384, %v8152, 0
      %v8249 = vsel %vm384, %v8153, 0
      %v8252 = vsel %vm384, %v8154, 0
      %v8255 = vsel %vm384, %v8155, 0
      %v8258 = vsel %vm384, %v8156, 0
      %v8261 = vsel %vm384, %v8157, 0
      %v8264 = vsel %vm384, %v8158, 0
      %8266 = vmatprep.subr.mxu0 0.0
      %8267 = vmatpush1.msra.mxu0 %v8159
      %8268 = vmatprep.subr.mxu0 0.0
      %8269 = vmatpush1.msra.mxu0 %v8160
      %8270 = vmatprep.subr.mxu0 0.0
      %8271 = vmatpush1.msra.mxu0 %v8161
      %8272 = vmatprep.subr.mxu0 0.0
      %8273 = vmatpush1.msra.mxu0 %v8162
      %8274 = vmatprep.subr.mxu0 0.0
      %8275 = vmatpush1.msra.mxu0 0.0
      %8276 = vmatprep.subr.mxu0 0.0
      %8277 = vmatpush1.msra.mxu0 0.0
      %8278 = vmatprep.subr.mxu0 0.0
      %8279 = vmatpush1.msra.mxu0 0.0
      %8280 = vmatprep.subr.mxu0 0.0
      %8281 = vmatpush1.msra.mxu0 0.0
      %8282 = vmatprep.subr.mxu0 0.0
      %8283 = vmatpush1.msra.mxu0 0.0
      %8284 = vmatprep.subr.mxu0 0.0
      %8285 = vmatpush1.msra.mxu0 0.0
      %8286 = vmatprep.subr.mxu0 0.0
      %8287 = vmatpush1.msra.mxu0 0.0
      %8288 = vmatprep.subr.mxu0 0.0
      %8289 = vmatpush1.msra.mxu0 0.0
      %8290 = vmatprep.subr.mxu0 0.0
      %8291 = vmatpush1.msra.mxu0 0.0
      %8292 = vmatprep.subr.mxu0 0.0
      %8293 = vmatpush1.msra.mxu0 0.0
      %8294 = vmatprep.subr.mxu0 0.0
      %8295 = vmatpush1.msra.mxu0 0.0
      %8296 = vmatprep.subr.mxu0 0.0
      %8297 = vmatpush1.msra.mxu0 0.0
      %8298 = vmatprep.subr.mxu0 0.0
      %8299 = vmatpush1.msra.mxu0 0.0
      %8300 = vmatprep.subr.mxu0 0.0
      %8301 = vmatpush1.msra.mxu0 0.0
      %8302 = vmatprep.subr.mxu0 0.0
      %8303 = vmatpush1.msra.mxu0 0.0
      %8304 = vmatprep.subr.mxu0 0.0
      %8305 = vmatpush1.msra.mxu0 0.0
      %8306 = vmatprep.subr.mxu0 0.0
      %8307 = vmatpush1.msra.mxu0 0.0
      %8308 = vmatprep.subr.mxu0 0.0
      %8309 = vmatpush1.msra.mxu0 0.0
      %8310 = vmatprep.subr.mxu0 0.0
      %8311 = vmatpush1.msra.mxu0 0.0
      %8312 = vmatprep.subr.mxu0 0.0
      %8313 = vmatpush1.msra.mxu0 0.0
      %8314 = vmatprep.subr.mxu0 0.0
      %8315 = vmatpush1.msra.mxu0 0.0
      %8316 = vmatprep.subr.mxu0 0.0
      %8317 = vmatpush1.msra.mxu0 0.0
      %8318 = vmatprep.subr.mxu0 0.0
      %8319 = vmatpush1.msra.mxu0 0.0
      %8320 = vmatprep.subr.mxu0 0.0
      %8321 = vmatpush1.msra.mxu0 0.0
      %8322 = vmatprep.subr.mxu0 0.0
      %8323 = vmatpush1.msra.mxu0 0.0
      %8324 = vmatprep.subr.mxu0 0.0
      %8325 = vmatpush1.msra.mxu0 0.0
      %8326 = vmatprep.subr.mxu0 0.0
      %8327 = vmatpush1.msra.mxu0 0.0
      %8328 = vmatprep.subr.mxu0 0.0
      %8329 = vmatpush1.msra.mxu0 0.0
      %8330 = vmatprep.mubr.f32.mxu0 0.0
      %8331 = vmatmul.mubr.f32.gmra.mrb[0].mxu0 %v8171
      %v8332 = vpop.f32.mrb[0].mxu0
      %v8333 = vadd.f32 %v8168, %v8332
      %v8334 = vpop.f32.mrb[0].mxu0
      %8335 = vmatprep.mubr.f32.mxu0 0.0
      %8336 = vmatmul.mubr.f32.gmra.mrb[0].mxu0 %v8174
      %v8337 = vpop.f32.mrb[0].mxu0
      %v8338 = vadd.f32 %v8168, %v8337
      %v8339 = vpop.f32.mrb[0].mxu0
      %8340 = vmatprep.mubr.f32.mxu0 0.0
      %8341 = vmatmul.mubr.f32.gmra.mrb[0].mxu0 %v8177
      %v8342 = vpop.f32.mrb[0].mxu0
      %v8343 = vadd.f32 %v8168, %v8342
      %v8344 = vpop.f32.mrb[0].mxu0
      %8345 = vmatprep.mubr.f32.mxu0 0.0
      %8346 = vmatmul.mubr.f32.gmra.mrb[0].mxu0 %v8180
      %v8347 = vpop.f32.mrb[0].mxu0
      %v8348 = vadd.f32 %v8168, %v8347
      %v8349 = vpop.f32.mrb[0].mxu0
      %8350 = vmatprep.mubr.f32.mxu0 0.0
      %8351 = vmatmul.mubr.f32.gmra.mrb[0].mxu0 %v8183
      %v8352 = vpop.f32.mrb[0].mxu0
      %v8353 = vadd.f32 %v8168, %v8352
      %v8354 = vpop.f32.mrb[0].mxu0
      %8355 = vmatprep.mubr.f32.mxu0 0.0
      %8356 = vmatmul.mubr.f32.gmra.mrb[0].mxu0 %v8186
      %v8357 = vpop.f32.mrb[0].mxu0
      %v8358 = vadd.f32 %v8168, %v8357
      %v8359 = vpop.f32.mrb[0].mxu0
      %8360 = vmatprep.mubr.f32.mxu0 0.0
      %8361 = vmatmul.mubr.f32.gmra.mrb[0].mxu0 %v8189
      %v8362 = vpop.f32.mrb[0].mxu0
      %v8363 = vadd.f32 %v8168, %v8362
      %v8364 = vpop.f32.mrb[0].mxu0
      %8365 = vmatprep.mubr.f32.mxu0 0.0
      %8366 = vmatmul.mubr.f32.gmra.mrb[0].mxu0 %v8192
      %v8367 = vpop.f32.mrb[0].mxu0
      %v8368 = vadd.f32 %v8168, %v8367
      %v8369 = vpop.f32.mrb[0].mxu0
      %8370 = vmatprep.mubr.f32.mxu0 0.0
      %8371 = vmatmul.mubr.f32.gmra.mrb[0].mxu0 %v8195
      %v8372 = vpop.f32.mrb[0].mxu0
      %v8373 = vadd.f32 %v8168, %v8372
      %v8374 = vpop.f32.mrb[0].mxu0
      %8375 = vmatprep.mubr.f32.mxu0 0.0
      %8376 = vmatmul.mubr.f32.gmra.mrb[0].mxu0 %v8198
      %v8377 = vpop.f32.mrb[0].mxu0
      %v8378 = vadd.f32 %v8168, %v8377
      %v8379 = vpop.f32.mrb[0].mxu0
      %8380 = vmatprep.mubr.f32.mxu0 0.0
      %8381 = vmatmul.mubr.f32.gmra.mrb[0].mxu0 %v8201
      %v8382 = vpop.f32.mrb[0].mxu0
      %v8383 = vadd.f32 %v8168, %v8382
      %v8384 = vpop.f32.mrb[0].mxu0
      %8385 = vmatprep.mubr.f32.mxu0 0.0
      %8386 = vmatmul.mubr.f32.gmra.mrb[0].mxu0 %v8204
      %v8387 = vpop.f32.mrb[0].mxu0
      %v8388 = vadd.f32 %v8168, %v8387
      %v8389 = vpop.f32.mrb[0].mxu0
      %8390 = vmatprep.mubr.f32.mxu0 0.0
      %8391 = vmatmul.mubr.f32.gmra.mrb[0].mxu0 %v8207
      %v8392 = vpop.f32.mrb[0].mxu0
      %v8393 = vadd.f32 %v8168, %v8392
      %v8394 = vpop.f32.mrb[0].mxu0
      %8395 = vmatprep.mubr.f32.mxu0 0.0
      %8396 = vmatmul.mubr.f32.gmra.mrb[0].mxu0 %v8210
      %v8397 = vpop.f32.mrb[0].mxu0
      %v8398 = vadd.f32 %v8168, %v8397
      %v8399 = vpop.f32.mrb[0].mxu0
      %8400 = vmatprep.mubr.f32.mxu0 0.0
      %8401 = vmatmul.mubr.f32.gmra.mrb[0].mxu0 %v8213
      %v8402 = vpop.f32.mrb[0].mxu0
      %v8403 = vadd.f32 %v8168, %v8402
      %v8404 = vpop.f32.mrb[0].mxu0
      %8405 = vmatprep.mubr.f32.mxu0 0.0
      %8406 = vmatmul.mubr.f32.gmra.mrb[0].mxu0 %v8216
      %v8407 = vpop.f32.mrb[0].mxu0
      %v8408 = vadd.f32 %v8168, %v8407
      %v8409 = vpop.f32.mrb[0].mxu0
      %8410 = vmatprep.mubr.f32.mxu0 0.0
      %8411 = vmatmul.mubr.f32.gmra.mrb[0].mxu0 %v8219
      %v8412 = vpop.f32.mrb[0].mxu0
      %v8413 = vadd.f32 %v8168, %v8412
      %v8414 = vpop.f32.mrb[0].mxu0
      %8415 = vmatprep.mubr.f32.mxu0 0.0
      %8416 = vmatmul.mubr.f32.gmra.mrb[0].mxu0 %v8222
      %v8417 = vpop.f32.mrb[0].mxu0
      %v8418 = vadd.f32 %v8168, %v8417
      %v8419 = vpop.f32.mrb[0].mxu0
      %8420 = vmatprep.mubr.f32.mxu0 0.0
      %8421 = vmatmul.mubr.f32.gmra.mrb[0].mxu0 %v8225
      %v8422 = vpop.f32.mrb[0].mxu0
      %v8423 = vadd.f32 %v8168, %v8422
      %v8424 = vpop.f32.mrb[0].mxu0
      %8425 = vmatprep.mubr.f32.mxu0 0.0
      %8426 = vmatmul.mubr.f32.gmra.mrb[0].mxu0 %v8228
      %v8427 = vpop.f32.mrb[0].mxu0
      %v8428 = vadd.f32 %v8168, %v8427
      %v8429 = vpop.f32.mrb[0].mxu0
      %8430 = vmatprep.mubr.f32.mxu0 0.0
      %8431 = vmatmul.mubr.f32.gmra.mrb[0].mxu0 %v8231
      %v8432 = vpop.f32.mrb[0].mxu0
      %v8433 = vadd.f32 %v8168, %v8432
      %v8434 = vpop.f32.mrb[0].mxu0
      %8435 = vmatprep.mubr.f32.mxu0 0.0
      %8436 = vmatmul.mubr.f32.gmra.mrb[0].mxu0 %v8234
      %v8437 = vpop.f32.mrb[0].mxu0
      %v8438 = vadd.f32 %v8168, %v8437
      %v8439 = vpop.f32.mrb[0].mxu0
      %8440 = vmatprep.mubr.f32.mxu0 0.0
      %8441 = vmatmul.mubr.f32.gmra.mrb[0].mxu0 %v8237
      %v8442 = vpop.f32.mrb[0].mxu0
      %v8443 = vadd.f32 %v8168, %v8442
      %v8444 = vpop.f32.mrb[0].mxu0
      %8445 = vmatprep.mubr.f32.mxu0 0.0
      %8446 = vmatmul.mubr.f32.gmra.mrb[0].mxu0 %v8240
      %v8447 = vpop.f32.mrb[0].mxu0
      %v8448 = vadd.f32 %v8168, %v8447
      %v8449 = vpop.f32.mrb[0].mxu0
      %8450 = vmatprep.mubr.f32.mxu0 0.0
      %8451 = vmatmul.mubr.f32.gmra.mrb[0].mxu0 %v8243
      %v8452 = vpop.f32.mrb[0].mxu0
      %v8453 = vadd.f32 %v8168, %v8452
      %v8454 = vpop.f32.mrb[0].mxu0
      %8455 = vmatprep.mubr.f32.mxu0 0.0
      %8456 = vmatmul.mubr.f32.gmra.mrb[0].mxu0 %v8246
      %v8457 = vpop.f32.mrb[0].mxu0
      %v8458 = vadd.f32 %v8168, %v8457
      %v8459 = vpop.f32.mrb[0].mxu0
      %8460 = vmatprep.mubr.f32.mxu0 0.0
      %8461 = vmatmul.mubr.f32.gmra.mrb[0].mxu0 %v8249
      %v8462 = vpop.f32.mrb[0].mxu0
      %v8463 = vadd.f32 %v8168, %v8462
      %v8464 = vpop.f32.mrb[0].mxu0
      %8465 = vmatprep.mubr.f32.mxu0 0.0
      %8466 = vmatmul.mubr.f32.gmra.mrb[0].mxu0 %v8252
      %v8467 = vpop.f32.mrb[0].mxu0
      %v8468 = vadd.f32 %v8168, %v8467
      %v8469 = vpop.f32.mrb[0].mxu0
      %8470 = vmatprep.mubr.f32.mxu0 0.0
      %8471 = vmatmul.mubr.f32.gmra.mrb[0].mxu0 %v8255
      %v8472 = vpop.f32.mrb[0].mxu0
      %v8473 = vadd.f32 %v8168, %v8472
      %v8474 = vpop.f32.mrb[0].mxu0
      %8475 = vmatprep.mubr.f32.mxu0 0.0
      %8476 = vmatmul.mubr.f32.gmra.mrb[0].mxu0 %v8258
      %v8477 = vpop.f32.mrb[0].mxu0
      %v8478 = vadd.f32 %v8168, %v8477
      %v8479 = vpop.f32.mrb[0].mxu0
      %8480 = vmatprep.mubr.f32.mxu0 0.0
      %8481 = vmatmul.mubr.f32.gmra.mrb[0].mxu0 %v8261
      %v8482 = vpop.f32.mrb[0].mxu0
      %v8483 = vadd.f32 %v8168, %v8482
      %v8484 = vpop.f32.mrb[0].mxu0
      %8485 = vmatprep.mubr.f32.mxu0 0.0
      %8486 = vmatmul.mubr.f32.gmra.mrb[0].mxu0 %v8264
      %v8487 = vpop.f32.mrb[0].mxu0
      %v8488 = vadd.f32 %v8168, %v8487
      %v8489 = vpop.f32.mrb[0].mxu0
      %8490 = vdwg.mxu0
      %8491 = vst.msk [vmem:[%s339] sm:$0xff] %vm384, %v8333
      %8492 = vst.msk [vmem:[%s339 + $0x8] sm:$0xff] %vm384, %v8338
      %8493 = vst.msk [vmem:[%s339 + $0x10] sm:$0xff] %vm384, %v8343
      %8494 = vst.msk [vmem:[%s339 + $0x18] sm:$0xff] %vm384, %v8348
      %8495 = vst.msk [vmem:[%s339 + $0x20] sm:$0xff] %vm384, %v8353
      %8496 = vst.msk [vmem:[%s339 + $0x28] sm:$0xff] %vm384, %v8358
      %8497 = vst.msk [vmem:[%s339 + $0x30] sm:$0xff] %vm384, %v8363
      %8498 = vst.msk [vmem:[%s339 + $0x38] sm:$0xff] %vm384, %v8368
      %8499 = vst.msk [vmem:[%s339 + $0x40] sm:$0xff] %vm384, %v8373
      %8500 = vst.msk [vmem:[%s339 + $0x48] sm:$0xff] %vm384, %v8378
      %8501 = vst.msk [vmem:[%s339 + $0x50] sm:$0xff] %vm384, %v8383
      %8502 = vst.msk [vmem:[%s339 + $0x58] sm:$0xff] %vm384, %v8388
      %8503 = vst.msk [vmem:[%s339 + $0x60] sm:$0xff] %vm384, %v8393
      %8504 = vst.msk [vmem:[%s339 + $0x68] sm:$0xff] %vm384, %v8398
      %8505 = vst.msk [vmem:[%s339 + $0x70] sm:$0xff] %vm384, %v8403
      %8506 = vst.msk [vmem:[%s339 + $0x78] sm:$0xff] %vm384, %v8408
      %8507 = vst.msk [vmem:[%s339 + $0x80] sm:$0xff] %vm384, %v8413
      %8508 = vst.msk [vmem:[%s339 + $0x88] sm:$0xff] %vm384, %v8418
      %8509 = vst.msk [vmem:[%s339 + $0x90] sm:$0xff] %vm384, %v8423
      %8510 = vst.msk [vmem:[%s339 + $0x98] sm:$0xff] %vm384, %v8428
      %8511 = vst.msk [vmem:[%s339 + $0xa0] sm:$0xff] %vm384, %v8433
      %8512 = vst.msk [vmem:[%s339 + $0xa8] sm:$0xff] %vm384, %v8438
      %8513 = vst.msk [vmem:[%s339 + $0xb0] sm:$0xff] %vm384, %v8443
      %8514 = vst.msk [vmem:[%s339 + $0xb8] sm:$0xff] %vm384, %v8448
      %8515 = vst.msk [vmem:[%s339 + $0xc0] sm:$0xff] %vm384, %v8453
      %8516 = vst.msk [vmem:[%s339 + $0xc8] sm:$0xff] %vm384, %v8458
      %8517 = vst.msk [vmem:[%s339 + $0xd0] sm:$0xff] %vm384, %v8463
      %8518 = vst.msk [vmem:[%s339 + $0xd8] sm:$0xff] %vm384, %v8468
      %8519 = vst.msk [vmem:[%s339 + $0xe0] sm:$0xff] %vm384, %v8473
      %8520 = vst.msk [vmem:[%s339 + $0xe8] sm:$0xff] %vm384, %v8478
      %8521 = vst.msk [vmem:[%s339 + $0xf0] sm:$0xff] %vm384, %v8483
      %8522 = vst.msk [vmem:[%s339 + $0xf8] sm:$0xff] %vm384, %v8488
      %s8523 = smul.u32 4, %s20
      %p8524 = scmp.lt.s32.totalorder %s8523, 7
      %s8525 = scalar_select %p8524, %s8523, 7
      %s8526 = smul.addr %s8525, 8
      %s8527 = smul.addr %s8526, 8
      %s8528 = scalar_lea.vmem %s9, %s8527
      // Predicated region
      $region57: #{tpu_custom_call.1} parent=55 // pred_check
        %p8529 = pneg %p232
      $region58: #{tpu_custom_call.1} parent=55 // pred_check_branch
        %8531 = sbr.rel (%p8529) target = $region60
      $region59: #{tpu_custom_call.1} parent=55 // pred_region
        %s8532 = smul.u32 4, %s20
      $region60: #{tpu_custom_call.1} parent=55 // pred_fallthru
        _
    $region56: #{tpu_custom_call.1} parent=5 // pred_fallthru
      _
    %p8533 = scmp.le.s32.totalorder 2, %s15
    // Predicated region
    $region61: #{tpu_custom_call.1} parent=5 // pred_check
      %p8534 = pneg %p8533
    $region62: #{tpu_custom_call.1} parent=5 // pred_check_branch
      %8536 = sbr.rel (%p8534) target = $region64
    $region63: #{tpu_custom_call.1} parent=5 // pred_region
      %s8537 = ssub.s32 %s15, 2
      // Predicated region
      $region65: #{tpu_custom_call.1} parent=63 // pred_check
        %p8538 = pneg %p238
      $region66: #{tpu_custom_call.1} parent=63 // pred_check_branch
        %8540 = sbr.rel (%p8538) target = $region68
      $region67: #{tpu_custom_call.1} parent=63 // pred_region
        %s8541 = smul.u32 4, %s21
        %p8542 = scmp.lt.s32.totalorder %s8541, 7
        %s8543 = scalar_select %p8542, %s8541, 7
        %s8544 = smul.addr %s8543, 8
        %s8545 = smul.addr %s8544, 8
        %s8546 = scalar_lea.vmem %s9, %s8545
      $region68: #{tpu_custom_call.1} parent=63 // pred_fallthru
        _
    $region64: #{tpu_custom_call.1} parent=5 // pred_fallthru
      _
  $region6: #{tpu_custom_call.1} parent=0 // loop_footer
    %s19 = sadd.s32 1, %s15
  $region7: #{tpu_custom_call.1} parent=0 // loop_footer_branch
    %14 = sbr.rel target = $region3
  $region8: #{tpu_custom_call.1} parent=0 // loop_exit
    _

</llo_original>
